<compile_context>
chip_gen: v6e
topology: v6e:2x2x1
jax: 0.10.0
libtpu: 0.0.40
codegen_flags: <defaults>
</compile_context>

<pallas_src>
import functools

import jax
import jax.numpy as jnp
from jax import lax
from jax.experimental import pallas as pl
from jax.experimental.pallas import tpu as pltpu


# ------------------------------ device helpers -------------------------------

@functools.lru_cache(maxsize=1)
def _has_two_tensorcores() -> bool:
    """v7x has 2 TensorCores per chip; v5e/v6e have 1."""
    try:
        kind = jax.devices()[0].device_kind.lower()
    except Exception:
        return False
    return ("v7" in kind) or ("tpu7" in kind) or ("7x" in kind)


# -------------------- Pallas kernel 1: fused 1x1 conv stage ------------------
# t = BN_a(conv1x1_a(xa)) + BN_b(conv1x1_b(xb))  ==  xa @ Wa + xb @ Wb + bias

def stage_matmul_kernel(xa_ref, xb_ref, wa_ref, wb_ref, b_ref, o_ref):
    # bf16 cast done in-kernel (no HBM round trip for a cast copy),
    # f32 accumulation on the MXU.
    acc = jnp.dot(xa_ref[...].astype(jnp.bfloat16), wa_ref[...],
                  preferred_element_type=jnp.float32)
    acc = acc + jnp.dot(xb_ref[...].astype(jnp.bfloat16), wb_ref[...],
                        preferred_element_type=jnp.float32)
    o_ref[...] = (acc + b_ref[...]).astype(o_ref.dtype)


def fused_stage(xa_up, xb, wa, wb, bias):
    """xa_up: (B,H,W,Ca) f32, xb: (B,H,W,Cb) f32 at the same spatial size.
    wa: (Ca,Cout) bf16, wb: (Cb,Cout) bf16 (BN scales folded); bias: (1,Cout) f32.
    Returns (B,H,W,Cout) f32."""
    B, H, W, Ca = xa_up.shape
    Cb = xb.shape[-1]
    Cout = wa.shape[-1]
    M = B * H * W
    xa = xa_up.reshape(M, Ca)            # free views; batch folded into matmul M
    xbf = xb.reshape(M, Cb)
    # split only where a second TensorCore exists (v7x); on v5e/v6e a 2-way
    # "parallel" grid is just a serial loop with per-step overhead.
    n_split = 2 if (_has_two_tensorcores() and M % 16 == 0) else 1
    tm = M // n_split
    out = pl.pallas_call(
        stage_matmul_kernel,
        out_shape=jax.ShapeDtypeStruct((M, Cout), jnp.float32),
        grid=(n_split,),
        in_specs=[
            pl.BlockSpec((tm, Ca), lambda i: (i, 0)),
            pl.BlockSpec((tm, Cb), lambda i: (i, 0)),
            pl.BlockSpec((Ca, Cout), lambda i: (0, 0)),
            pl.BlockSpec((Cb, Cout), lambda i: (0, 0)),
            pl.BlockSpec((1, Cout), lambda i: (0, 0)),
        ],
        out_specs=pl.BlockSpec((tm, Cout), lambda i: (i, 0)),
        compiler_params=pltpu.CompilerParams(
            dimension_semantics=("parallel",)),
    )(xa, xbf, wa, wb, bias)
    return out.reshape(B, H, W, Cout)


# ------------- Pallas kernel 2: fused result1 (3x3) + result (3x3) -----------

_OFF = 8    # sublane-aligned halo offset inside the padded VMEM scratches
_CH = 8     # output rows per inner chunk  TODO(synk): sweep 8 vs 16 at real H


def fused_head_kernel(x_ref, w1_ref, b1_ref, w2_ref, b2_ref,
                      o1_ref, o2_ref, xpad, ypad):
    """result  = conv3x3(x; w1) + b1   (BasicConv2d, BN folded)
       resultmap = conv3x3(result; w2) + b2   (plain Conv2d with bias)

    x_ref : (1, H, W, C1) f32     w1_ref: (9*C1, 64) bf16    b1_ref: (1, 64) f32
    w2_ref: (9, 64) f32           b2_ref: (1, 1) f32
    o1_ref: (1, H, W, 64) f32     o2_ref: (1, H, W) f32  (lane-dense map)
    xpad  : (H+2, W+2*_OFF, C1) bf16    ypad: (H+2, W+2*_OFF, 64) bf16  (VMEM)
    """
    _, H, W, C1 = x_ref.shape
    PW = W + 2 * _OFF

    # --- zero ONLY the halo frame: two aligned 8-wide column strips covering
    # the read columns _OFF-1 and _OFF+W, plus the top/bottom interior rows.
    # (Re-done per grid step so it is correct even if the batch axis is split
    # across cores; it is tiny compared to full-scratch zeroing.)
    xpad[:, 0:_OFF, :] = jnp.zeros((H + 2, _OFF, C1), xpad.dtype)
    xpad[:, _OFF + W:PW, :] = jnp.zeros((H + 2, _OFF, C1), xpad.dtype)
    xpad[0:1, _OFF:_OFF + W, :] = jnp.zeros((1, W, C1), xpad.dtype)
    xpad[H + 1:H + 2, _OFF:_OFF + W, :] = jnp.zeros((1, W, C1), xpad.dtype)
    ypad[:, 0:_OFF, :] = jnp.zeros((H + 2, _OFF, 64), ypad.dtype)
    ypad[:, _OFF + W:PW, :] = jnp.zeros((H + 2, _OFF, 64), ypad.dtype)
    ypad[0:1, _OFF:_OFF + W, :] = jnp.zeros((1, W, 64), ypad.dtype)
    ypad[H + 1:H + 2, _OFF:_OFF + W, :] = jnp.zeros((1, W, 64), ypad.dtype)

    # interior: fully aligned store at the halo offset, bf16 for the MXU
    xpad[1:H + 1, _OFF:_OFF + W, :] = x_ref[0, :, :, :].astype(jnp.bfloat16)

    # hoisted loop invariants (JAX does not CSE per-tap loads/broadcasts)
    w1 = w1_ref[...]                                       # (9*C1, 64) bf16
    b1 = b1_ref[...]                                       # (1, 64) f32
    w2_taps = [w2_ref[t].reshape(1, 1, 64) for t in range(9)]
    b2 = b2_ref[...]                                       # (1, 1) f32

    n_chunks = H // _CH

    # ---- conv1: 3x3, C1 -> 64 as ONE im2col matmul per chunk (K = 9*C1) ----
    def conv1_chunk(i, carry):
        h0 = pl.multiple_of(i * _CH, _CH)
        slabs = []
        for dh in range(3):                                # tap loop unrolled
            for dw in range(3):
                s = xpad[pl.ds(h0 + dh, _CH),
                         _OFF - 1 + dw:_OFF - 1 + dw + W, :]
                slabs.append(s.reshape(_CH * W, C1))
        patch = jnp.concatenate(slabs, axis=-1)            # (_CH*W, 9*C1) bf16
        y = (jnp.dot(patch, w1, preferred_element_type=jnp.float32)
             + b1).reshape(_CH, W, 64)
        o1_ref[0, pl.ds(h0, _CH), :, :] = y
        # the 64-channel intermediate never leaves VMEM
        ypad[pl.ds(1 + h0, _CH), _OFF:_OFF + W, :] = y.astype(jnp.bfloat16)
        return carry

    lax.fori_loop(0, n_chunks, conv1_chunk, 0)

    # ---- conv2: 3x3, 64 -> 1 (+bias): VPU accumulate, ONE lane reduce/chunk ----
    def conv2_chunk(i, carry):
        h0 = pl.multiple_of(i * _CH, _CH)
        acc = jnp.zeros((_CH, W, 64), jnp.float32)
        for dh in range(3):
            for dw in range(3):
                slab = ypad[pl.ds(h0 + dh, _CH),
                            _OFF - 1 + dw:_OFF - 1 + dw + W, :]
                acc = acc + slab.astype(jnp.float32) * w2_taps[dh * 3 + dw]
        o2_ref[0, pl.ds(h0, _CH), :] = jnp.sum(acc, axis=-1) + b2
        return carry

    lax.fori_loop(0, n_chunks, conv2_chunk, 0)


def fused_head(x, w1, b1, w2, b2):
    """x: (B,H,W,C1) f32 -> (result (B,H,W,64) f32, resultmap (B,H,W) f32)."""
    B, H, W, C1 = x.shape
    assert H % _CH == 0 and W % 8 == 0   # TODO(synk): remainder path for real sizes
    PW = W + 2 * _OFF
    return pl.pallas_call(
        fused_head_kernel,
        out_shape=(jax.ShapeDtypeStruct((B, H, W, 64), jnp.float32),
                   jax.ShapeDtypeStruct((B, H, W), jnp.float32)),
        grid=(B,),
        in_specs=[
            pl.BlockSpec((1, H, W, C1), lambda b: (b, 0, 0, 0)),
            pl.BlockSpec((9 * C1, 64), lambda b: (0, 0)),
            pl.BlockSpec((1, 64), lambda b: (0, 0)),
            pl.BlockSpec((9, 64), lambda b: (0, 0)),
            pl.BlockSpec((1, 1), lambda b: (0, 0)),
        ],
        out_specs=(pl.BlockSpec((1, H, W, 64), lambda b: (b, 0, 0, 0)),
                   pl.BlockSpec((1, H, W), lambda b: (b, 0, 0))),
        scratch_shapes=[pltpu.VMEM((H + 2, PW, C1), jnp.bfloat16),
                        pltpu.VMEM((H + 2, PW, 64), jnp.bfloat16)],
        compiler_params=pltpu.CompilerParams(
            dimension_semantics=("parallel",),
            vmem_limit_bytes=32 * 1024 * 1024),
    )(x, w1, b1, w2, b2)


# --------------------- bilinear resize (align_corners=True) ------------------
# Pure linear resampling glue (no channel mixing); kept in plain JAX.

def _interp_matrix(out_size, in_size):
    if out_size == 1:
        coords = jnp.zeros((1,), jnp.float32)
    else:
        coords = (jnp.arange(out_size, dtype=jnp.float32)
                  * (in_size - 1) / (out_size - 1))
    lo = jnp.floor(coords).astype(jnp.int32)
    hi = jnp.minimum(lo + 1, in_size - 1)
    frac = coords - lo.astype(jnp.float32)
    m = jnp.zeros((out_size, in_size), jnp.float32)
    m = m.at[jnp.arange(out_size), lo].add(1.0 - frac)
    m = m.at[jnp.arange(out_size), hi].add(frac)
    return m


def resize_bilinear_align_corners(x, out_hw):
    """(B,H,W,C) -> (B,Ho,Wo,C); matches F.interpolate(..., 'bilinear', align_corners=True)."""
    _, H, W, _ = x.shape
    Ho, Wo = out_hw
    Ah = _interp_matrix(Ho, H)
    Aw = _interp_matrix(Wo, W)
    return jnp.einsum('oh,bhwc,pw->bopc', Ah, x, Aw)


# ----------------------------- parameter setup -------------------------------

def _bn_scale_bias(key, c):
    kg, kb, km, kv = jax.random.split(key, 4)
    gamma = 1.0 + 0.1 * jax.random.normal(kg, (c,), jnp.float32)
    beta = 0.1 * jax.random.normal(kb, (c,), jnp.float32)
    mean = 0.1 * jax.random.normal(km, (c,), jnp.float32)
    var = 1.0 + 0.1 * jnp.abs(jax.random.normal(kv, (c,), jnp.float32))
    scale = gamma / jnp.sqrt(var + 1e-5)
    bias = beta - mean * scale
    return scale, bias


def _folded_1x1(key, cin, cout):
    kw, kbn = jax.random.split(key)
    w = 0.1 * jax.random.normal(kw, (cin, cout), jnp.float32)
    s, b = _bn_scale_bias(kbn, cout)
    return w * s[None, :], b                       # (cin, cout), (cout,)


def _folded_3x3(key, cin, cout):
    kw, kbn = jax.random.split(key)
    w = 0.1 * jax.random.normal(kw, (3, 3, cin, cout), jnp.float32)
    s, b = _bn_scale_bias(kbn, cout)
    return (w * s[None, None, None, :]).reshape(9, cin, cout), b


def init_params(key, c1, c2, c3, c4):
    ks = jax.random.split(key, 8)
    wBM4, bBM4 = _folded_1x1(ks[0], c4, c3)
    wBM3, bBM3 = _folded_1x1(ks[1], c3, c2)
    wBM2, bBM2 = _folded_1x1(ks[2], c2, c1)
    wFM3, bFM3 = _folded_1x1(ks[3], c3, c3)
    wFM2, bFM2 = _folded_1x1(ks[4], c2, c2)
    wFM1, bFM1 = _folded_1x1(ks[5], c1, c1)

    def stage(wa, ba, wb, bb):
        # two bf16 weight slices (no host-side activation concat) + summed f32 bias
        return (wa.astype(jnp.bfloat16), wb.astype(jnp.bfloat16),
                (ba + bb).reshape(1, -1).astype(jnp.float32))

    p = {
        'S3': stage(wBM4, bBM4, wFM3, bFM3),   # BM4(x4^) + FM3(x3) : (64,32)+(32,32) -> 32
        'S2': stage(wBM3, bBM3, wFM2, bFM2),   # BM3 + FM2
        'S1': stage(wBM2, bBM2, wFM1, bFM1),   # BM2 + FM1
    }
    # result1: BasicConv2d(c1, 64, 3, padding=1) -> BN folded, im2col layout
    w1, b1 = _folded_3x3(ks[6], c1, 64)                    # (9, c1, 64), (64,)
    # result: plain nn.Conv2d(64, 1, 3, padding=1) with bias, no BN
    kw, kb = jax.random.split(ks[7])
    w2 = 0.1 * jax.random.normal(kw, (3, 3, 64, 1), jnp.float32)
    b2 = 0.1 * jax.random.normal(kb, (1, 1), jnp.float32)
    p['HEAD'] = (w1.reshape(9 * c1, 64).astype(jnp.bfloat16),   # (9*c1, 64) bf16
                 b1.reshape(1, 64).astype(jnp.float32),
                 w2.reshape(9, 64).astype(jnp.float32),         # per-tap rows
                 b2)
    return p


# ------------------------------- forward pass --------------------------------

def decoder_resf_forward(params, x1, x2, x3, x4):
    """Inputs NHWC: x1 (B,H1,W1,c1), x2 (B,H2,W2,c2), x3 (B,H3,W3,c3), x4 (B,H4,W4,c4)."""
    p = params
    x4u = resize_bilinear_align_corners(x4, x3.shape[1:3])
    t3 = fused_stage(x4u, x3, *p['S3'])                 # BM4(x4^) + FM3(x3)
    t3u = resize_bilinear_align_corners(t3, x2.shape[1:3])
    t2 = fused_stage(t3u, x2, *p['S2'])                 # BM3 + FM2
    t2u = resize_bilinear_align_corners(t2, x1.shape[1:3])
    t1 = fused_stage(t2u, x1, *p['S1'])                 # BM2 + FM1
    t1u = resize_bilinear_align_corners(
        t1, (2 * x1.shape[1], 2 * x1.shape[2]))         # self.upsample (2x, align_corners)
    result, rmap = fused_head(t1u, *p['HEAD'])          # result1 + result, fused
    return result, rmap[..., None]                      # (B,H,W,64), (B,H,W,1)


# --------------------- pure-JAX reference (same folded weights) ---------------

def ref_decoder_resf_forward(params, x1, x2, x3, x4):
    p = params

    def stage(xa, xb, wa, wb, b):
        B, H, W, _ = xa.shape
        y = (xa.reshape(-1, xa.shape[-1]) @ wa.astype(jnp.float32)
             + xb.reshape(-1, xb.shape[-1]) @ wb.astype(jnp.float32) + b)
        return y.reshape(B, H, W, -1)

    x4u = resize_bilinear_align_corners(x4, x3.shape[1:3])
    t3 = stage(x4u, x3, *p['S3'])
    t3u = resize_bilinear_align_corners(t3, x2.shape[1:3])
    t2 = stage(t3u, x2, *p['S2'])
    t2u = resize_bilinear_align_corners(t2, x1.shape[1:3])
    t1 = stage(t2u, x1, *p['S1'])
    t1u = resize_bilinear_align_corners(t1, (2 * x1.shape[1], 2 * x1.shape[2]))

    w1, b1, w2, b2 = p['HEAD']
    C1 = x1.shape[-1]
    w1hw = w1.astype(jnp.float32).reshape(3, 3, C1, 64)
    r1 = lax.conv_general_dilated(
        t1u, w1hw, window_strides=(1, 1), padding='SAME',
        dimension_numbers=('NHWC', 'HWIO', 'NHWC')) + b1.reshape(1, 1, 1, 64)
    w2hw = w2.reshape(3, 3, 64, 1)
    rmap = lax.conv_general_dilated(
        r1, w2hw, window_strides=(1, 1), padding='SAME',
        dimension_numbers=('NHWC', 'HWIO', 'NHWC')) + b2[0, 0]
    return r1, rmap


# ----------------------------------- main -------------------------------------

if __name__ == "__main__":
    c1, c2, c3, c4 = 8, 16, 32, 64
    B = 2
    key = jax.random.PRNGKey(0)
    k1, k2, k3, k4 = jax.random.split(key, 4)
    # Backbone features (deeper layer -> smaller spatial / more channels), NHWC.
    x1 = jax.random.normal(k1, (B, 16, 16, c1), jnp.float32)
    x2 = jax.random.normal(k2, (B, 8, 8, c2), jnp.float32)
    x3 = jax.random.normal(k3, (B, 4, 4, c3), jnp.float32)
    x4 = jax.random.normal(k4, (B, 2, 2, c4), jnp.float32)

    params = init_params(jax.random.PRNGKey(42), c1, c2, c3, c4)

    fwd = jax.jit(decoder_resf_forward)
    result, resultmap = fwd(params, x1, x2, x3, x4)
    jax.block_until_ready((result, resultmap))

    assert result.shape == (B, 32, 32, 64), result.shape
    assert resultmap.shape == (B, 32, 32, 1), resultmap.shape
    assert bool(jnp.all(jnp.isfinite(result))) and bool(jnp.all(jnp.isfinite(resultmap)))

    # correctness vs pure-JAX f32 reference using the SAME folded weights
    # (tolerances account for bf16 activation / intermediate quantization).
    ref_res, ref_map = jax.jit(ref_decoder_resf_forward)(params, x1, x2, x3, x4)
    err1 = float(jnp.max(jnp.abs(result - ref_res)))
    err2 = float(jnp.max(jnp.abs(resultmap - ref_map)))
    assert err1 < 0.1 and err2 < 0.3, (err1, err2)

    print("KERNEL_OK")
</pallas_src>

<mosaic_0001>
module attributes {stable_mosaic.version = 11 : i64} {
  func.func private @main(%arg0: i32) attributes {dimension_semantics = [#tpu.dimension_semantics<core_parallel>], iteration_bounds = array<i64: 2>, tpu.core_type = #tpu.core_type<sc_scalar_subcore>, window_params = []} {
    return
  }
}

module attributes {stable_mosaic.version = 11 : i64} {
  func.func private @main(%arg0: i32) attributes {dimension_semantics = [#tpu.dimension_semantics<core_parallel>], iteration_bounds = array<i64: 2>, tpu.core_type = #tpu.core_type<sc_scalar_subcore>, window_params = []} {
    return
  }
}

module attributes {stable_mosaic.version = 11 : i64} {
  func.func @stage_matmul_kernel(%arg0: i32, %arg1: memref<32x64xf32, #tpu.memory_space<vmem>>, %arg2: memref<32x32xf32, #tpu.memory_space<vmem>>, %arg3: memref<64x32xbf16, #tpu.memory_space<vmem>>, %arg4: memref<32x32xbf16, #tpu.memory_space<vmem>>, %arg5: memref<1x32xf32, #tpu.memory_space<vmem>>, %arg6: memref<32x32xf32, #tpu.memory_space<vmem>>) attributes {dimension_semantics = [#tpu.dimension_semantics<parallel>], iteration_bounds = array<i64: 1>, scalar_prefetch = 0 : i64, scratch_operands = 0 : i64, tpu.core_type = #tpu.core_type<tc>, window_params = [{transform_indices = @transform_0, window_bounds = array<i64: 32, 64>}, {transform_indices = @transform_1, window_bounds = array<i64: 32, 32>}, {pipeline_mode = #tpu.pipeline_mode<synchronous>, transform_indices = @transform_2, window_bounds = array<i64: 64, 32>}, {pipeline_mode = #tpu.pipeline_mode<synchronous>, transform_indices = @transform_3, window_bounds = array<i64: 32, 32>}, {pipeline_mode = #tpu.pipeline_mode<synchronous>, transform_indices = @transform_4, window_bounds = array<i64: 1, 32>}, {transform_indices = @transform_5, window_bounds = array<i64: 32, 32>}]} {
    %c0 = arith.constant 0 : index
    %c0_0 = arith.constant 0 : index
    %0 = vector.load %arg1[%c0, %c0_0] : memref<32x64xf32, #tpu.memory_space<vmem>>, vector<32x64xf32>
    %1 = arith.truncf %0 : vector<32x64xf32> to vector<32x64xbf16>
    %c0_1 = arith.constant 0 : index
    %c0_2 = arith.constant 0 : index
    %2 = vector.load %arg3[%c0_1, %c0_2] : memref<64x32xbf16, #tpu.memory_space<vmem>>, vector<64x32xbf16>
    %cst = arith.constant dense<0.000000e+00> : vector<32x32xf32>
    %3 = tpu.matmul %1, %2, %cst {dimension_numbers = #tpu.dot_dimension_numbers<[1], [0], [0], [1], [0, 0, 1, 1], [], []>} : vector<32x64xbf16>, vector<64x32xbf16>, vector<32x32xf32> -> vector<32x32xf32>
    %c0_3 = arith.constant 0 : index
    %c0_4 = arith.constant 0 : index
    %4 = vector.load %arg2[%c0_3, %c0_4] : memref<32x32xf32, #tpu.memory_space<vmem>>, vector<32x32xf32>
    %5 = arith.truncf %4 : vector<32x32xf32> to vector<32x32xbf16>
    %c0_5 = arith.constant 0 : index
    %c0_6 = arith.constant 0 : index
    %6 = vector.load %arg4[%c0_5, %c0_6] : memref<32x32xbf16, #tpu.memory_space<vmem>>, vector<32x32xbf16>
    %cst_7 = arith.constant dense<0.000000e+00> : vector<32x32xf32>
    %7 = tpu.matmul %5, %6, %cst_7 {dimension_numbers = #tpu.dot_dimension_numbers<[1], [0], [0], [1], [0, 0, 1, 1], [], []>} : vector<32x32xbf16>, vector<32x32xbf16>, vector<32x32xf32> -> vector<32x32xf32>
    %8 = arith.addf %3, %7 : vector<32x32xf32>
    %c0_8 = arith.constant 0 : index
    %c0_9 = arith.constant 0 : index
    %9 = vector.load %arg5[%c0_8, %c0_9] : memref<1x32xf32, #tpu.memory_space<vmem>>, vector<1x32xf32>
    %10 = vector.broadcast %9 : vector<1x32xf32> to vector<32x32xf32>
    %11 = arith.addf %8, %10 : vector<32x32xf32>
    %c0_10 = arith.constant 0 : index
    %c0_11 = arith.constant 0 : index
    %12 = vector.load %arg6[%c0_10, %c0_11] : memref<32x32xf32, #tpu.memory_space<vmem>>, vector<32x32xf32>
    tpu.vector_store %arg6[%c0_10, %c0_11], %11 {strides = array<i32>} : memref<32x32xf32, #tpu.memory_space<vmem>>, vector<32x32xf32>,
    return
  }
  func.func @transform_0(%arg0: i32) -> (i32, i32) {
    %c0_i32 = arith.constant 0 : i32
    %c0_i32_0 = arith.constant 0 : i32
    return %arg0, %c0_i32 : i32, i32
  }
  func.func @transform_1(%arg0: i32) -> (i32, i32) {
    %c0_i32 = arith.constant 0 : i32
    %c0_i32_0 = arith.constant 0 : i32
    return %arg0, %c0_i32 : i32, i32
  }
  func.func @transform_2(%arg0: i32) -> (i32, i32) {
    %c0_i32 = arith.constant 0 : i32
    %c0_i32_0 = arith.constant 0 : i32
    %c0_i32_1 = arith.constant 0 : i32
    return %c0_i32, %c0_i32_0 : i32, i32
  }
  func.func @transform_3(%arg0: i32) -> (i32, i32) {
    %c0_i32 = arith.constant 0 : i32
    %c0_i32_0 = arith.constant 0 : i32
    %c0_i32_1 = arith.constant 0 : i32
    return %c0_i32, %c0_i32_0 : i32, i32
  }
  func.func @transform_4(%arg0: i32) -> (i32, i32) {
    %c0_i32 = arith.constant 0 : i32
    %c0_i32_0 = arith.constant 0 : i32
    %c0_i32_1 = arith.constant 0 : i32
    return %c0_i32, %c0_i32_0 : i32, i32
  }
  func.func @transform_5(%arg0: i32) -> (i32, i32) {
    %c0_i32 = arith.constant 0 : i32
    %c0_i32_0 = arith.constant 0 : i32
    return %arg0, %c0_i32 : i32, i32
  }
}

module attributes {stable_mosaic.version = 11 : i64} {
  func.func @stage_matmul_kernel(%arg0: i32, %arg1: memref<128x32xf32, #tpu.memory_space<vmem>>, %arg2: memref<128x16xf32, #tpu.memory_space<vmem>>, %arg3: memref<32x16xbf16, #tpu.memory_space<vmem>>, %arg4: memref<16x16xbf16, #tpu.memory_space<vmem>>, %arg5: memref<1x16xf32, #tpu.memory_space<vmem>>, %arg6: memref<128x16xf32, #tpu.memory_space<vmem>>) attributes {dimension_semantics = [#tpu.dimension_semantics<parallel>], iteration_bounds = array<i64: 1>, scalar_prefetch = 0 : i64, scratch_operands = 0 : i64, tpu.core_type = #tpu.core_type<tc>, window_params = [{transform_indices = @transform_0, window_bounds = array<i64: 128, 32>}, {transform_indices = @transform_1, window_bounds = array<i64: 128, 16>}, {pipeline_mode = #tpu.pipeline_mode<synchronous>, transform_indices = @transform_2, window_bounds = array<i64: 32, 16>}, {pipeline_mode = #tpu.pipeline_mode<synchronous>, transform_indices = @transform_3, window_bounds = array<i64: 16, 16>}, {pipeline_mode = #tpu.pipeline_mode<synchronous>, transform_indices = @transform_4, window_bounds = array<i64: 1, 16>}, {transform_indices = @transform_5, window_bounds = array<i64: 128, 16>}]} {
    %c0 = arith.constant 0 : index
    %c0_0 = arith.constant 0 : index
    %0 = vector.load %arg1[%c0, %c0_0] : memref<128x32xf32, #tpu.memory_space<vmem>>, vector<128x32xf32>
    %1 = arith.truncf %0 : vector<128x32xf32> to vector<128x32xbf16>
    %c0_1 = arith.constant 0 : index
    %c0_2 = arith.constant 0 : index
    %2 = vector.load %arg3[%c0_1, %c0_2] : memref<32x16xbf16, #tpu.memory_space<vmem>>, vector<32x16xbf16>
    %cst = arith.constant dense<0.000000e+00> : vector<128x16xf32>
    %3 = tpu.matmul %1, %2, %cst {dimension_numbers = #tpu.dot_dimension_numbers<[1], [0], [0], [1], [0, 0, 1, 1], [], []>} : vector<128x32xbf16>, vector<32x16xbf16>, vector<128x16xf32> -> vector<128x16xf32>
    %c0_3 = arith.constant 0 : index
    %c0_4 = arith.constant 0 : index
    %4 = vector.load %arg2[%c0_3, %c0_4] : memref<128x16xf32, #tpu.memory_space<vmem>>, vector<128x16xf32>
    %5 = arith.truncf %4 : vector<128x16xf32> to vector<128x16xbf16>
    %c0_5 = arith.constant 0 : index
    %c0_6 = arith.constant 0 : index
    %6 = vector.load %arg4[%c0_5, %c0_6] : memref<16x16xbf16, #tpu.memory_space<vmem>>, vector<16x16xbf16>
    %cst_7 = arith.constant dense<0.000000e+00> : vector<128x16xf32>
    %7 = tpu.matmul %5, %6, %cst_7 {dimension_numbers = #tpu.dot_dimension_numbers<[1], [0], [0], [1], [0, 0, 1, 1], [], []>} : vector<128x16xbf16>, vector<16x16xbf16>, vector<128x16xf32> -> vector<128x16xf32>
    %8 = arith.addf %3, %7 : vector<128x16xf32>
    %c0_8 = arith.constant 0 : index
    %c0_9 = arith.constant 0 : index
    %9 = vector.load %arg5[%c0_8, %c0_9] : memref<1x16xf32, #tpu.memory_space<vmem>>, vector<1x16xf32>
    %10 = vector.broadcast %9 : vector<1x16xf32> to vector<128x16xf32>
    %11 = arith.addf %8, %10 : vector<128x16xf32>
    %c0_10 = arith.constant 0 : index
    %c0_11 = arith.constant 0 : index
    %12 = vector.load %arg6[%c0_10, %c0_11] : memref<128x16xf32, #tpu.memory_space<vmem>>, vector<128x16xf32>
    tpu.vector_store %arg6[%c0_10, %c0_11], %11 {strides = array<i32>} : memref<128x16xf32, #tpu.memory_space<vmem>>, vector<128x16xf32>,
    return
  }
  func.func @transform_0(%arg0: i32) -> (i32, i32) {
    %c0_i32 = arith.constant 0 : i32
    %c0_i32_0 = arith.constant 0 : i32
    return %arg0, %c0_i32 : i32, i32
  }
  func.func @transform_1(%arg0: i32) -> (i32, i32) {
    %c0_i32 = arith.constant 0 : i32
    %c0_i32_0 = arith.constant 0 : i32
    return %arg0, %c0_i32 : i32, i32
  }
  func.func @transform_2(%arg0: i32) -> (i32, i32) {
    %c0_i32 = arith.constant 0 : i32
    %c0_i32_0 = arith.constant 0 : i32
    %c0_i32_1 = arith.constant 0 : i32
    return %c0_i32, %c0_i32_0 : i32, i32
  }
  func.func @transform_3(%arg0: i32) -> (i32, i32) {
    %c0_i32 = arith.constant 0 : i32
    %c0_i32_0 = arith.constant 0 : i32
    %c0_i32_1 = arith.constant 0 : i32
    return %c0_i32, %c0_i32_0 : i32, i32
  }
  func.func @transform_4(%arg0: i32) -> (i32, i32) {
    %c0_i32 = arith.constant 0 : i32
    %c0_i32_0 = arith.constant 0 : i32
    %c0_i32_1 = arith.constant 0 : i32
    return %c0_i32, %c0_i32_0 : i32, i32
  }
  func.func @transform_5(%arg0: i32) -> (i32, i32) {
    %c0_i32 = arith.constant 0 : i32
    %c0_i32_0 = arith.constant 0 : i32
    return %arg0, %c0_i32 : i32, i32
  }
}

module attributes {stable_mosaic.version = 11 : i64} {
  func.func @stage_matmul_kernel(%arg0: i32, %arg1: memref<512x16xf32, #tpu.memory_space<vmem>>, %arg2: memref<512x8xf32, #tpu.memory_space<vmem>>, %arg3: memref<16x8xbf16, #tpu.memory_space<vmem>>, %arg4: memref<8x8xbf16, #tpu.memory_space<vmem>>, %arg5: memref<1x8xf32, #tpu.memory_space<vmem>>, %arg6: memref<512x8xf32, #tpu.memory_space<vmem>>) attributes {dimension_semantics = [#tpu.dimension_semantics<parallel>], iteration_bounds = array<i64: 1>, scalar_prefetch = 0 : i64, scratch_operands = 0 : i64, tpu.core_type = #tpu.core_type<tc>, window_params = [{transform_indices = @transform_0, window_bounds = array<i64: 512, 16>}, {transform_indices = @transform_1, window_bounds = array<i64: 512, 8>}, {pipeline_mode = #tpu.pipeline_mode<synchronous>, transform_indices = @transform_2, window_bounds = array<i64: 16, 8>}, {pipeline_mode = #tpu.pipeline_mode<synchronous>, transform_indices = @transform_3, window_bounds = array<i64: 8, 8>}, {pipeline_mode = #tpu.pipeline_mode<synchronous>, transform_indices = @transform_4, window_bounds = array<i64: 1, 8>}, {transform_indices = @transform_5, window_bounds = array<i64: 512, 8>}]} {
    %c0 = arith.constant 0 : index
    %c0_0 = arith.constant 0 : index
    %0 = vector.load %arg1[%c0, %c0_0] : memref<512x16xf32, #tpu.memory_space<vmem>>, vector<512x16xf32>
    %1 = arith.truncf %0 : vector<512x16xf32> to vector<512x16xbf16>
    %c0_1 = arith.constant 0 : index
    %c0_2 = arith.constant 0 : index
    %2 = vector.load %arg3[%c0_1, %c0_2] : memref<16x8xbf16, #tpu.memory_space<vmem>>, vector<16x8xbf16>
    %cst = arith.constant dense<0.000000e+00> : vector<512x8xf32>
    %3 = tpu.matmul %1, %2, %cst {dimension_numbers = #tpu.dot_dimension_numbers<[1], [0], [0], [1], [0, 0, 1, 1], [], []>} : vector<512x16xbf16>, vector<16x8xbf16>, vector<512x8xf32> -> vector<512x8xf32>
    %c0_3 = arith.constant 0 : index
    %c0_4 = arith.constant 0 : index
    %4 = vector.load %arg2[%c0_3, %c0_4] : memref<512x8xf32, #tpu.memory_space<vmem>>, vector<512x8xf32>
    %5 = arith.truncf %4 : vector<512x8xf32> to vector<512x8xbf16>
    %c0_5 = arith.constant 0 : index
    %c0_6 = arith.constant 0 : index
    %6 = vector.load %arg4[%c0_5, %c0_6] : memref<8x8xbf16, #tpu.memory_space<vmem>>, vector<8x8xbf16>
    %cst_7 = arith.constant dense<0.000000e+00> : vector<512x8xf32>
    %7 = tpu.matmul %5, %6, %cst_7 {dimension_numbers = #tpu.dot_dimension_numbers<[1], [0], [0], [1], [0, 0, 1, 1], [], []>} : vector<512x8xbf16>, vector<8x8xbf16>, vector<512x8xf32> -> vector<512x8xf32>
    %8 = arith.addf %3, %7 : vector<512x8xf32>
    %c0_8 = arith.constant 0 : index
    %c0_9 = arith.constant 0 : index
    %9 = vector.load %arg5[%c0_8, %c0_9] : memref<1x8xf32, #tpu.memory_space<vmem>>, vector<1x8xf32>
    %10 = vector.broadcast %9 : vector<1x8xf32> to vector<512x8xf32>
    %11 = arith.addf %8, %10 : vector<512x8xf32>
    %c0_10 = arith.constant 0 : index
    %c0_11 = arith.constant 0 : index
    %12 = vector.load %arg6[%c0_10, %c0_11] : memref<512x8xf32, #tpu.memory_space<vmem>>, vector<512x8xf32>
    tpu.vector_store %arg6[%c0_10, %c0_11], %11 {strides = array<i32>} : memref<512x8xf32, #tpu.memory_space<vmem>>, vector<512x8xf32>,
    return
  }
  func.func @transform_0(%arg0: i32) -> (i32, i32) {
    %c0_i32 = arith.constant 0 : i32
    %c0_i32_0 = arith.constant 0 : i32
    return %arg0, %c0_i32 : i32, i32
  }
  func.func @transform_1(%arg0: i32) -> (i32, i32) {
    %c0_i32 = arith.constant 0 : i32
    %c0_i32_0 = arith.constant 0 : i32
    return %arg0, %c0_i32 : i32, i32
  }
  func.func @transform_2(%arg0: i32) -> (i32, i32) {
    %c0_i32 = arith.constant 0 : i32
    %c0_i32_0 = arith.constant 0 : i32
    %c0_i32_1 = arith.constant 0 : i32
    return %c0_i32, %c0_i32_0 : i32, i32
  }
  func.func @transform_3(%arg0: i32) -> (i32, i32) {
    %c0_i32 = arith.constant 0 : i32
    %c0_i32_0 = arith.constant 0 : i32
    %c0_i32_1 = arith.constant 0 : i32
    return %c0_i32, %c0_i32_0 : i32, i32
  }
  func.func @transform_4(%arg0: i32) -> (i32, i32) {
    %c0_i32 = arith.constant 0 : i32
    %c0_i32_0 = arith.constant 0 : i32
    %c0_i32_1 = arith.constant 0 : i32
    return %c0_i32, %c0_i32_0 : i32, i32
  }
  func.func @transform_5(%arg0: i32) -> (i32, i32) {
    %c0_i32 = arith.constant 0 : i32
    %c0_i32_0 = arith.constant 0 : i32
    return %arg0, %c0_i32 : i32, i32
  }
}

module attributes {stable_mosaic.version = 11 : i64} {
  func.func @fused_head_kernel(%arg0: i32, %arg1: memref<1x32x32x8xf32, #tpu.memory_space<vmem>>, %arg2: memref<72x64xbf16, #tpu.memory_space<vmem>>, %arg3: memref<1x64xf32, #tpu.memory_space<vmem>>, %arg4: memref<9x64xf32, #tpu.memory_space<vmem>>, %arg5: memref<1x1xf32, #tpu.memory_space<vmem>>, %arg6: memref<1x32x32x64xf32, #tpu.memory_space<vmem>>, %arg7: memref<1x32x32xf32, #tpu.memory_space<vmem>>, %arg8: memref<34x48x8xbf16, #tpu.memory_space<vmem>>, %arg9: memref<34x48x64xbf16, #tpu.memory_space<vmem>>) attributes {dimension_semantics = [#tpu.dimension_semantics<parallel>], iteration_bounds = array<i64: 2>, scalar_prefetch = 0 : i64, scratch_operands = 2 : i64, tpu.core_type = #tpu.core_type<tc>, window_params = [{transform_indices = @transform_0, window_bounds = array<i64: 1, 32, 32, 8>}, {pipeline_mode = #tpu.pipeline_mode<synchronous>, transform_indices = @transform_1, window_bounds = array<i64: 72, 64>}, {pipeline_mode = #tpu.pipeline_mode<synchronous>, transform_indices = @transform_2, window_bounds = array<i64: 1, 64>}, {pipeline_mode = #tpu.pipeline_mode<synchronous>, transform_indices = @transform_3, window_bounds = array<i64: 9, 64>}, {pipeline_mode = #tpu.pipeline_mode<synchronous>, transform_indices = @transform_4, window_bounds = array<i64: 1, 1>}, {transform_indices = @transform_5, window_bounds = array<i64: 1, 32, 32, 64>}, {transform_indices = @transform_6, window_bounds = array<i64: 1, 32, 32>}]} {
    %cst = arith.constant 0.000000e+00 : bf16
    %0 = vector.broadcast %cst : bf16 to vector<34x8x8xbf16>
    %c0 = arith.constant 0 : index
    %c0_0 = arith.constant 0 : index
    %c0_1 = arith.constant 0 : index
    %1 = vector.load %arg8[%c0, %c0_0, %c0_1] : memref<34x48x8xbf16, #tpu.memory_space<vmem>>, vector<34x8x8xbf16>
    tpu.vector_store %arg8[%c0, %c0_0, %c0_1], %0 {strides = array<i32>} : memref<34x48x8xbf16, #tpu.memory_space<vmem>>, vector<34x8x8xbf16>,
    %cst_2 = arith.constant 0.000000e+00 : bf16
    %2 = vector.broadcast %cst_2 : bf16 to vector<34x8x8xbf16>
    %c0_3 = arith.constant 0 : index
    %c40 = arith.constant 40 : index
    %c0_4 = arith.constant 0 : index
    %3 = vector.load %arg8[%c0_3, %c40, %c0_4] : memref<34x48x8xbf16, #tpu.memory_space<vmem>>, vector<34x8x8xbf16>
    tpu.vector_store %arg8[%c0_3, %c40, %c0_4], %2 {strides = array<i32>} : memref<34x48x8xbf16, #tpu.memory_space<vmem>>, vector<34x8x8xbf16>,
    %cst_5 = arith.constant 0.000000e+00 : bf16
    %4 = vector.broadcast %cst_5 : bf16 to vector<1x32x8xbf16>
    %c0_6 = arith.constant 0 : index
    %c8 = arith.constant 8 : index
    %c0_7 = arith.constant 0 : index
    %5 = vector.load %arg8[%c0_6, %c8, %c0_7] : memref<34x48x8xbf16, #tpu.memory_space<vmem>>, vector<1x32x8xbf16>
    tpu.vector_store %arg8[%c0_6, %c8, %c0_7], %4 {strides = array<i32>} : memref<34x48x8xbf16, #tpu.memory_space<vmem>>, vector<1x32x8xbf16>,
    %cst_8 = arith.constant 0.000000e+00 : bf16
    %6 = vector.broadcast %cst_8 : bf16 to vector<1x32x8xbf16>
    %c33 = arith.constant 33 : index
    %c8_9 = arith.constant 8 : index
    %c0_10 = arith.constant 0 : index
    %7 = vector.load %arg8[%c33, %c8_9, %c0_10] : memref<34x48x8xbf16, #tpu.memory_space<vmem>>, vector<1x32x8xbf16>
    tpu.vector_store %arg8[%c33, %c8_9, %c0_10], %6 {strides = array<i32>} : memref<34x48x8xbf16, #tpu.memory_space<vmem>>, vector<1x32x8xbf16>,
    %cst_11 = arith.constant 0.000000e+00 : bf16
    %8 = vector.broadcast %cst_11 : bf16 to vector<34x8x64xbf16>
    %c0_12 = arith.constant 0 : index
    %c0_13 = arith.constant 0 : index
    %c0_14 = arith.constant 0 : index
    %9 = vector.load %arg9[%c0_12, %c0_13, %c0_14] : memref<34x48x64xbf16, #tpu.memory_space<vmem>>, vector<34x8x64xbf16>
    tpu.vector_store %arg9[%c0_12, %c0_13, %c0_14], %8 {strides = array<i32>} : memref<34x48x64xbf16, #tpu.memory_space<vmem>>, vector<34x8x64xbf16>,
    %cst_15 = arith.constant 0.000000e+00 : bf16
    %10 = vector.broadcast %cst_15 : bf16 to vector<34x8x64xbf16>
    %c0_16 = arith.constant 0 : index
    %c40_17 = arith.constant 40 : index
    %c0_18 = arith.constant 0 : index
    %11 = vector.load %arg9[%c0_16, %c40_17, %c0_18] : memref<34x48x64xbf16, #tpu.memory_space<vmem>>, vector<34x8x64xbf16>
    tpu.vector_store %arg9[%c0_16, %c40_17, %c0_18], %10 {strides = array<i32>} : memref<34x48x64xbf16, #tpu.memory_space<vmem>>, vector<34x8x64xbf16>,
    %cst_19 = arith.constant 0.000000e+00 : bf16
    %12 = vector.broadcast %cst_19 : bf16 to vector<1x32x64xbf16>
    %c0_20 = arith.constant 0 : index
    %c8_21 = arith.constant 8 : index
    %c0_22 = arith.constant 0 : index
    %13 = vector.load %arg9[%c0_20, %c8_21, %c0_22] : memref<34x48x64xbf16, #tpu.memory_space<vmem>>, vector<1x32x64xbf16>
    tpu.vector_store %arg9[%c0_20, %c8_21, %c0_22], %12 {strides = array<i32>} : memref<34x48x64xbf16, #tpu.memory_space<vmem>>, vector<1x32x64xbf16>,
    %cst_23 = arith.constant 0.000000e+00 : bf16
    %14 = vector.broadcast %cst_23 : bf16 to vector<1x32x64xbf16>
    %c33_24 = arith.constant 33 : index
    %c8_25 = arith.constant 8 : index
    %c0_26 = arith.constant 0 : index
    %15 = vector.load %arg9[%c33_24, %c8_25, %c0_26] : memref<34x48x64xbf16, #tpu.memory_space<vmem>>, vector<1x32x64xbf16>
    tpu.vector_store %arg9[%c33_24, %c8_25, %c0_26], %14 {strides = array<i32>} : memref<34x48x64xbf16, #tpu.memory_space<vmem>>, vector<1x32x64xbf16>,
    %c0_27 = arith.constant 0 : index
    %c0_28 = arith.constant 0 : index
    %c0_29 = arith.constant 0 : index
    %c0_30 = arith.constant 0 : index
    %16 = vector.load %arg1[%c0_27, %c0_28, %c0_29, %c0_30] : memref<1x32x32x8xf32, #tpu.memory_space<vmem>>, vector<1x32x32x8xf32>
    %17 = vector.shape_cast %16 : vector<1x32x32x8xf32> to vector<32x32x8xf32>
    %18 = arith.truncf %17 : vector<32x32x8xf32> to vector<32x32x8xbf16>
    %c1 = arith.constant 1 : index
    %c8_31 = arith.constant 8 : index
    %c0_32 = arith.constant 0 : index
    %19 = vector.load %arg8[%c1, %c8_31, %c0_32] : memref<34x48x8xbf16, #tpu.memory_space<vmem>>, vector<32x32x8xbf16>
    tpu.vector_store %arg8[%c1, %c8_31, %c0_32], %18 {strides = array<i32>} : memref<34x48x8xbf16, #tpu.memory_space<vmem>>, vector<32x32x8xbf16>,
    %c0_33 = arith.constant 0 : index
    %c0_34 = arith.constant 0 : index
    %20 = vector.load %arg2[%c0_33, %c0_34] : memref<72x64xbf16, #tpu.memory_space<vmem>>, vector<72x64xbf16>
    %c0_35 = arith.constant 0 : index
    %c0_36 = arith.constant 0 : index
    %21 = vector.load %arg3[%c0_35, %c0_36] : memref<1x64xf32, #tpu.memory_space<vmem>>, vector<1x64xf32>
    %c0_37 = arith.constant 0 : index
    %c0_38 = arith.constant 0 : index
    %22 = vector.load %arg4[%c0_37, %c0_38] : memref<9x64xf32, #tpu.memory_space<vmem>>, vector<1x64xf32>
    %23 = vector.shape_cast %22 : vector<1x64xf32> to vector<64xf32>
    %24 = vector.shape_cast %23 : vector<64xf32> to vector<1x1x64xf32>
    %c1_39 = arith.constant 1 : index
    %c0_40 = arith.constant 0 : index
    %25 = vector.load %arg4[%c1_39, %c0_40] : memref<9x64xf32, #tpu.memory_space<vmem>>, vector<1x64xf32>
    %26 = vector.shape_cast %25 : vector<1x64xf32> to vector<64xf32>
    %27 = vector.shape_cast %26 : vector<64xf32> to vector<1x1x64xf32>
    %c2 = arith.constant 2 : index
    %c0_41 = arith.constant 0 : index
    %28 = vector.load %arg4[%c2, %c0_41] : memref<9x64xf32, #tpu.memory_space<vmem>>, vector<1x64xf32>
    %29 = vector.shape_cast %28 : vector<1x64xf32> to vector<64xf32>
    %30 = vector.shape_cast %29 : vector<64xf32> to vector<1x1x64xf32>
    %c3 = arith.constant 3 : index
    %c0_42 = arith.constant 0 : index
    %31 = vector.load %arg4[%c3, %c0_42] : memref<9x64xf32, #tpu.memory_space<vmem>>, vector<1x64xf32>
    %32 = vector.shape_cast %31 : vector<1x64xf32> to vector<64xf32>
    %33 = vector.shape_cast %32 : vector<64xf32> to vector<1x1x64xf32>
    %c4 = arith.constant 4 : index
    %c0_43 = arith.constant 0 : index
    %34 = vector.load %arg4[%c4, %c0_43] : memref<9x64xf32, #tpu.memory_space<vmem>>, vector<1x64xf32>
    %35 = vector.shape_cast %34 : vector<1x64xf32> to vector<64xf32>
    %36 = vector.shape_cast %35 : vector<64xf32> to vector<1x1x64xf32>
    %c5 = arith.constant 5 : index
    %c0_44 = arith.constant 0 : index
    %37 = vector.load %arg4[%c5, %c0_44] : memref<9x64xf32, #tpu.memory_space<vmem>>, vector<1x64xf32>
    %38 = vector.shape_cast %37 : vector<1x64xf32> to vector<64xf32>
    %39 = vector.shape_cast %38 : vector<64xf32> to vector<1x1x64xf32>
    %c6 = arith.constant 6 : index
    %c0_45 = arith.constant 0 : index
    %40 = vector.load %arg4[%c6, %c0_45] : memref<9x64xf32, #tpu.memory_space<vmem>>, vector<1x64xf32>
    %41 = vector.shape_cast %40 : vector<1x64xf32> to vector<64xf32>
    %42 = vector.shape_cast %41 : vector<64xf32> to vector<1x1x64xf32>
    %c7 = arith.constant 7 : index
    %c0_46 = arith.constant 0 : index
    %43 = vector.load %arg4[%c7, %c0_46] : memref<9x64xf32, #tpu.memory_space<vmem>>, vector<1x64xf32>
    %44 = vector.shape_cast %43 : vector<1x64xf32> to vector<64xf32>
    %45 = vector.shape_cast %44 : vector<64xf32> to vector<1x1x64xf32>
    %c8_47 = arith.constant 8 : index
    %c0_48 = arith.constant 0 : index
    %46 = vector.load %arg4[%c8_47, %c0_48] : memref<9x64xf32, #tpu.memory_space<vmem>>, vector<1x64xf32>
    %47 = vector.shape_cast %46 : vector<1x64xf32> to vector<64xf32>
    %48 = vector.shape_cast %47 : vector<64xf32> to vector<1x1x64xf32>
    %c0_49 = arith.constant 0 : index
    %c0_50 = arith.constant 0 : index
    %49 = vector.load %arg5[%c0_49, %c0_50] : memref<1x1xf32, #tpu.memory_space<vmem>>, vector<1x1xf32>
    %c0_i32 = arith.constant 0 : i32
    %c4_i32 = arith.constant 4 : i32
    %50 = arith.addi %c0_i32, %c4_i32 : i32
    %c1_i32 = arith.constant 1 : i32
    scf.for %arg10 = %c0_i32 to %50 step %c1_i32  : i32 {
      %c8_i32 = arith.constant 8 : i32
      %52 = arith.muli %arg10, %c8_i32 : i32
      %53 = tpu.assume_multiple %52, 8 : i32
      %c0_i32_56 = arith.constant 0 : i32
      %54 = arith.addi %53, %c0_i32_56 : i32
      %55 = arith.index_cast %54 : i32 to index
      %c7_57 = arith.constant 7 : index
      %c0_58 = arith.constant 0 : index
      %56 = vector.load %arg8[%55, %c7_57, %c0_58] : memref<34x48x8xbf16, #tpu.memory_space<vmem>>, vector<8x32x8xbf16>
      %57 = vector.shape_cast %56 : vector<8x32x8xbf16> to vector<256x8xbf16>
      %c0_i32_59 = arith.constant 0 : i32
      %58 = arith.addi %53, %c0_i32_59 : i32
      %59 = arith.index_cast %58 : i32 to index
      %c8_60 = arith.constant 8 : index
      %c0_61 = arith.constant 0 : index
      %60 = vector.load %arg8[%59, %c8_60, %c0_61] : memref<34x48x8xbf16, #tpu.memory_space<vmem>>, vector<8x32x8xbf16>
      %61 = vector.shape_cast %60 : vector<8x32x8xbf16> to vector<256x8xbf16>
      %c0_i32_62 = arith.constant 0 : i32
      %62 = arith.addi %53, %c0_i32_62 : i32
      %63 = arith.index_cast %62 : i32 to index
      %c9 = arith.constant 9 : index
      %c0_63 = arith.constant 0 : index
      %64 = vector.load %arg8[%63, %c9, %c0_63] : memref<34x48x8xbf16, #tpu.memory_space<vmem>>, vector<8x32x8xbf16>
      %65 = vector.shape_cast %64 : vector<8x32x8xbf16> to vector<256x8xbf16>
      %c1_i32_64 = arith.constant 1 : i32
      %66 = arith.addi %53, %c1_i32_64 : i32
      %67 = arith.index_cast %66 : i32 to index
      %c7_65 = arith.constant 7 : index
      %c0_66 = arith.constant 0 : index
      %68 = vector.load %arg8[%67, %c7_65, %c0_66] : memref<34x48x8xbf16, #tpu.memory_space<vmem>>, vector<8x32x8xbf16>
      %69 = vector.shape_cast %68 : vector<8x32x8xbf16> to vector<256x8xbf16>
      %c1_i32_67 = arith.constant 1 : i32
      %70 = arith.addi %53, %c1_i32_67 : i32
      %71 = arith.index_cast %70 : i32 to index
      %c8_68 = arith.constant 8 : index
      %c0_69 = arith.constant 0 : index
      %72 = vector.load %arg8[%71, %c8_68, %c0_69] : memref<34x48x8xbf16, #tpu.memory_space<vmem>>, vector<8x32x8xbf16>
      %73 = vector.shape_cast %72 : vector<8x32x8xbf16> to vector<256x8xbf16>
      %c1_i32_70 = arith.constant 1 : i32
      %74 = arith.addi %53, %c1_i32_70 : i32
      %75 = arith.index_cast %74 : i32 to index
      %c9_71 = arith.constant 9 : index
      %c0_72 = arith.constant 0 : index
      %76 = vector.load %arg8[%75, %c9_71, %c0_72] : memref<34x48x8xbf16, #tpu.memory_space<vmem>>, vector<8x32x8xbf16>
      %77 = vector.shape_cast %76 : vector<8x32x8xbf16> to vector<256x8xbf16>
      %c2_i32 = arith.constant 2 : i32
      %78 = arith.addi %53, %c2_i32 : i32
      %79 = arith.index_cast %78 : i32 to index
      %c7_73 = arith.constant 7 : index
      %c0_74 = arith.constant 0 : index
      %80 = vector.load %arg8[%79, %c7_73, %c0_74] : memref<34x48x8xbf16, #tpu.memory_space<vmem>>, vector<8x32x8xbf16>
      %81 = vector.shape_cast %80 : vector<8x32x8xbf16> to vector<256x8xbf16>
      %c2_i32_75 = arith.constant 2 : i32
      %82 = arith.addi %53, %c2_i32_75 : i32
      %83 = arith.index_cast %82 : i32 to index
      %c8_76 = arith.constant 8 : index
      %c0_77 = arith.constant 0 : index
      %84 = vector.load %arg8[%83, %c8_76, %c0_77] : memref<34x48x8xbf16, #tpu.memory_space<vmem>>, vector<8x32x8xbf16>
      %85 = vector.shape_cast %84 : vector<8x32x8xbf16> to vector<256x8xbf16>
      %c2_i32_78 = arith.constant 2 : i32
      %86 = arith.addi %53, %c2_i32_78 : i32
      %87 = arith.index_cast %86 : i32 to index
      %c9_79 = arith.constant 9 : index
      %c0_80 = arith.constant 0 : index
      %88 = vector.load %arg8[%87, %c9_79, %c0_80] : memref<34x48x8xbf16, #tpu.memory_space<vmem>>, vector<8x32x8xbf16>
      %89 = vector.shape_cast %88 : vector<8x32x8xbf16> to vector<256x8xbf16>
      %90 = tpu.concatenate %57, %61, %65, %69, %73, %77, %81, %85, %89 in 1 : vector<256x8xbf16>, vector<256x8xbf16>, vector<256x8xbf16>, vector<256x8xbf16>, vector<256x8xbf16>, vector<256x8xbf16>, vector<256x8xbf16>, vector<256x8xbf16>, vector<256x8xbf16> -> vector<256x72xbf16>
      %cst_81 = arith.constant dense<0.000000e+00> : vector<256x64xf32>
      %91 = tpu.matmul %90, %20, %cst_81 {dimension_numbers = #tpu.dot_dimension_numbers<[1], [0], [0], [1], [0, 0, 1, 1], [], []>} : vector<256x72xbf16>, vector<72x64xbf16>, vector<256x64xf32> -> vector<256x64xf32>
      %92 = vector.broadcast %21 : vector<1x64xf32> to vector<256x64xf32>
      %93 = arith.addf %91, %92 : vector<256x64xf32>
      %94 = vector.shape_cast %93 : vector<256x64xf32> to vector<8x32x64xf32>
      %c0_82 = arith.constant 0 : index
      %95 = arith.index_cast %53 : i32 to index
      %c0_83 = arith.constant 0 : index
      %c0_84 = arith.constant 0 : index
      %96 = vector.load %arg6[%c0_82, %95, %c0_83, %c0_84] : memref<1x32x32x64xf32, #tpu.memory_space<vmem>>, vector<1x8x32x64xf32>
      %97 = vector.shape_cast %96 : vector<1x8x32x64xf32> to vector<8x32x64xf32>
      %98 = vector.shape_cast %94 : vector<8x32x64xf32> to vector<1x8x32x64xf32>
      tpu.vector_store %arg6[%c0_82, %95, %c0_83, %c0_84], %98 {strides = array<i32>} : memref<1x32x32x64xf32, #tpu.memory_space<vmem>>, vector<1x8x32x64xf32>,
      %99 = arith.truncf %94 : vector<8x32x64xf32> to vector<8x32x64xbf16>
      %c1_i32_85 = arith.constant 1 : i32
      %100 = arith.addi %c1_i32_85, %53 : i32
      %101 = arith.index_cast %100 : i32 to index
      %c8_86 = arith.constant 8 : index
      %c0_87 = arith.constant 0 : index
      %102 = vector.load %arg9[%101, %c8_86, %c0_87] : memref<34x48x64xbf16, #tpu.memory_space<vmem>>, vector<8x32x64xbf16>
      tpu.vector_store %arg9[%101, %c8_86, %c0_87], %99 {strides = array<i32>} : memref<34x48x64xbf16, #tpu.memory_space<vmem>>, vector<8x32x64xbf16>,
    }
    %c4_i32_51 = arith.constant 4 : i32
    %c0_i32_52 = arith.constant 0 : i32
    %c4_i32_53 = arith.constant 4 : i32
    %51 = arith.addi %c0_i32_52, %c4_i32_53 : i32
    %c1_i32_54 = arith.constant 1 : i32
    scf.for %arg10 = %c0_i32_52 to %51 step %c1_i32_54  : i32 {
      %c8_i32 = arith.constant 8 : i32
      %52 = arith.muli %arg10, %c8_i32 : i32
      %53 = tpu.assume_multiple %52, 8 : i32
      %cst_56 = arith.constant 0.000000e+00 : f32
      %54 = vector.broadcast %cst_56 : f32 to vector<8x32x64xf32>
      %c0_i32_57 = arith.constant 0 : i32
      %55 = arith.addi %53, %c0_i32_57 : i32
      %56 = arith.index_cast %55 : i32 to index
      %c7_58 = arith.constant 7 : index
      %c0_59 = arith.constant 0 : index
      %57 = vector.load %arg9[%56, %c7_58, %c0_59] : memref<34x48x64xbf16, #tpu.memory_space<vmem>>, vector<8x32x64xbf16>
      %58 = arith.extf %57 : vector<8x32x64xbf16> to vector<8x32x64xf32>
      %59 = vector.broadcast %24 : vector<1x1x64xf32> to vector<8x32x64xf32>
      %60 = arith.mulf %58, %59 : vector<8x32x64xf32>
      %61 = arith.addf %54, %60 : vector<8x32x64xf32>
      %c0_i32_60 = arith.constant 0 : i32
      %62 = arith.addi %53, %c0_i32_60 : i32
      %63 = arith.index_cast %62 : i32 to index
      %c8_61 = arith.constant 8 : index
      %c0_62 = arith.constant 0 : index
      %64 = vector.load %arg9[%63, %c8_61, %c0_62] : memref<34x48x64xbf16, #tpu.memory_space<vmem>>, vector<8x32x64xbf16>
      %65 = arith.extf %64 : vector<8x32x64xbf16> to vector<8x32x64xf32>
      %66 = vector.broadcast %27 : vector<1x1x64xf32> to vector<8x32x64xf32>
      %67 = arith.mulf %65, %66 : vector<8x32x64xf32>
      %68 = arith.addf %61, %67 : vector<8x32x64xf32>
      %c0_i32_63 = arith.constant 0 : i32
      %69 = arith.addi %53, %c0_i32_63 : i32
      %70 = arith.index_cast %69 : i32 to index
      %c9 = arith.constant 9 : index
      %c0_64 = arith.constant 0 : index
      %71 = vector.load %arg9[%70, %c9, %c0_64] : memref<34x48x64xbf16, #tpu.memory_space<vmem>>, vector<8x32x64xbf16>
      %72 = arith.extf %71 : vector<8x32x64xbf16> to vector<8x32x64xf32>
      %73 = vector.broadcast %30 : vector<1x1x64xf32> to vector<8x32x64xf32>
      %74 = arith.mulf %72, %73 : vector<8x32x64xf32>
      %75 = arith.addf %68, %74 : vector<8x32x64xf32>
      %c1_i32_65 = arith.constant 1 : i32
      %76 = arith.addi %53, %c1_i32_65 : i32
      %77 = arith.index_cast %76 : i32 to index
      %c7_66 = arith.constant 7 : index
      %c0_67 = arith.constant 0 : index
      %78 = vector.load %arg9[%77, %c7_66, %c0_67] : memref<34x48x64xbf16, #tpu.memory_space<vmem>>, vector<8x32x64xbf16>
      %79 = arith.extf %78 : vector<8x32x64xbf16> to vector<8x32x64xf32>
      %80 = vector.broadcast %33 : vector<1x1x64xf32> to vector<8x32x64xf32>
      %81 = arith.mulf %79, %80 : vector<8x32x64xf32>
      %82 = arith.addf %75, %81 : vector<8x32x64xf32>
      %c1_i32_68 = arith.constant 1 : i32
      %83 = arith.addi %53, %c1_i32_68 : i32
      %84 = arith.index_cast %83 : i32 to index
      %c8_69 = arith.constant 8 : index
      %c0_70 = arith.constant 0 : index
      %85 = vector.load %arg9[%84, %c8_69, %c0_70] : memref<34x48x64xbf16, #tpu.memory_space<vmem>>, vector<8x32x64xbf16>
      %86 = arith.extf %85 : vector<8x32x64xbf16> to vector<8x32x64xf32>
      %87 = vector.broadcast %36 : vector<1x1x64xf32> to vector<8x32x64xf32>
      %88 = arith.mulf %86, %87 : vector<8x32x64xf32>
      %89 = arith.addf %82, %88 : vector<8x32x64xf32>
      %c1_i32_71 = arith.constant 1 : i32
      %90 = arith.addi %53, %c1_i32_71 : i32
      %91 = arith.index_cast %90 : i32 to index
      %c9_72 = arith.constant 9 : index
      %c0_73 = arith.constant 0 : index
      %92 = vector.load %arg9[%91, %c9_72, %c0_73] : memref<34x48x64xbf16, #tpu.memory_space<vmem>>, vector<8x32x64xbf16>
      %93 = arith.extf %92 : vector<8x32x64xbf16> to vector<8x32x64xf32>
      %94 = vector.broadcast %39 : vector<1x1x64xf32> to vector<8x32x64xf32>
      %95 = arith.mulf %93, %94 : vector<8x32x64xf32>
      %96 = arith.addf %89, %95 : vector<8x32x64xf32>
      %c2_i32 = arith.constant 2 : i32
      %97 = arith.addi %53, %c2_i32 : i32
      %98 = arith.index_cast %97 : i32 to index
      %c7_74 = arith.constant 7 : index
      %c0_75 = arith.constant 0 : index
      %99 = vector.load %arg9[%98, %c7_74, %c0_75] : memref<34x48x64xbf16, #tpu.memory_space<vmem>>, vector<8x32x64xbf16>
      %100 = arith.extf %99 : vector<8x32x64xbf16> to vector<8x32x64xf32>
      %101 = vector.broadcast %42 : vector<1x1x64xf32> to vector<8x32x64xf32>
      %102 = arith.mulf %100, %101 : vector<8x32x64xf32>
      %103 = arith.addf %96, %102 : vector<8x32x64xf32>
      %c2_i32_76 = arith.constant 2 : i32
      %104 = arith.addi %53, %c2_i32_76 : i32
      %105 = arith.index_cast %104 : i32 to index
      %c8_77 = arith.constant 8 : index
      %c0_78 = arith.constant 0 : index
      %106 = vector.load %arg9[%105, %c8_77, %c0_78] : memref<34x48x64xbf16, #tpu.memory_space<vmem>>, vector<8x32x64xbf16>
      %107 = arith.extf %106 : vector<8x32x64xbf16> to vector<8x32x64xf32>
      %108 = vector.broadcast %45 : vector<1x1x64xf32> to vector<8x32x64xf32>
      %109 = arith.mulf %107, %108 : vector<8x32x64xf32>
      %110 = arith.addf %103, %109 : vector<8x32x64xf32>
      %c2_i32_79 = arith.constant 2 : i32
      %111 = arith.addi %53, %c2_i32_79 : i32
      %112 = arith.index_cast %111 : i32 to index
      %c9_80 = arith.constant 9 : index
      %c0_81 = arith.constant 0 : index
      %113 = vector.load %arg9[%112, %c9_80, %c0_81] : memref<34x48x64xbf16, #tpu.memory_space<vmem>>, vector<8x32x64xbf16>
      %114 = arith.extf %113 : vector<8x32x64xbf16> to vector<8x32x64xf32>
      %115 = vector.broadcast %48 : vector<1x1x64xf32> to vector<8x32x64xf32>
      %116 = arith.mulf %114, %115 : vector<8x32x64xf32>
      %117 = arith.addf %110, %116 : vector<8x32x64xf32>
      %cst_82 = arith.constant dense<0.000000e+00> : vector<8x32xf32>
      %118 = vector.multi_reduction <add>, %117, %cst_82 [2] : vector<8x32x64xf32> to vector<8x32xf32>
      %119 = vector.broadcast %49 : vector<1x1xf32> to vector<8x32xf32>
      %120 = arith.addf %118, %119 : vector<8x32xf32>
      %c0_83 = arith.constant 0 : index
      %121 = arith.index_cast %53 : i32 to index
      %c0_84 = arith.constant 0 : index
      %122 = vector.load %arg7[%c0_83, %121, %c0_84] : memref<1x32x32xf32, #tpu.memory_space<vmem>>, vector<1x8x32xf32>
      %123 = vector.shape_cast %122 : vector<1x8x32xf32> to vector<8x32xf32>
      %124 = vector.shape_cast %120 : vector<8x32xf32> to vector<1x8x32xf32>
      tpu.vector_store %arg7[%c0_83, %121, %c0_84], %124 {strides = array<i32>} : memref<1x32x32xf32, #tpu.memory_space<vmem>>, vector<1x8x32xf32>,
    }
    %c4_i32_55 = arith.constant 4 : i32
    return
  }
  func.func @transform_0(%arg0: i32) -> (i32, i32, i32, i32) {
    %c0_i32 = arith.constant 0 : i32
    %c0_i32_0 = arith.constant 0 : i32
    %c0_i32_1 = arith.constant 0 : i32
    %c0_i32_2 = arith.constant 0 : i32
    return %arg0, %c0_i32, %c0_i32_0, %c0_i32_1 : i32, i32, i32, i32
  }
  func.func @transform_1(%arg0: i32) -> (i32, i32) {
    %c0_i32 = arith.constant 0 : i32
    %c0_i32_0 = arith.constant 0 : i32
    %c0_i32_1 = arith.constant 0 : i32
    return %c0_i32, %c0_i32_0 : i32, i32
  }
  func.func @transform_2(%arg0: i32) -> (i32, i32) {
    %c0_i32 = arith.constant 0 : i32
    %c0_i32_0 = arith.constant 0 : i32
    %c0_i32_1 = arith.constant 0 : i32
    return %c0_i32, %c0_i32_0 : i32, i32
  }
  func.func @transform_3(%arg0: i32) -> (i32, i32) {
    %c0_i32 = arith.constant 0 : i32
    %c0_i32_0 = arith.constant 0 : i32
    %c0_i32_1 = arith.constant 0 : i32
    return %c0_i32, %c0_i32_0 : i32, i32
  }
  func.func @transform_4(%arg0: i32) -> (i32, i32) {
    %c0_i32 = arith.constant 0 : i32
    %c0_i32_0 = arith.constant 0 : i32
    %c0_i32_1 = arith.constant 0 : i32
    return %c0_i32, %c0_i32_0 : i32, i32
  }
  func.func @transform_5(%arg0: i32) -> (i32, i32, i32, i32) {
    %c0_i32 = arith.constant 0 : i32
    %c0_i32_0 = arith.constant 0 : i32
    %c0_i32_1 = arith.constant 0 : i32
    %c0_i32_2 = arith.constant 0 : i32
    return %arg0, %c0_i32, %c0_i32_0, %c0_i32_1 : i32, i32, i32, i32
  }
  func.func @transform_6(%arg0: i32) -> (i32, i32, i32) {
    %c0_i32 = arith.constant 0 : i32
    %c0_i32_0 = arith.constant 0 : i32
    %c0_i32_1 = arith.constant 0 : i32
    return %arg0, %c0_i32, %c0_i32_0 : i32, i32, i32
  }
}

</mosaic_0001>

<llo_original>
// kernel: decoder_resf_forward.4
$region0: #{decoder_resf_forward.4}
  #allocation0 [shape = 'u32[]', space=smem, size = 0x4, offset = 0x4, fixed_abs, tag = 'smem constant byte address 0x4 - core index']
  #allocation1 [shape = 'u32[144,128]{1,0:T(1,128)}', space=vmem, size = 0x12000, scoped, tag = 'internal scratch']
  %s0 = inlined_call_operand.vmem [shape: f32[32,64], index: 0, kind: input, shape index: {}]
  %s1 = inlined_call_operand.vmem [shape: f32[32,32], index: 1, kind: input, shape index: {}]
  %s2 = inlined_call_operand.vmem [shape: bf16[64,32], index: 2, kind: input, shape index: {}]
  %s3 = inlined_call_operand.vmem [shape: bf16[32,32], index: 3, kind: input, shape index: {}]
  %s4 = inlined_call_operand.vmem [shape: f32[1,32], index: 4, kind: input, shape index: {}]
  %s5 = inlined_call_operand.vmem [shape: f32[32,32], index: 5, kind: output, shape index: {}]
  %s6 = sld [smem:[#allocation0]]
  $region30: #{decoder_resf_forward.4} parent=0
    _
  %s8 = ssub.s32 1, %s6
  %s9 = scalar_select 0, %s8, %s6
  // Predicated region
  $region2: #{decoder_resf_forward.4} parent=0 // pred_check
    _
  $region3: #{decoder_resf_forward.4} parent=0 // pred_check_branch
    %11 = sbr.rel (0) target = $region5
  $region4: #{decoder_resf_forward.4} parent=0 // pred_region
    _
  $region5: #{decoder_resf_forward.4} parent=0 // pred_fallthru
    _
  // Predicated region
  $region6: #{decoder_resf_forward.4} parent=0 // pred_check
    _
  $region7: #{decoder_resf_forward.4} parent=0 // pred_check_branch
    %13 = sbr.rel (0) target = $region9
  $region8: #{decoder_resf_forward.4} parent=0 // pred_region
    _
  $region9: #{decoder_resf_forward.4} parent=0 // pred_fallthru
    _
  // Predicated region
  $region10: #{decoder_resf_forward.4} parent=0 // pred_check
    _
  $region11: #{decoder_resf_forward.4} parent=0 // pred_check_branch
    %15 = sbr.rel (0) target = $region13
  $region12: #{decoder_resf_forward.4} parent=0 // pred_region
    _
  $region13: #{decoder_resf_forward.4} parent=0 // pred_fallthru
    _
  // Predicated region
  $region14: #{decoder_resf_forward.4} parent=0 // pred_check
    _
  $region15: #{decoder_resf_forward.4} parent=0 // pred_check_branch
    %17 = sbr.rel (0) target = $region17
  $region16: #{decoder_resf_forward.4} parent=0 // pred_region
    _
  $region17: #{decoder_resf_forward.4} parent=0 // pred_fallthru
    _
  // Predicated region
  $region18: #{decoder_resf_forward.4} parent=0 // pred_check
    _
  $region19: #{decoder_resf_forward.4} parent=0 // pred_check_branch
    %19 = sbr.rel (0) target = $region21
  $region20: #{decoder_resf_forward.4} parent=0 // pred_region
    _
  $region21: #{decoder_resf_forward.4} parent=0 // pred_fallthru
    _
  %v21 = vld [vmem:[%s0] sm:$0xff]
  %v22 = vld [vmem:[%s0 + $0x8] sm:$0xff]
  %v23 = vld [vmem:[%s0 + $0x10] sm:$0xff]
  %v24 = vld [vmem:[%s0 + $0x18] sm:$0xff]
  %v25 = vpack.c.bf16 %v22, %v21
  %v26 = vpack.c.bf16 %v24, %v23
  %v27 = vld [vmem:[%s2] sm:$0xf]
  %v28 = vld [vmem:[%s2 + $0x4] sm:$0xf]
  %v29 = vld [vmem:[%s2 + $0x8] sm:$0xf]
  %v30 = vld [vmem:[%s2 + $0xc] sm:$0xf]
  %v31 = vld [vmem:[%s2 + $0x10] sm:$0xf]
  %v32 = vld [vmem:[%s2 + $0x14] sm:$0xf]
  %v33 = vld [vmem:[%s2 + $0x18] sm:$0xf]
  %v34 = vld [vmem:[%s2 + $0x1c] sm:$0xf]
  %v35 = vld [vmem:[%s1] sm:$0xff]
  %v36 = vld [vmem:[%s1 + $0x8] sm:$0xff]
  %v37 = vld [vmem:[%s1 + $0x10] sm:$0xff]
  %v38 = vld [vmem:[%s1 + $0x18] sm:$0xff]
  %v39 = vpack.c.bf16 %v36, %v35
  %v40 = vpack.c.bf16 %v38, %v37
  %v41 = vld [vmem:[%s3] sm:$0xf]
  %v42 = vld [vmem:[%s3 + $0x4] sm:$0xf]
  %v43 = vld [vmem:[%s3 + $0x8] sm:$0xf]
  %v44 = vld [vmem:[%s3 + $0xc] sm:$0xf]
  %v49 = vunpack.c.l.b16 %v41
  %v50 = vunpack.c.l.b16 %v42
  %v51 = vunpack.c.l.b16 %v43
  %v52 = vunpack.c.l.b16 %v44
  %v53 = vpack.c.b16 %v50, %v49
  %v54 = vpack.c.b16 %v52, %v51
  %vm57 = vcmask 261120
  %v59 = vsel %vm57, %v39, 0
  %v62 = vsel %vm57, %v40, 0
  %64 = vmatprep.subr.bf16.mxu0 0
  %65 = vmatpush1.bf16.msra.mxu0 0
  %66 = vmatprep.subr.bf16.mxu0 0
  %67 = vmatpush1.bf16.msra.mxu0 0
  %68 = vmatprep.subr.bf16.mxu0 0
  %69 = vmatpush1.bf16.msra.mxu0 0
  %70 = vmatprep.subr.bf16.mxu0 0
  %71 = vmatpush1.bf16.msra.mxu0 0
  %72 = vmatprep.subr.bf16.mxu0 0
  %73 = vmatpush1.bf16.msra.mxu0 0
  %74 = vmatprep.subr.bf16.mxu0 0
  %75 = vmatpush1.bf16.msra.mxu0 0
  %76 = vmatprep.subr.bf16.mxu0 0
  %77 = vmatpush1.bf16.msra.mxu0 %v54
  %78 = vmatprep.subr.bf16.mxu0 0
  %79 = vmatpush1.bf16.msra.mxu0 %v53
  %80 = vmatprep.subr.bf16.mxu0 0
  %81 = vmatpush2.bf16.msra.mxu0 0
  %82 = vmatprep.subr.bf16.mxu0 0
  %83 = vmatpush2.bf16.msra.mxu0 0
  %84 = vmatprep.subr.bf16.mxu0 0
  %85 = vmatpush2.bf16.msra.mxu0 0
  %86 = vmatprep.subr.bf16.mxu0 0
  %87 = vmatpush2.bf16.msra.mxu0 0
  %88 = vmatprep.subr.bf16.mxu0 0
  %89 = vmatpush2.bf16.msra.mxu0 0
  %90 = vmatprep.subr.bf16.mxu0 0
  %91 = vmatpush2.bf16.msra.mxu0 0
  %92 = vmatprep.subr.bf16.mxu0 0
  %93 = vmatpush2.bf16.msra.mxu0 0
  %94 = vmatprep.subr.bf16.mxu0 0
  %95 = vmatpush2.bf16.msra.mxu0 0
  %96 = vmatprep.mubr.bf16.mxu0 0
  %97 = vmatmul.mubr.bf16.gmra.mxu0 %v59
  %v98 = vpop.f32.mrf.mxu0
  %v99 = vadd.f32 0.0, %v98
  %v100 = vpop.f32.mrf.mxu0
  %v101 = vpop.f32.mrf.mxu0
  %v102 = vadd.f32 0.0, %v101
  %v103 = vpop.f32.mrf.mxu0
  %104 = vmatprep.mubr.bf16.mxu0 0
  %105 = vmatmul.mubr.bf16.gmra.mxu0 %v62
  %v106 = vpop.f32.mrf.mxu0
  %v107 = vadd.f32 0.0, %v106
  %v108 = vpop.f32.mrf.mxu0
  %v109 = vpop.f32.mrf.mxu0
  %v110 = vadd.f32 0.0, %v109
  %v111 = vpop.f32.mrf.mxu0
  %112 = vdwg.mxu0
  %v121 = vunpack.c.l.b16 %v27
  %v122 = vunpack.c.l.b16 %v28
  %v123 = vunpack.c.l.b16 %v29
  %v124 = vunpack.c.l.b16 %v30
  %v125 = vunpack.c.l.b16 %v31
  %v126 = vunpack.c.l.b16 %v32
  %v127 = vunpack.c.l.b16 %v33
  %v128 = vunpack.c.l.b16 %v34
  %v129 = vpack.c.b16 %v122, %v121
  %v130 = vpack.c.b16 %v124, %v123
  %v131 = vpack.c.b16 %v126, %v125
  %v132 = vpack.c.b16 %v128, %v127
  %vm137 = vcmask 523264
  %v139 = vsel %vm137, %v25, 0
  %v142 = vsel %vm137, %v26, 0
  %144 = vmatprep.subr.bf16.mxu0 0
  %145 = vmatpush1.bf16.msra.mxu0 0
  %146 = vmatprep.subr.bf16.mxu0 0
  %147 = vmatpush1.bf16.msra.mxu0 0
  %148 = vmatprep.subr.bf16.mxu0 0
  %149 = vmatpush1.bf16.msra.mxu0 0
  %150 = vmatprep.subr.bf16.mxu0 0
  %151 = vmatpush1.bf16.msra.mxu0 0
  %152 = vmatprep.subr.bf16.mxu0 0
  %153 = vmatpush1.bf16.msra.mxu0 %v132
  %154 = vmatprep.subr.bf16.mxu0 0
  %155 = vmatpush1.bf16.msra.mxu0 %v131
  %156 = vmatprep.subr.bf16.mxu0 0
  %157 = vmatpush1.bf16.msra.mxu0 %v130
  %158 = vmatprep.subr.bf16.mxu0 0
  %159 = vmatpush1.bf16.msra.mxu0 %v129
  %160 = vmatprep.subr.bf16.mxu0 0
  %161 = vmatpush2.bf16.msra.mxu0 0
  %162 = vmatprep.subr.bf16.mxu0 0
  %163 = vmatpush2.bf16.msra.mxu0 0
  %164 = vmatprep.subr.bf16.mxu0 0
  %165 = vmatpush2.bf16.msra.mxu0 0
  %166 = vmatprep.subr.bf16.mxu0 0
  %167 = vmatpush2.bf16.msra.mxu0 0
  %168 = vmatprep.subr.bf16.mxu0 0
  %169 = vmatpush2.bf16.msra.mxu0 0
  %170 = vmatprep.subr.bf16.mxu0 0
  %171 = vmatpush2.bf16.msra.mxu0 0
  %172 = vmatprep.subr.bf16.mxu0 0
  %173 = vmatpush2.bf16.msra.mxu0 0
  %174 = vmatprep.subr.bf16.mxu0 0
  %175 = vmatpush2.bf16.msra.mxu0 0
  %176 = vmatprep.mubr.bf16.mxu0 0
  %177 = vmatmul.mubr.bf16.gmra.mxu0 %v139
  %v178 = vpop.f32.mrf.mxu0
  %v179 = vadd.f32 %v99, %v178
  %v180 = vpop.f32.mrf.mxu0
  %v181 = vpop.f32.mrf.mxu0
  %v182 = vadd.f32 %v102, %v181
  %v183 = vpop.f32.mrf.mxu0
  %184 = vmatprep.mubr.bf16.mxu0 0
  %185 = vmatmul.mubr.bf16.gmra.mxu0 %v142
  %v186 = vpop.f32.mrf.mxu0
  %v187 = vadd.f32 %v107, %v186
  %v188 = vpop.f32.mrf.mxu0
  %v189 = vpop.f32.mrf.mxu0
  %v190 = vadd.f32 %v110, %v189
  %v191 = vpop.f32.mrf.mxu0
  %192 = vdwg.mxu0
  %v193 = vld [vmem:[%s4] sm:$0x1]
  %v195 = vlaneseq
  %v196 = vshrl.u32 %v195, 7
  %v197 = vsub.s32 0, %v196
  %v198 = vrot.slane %v193, %v197
  %v200 = vadd.f32 %v179, %v198
  %v201 = vadd.f32 %v182, %v198
  %v202 = vadd.f32 %v187, %v198
  %v203 = vadd.f32 %v190, %v198
  %204 = vst.msk [vmem:[%s5] sm:$0xff] %vm57, %v200
  %205 = vst.msk [vmem:[%s5 + $0x8] sm:$0xff] %vm57, %v201
  %206 = vst.msk [vmem:[%s5 + $0x10] sm:$0xff] %vm57, %v202
  %207 = vst.msk [vmem:[%s5 + $0x18] sm:$0xff] %vm57, %v203
  // Predicated region
  $region22: #{decoder_resf_forward.4} parent=0 // pred_check
    _
  $region23: #{decoder_resf_forward.4} parent=0 // pred_check_branch
    %209 = sbr.rel (0) target = $region25
  $region24: #{decoder_resf_forward.4} parent=0 // pred_region
    _
  $region25: #{decoder_resf_forward.4} parent=0 // pred_fallthru
    _
  // Predicated region
  $region26: #{decoder_resf_forward.4} parent=0 // pred_check
    _
  $region27: #{decoder_resf_forward.4} parent=0 // pred_check_branch
    %211 = sbr.rel (0) target = $region29
  $region28: #{decoder_resf_forward.4} parent=0 // pred_region
    _
  $region29: #{decoder_resf_forward.4} parent=0 // pred_fallthru
    _

// kernel: decoder_resf_forward.5
$region0: #{decoder_resf_forward.5}
  #allocation0 [shape = 'u32[]', space=smem, size = 0x4, offset = 0x4, fixed_abs, tag = 'smem constant byte address 0x4 - core index']
  #allocation1 [shape = 'u32[144,128]{1,0:T(1,128)}', space=vmem, size = 0x12000, scoped, tag = 'internal scratch']
  %s0 = inlined_call_operand.vmem [shape: f32[128,32], index: 0, kind: input, shape index: {}]
  %s1 = inlined_call_operand.vmem [shape: f32[128,16], index: 1, kind: input, shape index: {}]
  %s2 = inlined_call_operand.vmem [shape: bf16[32,16], index: 2, kind: input, shape index: {}]
  %s3 = inlined_call_operand.vmem [shape: bf16[16,16], index: 3, kind: input, shape index: {}]
  %s4 = inlined_call_operand.vmem [shape: f32[1,16], index: 4, kind: input, shape index: {}]
  %s5 = inlined_call_operand.vmem [shape: f32[128,16], index: 5, kind: output, shape index: {}]
  %s6 = sld [smem:[#allocation0]]
  $region30: #{decoder_resf_forward.5} parent=0
    _
  %s8 = ssub.s32 1, %s6
  %s9 = scalar_select 0, %s8, %s6
  // Predicated region
  $region2: #{decoder_resf_forward.5} parent=0 // pred_check
    _
  $region3: #{decoder_resf_forward.5} parent=0 // pred_check_branch
    %11 = sbr.rel (0) target = $region5
  $region4: #{decoder_resf_forward.5} parent=0 // pred_region
    _
  $region5: #{decoder_resf_forward.5} parent=0 // pred_fallthru
    _
  // Predicated region
  $region6: #{decoder_resf_forward.5} parent=0 // pred_check
    _
  $region7: #{decoder_resf_forward.5} parent=0 // pred_check_branch
    %13 = sbr.rel (0) target = $region9
  $region8: #{decoder_resf_forward.5} parent=0 // pred_region
    _
  $region9: #{decoder_resf_forward.5} parent=0 // pred_fallthru
    _
  // Predicated region
  $region10: #{decoder_resf_forward.5} parent=0 // pred_check
    _
  $region11: #{decoder_resf_forward.5} parent=0 // pred_check_branch
    %15 = sbr.rel (0) target = $region13
  $region12: #{decoder_resf_forward.5} parent=0 // pred_region
    _
  $region13: #{decoder_resf_forward.5} parent=0 // pred_fallthru
    _
  // Predicated region
  $region14: #{decoder_resf_forward.5} parent=0 // pred_check
    _
  $region15: #{decoder_resf_forward.5} parent=0 // pred_check_branch
    %17 = sbr.rel (0) target = $region17
  $region16: #{decoder_resf_forward.5} parent=0 // pred_region
    _
  $region17: #{decoder_resf_forward.5} parent=0 // pred_fallthru
    _
  // Predicated region
  $region18: #{decoder_resf_forward.5} parent=0 // pred_check
    _
  $region19: #{decoder_resf_forward.5} parent=0 // pred_check_branch
    %19 = sbr.rel (0) target = $region21
  $region20: #{decoder_resf_forward.5} parent=0 // pred_region
    _
  $region21: #{decoder_resf_forward.5} parent=0 // pred_fallthru
    _
  %v21 = vld [vmem:[%s0] sm:$0xff]
  %v22 = vld [vmem:[%s0 + $0x8] sm:$0xff]
  %v23 = vld [vmem:[%s0 + $0x10] sm:$0xff]
  %v24 = vld [vmem:[%s0 + $0x18] sm:$0xff]
  %v25 = vld [vmem:[%s0 + $0x20] sm:$0xff]
  %v26 = vld [vmem:[%s0 + $0x28] sm:$0xff]
  %v27 = vld [vmem:[%s0 + $0x30] sm:$0xff]
  %v28 = vld [vmem:[%s0 + $0x38] sm:$0xff]
  %v29 = vld [vmem:[%s0 + $0x40] sm:$0xff]
  %v30 = vld [vmem:[%s0 + $0x48] sm:$0xff]
  %v31 = vld [vmem:[%s0 + $0x50] sm:$0xff]
  %v32 = vld [vmem:[%s0 + $0x58] sm:$0xff]
  %v33 = vld [vmem:[%s0 + $0x60] sm:$0xff]
  %v34 = vld [vmem:[%s0 + $0x68] sm:$0xff]
  %v35 = vld [vmem:[%s0 + $0x70] sm:$0xff]
  %v36 = vld [vmem:[%s0 + $0x78] sm:$0xff]
  %v37 = vpack.c.bf16 %v22, %v21
  %v38 = vpack.c.bf16 %v24, %v23
  %v39 = vpack.c.bf16 %v26, %v25
  %v40 = vpack.c.bf16 %v28, %v27
  %v41 = vpack.c.bf16 %v30, %v29
  %v42 = vpack.c.bf16 %v32, %v31
  %v43 = vpack.c.bf16 %v34, %v33
  %v44 = vpack.c.bf16 %v36, %v35
  %v45 = vld [vmem:[%s2] sm:$0xf]
  %v46 = vld [vmem:[%s2 + $0x4] sm:$0xf]
  %v47 = vld [vmem:[%s2 + $0x8] sm:$0xf]
  %v48 = vld [vmem:[%s2 + $0xc] sm:$0xf]
  %v49 = vld [vmem:[%s1] sm:$0xff]
  %v50 = vld [vmem:[%s1 + $0x8] sm:$0xff]
  %v51 = vld [vmem:[%s1 + $0x10] sm:$0xff]
  %v52 = vld [vmem:[%s1 + $0x18] sm:$0xff]
  %v53 = vld [vmem:[%s1 + $0x20] sm:$0xff]
  %v54 = vld [vmem:[%s1 + $0x28] sm:$0xff]
  %v55 = vld [vmem:[%s1 + $0x30] sm:$0xff]
  %v56 = vld [vmem:[%s1 + $0x38] sm:$0xff]
  %v57 = vld [vmem:[%s1 + $0x40] sm:$0xff]
  %v58 = vld [vmem:[%s1 + $0x48] sm:$0xff]
  %v59 = vld [vmem:[%s1 + $0x50] sm:$0xff]
  %v60 = vld [vmem:[%s1 + $0x58] sm:$0xff]
  %v61 = vld [vmem:[%s1 + $0x60] sm:$0xff]
  %v62 = vld [vmem:[%s1 + $0x68] sm:$0xff]
  %v63 = vld [vmem:[%s1 + $0x70] sm:$0xff]
  %v64 = vld [vmem:[%s1 + $0x78] sm:$0xff]
  %v65 = vpack.c.bf16 %v50, %v49
  %v66 = vpack.c.bf16 %v52, %v51
  %v67 = vpack.c.bf16 %v54, %v53
  %v68 = vpack.c.bf16 %v56, %v55
  %v69 = vpack.c.bf16 %v58, %v57
  %v70 = vpack.c.bf16 %v60, %v59
  %v71 = vpack.c.bf16 %v62, %v61
  %v72 = vpack.c.bf16 %v64, %v63
  %v73 = vld [vmem:[%s3] sm:$0xf]
  %v74 = vld [vmem:[%s3 + $0x4] sm:$0xf]
  %v77 = vunpack.c.l.b16 %v73
  %v78 = vunpack.c.l.b16 %v74
  %v79 = vpack.c.b16 %v78, %v77
  %vm81 = vcmask 130048
  %v83 = vsel %vm81, %v65, 0
  %v86 = vsel %vm81, %v66, 0
  %v89 = vsel %vm81, %v67, 0
  %v92 = vsel %vm81, %v68, 0
  %v95 = vsel %vm81, %v69, 0
  %v98 = vsel %vm81, %v70, 0
  %v101 = vsel %vm81, %v71, 0
  %v104 = vsel %vm81, %v72, 0
  %106 = vmatprep.subr.bf16.mxu0 0
  %107 = vmatpush1.bf16.msra.mxu0 0
  %108 = vmatprep.subr.bf16.mxu0 0
  %109 = vmatpush1.bf16.msra.mxu0 0
  %110 = vmatprep.subr.bf16.mxu0 0
  %111 = vmatpush1.bf16.msra.mxu0 0
  %112 = vmatprep.subr.bf16.mxu0 0
  %113 = vmatpush1.bf16.msra.mxu0 0
  %114 = vmatprep.subr.bf16.mxu0 0
  %115 = vmatpush1.bf16.msra.mxu0 0
  %116 = vmatprep.subr.bf16.mxu0 0
  %117 = vmatpush1.bf16.msra.mxu0 0
  %118 = vmatprep.subr.bf16.mxu0 0
  %119 = vmatpush1.bf16.msra.mxu0 0
  %120 = vmatprep.subr.bf16.mxu0 0
  %121 = vmatpush1.bf16.msra.mxu0 %v79
  %122 = vmatprep.subr.bf16.mxu0 0
  %123 = vmatpush2.bf16.msra.mxu0 0
  %124 = vmatprep.subr.bf16.mxu0 0
  %125 = vmatpush2.bf16.msra.mxu0 0
  %126 = vmatprep.subr.bf16.mxu0 0
  %127 = vmatpush2.bf16.msra.mxu0 0
  %128 = vmatprep.subr.bf16.mxu0 0
  %129 = vmatpush2.bf16.msra.mxu0 0
  %130 = vmatprep.subr.bf16.mxu0 0
  %131 = vmatpush2.bf16.msra.mxu0 0
  %132 = vmatprep.subr.bf16.mxu0 0
  %133 = vmatpush2.bf16.msra.mxu0 0
  %134 = vmatprep.subr.bf16.mxu0 0
  %135 = vmatpush2.bf16.msra.mxu0 0
  %136 = vmatprep.subr.bf16.mxu0 0
  %137 = vmatpush2.bf16.msra.mxu0 0
  %138 = vmatprep.mubr.bf16.mxu0 0
  %139 = vmatmul.mubr.bf16.gmra.mxu0 %v83
  %v140 = vpop.f32.mrf.mxu0
  %v141 = vadd.f32 0.0, %v140
  %v142 = vpop.f32.mrf.mxu0
  %v143 = vpop.f32.mrf.mxu0
  %v144 = vadd.f32 0.0, %v143
  %v145 = vpop.f32.mrf.mxu0
  %146 = vmatprep.mubr.bf16.mxu0 0
  %147 = vmatmul.mubr.bf16.gmra.mxu0 %v86
  %v148 = vpop.f32.mrf.mxu0
  %v149 = vadd.f32 0.0, %v148
  %v150 = vpop.f32.mrf.mxu0
  %v151 = vpop.f32.mrf.mxu0
  %v152 = vadd.f32 0.0, %v151
  %v153 = vpop.f32.mrf.mxu0
  %154 = vmatprep.mubr.bf16.mxu0 0
  %155 = vmatmul.mubr.bf16.gmra.mxu0 %v89
  %v156 = vpop.f32.mrf.mxu0
  %v157 = vadd.f32 0.0, %v156
  %v158 = vpop.f32.mrf.mxu0
  %v159 = vpop.f32.mrf.mxu0
  %v160 = vadd.f32 0.0, %v159
  %v161 = vpop.f32.mrf.mxu0
  %162 = vmatprep.mubr.bf16.mxu0 0
  %163 = vmatmul.mubr.bf16.gmra.mxu0 %v92
  %v164 = vpop.f32.mrf.mxu0
  %v165 = vadd.f32 0.0, %v164
  %v166 = vpop.f32.mrf.mxu0
  %v167 = vpop.f32.mrf.mxu0
  %v168 = vadd.f32 0.0, %v167
  %v169 = vpop.f32.mrf.mxu0
  %170 = vmatprep.mubr.bf16.mxu0 0
  %171 = vmatmul.mubr.bf16.gmra.mxu0 %v95
  %v172 = vpop.f32.mrf.mxu0
  %v173 = vadd.f32 0.0, %v172
  %v174 = vpop.f32.mrf.mxu0
  %v175 = vpop.f32.mrf.mxu0
  %v176 = vadd.f32 0.0, %v175
  %v177 = vpop.f32.mrf.mxu0
  %178 = vmatprep.mubr.bf16.mxu0 0
  %179 = vmatmul.mubr.bf16.gmra.mxu0 %v98
  %v180 = vpop.f32.mrf.mxu0
  %v181 = vadd.f32 0.0, %v180
  %v182 = vpop.f32.mrf.mxu0
  %v183 = vpop.f32.mrf.mxu0
  %v184 = vadd.f32 0.0, %v183
  %v185 = vpop.f32.mrf.mxu0
  %186 = vmatprep.mubr.bf16.mxu0 0
  %187 = vmatmul.mubr.bf16.gmra.mxu0 %v101
  %v188 = vpop.f32.mrf.mxu0
  %v189 = vadd.f32 0.0, %v188
  %v190 = vpop.f32.mrf.mxu0
  %v191 = vpop.f32.mrf.mxu0
  %v192 = vadd.f32 0.0, %v191
  %v193 = vpop.f32.mrf.mxu0
  %194 = vmatprep.mubr.bf16.mxu0 0
  %195 = vmatmul.mubr.bf16.gmra.mxu0 %v104
  %v196 = vpop.f32.mrf.mxu0
  %v197 = vadd.f32 0.0, %v196
  %v198 = vpop.f32.mrf.mxu0
  %v199 = vpop.f32.mrf.mxu0
  %v200 = vadd.f32 0.0, %v199
  %v201 = vpop.f32.mrf.mxu0
  %202 = vdwg.mxu0
  %v207 = vunpack.c.l.b16 %v45
  %v208 = vunpack.c.l.b16 %v46
  %v209 = vunpack.c.l.b16 %v47
  %v210 = vunpack.c.l.b16 %v48
  %v211 = vpack.c.b16 %v208, %v207
  %v212 = vpack.c.b16 %v210, %v209
  %vm215 = vcmask 261120
  %v217 = vsel %vm215, %v37, 0
  %v220 = vsel %vm215, %v38, 0
  %v223 = vsel %vm215, %v39, 0
  %v226 = vsel %vm215, %v40, 0
  %v229 = vsel %vm215, %v41, 0
  %v232 = vsel %vm215, %v42, 0
  %v235 = vsel %vm215, %v43, 0
  %v238 = vsel %vm215, %v44, 0
  %240 = vmatprep.subr.bf16.mxu0 0
  %241 = vmatpush1.bf16.msra.mxu0 0
  %242 = vmatprep.subr.bf16.mxu0 0
  %243 = vmatpush1.bf16.msra.mxu0 0
  %244 = vmatprep.subr.bf16.mxu0 0
  %245 = vmatpush1.bf16.msra.mxu0 0
  %246 = vmatprep.subr.bf16.mxu0 0
  %247 = vmatpush1.bf16.msra.mxu0 0
  %248 = vmatprep.subr.bf16.mxu0 0
  %249 = vmatpush1.bf16.msra.mxu0 0
  %250 = vmatprep.subr.bf16.mxu0 0
  %251 = vmatpush1.bf16.msra.mxu0 0
  %252 = vmatprep.subr.bf16.mxu0 0
  %253 = vmatpush1.bf16.msra.mxu0 %v212
  %254 = vmatprep.subr.bf16.mxu0 0
  %255 = vmatpush1.bf16.msra.mxu0 %v211
  %256 = vmatprep.subr.bf16.mxu0 0
  %257 = vmatpush2.bf16.msra.mxu0 0
  %258 = vmatprep.subr.bf16.mxu0 0
  %259 = vmatpush2.bf16.msra.mxu0 0
  %260 = vmatprep.subr.bf16.mxu0 0
  %261 = vmatpush2.bf16.msra.mxu0 0
  %262 = vmatprep.subr.bf16.mxu0 0
  %263 = vmatpush2.bf16.msra.mxu0 0
  %264 = vmatprep.subr.bf16.mxu0 0
  %265 = vmatpush2.bf16.msra.mxu0 0
  %266 = vmatprep.subr.bf16.mxu0 0
  %267 = vmatpush2.bf16.msra.mxu0 0
  %268 = vmatprep.subr.bf16.mxu0 0
  %269 = vmatpush2.bf16.msra.mxu0 0
  %270 = vmatprep.subr.bf16.mxu0 0
  %271 = vmatpush2.bf16.msra.mxu0 0
  %272 = vmatprep.mubr.bf16.mxu0 0
  %273 = vmatmul.mubr.bf16.gmra.mxu0 %v217
  %v274 = vpop.f32.mrf.mxu0
  %v275 = vadd.f32 %v141, %v274
  %v276 = vpop.f32.mrf.mxu0
  %v277 = vpop.f32.mrf.mxu0
  %v278 = vadd.f32 %v144, %v277
  %v279 = vpop.f32.mrf.mxu0
  %280 = vmatprep.mubr.bf16.mxu0 0
  %281 = vmatmul.mubr.bf16.gmra.mxu0 %v220
  %v282 = vpop.f32.mrf.mxu0
  %v283 = vadd.f32 %v149, %v282
  %v284 = vpop.f32.mrf.mxu0
  %v285 = vpop.f32.mrf.mxu0
  %v286 = vadd.f32 %v152, %v285
  %v287 = vpop.f32.mrf.mxu0
  %288 = vmatprep.mubr.bf16.mxu0 0
  %289 = vmatmul.mubr.bf16.gmra.mxu0 %v223
  %v290 = vpop.f32.mrf.mxu0
  %v291 = vadd.f32 %v157, %v290
  %v292 = vpop.f32.mrf.mxu0
  %v293 = vpop.f32.mrf.mxu0
  %v294 = vadd.f32 %v160, %v293
  %v295 = vpop.f32.mrf.mxu0
  %296 = vmatprep.mubr.bf16.mxu0 0
  %297 = vmatmul.mubr.bf16.gmra.mxu0 %v226
  %v298 = vpop.f32.mrf.mxu0
  %v299 = vadd.f32 %v165, %v298
  %v300 = vpop.f32.mrf.mxu0
  %v301 = vpop.f32.mrf.mxu0
  %v302 = vadd.f32 %v168, %v301
  %v303 = vpop.f32.mrf.mxu0
  %304 = vmatprep.mubr.bf16.mxu0 0
  %305 = vmatmul.mubr.bf16.gmra.mxu0 %v229
  %v306 = vpop.f32.mrf.mxu0
  %v307 = vadd.f32 %v173, %v306
  %v308 = vpop.f32.mrf.mxu0
  %v309 = vpop.f32.mrf.mxu0
  %v310 = vadd.f32 %v176, %v309
  %v311 = vpop.f32.mrf.mxu0
  %312 = vmatprep.mubr.bf16.mxu0 0
  %313 = vmatmul.mubr.bf16.gmra.mxu0 %v232
  %v314 = vpop.f32.mrf.mxu0
  %v315 = vadd.f32 %v181, %v314
  %v316 = vpop.f32.mrf.mxu0
  %v317 = vpop.f32.mrf.mxu0
  %v318 = vadd.f32 %v184, %v317
  %v319 = vpop.f32.mrf.mxu0
  %320 = vmatprep.mubr.bf16.mxu0 0
  %321 = vmatmul.mubr.bf16.gmra.mxu0 %v235
  %v322 = vpop.f32.mrf.mxu0
  %v323 = vadd.f32 %v189, %v322
  %v324 = vpop.f32.mrf.mxu0
  %v325 = vpop.f32.mrf.mxu0
  %v326 = vadd.f32 %v192, %v325
  %v327 = vpop.f32.mrf.mxu0
  %328 = vmatprep.mubr.bf16.mxu0 0
  %329 = vmatmul.mubr.bf16.gmra.mxu0 %v238
  %v330 = vpop.f32.mrf.mxu0
  %v331 = vadd.f32 %v197, %v330
  %v332 = vpop.f32.mrf.mxu0
  %v333 = vpop.f32.mrf.mxu0
  %v334 = vadd.f32 %v200, %v333
  %v335 = vpop.f32.mrf.mxu0
  %336 = vdwg.mxu0
  %v337 = vld [vmem:[%s4] sm:$0x1]
  %v339 = vlaneseq
  %v340 = vshrl.u32 %v339, 7
  %v341 = vsub.s32 0, %v340
  %v342 = vrot.slane %v337, %v341
  %v344 = vadd.f32 %v275, %v342
  %v345 = vadd.f32 %v278, %v342
  %v346 = vadd.f32 %v283, %v342
  %v347 = vadd.f32 %v286, %v342
  %v348 = vadd.f32 %v291, %v342
  %v349 = vadd.f32 %v294, %v342
  %v350 = vadd.f32 %v299, %v342
  %v351 = vadd.f32 %v302, %v342
  %v352 = vadd.f32 %v307, %v342
  %v353 = vadd.f32 %v310, %v342
  %v354 = vadd.f32 %v315, %v342
  %v355 = vadd.f32 %v318, %v342
  %v356 = vadd.f32 %v323, %v342
  %v357 = vadd.f32 %v326, %v342
  %v358 = vadd.f32 %v331, %v342
  %v359 = vadd.f32 %v334, %v342
  %360 = vst.msk [vmem:[%s5] sm:$0xff] %vm81, %v344
  %361 = vst.msk [vmem:[%s5 + $0x8] sm:$0xff] %vm81, %v345
  %362 = vst.msk [vmem:[%s5 + $0x10] sm:$0xff] %vm81, %v346
  %363 = vst.msk [vmem:[%s5 + $0x18] sm:$0xff] %vm81, %v347
  %364 = vst.msk [vmem:[%s5 + $0x20] sm:$0xff] %vm81, %v348
  %365 = vst.msk [vmem:[%s5 + $0x28] sm:$0xff] %vm81, %v349
  %366 = vst.msk [vmem:[%s5 + $0x30] sm:$0xff] %vm81, %v350
  %367 = vst.msk [vmem:[%s5 + $0x38] sm:$0xff] %vm81, %v351
  %368 = vst.msk [vmem:[%s5 + $0x40] sm:$0xff] %vm81, %v352
  %369 = vst.msk [vmem:[%s5 + $0x48] sm:$0xff] %vm81, %v353
  %370 = vst.msk [vmem:[%s5 + $0x50] sm:$0xff] %vm81, %v354
  %371 = vst.msk [vmem:[%s5 + $0x58] sm:$0xff] %vm81, %v355
  %372 = vst.msk [vmem:[%s5 + $0x60] sm:$0xff] %vm81, %v356
  %373 = vst.msk [vmem:[%s5 + $0x68] sm:$0xff] %vm81, %v357
  %374 = vst.msk [vmem:[%s5 + $0x70] sm:$0xff] %vm81, %v358
  %375 = vst.msk [vmem:[%s5 + $0x78] sm:$0xff] %vm81, %v359
  // Predicated region
  $region22: #{decoder_resf_forward.5} parent=0 // pred_check
    _
  $region23: #{decoder_resf_forward.5} parent=0 // pred_check_branch
    %377 = sbr.rel (0) target = $region25
  $region24: #{decoder_resf_forward.5} parent=0 // pred_region
    _
  $region25: #{decoder_resf_forward.5} parent=0 // pred_fallthru
    _
  // Predicated region
  $region26: #{decoder_resf_forward.5} parent=0 // pred_check
    _
  $region27: #{decoder_resf_forward.5} parent=0 // pred_check_branch
    %379 = sbr.rel (0) target = $region29
  $region28: #{decoder_resf_forward.5} parent=0 // pred_region
    _
  $region29: #{decoder_resf_forward.5} parent=0 // pred_fallthru
    _

// kernel: decoder_resf_forward.6
$region0: #{decoder_resf_forward.6}
  #allocation0 [shape = 'u32[]', space=smem, size = 0x4, offset = 0x4, fixed_abs, tag = 'smem constant byte address 0x4 - core index']
  #allocation1 [shape = 'u32[144,128]{1,0:T(1,128)}', space=vmem, size = 0x12000, scoped, tag = 'internal scratch']
  %s0 = inlined_call_operand.vmem [shape: f32[512,16], index: 0, kind: input, shape index: {}]
  %s1 = inlined_call_operand.vmem [shape: f32[512,8], index: 1, kind: input, shape index: {}]
  %s2 = inlined_call_operand.vmem [shape: bf16[16,8], index: 2, kind: input, shape index: {}]
  %s3 = inlined_call_operand.vmem [shape: bf16[8,8], index: 3, kind: input, shape index: {}]
  %s4 = inlined_call_operand.vmem [shape: f32[1,8], index: 4, kind: input, shape index: {}]
  %s5 = inlined_call_operand.vmem [shape: f32[512,8], index: 5, kind: output, shape index: {}]
  %s6 = sld [smem:[#allocation0]]
  $region30: #{decoder_resf_forward.6} parent=0
    _
  %s8 = ssub.s32 1, %s6
  %s9 = scalar_select 0, %s8, %s6
  // Predicated region
  $region2: #{decoder_resf_forward.6} parent=0 // pred_check
    _
  $region3: #{decoder_resf_forward.6} parent=0 // pred_check_branch
    %11 = sbr.rel (0) target = $region5
  $region4: #{decoder_resf_forward.6} parent=0 // pred_region
    _
  $region5: #{decoder_resf_forward.6} parent=0 // pred_fallthru
    _
  // Predicated region
  $region6: #{decoder_resf_forward.6} parent=0 // pred_check
    _
  $region7: #{decoder_resf_forward.6} parent=0 // pred_check_branch
    %13 = sbr.rel (0) target = $region9
  $region8: #{decoder_resf_forward.6} parent=0 // pred_region
    _
  $region9: #{decoder_resf_forward.6} parent=0 // pred_fallthru
    _
  // Predicated region
  $region10: #{decoder_resf_forward.6} parent=0 // pred_check
    _
  $region11: #{decoder_resf_forward.6} parent=0 // pred_check_branch
    %15 = sbr.rel (0) target = $region13
  $region12: #{decoder_resf_forward.6} parent=0 // pred_region
    _
  $region13: #{decoder_resf_forward.6} parent=0 // pred_fallthru
    _
  // Predicated region
  $region14: #{decoder_resf_forward.6} parent=0 // pred_check
    _
  $region15: #{decoder_resf_forward.6} parent=0 // pred_check_branch
    %17 = sbr.rel (0) target = $region17
  $region16: #{decoder_resf_forward.6} parent=0 // pred_region
    _
  $region17: #{decoder_resf_forward.6} parent=0 // pred_fallthru
    _
  // Predicated region
  $region18: #{decoder_resf_forward.6} parent=0 // pred_check
    _
  $region19: #{decoder_resf_forward.6} parent=0 // pred_check_branch
    %19 = sbr.rel (0) target = $region21
  $region20: #{decoder_resf_forward.6} parent=0 // pred_region
    _
  $region21: #{decoder_resf_forward.6} parent=0 // pred_fallthru
    _
  %v21 = vld [vmem:[%s0] sm:$0xff]
  %v22 = vld [vmem:[%s0 + $0x8] sm:$0xff]
  %v23 = vld [vmem:[%s0 + $0x10] sm:$0xff]
  %v24 = vld [vmem:[%s0 + $0x18] sm:$0xff]
  %v25 = vld [vmem:[%s0 + $0x20] sm:$0xff]
  %v26 = vld [vmem:[%s0 + $0x28] sm:$0xff]
  %v27 = vld [vmem:[%s0 + $0x30] sm:$0xff]
  %v28 = vld [vmem:[%s0 + $0x38] sm:$0xff]
  %v29 = vld [vmem:[%s0 + $0x40] sm:$0xff]
  %v30 = vld [vmem:[%s0 + $0x48] sm:$0xff]
  %v31 = vld [vmem:[%s0 + $0x50] sm:$0xff]
  %v32 = vld [vmem:[%s0 + $0x58] sm:$0xff]
  %v33 = vld [vmem:[%s0 + $0x60] sm:$0xff]
  %v34 = vld [vmem:[%s0 + $0x68] sm:$0xff]
  %v35 = vld [vmem:[%s0 + $0x70] sm:$0xff]
  %v36 = vld [vmem:[%s0 + $0x78] sm:$0xff]
  %v37 = vld [vmem:[%s0 + $0x80] sm:$0xff]
  %v38 = vld [vmem:[%s0 + $0x88] sm:$0xff]
  %v39 = vld [vmem:[%s0 + $0x90] sm:$0xff]
  %v40 = vld [vmem:[%s0 + $0x98] sm:$0xff]
  %v41 = vld [vmem:[%s0 + $0xa0] sm:$0xff]
  %v42 = vld [vmem:[%s0 + $0xa8] sm:$0xff]
  %v43 = vld [vmem:[%s0 + $0xb0] sm:$0xff]
  %v44 = vld [vmem:[%s0 + $0xb8] sm:$0xff]
  %v45 = vld [vmem:[%s0 + $0xc0] sm:$0xff]
  %v46 = vld [vmem:[%s0 + $0xc8] sm:$0xff]
  %v47 = vld [vmem:[%s0 + $0xd0] sm:$0xff]
  %v48 = vld [vmem:[%s0 + $0xd8] sm:$0xff]
  %v49 = vld [vmem:[%s0 + $0xe0] sm:$0xff]
  %v50 = vld [vmem:[%s0 + $0xe8] sm:$0xff]
  %v51 = vld [vmem:[%s0 + $0xf0] sm:$0xff]
  %v52 = vld [vmem:[%s0 + $0xf8] sm:$0xff]
  %v53 = vld [vmem:[%s0 + $0x100] sm:$0xff]
  %v54 = vld [vmem:[%s0 + $0x108] sm:$0xff]
  %v55 = vld [vmem:[%s0 + $0x110] sm:$0xff]
  %v56 = vld [vmem:[%s0 + $0x118] sm:$0xff]
  %v57 = vld [vmem:[%s0 + $0x120] sm:$0xff]
  %v58 = vld [vmem:[%s0 + $0x128] sm:$0xff]
  %v59 = vld [vmem:[%s0 + $0x130] sm:$0xff]
  %v60 = vld [vmem:[%s0 + $0x138] sm:$0xff]
  %v61 = vld [vmem:[%s0 + $0x140] sm:$0xff]
  %v62 = vld [vmem:[%s0 + $0x148] sm:$0xff]
  %v63 = vld [vmem:[%s0 + $0x150] sm:$0xff]
  %v64 = vld [vmem:[%s0 + $0x158] sm:$0xff]
  %v65 = vld [vmem:[%s0 + $0x160] sm:$0xff]
  %v66 = vld [vmem:[%s0 + $0x168] sm:$0xff]
  %v67 = vld [vmem:[%s0 + $0x170] sm:$0xff]
  %v68 = vld [vmem:[%s0 + $0x178] sm:$0xff]
  %v69 = vld [vmem:[%s0 + $0x180] sm:$0xff]
  %v70 = vld [vmem:[%s0 + $0x188] sm:$0xff]
  %v71 = vld [vmem:[%s0 + $0x190] sm:$0xff]
  %v72 = vld [vmem:[%s0 + $0x198] sm:$0xff]
  %v73 = vld [vmem:[%s0 + $0x1a0] sm:$0xff]
  %v74 = vld [vmem:[%s0 + $0x1a8] sm:$0xff]
  %v75 = vld [vmem:[%s0 + $0x1b0] sm:$0xff]
  %v76 = vld [vmem:[%s0 + $0x1b8] sm:$0xff]
  %v77 = vld [vmem:[%s0 + $0x1c0] sm:$0xff]
  %v78 = vld [vmem:[%s0 + $0x1c8] sm:$0xff]
  %v79 = vld [vmem:[%s0 + $0x1d0] sm:$0xff]
  %v80 = vld [vmem:[%s0 + $0x1d8] sm:$0xff]
  %v81 = vld [vmem:[%s0 + $0x1e0] sm:$0xff]
  %v82 = vld [vmem:[%s0 + $0x1e8] sm:$0xff]
  %v83 = vld [vmem:[%s0 + $0x1f0] sm:$0xff]
  %v84 = vld [vmem:[%s0 + $0x1f8] sm:$0xff]
  %v85 = vpack.c.bf16 %v22, %v21
  %v86 = vpack.c.bf16 %v24, %v23
  %v87 = vpack.c.bf16 %v26, %v25
  %v88 = vpack.c.bf16 %v28, %v27
  %v89 = vpack.c.bf16 %v30, %v29
  %v90 = vpack.c.bf16 %v32, %v31
  %v91 = vpack.c.bf16 %v34, %v33
  %v92 = vpack.c.bf16 %v36, %v35
  %v93 = vpack.c.bf16 %v38, %v37
  %v94 = vpack.c.bf16 %v40, %v39
  %v95 = vpack.c.bf16 %v42, %v41
  %v96 = vpack.c.bf16 %v44, %v43
  %v97 = vpack.c.bf16 %v46, %v45
  %v98 = vpack.c.bf16 %v48, %v47
  %v99 = vpack.c.bf16 %v50, %v49
  %v100 = vpack.c.bf16 %v52, %v51
  %v101 = vpack.c.bf16 %v54, %v53
  %v102 = vpack.c.bf16 %v56, %v55
  %v103 = vpack.c.bf16 %v58, %v57
  %v104 = vpack.c.bf16 %v60, %v59
  %v105 = vpack.c.bf16 %v62, %v61
  %v106 = vpack.c.bf16 %v64, %v63
  %v107 = vpack.c.bf16 %v66, %v65
  %v108 = vpack.c.bf16 %v68, %v67
  %v109 = vpack.c.bf16 %v70, %v69
  %v110 = vpack.c.bf16 %v72, %v71
  %v111 = vpack.c.bf16 %v74, %v73
  %v112 = vpack.c.bf16 %v76, %v75
  %v113 = vpack.c.bf16 %v78, %v77
  %v114 = vpack.c.bf16 %v80, %v79
  %v115 = vpack.c.bf16 %v82, %v81
  %v116 = vpack.c.bf16 %v84, %v83
  %v117 = vld [vmem:[%s2] sm:$0xf]
  %v118 = vld [vmem:[%s2 + $0x4] sm:$0xf]
  %v119 = vld [vmem:[%s1] sm:$0xff]
  %v120 = vld [vmem:[%s1 + $0x8] sm:$0xff]
  %v121 = vld [vmem:[%s1 + $0x10] sm:$0xff]
  %v122 = vld [vmem:[%s1 + $0x18] sm:$0xff]
  %v123 = vld [vmem:[%s1 + $0x20] sm:$0xff]
  %v124 = vld [vmem:[%s1 + $0x28] sm:$0xff]
  %v125 = vld [vmem:[%s1 + $0x30] sm:$0xff]
  %v126 = vld [vmem:[%s1 + $0x38] sm:$0xff]
  %v127 = vld [vmem:[%s1 + $0x40] sm:$0xff]
  %v128 = vld [vmem:[%s1 + $0x48] sm:$0xff]
  %v129 = vld [vmem:[%s1 + $0x50] sm:$0xff]
  %v130 = vld [vmem:[%s1 + $0x58] sm:$0xff]
  %v131 = vld [vmem:[%s1 + $0x60] sm:$0xff]
  %v132 = vld [vmem:[%s1 + $0x68] sm:$0xff]
  %v133 = vld [vmem:[%s1 + $0x70] sm:$0xff]
  %v134 = vld [vmem:[%s1 + $0x78] sm:$0xff]
  %v135 = vld [vmem:[%s1 + $0x80] sm:$0xff]
  %v136 = vld [vmem:[%s1 + $0x88] sm:$0xff]
  %v137 = vld [vmem:[%s1 + $0x90] sm:$0xff]
  %v138 = vld [vmem:[%s1 + $0x98] sm:$0xff]
  %v139 = vld [vmem:[%s1 + $0xa0] sm:$0xff]
  %v140 = vld [vmem:[%s1 + $0xa8] sm:$0xff]
  %v141 = vld [vmem:[%s1 + $0xb0] sm:$0xff]
  %v142 = vld [vmem:[%s1 + $0xb8] sm:$0xff]
  %v143 = vld [vmem:[%s1 + $0xc0] sm:$0xff]
  %v144 = vld [vmem:[%s1 + $0xc8] sm:$0xff]
  %v145 = vld [vmem:[%s1 + $0xd0] sm:$0xff]
  %v146 = vld [vmem:[%s1 + $0xd8] sm:$0xff]
  %v147 = vld [vmem:[%s1 + $0xe0] sm:$0xff]
  %v148 = vld [vmem:[%s1 + $0xe8] sm:$0xff]
  %v149 = vld [vmem:[%s1 + $0xf0] sm:$0xff]
  %v150 = vld [vmem:[%s1 + $0xf8] sm:$0xff]
  %v151 = vld [vmem:[%s1 + $0x100] sm:$0xff]
  %v152 = vld [vmem:[%s1 + $0x108] sm:$0xff]
  %v153 = vld [vmem:[%s1 + $0x110] sm:$0xff]
  %v154 = vld [vmem:[%s1 + $0x118] sm:$0xff]
  %v155 = vld [vmem:[%s1 + $0x120] sm:$0xff]
  %v156 = vld [vmem:[%s1 + $0x128] sm:$0xff]
  %v157 = vld [vmem:[%s1 + $0x130] sm:$0xff]
  %v158 = vld [vmem:[%s1 + $0x138] sm:$0xff]
  %v159 = vld [vmem:[%s1 + $0x140] sm:$0xff]
  %v160 = vld [vmem:[%s1 + $0x148] sm:$0xff]
  %v161 = vld [vmem:[%s1 + $0x150] sm:$0xff]
  %v162 = vld [vmem:[%s1 + $0x158] sm:$0xff]
  %v163 = vld [vmem:[%s1 + $0x160] sm:$0xff]
  %v164 = vld [vmem:[%s1 + $0x168] sm:$0xff]
  %v165 = vld [vmem:[%s1 + $0x170] sm:$0xff]
  %v166 = vld [vmem:[%s1 + $0x178] sm:$0xff]
  %v167 = vld [vmem:[%s1 + $0x180] sm:$0xff]
  %v168 = vld [vmem:[%s1 + $0x188] sm:$0xff]
  %v169 = vld [vmem:[%s1 + $0x190] sm:$0xff]
  %v170 = vld [vmem:[%s1 + $0x198] sm:$0xff]
  %v171 = vld [vmem:[%s1 + $0x1a0] sm:$0xff]
  %v172 = vld [vmem:[%s1 + $0x1a8] sm:$0xff]
  %v173 = vld [vmem:[%s1 + $0x1b0] sm:$0xff]
  %v174 = vld [vmem:[%s1 + $0x1b8] sm:$0xff]
  %v175 = vld [vmem:[%s1 + $0x1c0] sm:$0xff]
  %v176 = vld [vmem:[%s1 + $0x1c8] sm:$0xff]
  %v177 = vld [vmem:[%s1 + $0x1d0] sm:$0xff]
  %v178 = vld [vmem:[%s1 + $0x1d8] sm:$0xff]
  %v179 = vld [vmem:[%s1 + $0x1e0] sm:$0xff]
  %v180 = vld [vmem:[%s1 + $0x1e8] sm:$0xff]
  %v181 = vld [vmem:[%s1 + $0x1f0] sm:$0xff]
  %v182 = vld [vmem:[%s1 + $0x1f8] sm:$0xff]
  %v183 = vpack.c.bf16 %v120, %v119
  %v184 = vpack.c.bf16 %v122, %v121
  %v185 = vpack.c.bf16 %v124, %v123
  %v186 = vpack.c.bf16 %v126, %v125
  %v187 = vpack.c.bf16 %v128, %v127
  %v188 = vpack.c.bf16 %v130, %v129
  %v189 = vpack.c.bf16 %v132, %v131
  %v190 = vpack.c.bf16 %v134, %v133
  %v191 = vpack.c.bf16 %v136, %v135
  %v192 = vpack.c.bf16 %v138, %v137
  %v193 = vpack.c.bf16 %v140, %v139
  %v194 = vpack.c.bf16 %v142, %v141
  %v195 = vpack.c.bf16 %v144, %v143
  %v196 = vpack.c.bf16 %v146, %v145
  %v197 = vpack.c.bf16 %v148, %v147
  %v198 = vpack.c.bf16 %v150, %v149
  %v199 = vpack.c.bf16 %v152, %v151
  %v200 = vpack.c.bf16 %v154, %v153
  %v201 = vpack.c.bf16 %v156, %v155
  %v202 = vpack.c.bf16 %v158, %v157
  %v203 = vpack.c.bf16 %v160, %v159
  %v204 = vpack.c.bf16 %v162, %v161
  %v205 = vpack.c.bf16 %v164, %v163
  %v206 = vpack.c.bf16 %v166, %v165
  %v207 = vpack.c.bf16 %v168, %v167
  %v208 = vpack.c.bf16 %v170, %v169
  %v209 = vpack.c.bf16 %v172, %v171
  %v210 = vpack.c.bf16 %v174, %v173
  %v211 = vpack.c.bf16 %v176, %v175
  %v212 = vpack.c.bf16 %v178, %v177
  %v213 = vpack.c.bf16 %v180, %v179
  %v214 = vpack.c.bf16 %v182, %v181
  %v215 = vld [vmem:[%s3] sm:$0xf]
  %vm216 = vcmask 64512
  %v218 = vsel %vm216, %v183, 0
  %v221 = vsel %vm216, %v184, 0
  %v224 = vsel %vm216, %v185, 0
  %v227 = vsel %vm216, %v186, 0
  %v230 = vsel %vm216, %v187, 0
  %v233 = vsel %vm216, %v188, 0
  %v236 = vsel %vm216, %v189, 0
  %v239 = vsel %vm216, %v190, 0
  %v242 = vsel %vm216, %v191, 0
  %v245 = vsel %vm216, %v192, 0
  %v248 = vsel %vm216, %v193, 0
  %v251 = vsel %vm216, %v194, 0
  %v254 = vsel %vm216, %v195, 0
  %v257 = vsel %vm216, %v196, 0
  %v260 = vsel %vm216, %v197, 0
  %v263 = vsel %vm216, %v198, 0
  %v266 = vsel %vm216, %v199, 0
  %v269 = vsel %vm216, %v200, 0
  %v272 = vsel %vm216, %v201, 0
  %v275 = vsel %vm216, %v202, 0
  %v278 = vsel %vm216, %v203, 0
  %v281 = vsel %vm216, %v204, 0
  %v284 = vsel %vm216, %v205, 0
  %v287 = vsel %vm216, %v206, 0
  %v290 = vsel %vm216, %v207, 0
  %v293 = vsel %vm216, %v208, 0
  %v296 = vsel %vm216, %v209, 0
  %v299 = vsel %vm216, %v210, 0
  %v302 = vsel %vm216, %v211, 0
  %v305 = vsel %vm216, %v212, 0
  %v308 = vsel %vm216, %v213, 0
  %v311 = vsel %vm216, %v214, 0
  %vm313 = vcmask 1043456
  %v315 = vsel %vm313, %v215, 0
  %317 = vmatprep.subr.bf16.mxu0 0
  %318 = vmatpush1.bf16.msra.mxu0 0
  %319 = vmatprep.subr.bf16.mxu0 0
  %320 = vmatpush1.bf16.msra.mxu0 0
  %321 = vmatprep.subr.bf16.mxu0 0
  %322 = vmatpush1.bf16.msra.mxu0 0
  %323 = vmatprep.subr.bf16.mxu0 0
  %324 = vmatpush1.bf16.msra.mxu0 0
  %325 = vmatprep.subr.bf16.mxu0 0
  %326 = vmatpush1.bf16.msra.mxu0 0
  %327 = vmatprep.subr.bf16.mxu0 0
  %328 = vmatpush1.bf16.msra.mxu0 0
  %329 = vmatprep.subr.bf16.mxu0 0
  %330 = vmatpush1.bf16.msra.mxu0 0
  %331 = vmatprep.subr.bf16.mxu0 0
  %332 = vmatpush1.bf16.msra.mxu0 %v315
  %333 = vmatprep.subr.bf16.mxu0 0
  %334 = vmatpush2.bf16.msra.mxu0 0
  %335 = vmatprep.subr.bf16.mxu0 0
  %336 = vmatpush2.bf16.msra.mxu0 0
  %337 = vmatprep.subr.bf16.mxu0 0
  %338 = vmatpush2.bf16.msra.mxu0 0
  %339 = vmatprep.subr.bf16.mxu0 0
  %340 = vmatpush2.bf16.msra.mxu0 0
  %341 = vmatprep.subr.bf16.mxu0 0
  %342 = vmatpush2.bf16.msra.mxu0 0
  %343 = vmatprep.subr.bf16.mxu0 0
  %344 = vmatpush2.bf16.msra.mxu0 0
  %345 = vmatprep.subr.bf16.mxu0 0
  %346 = vmatpush2.bf16.msra.mxu0 0
  %347 = vmatprep.subr.bf16.mxu0 0
  %348 = vmatpush2.bf16.msra.mxu0 0
  %349 = vmatprep.mubr.bf16.mxu0 0
  %350 = vmatmul.mubr.bf16.gmra.mxu0 %v218
  %v351 = vpop.f32.mrf.mxu0
  %v352 = vadd.f32 0.0, %v351
  %v353 = vpop.f32.mrf.mxu0
  %v354 = vpop.f32.mrf.mxu0
  %v355 = vadd.f32 0.0, %v354
  %v356 = vpop.f32.mrf.mxu0
  %357 = vmatprep.mubr.bf16.mxu0 0
  %358 = vmatmul.mubr.bf16.gmra.mxu0 %v221
  %v359 = vpop.f32.mrf.mxu0
  %v360 = vadd.f32 0.0, %v359
  %v361 = vpop.f32.mrf.mxu0
  %v362 = vpop.f32.mrf.mxu0
  %v363 = vadd.f32 0.0, %v362
  %v364 = vpop.f32.mrf.mxu0
  %365 = vmatprep.mubr.bf16.mxu0 0
  %366 = vmatmul.mubr.bf16.gmra.mxu0 %v224
  %v367 = vpop.f32.mrf.mxu0
  %v368 = vadd.f32 0.0, %v367
  %v369 = vpop.f32.mrf.mxu0
  %v370 = vpop.f32.mrf.mxu0
  %v371 = vadd.f32 0.0, %v370
  %v372 = vpop.f32.mrf.mxu0
  %373 = vmatprep.mubr.bf16.mxu0 0
  %374 = vmatmul.mubr.bf16.gmra.mxu0 %v227
  %v375 = vpop.f32.mrf.mxu0
  %v376 = vadd.f32 0.0, %v375
  %v377 = vpop.f32.mrf.mxu0
  %v378 = vpop.f32.mrf.mxu0
  %v379 = vadd.f32 0.0, %v378
  %v380 = vpop.f32.mrf.mxu0
  %381 = vmatprep.mubr.bf16.mxu0 0
  %382 = vmatmul.mubr.bf16.gmra.mxu0 %v230
  %v383 = vpop.f32.mrf.mxu0
  %v384 = vadd.f32 0.0, %v383
  %v385 = vpop.f32.mrf.mxu0
  %v386 = vpop.f32.mrf.mxu0
  %v387 = vadd.f32 0.0, %v386
  %v388 = vpop.f32.mrf.mxu0
  %389 = vmatprep.mubr.bf16.mxu0 0
  %390 = vmatmul.mubr.bf16.gmra.mxu0 %v233
  %v391 = vpop.f32.mrf.mxu0
  %v392 = vadd.f32 0.0, %v391
  %v393 = vpop.f32.mrf.mxu0
  %v394 = vpop.f32.mrf.mxu0
  %v395 = vadd.f32 0.0, %v394
  %v396 = vpop.f32.mrf.mxu0
  %397 = vmatprep.mubr.bf16.mxu0 0
  %398 = vmatmul.mubr.bf16.gmra.mxu0 %v236
  %v399 = vpop.f32.mrf.mxu0
  %v400 = vadd.f32 0.0, %v399
  %v401 = vpop.f32.mrf.mxu0
  %v402 = vpop.f32.mrf.mxu0
  %v403 = vadd.f32 0.0, %v402
  %v404 = vpop.f32.mrf.mxu0
  %405 = vmatprep.mubr.bf16.mxu0 0
  %406 = vmatmul.mubr.bf16.gmra.mxu0 %v239
  %v407 = vpop.f32.mrf.mxu0
  %v408 = vadd.f32 0.0, %v407
  %v409 = vpop.f32.mrf.mxu0
  %v410 = vpop.f32.mrf.mxu0
  %v411 = vadd.f32 0.0, %v410
  %v412 = vpop.f32.mrf.mxu0
  %413 = vmatprep.mubr.bf16.mxu0 0
  %414 = vmatmul.mubr.bf16.gmra.mxu0 %v242
  %v415 = vpop.f32.mrf.mxu0
  %v416 = vadd.f32 0.0, %v415
  %v417 = vpop.f32.mrf.mxu0
  %v418 = vpop.f32.mrf.mxu0
  %v419 = vadd.f32 0.0, %v418
  %v420 = vpop.f32.mrf.mxu0
  %421 = vmatprep.mubr.bf16.mxu0 0
  %422 = vmatmul.mubr.bf16.gmra.mxu0 %v245
  %v423 = vpop.f32.mrf.mxu0
  %v424 = vadd.f32 0.0, %v423
  %v425 = vpop.f32.mrf.mxu0
  %v426 = vpop.f32.mrf.mxu0
  %v427 = vadd.f32 0.0, %v426
  %v428 = vpop.f32.mrf.mxu0
  %429 = vmatprep.mubr.bf16.mxu0 0
  %430 = vmatmul.mubr.bf16.gmra.mxu0 %v248
  %v431 = vpop.f32.mrf.mxu0
  %v432 = vadd.f32 0.0, %v431
  %v433 = vpop.f32.mrf.mxu0
  %v434 = vpop.f32.mrf.mxu0
  %v435 = vadd.f32 0.0, %v434
  %v436 = vpop.f32.mrf.mxu0
  %437 = vmatprep.mubr.bf16.mxu0 0
  %438 = vmatmul.mubr.bf16.gmra.mxu0 %v251
  %v439 = vpop.f32.mrf.mxu0
  %v440 = vadd.f32 0.0, %v439
  %v441 = vpop.f32.mrf.mxu0
  %v442 = vpop.f32.mrf.mxu0
  %v443 = vadd.f32 0.0, %v442
  %v444 = vpop.f32.mrf.mxu0
  %445 = vmatprep.mubr.bf16.mxu0 0
  %446 = vmatmul.mubr.bf16.gmra.mxu0 %v254
  %v447 = vpop.f32.mrf.mxu0
  %v448 = vadd.f32 0.0, %v447
  %v449 = vpop.f32.mrf.mxu0
  %v450 = vpop.f32.mrf.mxu0
  %v451 = vadd.f32 0.0, %v450
  %v452 = vpop.f32.mrf.mxu0
  %453 = vmatprep.mubr.bf16.mxu0 0
  %454 = vmatmul.mubr.bf16.gmra.mxu0 %v257
  %v455 = vpop.f32.mrf.mxu0
  %v456 = vadd.f32 0.0, %v455
  %v457 = vpop.f32.mrf.mxu0
  %v458 = vpop.f32.mrf.mxu0
  %v459 = vadd.f32 0.0, %v458
  %v460 = vpop.f32.mrf.mxu0
  %461 = vmatprep.mubr.bf16.mxu0 0
  %462 = vmatmul.mubr.bf16.gmra.mxu0 %v260
  %v463 = vpop.f32.mrf.mxu0
  %v464 = vadd.f32 0.0, %v463
  %v465 = vpop.f32.mrf.mxu0
  %v466 = vpop.f32.mrf.mxu0
  %v467 = vadd.f32 0.0, %v466
  %v468 = vpop.f32.mrf.mxu0
  %469 = vmatprep.mubr.bf16.mxu0 0
  %470 = vmatmul.mubr.bf16.gmra.mxu0 %v263
  %v471 = vpop.f32.mrf.mxu0
  %v472 = vadd.f32 0.0, %v471
  %v473 = vpop.f32.mrf.mxu0
  %v474 = vpop.f32.mrf.mxu0
  %v475 = vadd.f32 0.0, %v474
  %v476 = vpop.f32.mrf.mxu0
  %477 = vmatprep.mubr.bf16.mxu0 0
  %478 = vmatmul.mubr.bf16.gmra.mxu0 %v266
  %v479 = vpop.f32.mrf.mxu0
  %v480 = vadd.f32 0.0, %v479
  %v481 = vpop.f32.mrf.mxu0
  %v482 = vpop.f32.mrf.mxu0
  %v483 = vadd.f32 0.0, %v482
  %v484 = vpop.f32.mrf.mxu0
  %485 = vmatprep.mubr.bf16.mxu0 0
  %486 = vmatmul.mubr.bf16.gmra.mxu0 %v269
  %v487 = vpop.f32.mrf.mxu0
  %v488 = vadd.f32 0.0, %v487
  %v489 = vpop.f32.mrf.mxu0
  %v490 = vpop.f32.mrf.mxu0
  %v491 = vadd.f32 0.0, %v490
  %v492 = vpop.f32.mrf.mxu0
  %493 = vmatprep.mubr.bf16.mxu0 0
  %494 = vmatmul.mubr.bf16.gmra.mxu0 %v272
  %v495 = vpop.f32.mrf.mxu0
  %v496 = vadd.f32 0.0, %v495
  %v497 = vpop.f32.mrf.mxu0
  %v498 = vpop.f32.mrf.mxu0
  %v499 = vadd.f32 0.0, %v498
  %v500 = vpop.f32.mrf.mxu0
  %501 = vmatprep.mubr.bf16.mxu0 0
  %502 = vmatmul.mubr.bf16.gmra.mxu0 %v275
  %v503 = vpop.f32.mrf.mxu0
  %v504 = vadd.f32 0.0, %v503
  %v505 = vpop.f32.mrf.mxu0
  %v506 = vpop.f32.mrf.mxu0
  %v507 = vadd.f32 0.0, %v506
  %v508 = vpop.f32.mrf.mxu0
  %509 = vmatprep.mubr.bf16.mxu0 0
  %510 = vmatmul.mubr.bf16.gmra.mxu0 %v278
  %v511 = vpop.f32.mrf.mxu0
  %v512 = vadd.f32 0.0, %v511
  %v513 = vpop.f32.mrf.mxu0
  %v514 = vpop.f32.mrf.mxu0
  %v515 = vadd.f32 0.0, %v514
  %v516 = vpop.f32.mrf.mxu0
  %517 = vmatprep.mubr.bf16.mxu0 0
  %518 = vmatmul.mubr.bf16.gmra.mxu0 %v281
  %v519 = vpop.f32.mrf.mxu0
  %v520 = vadd.f32 0.0, %v519
  %v521 = vpop.f32.mrf.mxu0
  %v522 = vpop.f32.mrf.mxu0
  %v523 = vadd.f32 0.0, %v522
  %v524 = vpop.f32.mrf.mxu0
  %525 = vmatprep.mubr.bf16.mxu0 0
  %526 = vmatmul.mubr.bf16.gmra.mxu0 %v284
  %v527 = vpop.f32.mrf.mxu0
  %v528 = vadd.f32 0.0, %v527
  %v529 = vpop.f32.mrf.mxu0
  %v530 = vpop.f32.mrf.mxu0
  %v531 = vadd.f32 0.0, %v530
  %v532 = vpop.f32.mrf.mxu0
  %533 = vmatprep.mubr.bf16.mxu0 0
  %534 = vmatmul.mubr.bf16.gmra.mxu0 %v287
  %v535 = vpop.f32.mrf.mxu0
  %v536 = vadd.f32 0.0, %v535
  %v537 = vpop.f32.mrf.mxu0
  %v538 = vpop.f32.mrf.mxu0
  %v539 = vadd.f32 0.0, %v538
  %v540 = vpop.f32.mrf.mxu0
  %541 = vmatprep.mubr.bf16.mxu0 0
  %542 = vmatmul.mubr.bf16.gmra.mxu0 %v290
  %v543 = vpop.f32.mrf.mxu0
  %v544 = vadd.f32 0.0, %v543
  %v545 = vpop.f32.mrf.mxu0
  %v546 = vpop.f32.mrf.mxu0
  %v547 = vadd.f32 0.0, %v546
  %v548 = vpop.f32.mrf.mxu0
  %549 = vmatprep.mubr.bf16.mxu0 0
  %550 = vmatmul.mubr.bf16.gmra.mxu0 %v293
  %v551 = vpop.f32.mrf.mxu0
  %v552 = vadd.f32 0.0, %v551
  %v553 = vpop.f32.mrf.mxu0
  %v554 = vpop.f32.mrf.mxu0
  %v555 = vadd.f32 0.0, %v554
  %v556 = vpop.f32.mrf.mxu0
  %557 = vmatprep.mubr.bf16.mxu0 0
  %558 = vmatmul.mubr.bf16.gmra.mxu0 %v296
  %v559 = vpop.f32.mrf.mxu0
  %v560 = vadd.f32 0.0, %v559
  %v561 = vpop.f32.mrf.mxu0
  %v562 = vpop.f32.mrf.mxu0
  %v563 = vadd.f32 0.0, %v562
  %v564 = vpop.f32.mrf.mxu0
  %565 = vmatprep.mubr.bf16.mxu0 0
  %566 = vmatmul.mubr.bf16.gmra.mxu0 %v299
  %v567 = vpop.f32.mrf.mxu0
  %v568 = vadd.f32 0.0, %v567
  %v569 = vpop.f32.mrf.mxu0
  %v570 = vpop.f32.mrf.mxu0
  %v571 = vadd.f32 0.0, %v570
  %v572 = vpop.f32.mrf.mxu0
  %573 = vmatprep.mubr.bf16.mxu0 0
  %574 = vmatmul.mubr.bf16.gmra.mxu0 %v302
  %v575 = vpop.f32.mrf.mxu0
  %v576 = vadd.f32 0.0, %v575
  %v577 = vpop.f32.mrf.mxu0
  %v578 = vpop.f32.mrf.mxu0
  %v579 = vadd.f32 0.0, %v578
  %v580 = vpop.f32.mrf.mxu0
  %581 = vmatprep.mubr.bf16.mxu0 0
  %582 = vmatmul.mubr.bf16.gmra.mxu0 %v305
  %v583 = vpop.f32.mrf.mxu0
  %v584 = vadd.f32 0.0, %v583
  %v585 = vpop.f32.mrf.mxu0
  %v586 = vpop.f32.mrf.mxu0
  %v587 = vadd.f32 0.0, %v586
  %v588 = vpop.f32.mrf.mxu0
  %589 = vmatprep.mubr.bf16.mxu0 0
  %590 = vmatmul.mubr.bf16.gmra.mxu0 %v308
  %v591 = vpop.f32.mrf.mxu0
  %v592 = vadd.f32 0.0, %v591
  %v593 = vpop.f32.mrf.mxu0
  %v594 = vpop.f32.mrf.mxu0
  %v595 = vadd.f32 0.0, %v594
  %v596 = vpop.f32.mrf.mxu0
  %597 = vmatprep.mubr.bf16.mxu0 0
  %598 = vmatmul.mubr.bf16.gmra.mxu0 %v311
  %v599 = vpop.f32.mrf.mxu0
  %v600 = vadd.f32 0.0, %v599
  %v601 = vpop.f32.mrf.mxu0
  %v602 = vpop.f32.mrf.mxu0
  %v603 = vadd.f32 0.0, %v602
  %v604 = vpop.f32.mrf.mxu0
  %605 = vdwg.mxu0
  %v608 = vunpack.c.l.b16 %v117
  %v609 = vunpack.c.l.b16 %v118
  %v610 = vpack.c.b16 %v609, %v608
  %vm612 = vcmask 130048
  %v614 = vsel %vm612, %v85, 0
  %v617 = vsel %vm612, %v86, 0
  %v620 = vsel %vm612, %v87, 0
  %v623 = vsel %vm612, %v88, 0
  %v626 = vsel %vm612, %v89, 0
  %v629 = vsel %vm612, %v90, 0
  %v632 = vsel %vm612, %v91, 0
  %v635 = vsel %vm612, %v92, 0
  %v638 = vsel %vm612, %v93, 0
  %v641 = vsel %vm612, %v94, 0
  %v644 = vsel %vm612, %v95, 0
  %v647 = vsel %vm612, %v96, 0
  %v650 = vsel %vm612, %v97, 0
  %v653 = vsel %vm612, %v98, 0
  %v656 = vsel %vm612, %v99, 0
  %v659 = vsel %vm612, %v100, 0
  %v662 = vsel %vm612, %v101, 0
  %v665 = vsel %vm612, %v102, 0
  %v668 = vsel %vm612, %v103, 0
  %v671 = vsel %vm612, %v104, 0
  %v674 = vsel %vm612, %v105, 0
  %v677 = vsel %vm612, %v106, 0
  %v680 = vsel %vm612, %v107, 0
  %v683 = vsel %vm612, %v108, 0
  %v686 = vsel %vm612, %v109, 0
  %v689 = vsel %vm612, %v110, 0
  %v692 = vsel %vm612, %v111, 0
  %v695 = vsel %vm612, %v112, 0
  %v698 = vsel %vm612, %v113, 0
  %v701 = vsel %vm612, %v114, 0
  %v704 = vsel %vm612, %v115, 0
  %v707 = vsel %vm612, %v116, 0
  %709 = vmatprep.subr.bf16.mxu0 0
  %710 = vmatpush1.bf16.msra.mxu0 0
  %711 = vmatprep.subr.bf16.mxu0 0
  %712 = vmatpush1.bf16.msra.mxu0 0
  %713 = vmatprep.subr.bf16.mxu0 0
  %714 = vmatpush1.bf16.msra.mxu0 0
  %715 = vmatprep.subr.bf16.mxu0 0
  %716 = vmatpush1.bf16.msra.mxu0 0
  %717 = vmatprep.subr.bf16.mxu0 0
  %718 = vmatpush1.bf16.msra.mxu0 0
  %719 = vmatprep.subr.bf16.mxu0 0
  %720 = vmatpush1.bf16.msra.mxu0 0
  %721 = vmatprep.subr.bf16.mxu0 0
  %722 = vmatpush1.bf16.msra.mxu0 0
  %723 = vmatprep.subr.bf16.mxu0 0
  %724 = vmatpush1.bf16.msra.mxu0 %v610
  %725 = vmatprep.subr.bf16.mxu0 0
  %726 = vmatpush2.bf16.msra.mxu0 0
  %727 = vmatprep.subr.bf16.mxu0 0
  %728 = vmatpush2.bf16.msra.mxu0 0
  %729 = vmatprep.subr.bf16.mxu0 0
  %730 = vmatpush2.bf16.msra.mxu0 0
  %731 = vmatprep.subr.bf16.mxu0 0
  %732 = vmatpush2.bf16.msra.mxu0 0
  %733 = vmatprep.subr.bf16.mxu0 0
  %734 = vmatpush2.bf16.msra.mxu0 0
  %735 = vmatprep.subr.bf16.mxu0 0
  %736 = vmatpush2.bf16.msra.mxu0 0
  %737 = vmatprep.subr.bf16.mxu0 0
  %738 = vmatpush2.bf16.msra.mxu0 0
  %739 = vmatprep.subr.bf16.mxu0 0
  %740 = vmatpush2.bf16.msra.mxu0 0
  %741 = vmatprep.mubr.bf16.mxu0 0
  %742 = vmatmul.mubr.bf16.gmra.mxu0 %v614
  %v743 = vpop.f32.mrf.mxu0
  %v744 = vadd.f32 %v352, %v743
  %v745 = vpop.f32.mrf.mxu0
  %v746 = vpop.f32.mrf.mxu0
  %v747 = vadd.f32 %v355, %v746
  %v748 = vpop.f32.mrf.mxu0
  %749 = vmatprep.mubr.bf16.mxu0 0
  %750 = vmatmul.mubr.bf16.gmra.mxu0 %v617
  %v751 = vpop.f32.mrf.mxu0
  %v752 = vadd.f32 %v360, %v751
  %v753 = vpop.f32.mrf.mxu0
  %v754 = vpop.f32.mrf.mxu0
  %v755 = vadd.f32 %v363, %v754
  %v756 = vpop.f32.mrf.mxu0
  %757 = vmatprep.mubr.bf16.mxu0 0
  %758 = vmatmul.mubr.bf16.gmra.mxu0 %v620
  %v759 = vpop.f32.mrf.mxu0
  %v760 = vadd.f32 %v368, %v759
  %v761 = vpop.f32.mrf.mxu0
  %v762 = vpop.f32.mrf.mxu0
  %v763 = vadd.f32 %v371, %v762
  %v764 = vpop.f32.mrf.mxu0
  %765 = vmatprep.mubr.bf16.mxu0 0
  %766 = vmatmul.mubr.bf16.gmra.mxu0 %v623
  %v767 = vpop.f32.mrf.mxu0
  %v768 = vadd.f32 %v376, %v767
  %v769 = vpop.f32.mrf.mxu0
  %v770 = vpop.f32.mrf.mxu0
  %v771 = vadd.f32 %v379, %v770
  %v772 = vpop.f32.mrf.mxu0
  %773 = vmatprep.mubr.bf16.mxu0 0
  %774 = vmatmul.mubr.bf16.gmra.mxu0 %v626
  %v775 = vpop.f32.mrf.mxu0
  %v776 = vadd.f32 %v384, %v775
  %v777 = vpop.f32.mrf.mxu0
  %v778 = vpop.f32.mrf.mxu0
  %v779 = vadd.f32 %v387, %v778
  %v780 = vpop.f32.mrf.mxu0
  %781 = vmatprep.mubr.bf16.mxu0 0
  %782 = vmatmul.mubr.bf16.gmra.mxu0 %v629
  %v783 = vpop.f32.mrf.mxu0
  %v784 = vadd.f32 %v392, %v783
  %v785 = vpop.f32.mrf.mxu0
  %v786 = vpop.f32.mrf.mxu0
  %v787 = vadd.f32 %v395, %v786
  %v788 = vpop.f32.mrf.mxu0
  %789 = vmatprep.mubr.bf16.mxu0 0
  %790 = vmatmul.mubr.bf16.gmra.mxu0 %v632
  %v791 = vpop.f32.mrf.mxu0
  %v792 = vadd.f32 %v400, %v791
  %v793 = vpop.f32.mrf.mxu0
  %v794 = vpop.f32.mrf.mxu0
  %v795 = vadd.f32 %v403, %v794
  %v796 = vpop.f32.mrf.mxu0
  %797 = vmatprep.mubr.bf16.mxu0 0
  %798 = vmatmul.mubr.bf16.gmra.mxu0 %v635
  %v799 = vpop.f32.mrf.mxu0
  %v800 = vadd.f32 %v408, %v799
  %v801 = vpop.f32.mrf.mxu0
  %v802 = vpop.f32.mrf.mxu0
  %v803 = vadd.f32 %v411, %v802
  %v804 = vpop.f32.mrf.mxu0
  %805 = vmatprep.mubr.bf16.mxu0 0
  %806 = vmatmul.mubr.bf16.gmra.mxu0 %v638
  %v807 = vpop.f32.mrf.mxu0
  %v808 = vadd.f32 %v416, %v807
  %v809 = vpop.f32.mrf.mxu0
  %v810 = vpop.f32.mrf.mxu0
  %v811 = vadd.f32 %v419, %v810
  %v812 = vpop.f32.mrf.mxu0
  %813 = vmatprep.mubr.bf16.mxu0 0
  %814 = vmatmul.mubr.bf16.gmra.mxu0 %v641
  %v815 = vpop.f32.mrf.mxu0
  %v816 = vadd.f32 %v424, %v815
  %v817 = vpop.f32.mrf.mxu0
  %v818 = vpop.f32.mrf.mxu0
  %v819 = vadd.f32 %v427, %v818
  %v820 = vpop.f32.mrf.mxu0
  %821 = vmatprep.mubr.bf16.mxu0 0
  %822 = vmatmul.mubr.bf16.gmra.mxu0 %v644
  %v823 = vpop.f32.mrf.mxu0
  %v824 = vadd.f32 %v432, %v823
  %v825 = vpop.f32.mrf.mxu0
  %v826 = vpop.f32.mrf.mxu0
  %v827 = vadd.f32 %v435, %v826
  %v828 = vpop.f32.mrf.mxu0
  %829 = vmatprep.mubr.bf16.mxu0 0
  %830 = vmatmul.mubr.bf16.gmra.mxu0 %v647
  %v831 = vpop.f32.mrf.mxu0
  %v832 = vadd.f32 %v440, %v831
  %v833 = vpop.f32.mrf.mxu0
  %v834 = vpop.f32.mrf.mxu0
  %v835 = vadd.f32 %v443, %v834
  %v836 = vpop.f32.mrf.mxu0
  %837 = vmatprep.mubr.bf16.mxu0 0
  %838 = vmatmul.mubr.bf16.gmra.mxu0 %v650
  %v839 = vpop.f32.mrf.mxu0
  %v840 = vadd.f32 %v448, %v839
  %v841 = vpop.f32.mrf.mxu0
  %v842 = vpop.f32.mrf.mxu0
  %v843 = vadd.f32 %v451, %v842
  %v844 = vpop.f32.mrf.mxu0
  %845 = vmatprep.mubr.bf16.mxu0 0
  %846 = vmatmul.mubr.bf16.gmra.mxu0 %v653
  %v847 = vpop.f32.mrf.mxu0
  %v848 = vadd.f32 %v456, %v847
  %v849 = vpop.f32.mrf.mxu0
  %v850 = vpop.f32.mrf.mxu0
  %v851 = vadd.f32 %v459, %v850
  %v852 = vpop.f32.mrf.mxu0
  %853 = vmatprep.mubr.bf16.mxu0 0
  %854 = vmatmul.mubr.bf16.gmra.mxu0 %v656
  %v855 = vpop.f32.mrf.mxu0
  %v856 = vadd.f32 %v464, %v855
  %v857 = vpop.f32.mrf.mxu0
  %v858 = vpop.f32.mrf.mxu0
  %v859 = vadd.f32 %v467, %v858
  %v860 = vpop.f32.mrf.mxu0
  %861 = vmatprep.mubr.bf16.mxu0 0
  %862 = vmatmul.mubr.bf16.gmra.mxu0 %v659
  %v863 = vpop.f32.mrf.mxu0
  %v864 = vadd.f32 %v472, %v863
  %v865 = vpop.f32.mrf.mxu0
  %v866 = vpop.f32.mrf.mxu0
  %v867 = vadd.f32 %v475, %v866
  %v868 = vpop.f32.mrf.mxu0
  %869 = vmatprep.mubr.bf16.mxu0 0
  %870 = vmatmul.mubr.bf16.gmra.mxu0 %v662
  %v871 = vpop.f32.mrf.mxu0
  %v872 = vadd.f32 %v480, %v871
  %v873 = vpop.f32.mrf.mxu0
  %v874 = vpop.f32.mrf.mxu0
  %v875 = vadd.f32 %v483, %v874
  %v876 = vpop.f32.mrf.mxu0
  %877 = vmatprep.mubr.bf16.mxu0 0
  %878 = vmatmul.mubr.bf16.gmra.mxu0 %v665
  %v879 = vpop.f32.mrf.mxu0
  %v880 = vadd.f32 %v488, %v879
  %v881 = vpop.f32.mrf.mxu0
  %v882 = vpop.f32.mrf.mxu0
  %v883 = vadd.f32 %v491, %v882
  %v884 = vpop.f32.mrf.mxu0
  %885 = vmatprep.mubr.bf16.mxu0 0
  %886 = vmatmul.mubr.bf16.gmra.mxu0 %v668
  %v887 = vpop.f32.mrf.mxu0
  %v888 = vadd.f32 %v496, %v887
  %v889 = vpop.f32.mrf.mxu0
  %v890 = vpop.f32.mrf.mxu0
  %v891 = vadd.f32 %v499, %v890
  %v892 = vpop.f32.mrf.mxu0
  %893 = vmatprep.mubr.bf16.mxu0 0
  %894 = vmatmul.mubr.bf16.gmra.mxu0 %v671
  %v895 = vpop.f32.mrf.mxu0
  %v896 = vadd.f32 %v504, %v895
  %v897 = vpop.f32.mrf.mxu0
  %v898 = vpop.f32.mrf.mxu0
  %v899 = vadd.f32 %v507, %v898
  %v900 = vpop.f32.mrf.mxu0
  %901 = vmatprep.mubr.bf16.mxu0 0
  %902 = vmatmul.mubr.bf16.gmra.mxu0 %v674
  %v903 = vpop.f32.mrf.mxu0
  %v904 = vadd.f32 %v512, %v903
  %v905 = vpop.f32.mrf.mxu0
  %v906 = vpop.f32.mrf.mxu0
  %v907 = vadd.f32 %v515, %v906
  %v908 = vpop.f32.mrf.mxu0
  %909 = vmatprep.mubr.bf16.mxu0 0
  %910 = vmatmul.mubr.bf16.gmra.mxu0 %v677
  %v911 = vpop.f32.mrf.mxu0
  %v912 = vadd.f32 %v520, %v911
  %v913 = vpop.f32.mrf.mxu0
  %v914 = vpop.f32.mrf.mxu0
  %v915 = vadd.f32 %v523, %v914
  %v916 = vpop.f32.mrf.mxu0
  %917 = vmatprep.mubr.bf16.mxu0 0
  %918 = vmatmul.mubr.bf16.gmra.mxu0 %v680
  %v919 = vpop.f32.mrf.mxu0
  %v920 = vadd.f32 %v528, %v919
  %v921 = vpop.f32.mrf.mxu0
  %v922 = vpop.f32.mrf.mxu0
  %v923 = vadd.f32 %v531, %v922
  %v924 = vpop.f32.mrf.mxu0
  %925 = vmatprep.mubr.bf16.mxu0 0
  %926 = vmatmul.mubr.bf16.gmra.mxu0 %v683
  %v927 = vpop.f32.mrf.mxu0
  %v928 = vadd.f32 %v536, %v927
  %v929 = vpop.f32.mrf.mxu0
  %v930 = vpop.f32.mrf.mxu0
  %v931 = vadd.f32 %v539, %v930
  %v932 = vpop.f32.mrf.mxu0
  %933 = vmatprep.mubr.bf16.mxu0 0
  %934 = vmatmul.mubr.bf16.gmra.mxu0 %v686
  %v935 = vpop.f32.mrf.mxu0
  %v936 = vadd.f32 %v544, %v935
  %v937 = vpop.f32.mrf.mxu0
  %v938 = vpop.f32.mrf.mxu0
  %v939 = vadd.f32 %v547, %v938
  %v940 = vpop.f32.mrf.mxu0
  %941 = vmatprep.mubr.bf16.mxu0 0
  %942 = vmatmul.mubr.bf16.gmra.mxu0 %v689
  %v943 = vpop.f32.mrf.mxu0
  %v944 = vadd.f32 %v552, %v943
  %v945 = vpop.f32.mrf.mxu0
  %v946 = vpop.f32.mrf.mxu0
  %v947 = vadd.f32 %v555, %v946
  %v948 = vpop.f32.mrf.mxu0
  %949 = vmatprep.mubr.bf16.mxu0 0
  %950 = vmatmul.mubr.bf16.gmra.mxu0 %v692
  %v951 = vpop.f32.mrf.mxu0
  %v952 = vadd.f32 %v560, %v951
  %v953 = vpop.f32.mrf.mxu0
  %v954 = vpop.f32.mrf.mxu0
  %v955 = vadd.f32 %v563, %v954
  %v956 = vpop.f32.mrf.mxu0
  %957 = vmatprep.mubr.bf16.mxu0 0
  %958 = vmatmul.mubr.bf16.gmra.mxu0 %v695
  %v959 = vpop.f32.mrf.mxu0
  %v960 = vadd.f32 %v568, %v959
  %v961 = vpop.f32.mrf.mxu0
  %v962 = vpop.f32.mrf.mxu0
  %v963 = vadd.f32 %v571, %v962
  %v964 = vpop.f32.mrf.mxu0
  %965 = vmatprep.mubr.bf16.mxu0 0
  %966 = vmatmul.mubr.bf16.gmra.mxu0 %v698
  %v967 = vpop.f32.mrf.mxu0
  %v968 = vadd.f32 %v576, %v967
  %v969 = vpop.f32.mrf.mxu0
  %v970 = vpop.f32.mrf.mxu0
  %v971 = vadd.f32 %v579, %v970
  %v972 = vpop.f32.mrf.mxu0
  %973 = vmatprep.mubr.bf16.mxu0 0
  %974 = vmatmul.mubr.bf16.gmra.mxu0 %v701
  %v975 = vpop.f32.mrf.mxu0
  %v976 = vadd.f32 %v584, %v975
  %v977 = vpop.f32.mrf.mxu0
  %v978 = vpop.f32.mrf.mxu0
  %v979 = vadd.f32 %v587, %v978
  %v980 = vpop.f32.mrf.mxu0
  %981 = vmatprep.mubr.bf16.mxu0 0
  %982 = vmatmul.mubr.bf16.gmra.mxu0 %v704
  %v983 = vpop.f32.mrf.mxu0
  %v984 = vadd.f32 %v592, %v983
  %v985 = vpop.f32.mrf.mxu0
  %v986 = vpop.f32.mrf.mxu0
  %v987 = vadd.f32 %v595, %v986
  %v988 = vpop.f32.mrf.mxu0
  %989 = vmatprep.mubr.bf16.mxu0 0
  %990 = vmatmul.mubr.bf16.gmra.mxu0 %v707
  %v991 = vpop.f32.mrf.mxu0
  %v992 = vadd.f32 %v600, %v991
  %v993 = vpop.f32.mrf.mxu0
  %v994 = vpop.f32.mrf.mxu0
  %v995 = vadd.f32 %v603, %v994
  %v996 = vpop.f32.mrf.mxu0
  %997 = vdwg.mxu0
  %v998 = vld [vmem:[%s4] sm:$0x1]
  %v1000 = vlaneseq
  %v1001 = vshrl.u32 %v1000, 7
  %v1002 = vsub.s32 0, %v1001
  %v1003 = vrot.slane %v998, %v1002
  %v1005 = vadd.f32 %v744, %v1003
  %v1006 = vadd.f32 %v747, %v1003
  %v1007 = vadd.f32 %v752, %v1003
  %v1008 = vadd.f32 %v755, %v1003
  %v1009 = vadd.f32 %v760, %v1003
  %v1010 = vadd.f32 %v763, %v1003
  %v1011 = vadd.f32 %v768, %v1003
  %v1012 = vadd.f32 %v771, %v1003
  %v1013 = vadd.f32 %v776, %v1003
  %v1014 = vadd.f32 %v779, %v1003
  %v1015 = vadd.f32 %v784, %v1003
  %v1016 = vadd.f32 %v787, %v1003
  %v1017 = vadd.f32 %v792, %v1003
  %v1018 = vadd.f32 %v795, %v1003
  %v1019 = vadd.f32 %v800, %v1003
  %v1020 = vadd.f32 %v803, %v1003
  %v1021 = vadd.f32 %v808, %v1003
  %v1022 = vadd.f32 %v811, %v1003
  %v1023 = vadd.f32 %v816, %v1003
  %v1024 = vadd.f32 %v819, %v1003
  %v1025 = vadd.f32 %v824, %v1003
  %v1026 = vadd.f32 %v827, %v1003
  %v1027 = vadd.f32 %v832, %v1003
  %v1028 = vadd.f32 %v835, %v1003
  %v1029 = vadd.f32 %v840, %v1003
  %v1030 = vadd.f32 %v843, %v1003
  %v1031 = vadd.f32 %v848, %v1003
  %v1032 = vadd.f32 %v851, %v1003
  %v1033 = vadd.f32 %v856, %v1003
  %v1034 = vadd.f32 %v859, %v1003
  %v1035 = vadd.f32 %v864, %v1003
  %v1036 = vadd.f32 %v867, %v1003
  %v1037 = vadd.f32 %v872, %v1003
  %v1038 = vadd.f32 %v875, %v1003
  %v1039 = vadd.f32 %v880, %v1003
  %v1040 = vadd.f32 %v883, %v1003
  %v1041 = vadd.f32 %v888, %v1003
  %v1042 = vadd.f32 %v891, %v1003
  %v1043 = vadd.f32 %v896, %v1003
  %v1044 = vadd.f32 %v899, %v1003
  %v1045 = vadd.f32 %v904, %v1003
  %v1046 = vadd.f32 %v907, %v1003
  %v1047 = vadd.f32 %v912, %v1003
  %v1048 = vadd.f32 %v915, %v1003
  %v1049 = vadd.f32 %v920, %v1003
  %v1050 = vadd.f32 %v923, %v1003
  %v1051 = vadd.f32 %v928, %v1003
  %v1052 = vadd.f32 %v931, %v1003
  %v1053 = vadd.f32 %v936, %v1003
  %v1054 = vadd.f32 %v939, %v1003
  %v1055 = vadd.f32 %v944, %v1003
  %v1056 = vadd.f32 %v947, %v1003
  %v1057 = vadd.f32 %v952, %v1003
  %v1058 = vadd.f32 %v955, %v1003
  %v1059 = vadd.f32 %v960, %v1003
  %v1060 = vadd.f32 %v963, %v1003
  %v1061 = vadd.f32 %v968, %v1003
  %v1062 = vadd.f32 %v971, %v1003
  %v1063 = vadd.f32 %v976, %v1003
  %v1064 = vadd.f32 %v979, %v1003
  %v1065 = vadd.f32 %v984, %v1003
  %v1066 = vadd.f32 %v987, %v1003
  %v1067 = vadd.f32 %v992, %v1003
  %v1068 = vadd.f32 %v995, %v1003
  %1069 = vst.msk [vmem:[%s5] sm:$0xff] %vm216, %v1005
  %1070 = vst.msk [vmem:[%s5 + $0x8] sm:$0xff] %vm216, %v1006
  %1071 = vst.msk [vmem:[%s5 + $0x10] sm:$0xff] %vm216, %v1007
  %1072 = vst.msk [vmem:[%s5 + $0x18] sm:$0xff] %vm216, %v1008
  %1073 = vst.msk [vmem:[%s5 + $0x20] sm:$0xff] %vm216, %v1009
  %1074 = vst.msk [vmem:[%s5 + $0x28] sm:$0xff] %vm216, %v1010
  %1075 = vst.msk [vmem:[%s5 + $0x30] sm:$0xff] %vm216, %v1011
  %1076 = vst.msk [vmem:[%s5 + $0x38] sm:$0xff] %vm216, %v1012
  %1077 = vst.msk [vmem:[%s5 + $0x40] sm:$0xff] %vm216, %v1013
  %1078 = vst.msk [vmem:[%s5 + $0x48] sm:$0xff] %vm216, %v1014
  %1079 = vst.msk [vmem:[%s5 + $0x50] sm:$0xff] %vm216, %v1015
  %1080 = vst.msk [vmem:[%s5 + $0x58] sm:$0xff] %vm216, %v1016
  %1081 = vst.msk [vmem:[%s5 + $0x60] sm:$0xff] %vm216, %v1017
  %1082 = vst.msk [vmem:[%s5 + $0x68] sm:$0xff] %vm216, %v1018
  %1083 = vst.msk [vmem:[%s5 + $0x70] sm:$0xff] %vm216, %v1019
  %1084 = vst.msk [vmem:[%s5 + $0x78] sm:$0xff] %vm216, %v1020
  %1085 = vst.msk [vmem:[%s5 + $0x80] sm:$0xff] %vm216, %v1021
  %1086 = vst.msk [vmem:[%s5 + $0x88] sm:$0xff] %vm216, %v1022
  %1087 = vst.msk [vmem:[%s5 + $0x90] sm:$0xff] %vm216, %v1023
  %1088 = vst.msk [vmem:[%s5 + $0x98] sm:$0xff] %vm216, %v1024
  %1089 = vst.msk [vmem:[%s5 + $0xa0] sm:$0xff] %vm216, %v1025
  %1090 = vst.msk [vmem:[%s5 + $0xa8] sm:$0xff] %vm216, %v1026
  %1091 = vst.msk [vmem:[%s5 + $0xb0] sm:$0xff] %vm216, %v1027
  %1092 = vst.msk [vmem:[%s5 + $0xb8] sm:$0xff] %vm216, %v1028
  %1093 = vst.msk [vmem:[%s5 + $0xc0] sm:$0xff] %vm216, %v1029
  %1094 = vst.msk [vmem:[%s5 + $0xc8] sm:$0xff] %vm216, %v1030
  %1095 = vst.msk [vmem:[%s5 + $0xd0] sm:$0xff] %vm216, %v1031
  %1096 = vst.msk [vmem:[%s5 + $0xd8] sm:$0xff] %vm216, %v1032
  %1097 = vst.msk [vmem:[%s5 + $0xe0] sm:$0xff] %vm216, %v1033
  %1098 = vst.msk [vmem:[%s5 + $0xe8] sm:$0xff] %vm216, %v1034
  %1099 = vst.msk [vmem:[%s5 + $0xf0] sm:$0xff] %vm216, %v1035
  %1100 = vst.msk [vmem:[%s5 + $0xf8] sm:$0xff] %vm216, %v1036
  %1101 = vst.msk [vmem:[%s5 + $0x100] sm:$0xff] %vm216, %v1037
  %1102 = vst.msk [vmem:[%s5 + $0x108] sm:$0xff] %vm216, %v1038
  %1103 = vst.msk [vmem:[%s5 + $0x110] sm:$0xff] %vm216, %v1039
  %1104 = vst.msk [vmem:[%s5 + $0x118] sm:$0xff] %vm216, %v1040
  %1105 = vst.msk [vmem:[%s5 + $0x120] sm:$0xff] %vm216, %v1041
  %1106 = vst.msk [vmem:[%s5 + $0x128] sm:$0xff] %vm216, %v1042
  %1107 = vst.msk [vmem:[%s5 + $0x130] sm:$0xff] %vm216, %v1043
  %1108 = vst.msk [vmem:[%s5 + $0x138] sm:$0xff] %vm216, %v1044
  %1109 = vst.msk [vmem:[%s5 + $0x140] sm:$0xff] %vm216, %v1045
  %1110 = vst.msk [vmem:[%s5 + $0x148] sm:$0xff] %vm216, %v1046
  %1111 = vst.msk [vmem:[%s5 + $0x150] sm:$0xff] %vm216, %v1047
  %1112 = vst.msk [vmem:[%s5 + $0x158] sm:$0xff] %vm216, %v1048
  %1113 = vst.msk [vmem:[%s5 + $0x160] sm:$0xff] %vm216, %v1049
  %1114 = vst.msk [vmem:[%s5 + $0x168] sm:$0xff] %vm216, %v1050
  %1115 = vst.msk [vmem:[%s5 + $0x170] sm:$0xff] %vm216, %v1051
  %1116 = vst.msk [vmem:[%s5 + $0x178] sm:$0xff] %vm216, %v1052
  %1117 = vst.msk [vmem:[%s5 + $0x180] sm:$0xff] %vm216, %v1053
  %1118 = vst.msk [vmem:[%s5 + $0x188] sm:$0xff] %vm216, %v1054
  %1119 = vst.msk [vmem:[%s5 + $0x190] sm:$0xff] %vm216, %v1055
  %1120 = vst.msk [vmem:[%s5 + $0x198] sm:$0xff] %vm216, %v1056
  %1121 = vst.msk [vmem:[%s5 + $0x1a0] sm:$0xff] %vm216, %v1057
  %1122 = vst.msk [vmem:[%s5 + $0x1a8] sm:$0xff] %vm216, %v1058
  %1123 = vst.msk [vmem:[%s5 + $0x1b0] sm:$0xff] %vm216, %v1059
  %1124 = vst.msk [vmem:[%s5 + $0x1b8] sm:$0xff] %vm216, %v1060
  %1125 = vst.msk [vmem:[%s5 + $0x1c0] sm:$0xff] %vm216, %v1061
  %1126 = vst.msk [vmem:[%s5 + $0x1c8] sm:$0xff] %vm216, %v1062
  %1127 = vst.msk [vmem:[%s5 + $0x1d0] sm:$0xff] %vm216, %v1063
  %1128 = vst.msk [vmem:[%s5 + $0x1d8] sm:$0xff] %vm216, %v1064
  %1129 = vst.msk [vmem:[%s5 + $0x1e0] sm:$0xff] %vm216, %v1065
  %1130 = vst.msk [vmem:[%s5 + $0x1e8] sm:$0xff] %vm216, %v1066
  %1131 = vst.msk [vmem:[%s5 + $0x1f0] sm:$0xff] %vm216, %v1067
  %1132 = vst.msk [vmem:[%s5 + $0x1f8] sm:$0xff] %vm216, %v1068
  // Predicated region
  $region22: #{decoder_resf_forward.6} parent=0 // pred_check
    _
  $region23: #{decoder_resf_forward.6} parent=0 // pred_check_branch
    %1134 = sbr.rel (0) target = $region25
  $region24: #{decoder_resf_forward.6} parent=0 // pred_region
    _
  $region25: #{decoder_resf_forward.6} parent=0 // pred_fallthru
    _
  // Predicated region
  $region26: #{decoder_resf_forward.6} parent=0 // pred_check
    _
  $region27: #{decoder_resf_forward.6} parent=0 // pred_check_branch
    %1136 = sbr.rel (0) target = $region29
  $region28: #{decoder_resf_forward.6} parent=0 // pred_region
    _
  $region29: #{decoder_resf_forward.6} parent=0 // pred_fallthru
    _

// kernel: decoder_resf_forward.7
$region0: #{decoder_resf_forward.7}
  #allocation0 [shape = 'u32[]', space=smem, size = 0x4, offset = 0x4, fixed_abs, tag = 'smem constant byte address 0x4 - core index']
  #allocation1 [shape = 'u32[144,128]{1,0:T(1,128)}', space=vmem, size = 0x12000, scoped, tag = 'internal scratch']
  #allocation2 [shape = 'bf16[34,48,8]{2,1,0:T(8,128)(2,1)}', space=vmem, size = 0x66000, scoped, tag = 'scratch operand']
  #allocation3 [shape = 'bf16[34,48,64]{2,1,0:T(8,128)(2,1)}', space=vmem, size = 0x66000, scoped, tag = 'scratch operand']
  #allocation4 [shape = 'f32[1,1]{1,0:T(1,128)S(1)}', space=vmem, size = 0x200, scoped, tag = 'scoped memory for decoder_resf_forward.7']
  %s0 = inlined_call_operand.vmem [shape: f32[2,32,32,8], index: 0, kind: input, shape index: {}]
  %s1 = inlined_call_operand.vmem [shape: bf16[72,64], index: 1, kind: input, shape index: {}]
  %s2 = inlined_call_operand.vmem [shape: f32[1,64], index: 2, kind: input, shape index: {}]
  %s3 = inlined_call_operand.vmem [shape: f32[9,64], index: 3, kind: input, shape index: {}]
  %s4 = inlined_call_operand.<no memory space> [shape: f32[1,1], index: 4, kind: input, shape index: {}]
  %s5 = inlined_call_operand.hbm [shape: f32[2,32,32,64], index: 5, kind: output, shape index: {0}]
  %s6 = inlined_call_operand.hbm [shape: f32[2,32,32], index: 6, kind: output, shape index: {1}]
  %7 = xla_tuple %s5, %s6
  %s8 = sld [smem:[#allocation0]]
  $region75: #{decoder_resf_forward.7} parent=0
    _
  %s10 = ssub.s32 1, %s8
  %s11 = scalar_select 0, %s10, %s8
  %v12 = vstv %s4
  %13 = vst [vmem:[#allocation4] sm:$0x1] %v12
  $region1: #{decoder_resf_forward.7} parent=0
    #allocation5 [shape = 'u8[1048576]{0}', space=vmem, size = 0x100000, scoped, tag = 'output window, operand 0']
    #allocation6 [shape = 's32[2]{0}', space=sflag, size = 0x8, scoped, tag = 'scoped memory for decoder_resf_forward.7']
    #allocation7 [shape = 'u8[32768]{0}', space=vmem, size = 0x8000, scoped, tag = 'output window, operand 1']
    #allocation8 [shape = 's32[2]{0}', space=sflag, size = 0x8, scoped, tag = 'scoped memory for decoder_resf_forward.7']
    %14 = vsyncpa [#allocation6], 0
    %s15 = scalar_lea.sflag [#allocation6], 1
    %16 = vsyncpa %s15, 0
    %17 = vsyncpa [#allocation8], 0
    %s18 = scalar_lea.sflag [#allocation8], 1
    %19 = vsyncpa %s18, 0
    loop: start=0, step=1, limit=4
    $region2: #{decoder_resf_forward.7} parent=1 // loop_pre_header
      _
    $region3: #{decoder_resf_forward.7} parent=1 // loop_header
      %s21 = sphi 0, %s25
      %p22 = scmp.ge.s32.totalorder %s21, 4
      %s31 = sphi 0, %s33
      %s34 = sphi 0, %s31
      %s35 = sphi 0, %s34
      %s51 = sphi 0, %s35
      %s55 = sphi 0, %s55
      %s57 = sphi 0, %s55
      %s58 = sphi 0, %s57
      %s72 = sphi 0, %s58
      %s76 = sphi 0, %s76
      %s78 = sphi 0, %s76
      %s79 = sphi 0, %s78
      %s93 = sphi 0, %s79
      %s97 = sphi 0, %s97
      %s99 = sphi 0, %s97
      %s100 = sphi 0, %s99
      %s114 = sphi 0, %s100
      %s118 = sphi 0, %s118
      %s120 = sphi 0, %s118
      %s121 = sphi 0, %s120
      %s135 = sphi 0, %s121
      %s141 = sphi 0, %s143
      %s144 = sphi 0, %s141
      %s145 = sphi 0, %s144
      %s161 = sphi 0, %s145
      %s167 = sphi 0, %s169
      %s170 = sphi 0, %s167
      %s171 = sphi 0, %s170
      %s187 = sphi 0, %s171
    $region4: #{decoder_resf_forward.7} parent=1 // loop_header_branch
      %24 = sbr.rel (%p22) target = $region8
    $region5: #{decoder_resf_forward.7} parent=1 // loop_body
      %s26 = ssub.s32 %s21, 1
      %s27 = ssub.s32 %s21, 2
      %s28 = sadd.s32 %s21, 1
      %s29 = ssub.s32 %s21, %s28
      %p30 = scmp.eq.s32.totalorder %s29, 0
      %s32 = sadd.s32 %s31, 1
      %s33 = scalar_select %p30, %s31, %s32
      %p36 = pneg %p30
      %p37 = scmp.eq.s32.totalorder %s21, 1
      %p38 = por %p36, %p37
      %p39 = scmp.ne.s32.totalorder %s31, %s34
      %p40 = scmp.eq.s32.totalorder %s21, 0
      %p41 = por %p39, %p40
      %p42 = scmp.ne.s32.totalorder %s31, %s34
      %p43 = scmp.eq.s32.totalorder %s26, 1
      %p44 = por %p42, %p43
      %p45 = scmp.ne.s32.totalorder %s34, %s35
      %p46 = scmp.eq.s32.totalorder %s26, 0
      %p47 = por %p45, %p46
      %p48 = scmp.ne.s32.totalorder %s34, %s35
      %p49 = scmp.eq.s32.totalorder %s27, 1
      %p50 = por %p48, %p49
      %p52 = scmp.ne.s32.totalorder %s35, %s51
      %p53 = scmp.eq.s32.totalorder %s27, 0
      %p54 = por %p52, %p53
      %s56 = sadd.s32 %s55, 1
      %p59 = scmp.eq.s32.totalorder %s21, 1
      %p60 = scmp.ne.s32.totalorder %s55, %s57
      %p61 = scmp.eq.s32.totalorder %s21, 0
      %p62 = por %p60, %p61
      %p63 = scmp.ne.s32.totalorder %s55, %s57
      %p64 = scmp.eq.s32.totalorder %s26, 1
      %p65 = por %p63, %p64
      %p66 = scmp.ne.s32.totalorder %s57, %s58
      %p67 = scmp.eq.s32.totalorder %s26, 0
      %p68 = por %p66, %p67
      %p69 = scmp.ne.s32.totalorder %s57, %s58
      %p70 = scmp.eq.s32.totalorder %s27, 1
      %p71 = por %p69, %p70
      %p73 = scmp.ne.s32.totalorder %s58, %s72
      %p74 = scmp.eq.s32.totalorder %s27, 0
      %p75 = por %p73, %p74
      %s77 = sadd.s32 %s76, 1
      %p80 = scmp.eq.s32.totalorder %s21, 1
      %p81 = scmp.ne.s32.totalorder %s76, %s78
      %p82 = scmp.eq.s32.totalorder %s21, 0
      %p83 = por %p81, %p82
      %p84 = scmp.ne.s32.totalorder %s76, %s78
      %p85 = scmp.eq.s32.totalorder %s26, 1
      %p86 = por %p84, %p85
      %p87 = scmp.ne.s32.totalorder %s78, %s79
      %p88 = scmp.eq.s32.totalorder %s26, 0
      %p89 = por %p87, %p88
      %p90 = scmp.ne.s32.totalorder %s78, %s79
      %p91 = scmp.eq.s32.totalorder %s27, 1
      %p92 = por %p90, %p91
      %p94 = scmp.ne.s32.totalorder %s79, %s93
      %p95 = scmp.eq.s32.totalorder %s27, 0
      %p96 = por %p94, %p95
      %s98 = sadd.s32 %s97, 1
      %p101 = scmp.eq.s32.totalorder %s21, 1
      %p102 = scmp.ne.s32.totalorder %s97, %s99
      %p103 = scmp.eq.s32.totalorder %s21, 0
      %p104 = por %p102, %p103
      %p105 = scmp.ne.s32.totalorder %s97, %s99
      %p106 = scmp.eq.s32.totalorder %s26, 1
      %p107 = por %p105, %p106
      %p108 = scmp.ne.s32.totalorder %s99, %s100
      %p109 = scmp.eq.s32.totalorder %s26, 0
      %p110 = por %p108, %p109
      %p111 = scmp.ne.s32.totalorder %s99, %s100
      %p112 = scmp.eq.s32.totalorder %s27, 1
      %p113 = por %p111, %p112
      %p115 = scmp.ne.s32.totalorder %s100, %s114
      %p116 = scmp.eq.s32.totalorder %s27, 0
      %p117 = por %p115, %p116
      %s119 = sadd.s32 %s118, 1
      %p122 = scmp.eq.s32.totalorder %s21, 1
      %p123 = scmp.ne.s32.totalorder %s118, %s120
      %p124 = scmp.eq.s32.totalorder %s21, 0
      %p125 = por %p123, %p124
      %p126 = scmp.ne.s32.totalorder %s118, %s120
      %p127 = scmp.eq.s32.totalorder %s26, 1
      %p128 = por %p126, %p127
      %p129 = scmp.ne.s32.totalorder %s120, %s121
      %p130 = scmp.eq.s32.totalorder %s26, 0
      %p131 = por %p129, %p130
      %p132 = scmp.ne.s32.totalorder %s120, %s121
      %p133 = scmp.eq.s32.totalorder %s27, 1
      %p134 = por %p132, %p133
      %p136 = scmp.ne.s32.totalorder %s121, %s135
      %p137 = scmp.eq.s32.totalorder %s27, 0
      %p138 = por %p136, %p137
      %s139 = ssub.s32 %s21, %s28
      %p140 = scmp.eq.s32.totalorder %s139, 0
      %s142 = sadd.s32 %s141, 1
      %s143 = scalar_select %p140, %s141, %s142
      %p146 = pneg %p140
      %p147 = scmp.eq.s32.totalorder %s21, 1
      %p148 = por %p146, %p147
      %p149 = scmp.ne.s32.totalorder %s141, %s144
      %p150 = scmp.eq.s32.totalorder %s21, 0
      %p151 = por %p149, %p150
      %p152 = scmp.ne.s32.totalorder %s141, %s144
      %p153 = scmp.eq.s32.totalorder %s26, 1
      %p154 = por %p152, %p153
      %p155 = scmp.ne.s32.totalorder %s144, %s145
      %p156 = scmp.eq.s32.totalorder %s26, 0
      %p157 = por %p155, %p156
      %p158 = scmp.ne.s32.totalorder %s144, %s145
      %p159 = scmp.eq.s32.totalorder %s27, 1
      %p160 = por %p158, %p159
      %p162 = scmp.ne.s32.totalorder %s145, %s161
      %p163 = scmp.eq.s32.totalorder %s27, 0
      %p164 = por %p162, %p163
      %s165 = ssub.s32 %s21, %s28
      %p166 = scmp.eq.s32.totalorder %s165, 0
      %s168 = sadd.s32 %s167, 1
      %s169 = scalar_select %p166, %s167, %s168
      %p172 = pneg %p166
      %p173 = scmp.eq.s32.totalorder %s21, 1
      %p174 = por %p172, %p173
      %p175 = scmp.ne.s32.totalorder %s167, %s170
      %p176 = scmp.eq.s32.totalorder %s21, 0
      %p177 = por %p175, %p176
      %p178 = scmp.ne.s32.totalorder %s167, %s170
      %p179 = scmp.eq.s32.totalorder %s26, 1
      %p180 = por %p178, %p179
      %p181 = scmp.ne.s32.totalorder %s170, %s171
      %p182 = scmp.eq.s32.totalorder %s26, 0
      %p183 = por %p181, %p182
      %p184 = scmp.ne.s32.totalorder %s170, %s171
      %p185 = scmp.eq.s32.totalorder %s27, 1
      %p186 = por %p184, %p185
      %p188 = scmp.ne.s32.totalorder %s171, %s187
      %p189 = scmp.eq.s32.totalorder %s27, 0
      %p190 = por %p188, %p189
      %p191 = scmp.le.s32.totalorder 1, %s21
      %p192 = scmp.lt.s32.totalorder %s21, 3
      %p193 = pnand %p191, %p192
      %p194 = pneg %p193
      // Predicated region
      $region9: #{decoder_resf_forward.7} parent=5 // pred_check
        _
      $region10: #{decoder_resf_forward.7} parent=5 // pred_check_branch
        %196 = sbr.rel (%p193) target = $region12
      $region11: #{decoder_resf_forward.7} parent=5 // pred_region
        %s197 = ssub.s32 %s21, 1
        // Predicated region
        $region13: #{decoder_resf_forward.7} parent=11 // pred_check
          %p198 = pneg %p68
        $region14: #{decoder_resf_forward.7} parent=11 // pred_check_branch
          %200 = sbr.rel (%p198) target = $region16
        $region15: #{decoder_resf_forward.7} parent=11 // pred_region
          _
        $region16: #{decoder_resf_forward.7} parent=11 // pred_fallthru
          _
        // Predicated region
        $region17: #{decoder_resf_forward.7} parent=11 // pred_check
          %p201 = pneg %p89
        $region18: #{decoder_resf_forward.7} parent=11 // pred_check_branch
          %203 = sbr.rel (%p201) target = $region20
        $region19: #{decoder_resf_forward.7} parent=11 // pred_region
          _
        $region20: #{decoder_resf_forward.7} parent=11 // pred_fallthru
          _
        // Predicated region
        $region21: #{decoder_resf_forward.7} parent=11 // pred_check
          %p204 = pneg %p110
        $region22: #{decoder_resf_forward.7} parent=11 // pred_check_branch
          %206 = sbr.rel (%p204) target = $region24
        $region23: #{decoder_resf_forward.7} parent=11 // pred_region
          _
        $region24: #{decoder_resf_forward.7} parent=11 // pred_fallthru
          _
        // Predicated region
        $region25: #{decoder_resf_forward.7} parent=11 // pred_check
          %p207 = pneg %p131
        $region26: #{decoder_resf_forward.7} parent=11 // pred_check_branch
          %209 = sbr.rel (%p207) target = $region28
        $region27: #{decoder_resf_forward.7} parent=11 // pred_region
          _
        $region28: #{decoder_resf_forward.7} parent=11 // pred_fallthru
          _
      $region12: #{decoder_resf_forward.7} parent=5 // pred_fallthru
        _
      %p210 = scmp.lt.s32.totalorder %s21, 2
      // Predicated region
      $region29: #{decoder_resf_forward.7} parent=5 // pred_check
        %p211 = pneg %p210
      $region30: #{decoder_resf_forward.7} parent=5 // pred_check_branch
        %213 = sbr.rel (%p211) target = $region32
      $region31: #{decoder_resf_forward.7} parent=5 // pred_region
        // Predicated region
        $region33: #{decoder_resf_forward.7} parent=31 // pred_check
          %p214 = pneg %p41
        $region34: #{decoder_resf_forward.7} parent=31 // pred_check_branch
          %216 = sbr.rel (%p214) target = $region36
        $region35: #{decoder_resf_forward.7} parent=31 // pred_region
          %p217 = scmp.lt.s32.totalorder %s21, 1
          %s218 = scalar_select %p217, %s21, 1
          %s219 = smul.addr %s218, 128
          %s220 = smul.addr %s219, 8
          %s221 = scalar_lea.vmem %s0, %s220
        $region36: #{decoder_resf_forward.7} parent=31 // pred_fallthru
          _
      $region32: #{decoder_resf_forward.7} parent=5 // pred_fallthru
        _
      %p222 = scmp.le.s32.totalorder 1, %s21
      %p223 = scmp.lt.s32.totalorder %s21, 3
      %p224 = pnand %p222, %p223
      %p225 = pneg %p224
      // Predicated region
      $region37: #{decoder_resf_forward.7} parent=5 // pred_check
        _
      $region38: #{decoder_resf_forward.7} parent=5 // pred_check_branch
        %227 = sbr.rel (%p224) target = $region40
      $region39: #{decoder_resf_forward.7} parent=5 // pred_region
        %s228 = ssub.s32 %s21, 1
        %p229 = scmp.lt.s32.totalorder %s26, 1
        %s230 = scalar_select %p229, %s26, 1
        %s231 = smul.addr %s230, 128
        %s232 = smul.addr %s231, 8
        %s233 = scalar_lea.vmem %s0, %s232
        %p234 = pneg %p47
        %p235 = pneg %p44
        %p236 = pneg %p68
        %p237 = pneg %p65
        %p238 = pneg %p89
        %p239 = pneg %p86
        %p240 = pneg %p110
        %p241 = pneg %p107
        %p242 = pneg %p131
        %p243 = pneg %p128
        %p244 = pneg %p157
        %p245 = pneg %p154
        %s246 = sand.u32 %s144, 1
        %s247 = scalar_lea.sflag [#allocation6], %s246
        %s248 = sand.u32 %s144, 1
        %s249 = smul.addr %s248, 1024
        %s250 = scalar_lea.vmem [#allocation5], %s249
        %p251 = pneg %p183
        %p252 = pneg %p180
        %s253 = sand.u32 %s170, 1
        %s254 = scalar_lea.sflag [#allocation8], %s253
        %s255 = sand.u32 %s170, 1
        %s256 = smul.addr %s255, 32
        %s257 = scalar_lea.vmem [#allocation7], %s256
        %p258 = scmp.lt.s32.totalorder %s26, 1
        %s259 = scalar_select %p258, %s26, 1
        %s260 = smul.addr %s259, 128
        %s261 = smul.addr %s260, 8
        %s262 = scalar_lea.vmem %s0, %s261
        %vm264 = vcmask 60416
        %265 = vst.msk [vmem:[#allocation2] sm:$0xf] %vm264, 0
        %266 = vst.msk [vmem:[#allocation2 + $0x18] sm:$0xf] %vm264, 0
        %267 = vst.msk [vmem:[#allocation2 + $0x30] sm:$0xf] %vm264, 0
        %268 = vst.msk [vmem:[#allocation2 + $0x48] sm:$0xf] %vm264, 0
        %269 = vst.msk [vmem:[#allocation2 + $0x60] sm:$0xf] %vm264, 0
        %270 = vst.msk [vmem:[#allocation2 + $0x78] sm:$0xf] %vm264, 0
        %271 = vst.msk [vmem:[#allocation2 + $0x90] sm:$0xf] %vm264, 0
        %272 = vst.msk [vmem:[#allocation2 + $0xa8] sm:$0xf] %vm264, 0
        %273 = vst.msk [vmem:[#allocation2 + $0xc0] sm:$0xf] %vm264, 0
        %274 = vst.msk [vmem:[#allocation2 + $0xd8] sm:$0xf] %vm264, 0
        %275 = vst.msk [vmem:[#allocation2 + $0xf0] sm:$0xf] %vm264, 0
        %276 = vst.msk [vmem:[#allocation2 + $0x108] sm:$0xf] %vm264, 0
        %277 = vst.msk [vmem:[#allocation2 + $0x120] sm:$0xf] %vm264, 0
        %278 = vst.msk [vmem:[#allocation2 + $0x138] sm:$0xf] %vm264, 0
        %279 = vst.msk [vmem:[#allocation2 + $0x150] sm:$0xf] %vm264, 0
        %280 = vst.msk [vmem:[#allocation2 + $0x168] sm:$0xf] %vm264, 0
        %281 = vst.msk [vmem:[#allocation2 + $0x180] sm:$0xf] %vm264, 0
        %282 = vst.msk [vmem:[#allocation2 + $0x198] sm:$0xf] %vm264, 0
        %283 = vst.msk [vmem:[#allocation2 + $0x1b0] sm:$0xf] %vm264, 0
        %284 = vst.msk [vmem:[#allocation2 + $0x1c8] sm:$0xf] %vm264, 0
        %285 = vst.msk [vmem:[#allocation2 + $0x1e0] sm:$0xf] %vm264, 0
        %286 = vst.msk [vmem:[#allocation2 + $0x1f8] sm:$0xf] %vm264, 0
        %287 = vst.msk [vmem:[#allocation2 + $0x210] sm:$0xf] %vm264, 0
        %288 = vst.msk [vmem:[#allocation2 + $0x228] sm:$0xf] %vm264, 0
        %289 = vst.msk [vmem:[#allocation2 + $0x240] sm:$0xf] %vm264, 0
        %290 = vst.msk [vmem:[#allocation2 + $0x258] sm:$0xf] %vm264, 0
        %291 = vst.msk [vmem:[#allocation2 + $0x270] sm:$0xf] %vm264, 0
        %292 = vst.msk [vmem:[#allocation2 + $0x288] sm:$0xf] %vm264, 0
        %293 = vst.msk [vmem:[#allocation2 + $0x2a0] sm:$0xf] %vm264, 0
        %294 = vst.msk [vmem:[#allocation2 + $0x2b8] sm:$0xf] %vm264, 0
        %295 = vst.msk [vmem:[#allocation2 + $0x2d0] sm:$0xf] %vm264, 0
        %296 = vst.msk [vmem:[#allocation2 + $0x2e8] sm:$0xf] %vm264, 0
        %297 = vst.msk [vmem:[#allocation2 + $0x300] sm:$0xf] %vm264, 0
        %298 = vst.msk [vmem:[#allocation2 + $0x318] sm:$0xf] %vm264, 0
        %299 = vst.msk [vmem:[#allocation2 + $0x14] sm:$0xf] %vm264, 0
        %300 = vst.msk [vmem:[#allocation2 + $0x2c] sm:$0xf] %vm264, 0
        %301 = vst.msk [vmem:[#allocation2 + $0x44] sm:$0xf] %vm264, 0
        %302 = vst.msk [vmem:[#allocation2 + $0x5c] sm:$0xf] %vm264, 0
        %303 = vst.msk [vmem:[#allocation2 + $0x74] sm:$0xf] %vm264, 0
        %304 = vst.msk [vmem:[#allocation2 + $0x8c] sm:$0xf] %vm264, 0
        %305 = vst.msk [vmem:[#allocation2 + $0xa4] sm:$0xf] %vm264, 0
        %306 = vst.msk [vmem:[#allocation2 + $0xbc] sm:$0xf] %vm264, 0
        %307 = vst.msk [vmem:[#allocation2 + $0xd4] sm:$0xf] %vm264, 0
        %308 = vst.msk [vmem:[#allocation2 + $0xec] sm:$0xf] %vm264, 0
        %309 = vst.msk [vmem:[#allocation2 + $0x104] sm:$0xf] %vm264, 0
        %310 = vst.msk [vmem:[#allocation2 + $0x11c] sm:$0xf] %vm264, 0
        %311 = vst.msk [vmem:[#allocation2 + $0x134] sm:$0xf] %vm264, 0
        %312 = vst.msk [vmem:[#allocation2 + $0x14c] sm:$0xf] %vm264, 0
        %313 = vst.msk [vmem:[#allocation2 + $0x164] sm:$0xf] %vm264, 0
        %314 = vst.msk [vmem:[#allocation2 + $0x17c] sm:$0xf] %vm264, 0
        %315 = vst.msk [vmem:[#allocation2 + $0x194] sm:$0xf] %vm264, 0
        %316 = vst.msk [vmem:[#allocation2 + $0x1ac] sm:$0xf] %vm264, 0
        %317 = vst.msk [vmem:[#allocation2 + $0x1c4] sm:$0xf] %vm264, 0
        %318 = vst.msk [vmem:[#allocation2 + $0x1dc] sm:$0xf] %vm264, 0
        %319 = vst.msk [vmem:[#allocation2 + $0x1f4] sm:$0xf] %vm264, 0
        %320 = vst.msk [vmem:[#allocation2 + $0x20c] sm:$0xf] %vm264, 0
        %321 = vst.msk [vmem:[#allocation2 + $0x224] sm:$0xf] %vm264, 0
        %322 = vst.msk [vmem:[#allocation2 + $0x23c] sm:$0xf] %vm264, 0
        %323 = vst.msk [vmem:[#allocation2 + $0x254] sm:$0xf] %vm264, 0
        %324 = vst.msk [vmem:[#allocation2 + $0x26c] sm:$0xf] %vm264, 0
        %325 = vst.msk [vmem:[#allocation2 + $0x284] sm:$0xf] %vm264, 0
        %326 = vst.msk [vmem:[#allocation2 + $0x29c] sm:$0xf] %vm264, 0
        %327 = vst.msk [vmem:[#allocation2 + $0x2b4] sm:$0xf] %vm264, 0
        %328 = vst.msk [vmem:[#allocation2 + $0x2cc] sm:$0xf] %vm264, 0
        %329 = vst.msk [vmem:[#allocation2 + $0x2e4] sm:$0xf] %vm264, 0
        %330 = vst.msk [vmem:[#allocation2 + $0x2fc] sm:$0xf] %vm264, 0
        %331 = vst.msk [vmem:[#allocation2 + $0x314] sm:$0xf] %vm264, 0
        %332 = vst.msk [vmem:[#allocation2 + $0x32c] sm:$0xf] %vm264, 0
        %333 = vst.msk [vmem:[#allocation2 + $0x4] sm:$0xf] %vm264, 0
        %334 = vst.msk [vmem:[#allocation2 + $0x8] sm:$0xf] %vm264, 0
        %335 = vst.msk [vmem:[#allocation2 + $0xc] sm:$0xf] %vm264, 0
        %336 = vst.msk [vmem:[#allocation2 + $0x10] sm:$0xf] %vm264, 0
        %s337 = scalar_lea.vmem [#allocation2], 792
        %338 = vst.msk [vmem:[%s337 + $0x4] sm:$0xf] %vm264, 0
        %339 = vst.msk [vmem:[%s337 + $0x8] sm:$0xf] %vm264, 0
        %340 = vst.msk [vmem:[%s337 + $0xc] sm:$0xf] %vm264, 0
        %341 = vst.msk [vmem:[%s337 + $0x10] sm:$0xf] %vm264, 0
        %vm342 = vcmask 519168
        %343 = vst.msk [vmem:[#allocation3] sm:$0xf] %vm342, 0
        %344 = vst.msk [vmem:[#allocation3 + $0x18] sm:$0xf] %vm342, 0
        %345 = vst.msk [vmem:[#allocation3 + $0x30] sm:$0xf] %vm342, 0
        %346 = vst.msk [vmem:[#allocation3 + $0x48] sm:$0xf] %vm342, 0
        %347 = vst.msk [vmem:[#allocation3 + $0x60] sm:$0xf] %vm342, 0
        %348 = vst.msk [vmem:[#allocation3 + $0x78] sm:$0xf] %vm342, 0
        %349 = vst.msk [vmem:[#allocation3 + $0x90] sm:$0xf] %vm342, 0
        %350 = vst.msk [vmem:[#allocation3 + $0xa8] sm:$0xf] %vm342, 0
        %351 = vst.msk [vmem:[#allocation3 + $0xc0] sm:$0xf] %vm342, 0
        %352 = vst.msk [vmem:[#allocation3 + $0xd8] sm:$0xf] %vm342, 0
        %353 = vst.msk [vmem:[#allocation3 + $0xf0] sm:$0xf] %vm342, 0
        %354 = vst.msk [vmem:[#allocation3 + $0x108] sm:$0xf] %vm342, 0
        %355 = vst.msk [vmem:[#allocation3 + $0x120] sm:$0xf] %vm342, 0
        %356 = vst.msk [vmem:[#allocation3 + $0x138] sm:$0xf] %vm342, 0
        %357 = vst.msk [vmem:[#allocation3 + $0x150] sm:$0xf] %vm342, 0
        %358 = vst.msk [vmem:[#allocation3 + $0x168] sm:$0xf] %vm342, 0
        %359 = vst.msk [vmem:[#allocation3 + $0x180] sm:$0xf] %vm342, 0
        %360 = vst.msk [vmem:[#allocation3 + $0x198] sm:$0xf] %vm342, 0
        %361 = vst.msk [vmem:[#allocation3 + $0x1b0] sm:$0xf] %vm342, 0
        %362 = vst.msk [vmem:[#allocation3 + $0x1c8] sm:$0xf] %vm342, 0
        %363 = vst.msk [vmem:[#allocation3 + $0x1e0] sm:$0xf] %vm342, 0
        %364 = vst.msk [vmem:[#allocation3 + $0x1f8] sm:$0xf] %vm342, 0
        %365 = vst.msk [vmem:[#allocation3 + $0x210] sm:$0xf] %vm342, 0
        %366 = vst.msk [vmem:[#allocation3 + $0x228] sm:$0xf] %vm342, 0
        %367 = vst.msk [vmem:[#allocation3 + $0x240] sm:$0xf] %vm342, 0
        %368 = vst.msk [vmem:[#allocation3 + $0x258] sm:$0xf] %vm342, 0
        %369 = vst.msk [vmem:[#allocation3 + $0x270] sm:$0xf] %vm342, 0
        %370 = vst.msk [vmem:[#allocation3 + $0x288] sm:$0xf] %vm342, 0
        %371 = vst.msk [vmem:[#allocation3 + $0x2a0] sm:$0xf] %vm342, 0
        %372 = vst.msk [vmem:[#allocation3 + $0x2b8] sm:$0xf] %vm342, 0
        %373 = vst.msk [vmem:[#allocation3 + $0x2d0] sm:$0xf] %vm342, 0
        %374 = vst.msk [vmem:[#allocation3 + $0x2e8] sm:$0xf] %vm342, 0
        %375 = vst.msk [vmem:[#allocation3 + $0x300] sm:$0xf] %vm342, 0
        %376 = vst.msk [vmem:[#allocation3 + $0x318] sm:$0xf] %vm342, 0
        %377 = vst.msk [vmem:[#allocation3 + $0x14] sm:$0xf] %vm342, 0
        %378 = vst.msk [vmem:[#allocation3 + $0x2c] sm:$0xf] %vm342, 0
        %379 = vst.msk [vmem:[#allocation3 + $0x44] sm:$0xf] %vm342, 0
        %380 = vst.msk [vmem:[#allocation3 + $0x5c] sm:$0xf] %vm342, 0
        %381 = vst.msk [vmem:[#allocation3 + $0x74] sm:$0xf] %vm342, 0
        %382 = vst.msk [vmem:[#allocation3 + $0x8c] sm:$0xf] %vm342, 0
        %383 = vst.msk [vmem:[#allocation3 + $0xa4] sm:$0xf] %vm342, 0
        %384 = vst.msk [vmem:[#allocation3 + $0xbc] sm:$0xf] %vm342, 0
        %385 = vst.msk [vmem:[#allocation3 + $0xd4] sm:$0xf] %vm342, 0
        %386 = vst.msk [vmem:[#allocation3 + $0xec] sm:$0xf] %vm342, 0
        %387 = vst.msk [vmem:[#allocation3 + $0x104] sm:$0xf] %vm342, 0
        %388 = vst.msk [vmem:[#allocation3 + $0x11c] sm:$0xf] %vm342, 0
        %389 = vst.msk [vmem:[#allocation3 + $0x134] sm:$0xf] %vm342, 0
        %390 = vst.msk [vmem:[#allocation3 + $0x14c] sm:$0xf] %vm342, 0
        %391 = vst.msk [vmem:[#allocation3 + $0x164] sm:$0xf] %vm342, 0
        %392 = vst.msk [vmem:[#allocation3 + $0x17c] sm:$0xf] %vm342, 0
        %393 = vst.msk [vmem:[#allocation3 + $0x194] sm:$0xf] %vm342, 0
        %394 = vst.msk [vmem:[#allocation3 + $0x1ac] sm:$0xf] %vm342, 0
        %395 = vst.msk [vmem:[#allocation3 + $0x1c4] sm:$0xf] %vm342, 0
        %396 = vst.msk [vmem:[#allocation3 + $0x1dc] sm:$0xf] %vm342, 0
        %397 = vst.msk [vmem:[#allocation3 + $0x1f4] sm:$0xf] %vm342, 0
        %398 = vst.msk [vmem:[#allocation3 + $0x20c] sm:$0xf] %vm342, 0
        %399 = vst.msk [vmem:[#allocation3 + $0x224] sm:$0xf] %vm342, 0
        %400 = vst.msk [vmem:[#allocation3 + $0x23c] sm:$0xf] %vm342, 0
        %401 = vst.msk [vmem:[#allocation3 + $0x254] sm:$0xf] %vm342, 0
        %402 = vst.msk [vmem:[#allocation3 + $0x26c] sm:$0xf] %vm342, 0
        %403 = vst.msk [vmem:[#allocation3 + $0x284] sm:$0xf] %vm342, 0
        %404 = vst.msk [vmem:[#allocation3 + $0x29c] sm:$0xf] %vm342, 0
        %405 = vst.msk [vmem:[#allocation3 + $0x2b4] sm:$0xf] %vm342, 0
        %406 = vst.msk [vmem:[#allocation3 + $0x2cc] sm:$0xf] %vm342, 0
        %407 = vst.msk [vmem:[#allocation3 + $0x2e4] sm:$0xf] %vm342, 0
        %408 = vst.msk [vmem:[#allocation3 + $0x2fc] sm:$0xf] %vm342, 0
        %409 = vst.msk [vmem:[#allocation3 + $0x314] sm:$0xf] %vm342, 0
        %410 = vst.msk [vmem:[#allocation3 + $0x32c] sm:$0xf] %vm342, 0
        %411 = vst.msk [vmem:[#allocation3 + $0x4] sm:$0xf] %vm342, 0
        %412 = vst.msk [vmem:[#allocation3 + $0x8] sm:$0xf] %vm342, 0
        %413 = vst.msk [vmem:[#allocation3 + $0xc] sm:$0xf] %vm342, 0
        %414 = vst.msk [vmem:[#allocation3 + $0x10] sm:$0xf] %vm342, 0
        %s415 = scalar_lea.vmem [#allocation3], 792
        %416 = vst.msk [vmem:[%s415 + $0x4] sm:$0xf] %vm342, 0
        %417 = vst.msk [vmem:[%s415 + $0x8] sm:$0xf] %vm342, 0
        %418 = vst.msk [vmem:[%s415 + $0xc] sm:$0xf] %vm342, 0
        %419 = vst.msk [vmem:[%s415 + $0x10] sm:$0xf] %vm342, 0
        %v420 = vld [vmem:[%s262] sm:$0xff]
        %v421 = vld [vmem:[%s262 + $0x8] sm:$0xff]
        %v422 = vld [vmem:[%s262 + $0x10] sm:$0xff]
        %v423 = vld [vmem:[%s262 + $0x18] sm:$0xff]
        %v424 = vld [vmem:[%s262 + $0x20] sm:$0xff]
        %v425 = vld [vmem:[%s262 + $0x28] sm:$0xff]
        %v426 = vld [vmem:[%s262 + $0x30] sm:$0xff]
        %v427 = vld [vmem:[%s262 + $0x38] sm:$0xff]
        %v428 = vld [vmem:[%s262 + $0x40] sm:$0xff]
        %v429 = vld [vmem:[%s262 + $0x48] sm:$0xff]
        %v430 = vld [vmem:[%s262 + $0x50] sm:$0xff]
        %v431 = vld [vmem:[%s262 + $0x58] sm:$0xff]
        %v432 = vld [vmem:[%s262 + $0x60] sm:$0xff]
        %v433 = vld [vmem:[%s262 + $0x68] sm:$0xff]
        %v434 = vld [vmem:[%s262 + $0x70] sm:$0xff]
        %v435 = vld [vmem:[%s262 + $0x78] sm:$0xff]
        %v436 = vld [vmem:[%s262 + $0x80] sm:$0xff]
        %v437 = vld [vmem:[%s262 + $0x88] sm:$0xff]
        %v438 = vld [vmem:[%s262 + $0x90] sm:$0xff]
        %v439 = vld [vmem:[%s262 + $0x98] sm:$0xff]
        %v440 = vld [vmem:[%s262 + $0xa0] sm:$0xff]
        %v441 = vld [vmem:[%s262 + $0xa8] sm:$0xff]
        %v442 = vld [vmem:[%s262 + $0xb0] sm:$0xff]
        %v443 = vld [vmem:[%s262 + $0xb8] sm:$0xff]
        %v444 = vld [vmem:[%s262 + $0xc0] sm:$0xff]
        %v445 = vld [vmem:[%s262 + $0xc8] sm:$0xff]
        %v446 = vld [vmem:[%s262 + $0xd0] sm:$0xff]
        %v447 = vld [vmem:[%s262 + $0xd8] sm:$0xff]
        %v448 = vld [vmem:[%s262 + $0xe0] sm:$0xff]
        %v449 = vld [vmem:[%s262 + $0xe8] sm:$0xff]
        %v450 = vld [vmem:[%s262 + $0xf0] sm:$0xff]
        %v451 = vld [vmem:[%s262 + $0xf8] sm:$0xff]
        %v452 = vld [vmem:[%s262 + $0x100] sm:$0xff]
        %v453 = vld [vmem:[%s262 + $0x108] sm:$0xff]
        %v454 = vld [vmem:[%s262 + $0x110] sm:$0xff]
        %v455 = vld [vmem:[%s262 + $0x118] sm:$0xff]
        %v456 = vld [vmem:[%s262 + $0x120] sm:$0xff]
        %v457 = vld [vmem:[%s262 + $0x128] sm:$0xff]
        %v458 = vld [vmem:[%s262 + $0x130] sm:$0xff]
        %v459 = vld [vmem:[%s262 + $0x138] sm:$0xff]
        %v460 = vld [vmem:[%s262 + $0x140] sm:$0xff]
        %v461 = vld [vmem:[%s262 + $0x148] sm:$0xff]
        %v462 = vld [vmem:[%s262 + $0x150] sm:$0xff]
        %v463 = vld [vmem:[%s262 + $0x158] sm:$0xff]
        %v464 = vld [vmem:[%s262 + $0x160] sm:$0xff]
        %v465 = vld [vmem:[%s262 + $0x168] sm:$0xff]
        %v466 = vld [vmem:[%s262 + $0x170] sm:$0xff]
        %v467 = vld [vmem:[%s262 + $0x178] sm:$0xff]
        %v468 = vld [vmem:[%s262 + $0x180] sm:$0xff]
        %v469 = vld [vmem:[%s262 + $0x188] sm:$0xff]
        %v470 = vld [vmem:[%s262 + $0x190] sm:$0xff]
        %v471 = vld [vmem:[%s262 + $0x198] sm:$0xff]
        %v472 = vld [vmem:[%s262 + $0x1a0] sm:$0xff]
        %v473 = vld [vmem:[%s262 + $0x1a8] sm:$0xff]
        %v474 = vld [vmem:[%s262 + $0x1b0] sm:$0xff]
        %v475 = vld [vmem:[%s262 + $0x1b8] sm:$0xff]
        %v476 = vld [vmem:[%s262 + $0x1c0] sm:$0xff]
        %v477 = vld [vmem:[%s262 + $0x1c8] sm:$0xff]
        %v478 = vld [vmem:[%s262 + $0x1d0] sm:$0xff]
        %v479 = vld [vmem:[%s262 + $0x1d8] sm:$0xff]
        %v480 = vld [vmem:[%s262 + $0x1e0] sm:$0xff]
        %v481 = vld [vmem:[%s262 + $0x1e8] sm:$0xff]
        %v482 = vld [vmem:[%s262 + $0x1f0] sm:$0xff]
        %v483 = vld [vmem:[%s262 + $0x1f8] sm:$0xff]
        %v484 = vld [vmem:[%s262 + $0x200] sm:$0xff]
        %v485 = vld [vmem:[%s262 + $0x208] sm:$0xff]
        %v486 = vld [vmem:[%s262 + $0x210] sm:$0xff]
        %v487 = vld [vmem:[%s262 + $0x218] sm:$0xff]
        %v488 = vld [vmem:[%s262 + $0x220] sm:$0xff]
        %v489 = vld [vmem:[%s262 + $0x228] sm:$0xff]
        %v490 = vld [vmem:[%s262 + $0x230] sm:$0xff]
        %v491 = vld [vmem:[%s262 + $0x238] sm:$0xff]
        %v492 = vld [vmem:[%s262 + $0x240] sm:$0xff]
        %v493 = vld [vmem:[%s262 + $0x248] sm:$0xff]
        %v494 = vld [vmem:[%s262 + $0x250] sm:$0xff]
        %v495 = vld [vmem:[%s262 + $0x258] sm:$0xff]
        %v496 = vld [vmem:[%s262 + $0x260] sm:$0xff]
        %v497 = vld [vmem:[%s262 + $0x268] sm:$0xff]
        %v498 = vld [vmem:[%s262 + $0x270] sm:$0xff]
        %v499 = vld [vmem:[%s262 + $0x278] sm:$0xff]
        %v500 = vld [vmem:[%s262 + $0x280] sm:$0xff]
        %v501 = vld [vmem:[%s262 + $0x288] sm:$0xff]
        %v502 = vld [vmem:[%s262 + $0x290] sm:$0xff]
        %v503 = vld [vmem:[%s262 + $0x298] sm:$0xff]
        %v504 = vld [vmem:[%s262 + $0x2a0] sm:$0xff]
        %v505 = vld [vmem:[%s262 + $0x2a8] sm:$0xff]
        %v506 = vld [vmem:[%s262 + $0x2b0] sm:$0xff]
        %v507 = vld [vmem:[%s262 + $0x2b8] sm:$0xff]
        %v508 = vld [vmem:[%s262 + $0x2c0] sm:$0xff]
        %v509 = vld [vmem:[%s262 + $0x2c8] sm:$0xff]
        %v510 = vld [vmem:[%s262 + $0x2d0] sm:$0xff]
        %v511 = vld [vmem:[%s262 + $0x2d8] sm:$0xff]
        %v512 = vld [vmem:[%s262 + $0x2e0] sm:$0xff]
        %v513 = vld [vmem:[%s262 + $0x2e8] sm:$0xff]
        %v514 = vld [vmem:[%s262 + $0x2f0] sm:$0xff]
        %v515 = vld [vmem:[%s262 + $0x2f8] sm:$0xff]
        %v516 = vld [vmem:[%s262 + $0x300] sm:$0xff]
        %v517 = vld [vmem:[%s262 + $0x308] sm:$0xff]
        %v518 = vld [vmem:[%s262 + $0x310] sm:$0xff]
        %v519 = vld [vmem:[%s262 + $0x318] sm:$0xff]
        %v520 = vld [vmem:[%s262 + $0x320] sm:$0xff]
        %v521 = vld [vmem:[%s262 + $0x328] sm:$0xff]
        %v522 = vld [vmem:[%s262 + $0x330] sm:$0xff]
        %v523 = vld [vmem:[%s262 + $0x338] sm:$0xff]
        %v524 = vld [vmem:[%s262 + $0x340] sm:$0xff]
        %v525 = vld [vmem:[%s262 + $0x348] sm:$0xff]
        %v526 = vld [vmem:[%s262 + $0x350] sm:$0xff]
        %v527 = vld [vmem:[%s262 + $0x358] sm:$0xff]
        %v528 = vld [vmem:[%s262 + $0x360] sm:$0xff]
        %v529 = vld [vmem:[%s262 + $0x368] sm:$0xff]
        %v530 = vld [vmem:[%s262 + $0x370] sm:$0xff]
        %v531 = vld [vmem:[%s262 + $0x378] sm:$0xff]
        %v532 = vld [vmem:[%s262 + $0x380] sm:$0xff]
        %v533 = vld [vmem:[%s262 + $0x388] sm:$0xff]
        %v534 = vld [vmem:[%s262 + $0x390] sm:$0xff]
        %v535 = vld [vmem:[%s262 + $0x398] sm:$0xff]
        %v536 = vld [vmem:[%s262 + $0x3a0] sm:$0xff]
        %v537 = vld [vmem:[%s262 + $0x3a8] sm:$0xff]
        %v538 = vld [vmem:[%s262 + $0x3b0] sm:$0xff]
        %v539 = vld [vmem:[%s262 + $0x3b8] sm:$0xff]
        %v540 = vld [vmem:[%s262 + $0x3c0] sm:$0xff]
        %v541 = vld [vmem:[%s262 + $0x3c8] sm:$0xff]
        %v542 = vld [vmem:[%s262 + $0x3d0] sm:$0xff]
        %v543 = vld [vmem:[%s262 + $0x3d8] sm:$0xff]
        %v544 = vld [vmem:[%s262 + $0x3e0] sm:$0xff]
        %v545 = vld [vmem:[%s262 + $0x3e8] sm:$0xff]
        %v546 = vld [vmem:[%s262 + $0x3f0] sm:$0xff]
        %v547 = vld [vmem:[%s262 + $0x3f8] sm:$0xff]
        %v548 = vpack.c.bf16 %v421, %v420
        %v549 = vpack.c.bf16 %v423, %v422
        %v550 = vpack.c.bf16 %v425, %v424
        %v551 = vpack.c.bf16 %v427, %v426
        %v552 = vpack.c.bf16 %v429, %v428
        %v553 = vpack.c.bf16 %v431, %v430
        %v554 = vpack.c.bf16 %v433, %v432
        %v555 = vpack.c.bf16 %v435, %v434
        %v556 = vpack.c.bf16 %v437, %v436
        %v557 = vpack.c.bf16 %v439, %v438
        %v558 = vpack.c.bf16 %v441, %v440
        %v559 = vpack.c.bf16 %v443, %v442
        %v560 = vpack.c.bf16 %v445, %v444
        %v561 = vpack.c.bf16 %v447, %v446
        %v562 = vpack.c.bf16 %v449, %v448
        %v563 = vpack.c.bf16 %v451, %v450
        %v564 = vpack.c.bf16 %v453, %v452
        %v565 = vpack.c.bf16 %v455, %v454
        %v566 = vpack.c.bf16 %v457, %v456
        %v567 = vpack.c.bf16 %v459, %v458
        %v568 = vpack.c.bf16 %v461, %v460
        %v569 = vpack.c.bf16 %v463, %v462
        %v570 = vpack.c.bf16 %v465, %v464
        %v571 = vpack.c.bf16 %v467, %v466
        %v572 = vpack.c.bf16 %v469, %v468
        %v573 = vpack.c.bf16 %v471, %v470
        %v574 = vpack.c.bf16 %v473, %v472
        %v575 = vpack.c.bf16 %v475, %v474
        %v576 = vpack.c.bf16 %v477, %v476
        %v577 = vpack.c.bf16 %v479, %v478
        %v578 = vpack.c.bf16 %v481, %v480
        %v579 = vpack.c.bf16 %v483, %v482
        %v580 = vpack.c.bf16 %v485, %v484
        %v581 = vpack.c.bf16 %v487, %v486
        %v582 = vpack.c.bf16 %v489, %v488
        %v583 = vpack.c.bf16 %v491, %v490
        %v584 = vpack.c.bf16 %v493, %v492
        %v585 = vpack.c.bf16 %v495, %v494
        %v586 = vpack.c.bf16 %v497, %v496
        %v587 = vpack.c.bf16 %v499, %v498
        %v588 = vpack.c.bf16 %v501, %v500
        %v589 = vpack.c.bf16 %v503, %v502
        %v590 = vpack.c.bf16 %v505, %v504
        %v591 = vpack.c.bf16 %v507, %v506
        %v592 = vpack.c.bf16 %v509, %v508
        %v593 = vpack.c.bf16 %v511, %v510
        %v594 = vpack.c.bf16 %v513, %v512
        %v595 = vpack.c.bf16 %v515, %v514
        %v596 = vpack.c.bf16 %v517, %v516
        %v597 = vpack.c.bf16 %v519, %v518
        %v598 = vpack.c.bf16 %v521, %v520
        %v599 = vpack.c.bf16 %v523, %v522
        %v600 = vpack.c.bf16 %v525, %v524
        %v601 = vpack.c.bf16 %v527, %v526
        %v602 = vpack.c.bf16 %v529, %v528
        %v603 = vpack.c.bf16 %v531, %v530
        %v604 = vpack.c.bf16 %v533, %v532
        %v605 = vpack.c.bf16 %v535, %v534
        %v606 = vpack.c.bf16 %v537, %v536
        %v607 = vpack.c.bf16 %v539, %v538
        %v608 = vpack.c.bf16 %v541, %v540
        %v609 = vpack.c.bf16 %v543, %v542
        %v610 = vpack.c.bf16 %v545, %v544
        %v611 = vpack.c.bf16 %v547, %v546
        %v676 = vunpack.c.l.b16 %v548
        %v677 = vunpack.c.h.b16 %v548
        %v678 = vunpack.c.l.b16 %v549
        %v679 = vunpack.c.h.b16 %v549
        %v680 = vunpack.c.l.b16 %v550
        %v681 = vunpack.c.h.b16 %v550
        %v682 = vunpack.c.l.b16 %v551
        %v683 = vunpack.c.h.b16 %v551
        %v684 = vunpack.c.l.b16 %v552
        %v685 = vunpack.c.h.b16 %v552
        %v686 = vunpack.c.l.b16 %v553
        %v687 = vunpack.c.h.b16 %v553
        %v688 = vunpack.c.l.b16 %v554
        %v689 = vunpack.c.h.b16 %v554
        %v690 = vunpack.c.l.b16 %v555
        %v691 = vunpack.c.h.b16 %v555
        %v692 = vunpack.c.l.b16 %v556
        %v693 = vunpack.c.h.b16 %v556
        %v694 = vunpack.c.l.b16 %v557
        %v695 = vunpack.c.h.b16 %v557
        %v696 = vunpack.c.l.b16 %v558
        %v697 = vunpack.c.h.b16 %v558
        %v698 = vunpack.c.l.b16 %v559
        %v699 = vunpack.c.h.b16 %v559
        %v700 = vunpack.c.l.b16 %v560
        %v701 = vunpack.c.h.b16 %v560
        %v702 = vunpack.c.l.b16 %v561
        %v703 = vunpack.c.h.b16 %v561
        %v704 = vunpack.c.l.b16 %v562
        %v705 = vunpack.c.h.b16 %v562
        %v706 = vunpack.c.l.b16 %v563
        %v707 = vunpack.c.h.b16 %v563
        %v708 = vunpack.c.l.b16 %v564
        %v709 = vunpack.c.h.b16 %v564
        %v710 = vunpack.c.l.b16 %v565
        %v711 = vunpack.c.h.b16 %v565
        %v712 = vunpack.c.l.b16 %v566
        %v713 = vunpack.c.h.b16 %v566
        %v714 = vunpack.c.l.b16 %v567
        %v715 = vunpack.c.h.b16 %v567
        %v716 = vunpack.c.l.b16 %v568
        %v717 = vunpack.c.h.b16 %v568
        %v718 = vunpack.c.l.b16 %v569
        %v719 = vunpack.c.h.b16 %v569
        %v720 = vunpack.c.l.b16 %v570
        %v721 = vunpack.c.h.b16 %v570
        %v722 = vunpack.c.l.b16 %v571
        %v723 = vunpack.c.h.b16 %v571
        %v724 = vunpack.c.l.b16 %v572
        %v725 = vunpack.c.h.b16 %v572
        %v726 = vunpack.c.l.b16 %v573
        %v727 = vunpack.c.h.b16 %v573
        %v728 = vunpack.c.l.b16 %v574
        %v729 = vunpack.c.h.b16 %v574
        %v730 = vunpack.c.l.b16 %v575
        %v731 = vunpack.c.h.b16 %v575
        %v732 = vunpack.c.l.b16 %v576
        %v733 = vunpack.c.h.b16 %v576
        %v734 = vunpack.c.l.b16 %v577
        %v735 = vunpack.c.h.b16 %v577
        %v736 = vunpack.c.l.b16 %v578
        %v737 = vunpack.c.h.b16 %v578
        %v738 = vunpack.c.l.b16 %v579
        %v739 = vunpack.c.h.b16 %v579
        %v740 = vunpack.c.l.b16 %v580
        %v741 = vunpack.c.h.b16 %v580
        %v742 = vunpack.c.l.b16 %v581
        %v743 = vunpack.c.h.b16 %v581
        %v744 = vunpack.c.l.b16 %v582
        %v745 = vunpack.c.h.b16 %v582
        %v746 = vunpack.c.l.b16 %v583
        %v747 = vunpack.c.h.b16 %v583
        %v748 = vunpack.c.l.b16 %v584
        %v749 = vunpack.c.h.b16 %v584
        %v750 = vunpack.c.l.b16 %v585
        %v751 = vunpack.c.h.b16 %v585
        %v752 = vunpack.c.l.b16 %v586
        %v753 = vunpack.c.h.b16 %v586
        %v754 = vunpack.c.l.b16 %v587
        %v755 = vunpack.c.h.b16 %v587
        %v756 = vunpack.c.l.b16 %v588
        %v757 = vunpack.c.h.b16 %v588
        %v758 = vunpack.c.l.b16 %v589
        %v759 = vunpack.c.h.b16 %v589
        %v760 = vunpack.c.l.b16 %v590
        %v761 = vunpack.c.h.b16 %v590
        %v762 = vunpack.c.l.b16 %v591
        %v763 = vunpack.c.h.b16 %v591
        %v764 = vunpack.c.l.b16 %v592
        %v765 = vunpack.c.h.b16 %v592
        %v766 = vunpack.c.l.b16 %v593
        %v767 = vunpack.c.h.b16 %v593
        %v768 = vunpack.c.l.b16 %v594
        %v769 = vunpack.c.h.b16 %v594
        %v770 = vunpack.c.l.b16 %v595
        %v771 = vunpack.c.h.b16 %v595
        %v772 = vunpack.c.l.b16 %v596
        %v773 = vunpack.c.h.b16 %v596
        %v774 = vunpack.c.l.b16 %v597
        %v775 = vunpack.c.h.b16 %v597
        %v776 = vunpack.c.l.b16 %v598
        %v777 = vunpack.c.h.b16 %v598
        %v778 = vunpack.c.l.b16 %v599
        %v779 = vunpack.c.h.b16 %v599
        %v780 = vunpack.c.l.b16 %v600
        %v781 = vunpack.c.h.b16 %v600
        %v782 = vunpack.c.l.b16 %v601
        %v783 = vunpack.c.h.b16 %v601
        %v784 = vunpack.c.l.b16 %v602
        %v785 = vunpack.c.h.b16 %v602
        %v786 = vunpack.c.l.b16 %v603
        %v787 = vunpack.c.h.b16 %v603
        %v788 = vunpack.c.l.b16 %v604
        %v789 = vunpack.c.h.b16 %v604
        %v790 = vunpack.c.l.b16 %v605
        %v791 = vunpack.c.h.b16 %v605
        %v792 = vunpack.c.l.b16 %v606
        %v793 = vunpack.c.h.b16 %v606
        %v794 = vunpack.c.l.b16 %v607
        %v795 = vunpack.c.h.b16 %v607
        %v796 = vunpack.c.l.b16 %v608
        %v797 = vunpack.c.h.b16 %v608
        %v798 = vunpack.c.l.b16 %v609
        %v799 = vunpack.c.h.b16 %v609
        %v800 = vunpack.c.l.b16 %v610
        %v801 = vunpack.c.h.b16 %v610
        %v802 = vunpack.c.l.b16 %v611
        %v803 = vunpack.c.h.b16 %v611
        %v804 = vpack.c.b16 %v676, %v676
        %v805 = vpack.c.b16 %v677, %v677
        %v806 = vpack.c.b16 %v678, %v678
        %v807 = vpack.c.b16 %v679, %v679
        %v808 = vpack.c.b16 %v680, %v680
        %v809 = vpack.c.b16 %v681, %v681
        %v810 = vpack.c.b16 %v682, %v682
        %v811 = vpack.c.b16 %v683, %v683
        %v812 = vpack.c.b16 %v684, %v684
        %v813 = vpack.c.b16 %v685, %v685
        %v814 = vpack.c.b16 %v686, %v686
        %v815 = vpack.c.b16 %v687, %v687
        %v816 = vpack.c.b16 %v688, %v688
        %v817 = vpack.c.b16 %v689, %v689
        %v818 = vpack.c.b16 %v690, %v690
        %v819 = vpack.c.b16 %v691, %v691
        %v820 = vpack.c.b16 %v692, %v692
        %v821 = vpack.c.b16 %v693, %v693
        %v822 = vpack.c.b16 %v694, %v694
        %v823 = vpack.c.b16 %v695, %v695
        %v824 = vpack.c.b16 %v696, %v696
        %v825 = vpack.c.b16 %v697, %v697
        %v826 = vpack.c.b16 %v698, %v698
        %v827 = vpack.c.b16 %v699, %v699
        %v828 = vpack.c.b16 %v700, %v700
        %v829 = vpack.c.b16 %v701, %v701
        %v830 = vpack.c.b16 %v702, %v702
        %v831 = vpack.c.b16 %v703, %v703
        %v832 = vpack.c.b16 %v704, %v704
        %v833 = vpack.c.b16 %v705, %v705
        %v834 = vpack.c.b16 %v706, %v706
        %v835 = vpack.c.b16 %v707, %v707
        %v836 = vpack.c.b16 %v708, %v708
        %v837 = vpack.c.b16 %v709, %v709
        %v838 = vpack.c.b16 %v710, %v710
        %v839 = vpack.c.b16 %v711, %v711
        %v840 = vpack.c.b16 %v712, %v712
        %v841 = vpack.c.b16 %v713, %v713
        %v842 = vpack.c.b16 %v714, %v714
        %v843 = vpack.c.b16 %v715, %v715
        %v844 = vpack.c.b16 %v716, %v716
        %v845 = vpack.c.b16 %v717, %v717
        %v846 = vpack.c.b16 %v718, %v718
        %v847 = vpack.c.b16 %v719, %v719
        %v848 = vpack.c.b16 %v720, %v720
        %v849 = vpack.c.b16 %v721, %v721
        %v850 = vpack.c.b16 %v722, %v722
        %v851 = vpack.c.b16 %v723, %v723
        %v852 = vpack.c.b16 %v724, %v724
        %v853 = vpack.c.b16 %v725, %v725
        %v854 = vpack.c.b16 %v726, %v726
        %v855 = vpack.c.b16 %v727, %v727
        %v856 = vpack.c.b16 %v728, %v728
        %v857 = vpack.c.b16 %v729, %v729
        %v858 = vpack.c.b16 %v730, %v730
        %v859 = vpack.c.b16 %v731, %v731
        %v860 = vpack.c.b16 %v732, %v732
        %v861 = vpack.c.b16 %v733, %v733
        %v862 = vpack.c.b16 %v734, %v734
        %v863 = vpack.c.b16 %v735, %v735
        %v864 = vpack.c.b16 %v736, %v736
        %v865 = vpack.c.b16 %v737, %v737
        %v866 = vpack.c.b16 %v738, %v738
        %v867 = vpack.c.b16 %v739, %v739
        %v868 = vpack.c.b16 %v740, %v740
        %v869 = vpack.c.b16 %v741, %v741
        %v870 = vpack.c.b16 %v742, %v742
        %v871 = vpack.c.b16 %v743, %v743
        %v872 = vpack.c.b16 %v744, %v744
        %v873 = vpack.c.b16 %v745, %v745
        %v874 = vpack.c.b16 %v746, %v746
        %v875 = vpack.c.b16 %v747, %v747
        %v876 = vpack.c.b16 %v748, %v748
        %v877 = vpack.c.b16 %v749, %v749
        %v878 = vpack.c.b16 %v750, %v750
        %v879 = vpack.c.b16 %v751, %v751
        %v880 = vpack.c.b16 %v752, %v752
        %v881 = vpack.c.b16 %v753, %v753
        %v882 = vpack.c.b16 %v754, %v754
        %v883 = vpack.c.b16 %v755, %v755
        %v884 = vpack.c.b16 %v756, %v756
        %v885 = vpack.c.b16 %v757, %v757
        %v886 = vpack.c.b16 %v758, %v758
        %v887 = vpack.c.b16 %v759, %v759
        %v888 = vpack.c.b16 %v760, %v760
        %v889 = vpack.c.b16 %v761, %v761
        %v890 = vpack.c.b16 %v762, %v762
        %v891 = vpack.c.b16 %v763, %v763
        %v892 = vpack.c.b16 %v764, %v764
        %v893 = vpack.c.b16 %v765, %v765
        %v894 = vpack.c.b16 %v766, %v766
        %v895 = vpack.c.b16 %v767, %v767
        %v896 = vpack.c.b16 %v768, %v768
        %v897 = vpack.c.b16 %v769, %v769
        %v898 = vpack.c.b16 %v770, %v770
        %v899 = vpack.c.b16 %v771, %v771
        %v900 = vpack.c.b16 %v772, %v772
        %v901 = vpack.c.b16 %v773, %v773
        %v902 = vpack.c.b16 %v774, %v774
        %v903 = vpack.c.b16 %v775, %v775
        %v904 = vpack.c.b16 %v776, %v776
        %v905 = vpack.c.b16 %v777, %v777
        %v906 = vpack.c.b16 %v778, %v778
        %v907 = vpack.c.b16 %v779, %v779
        %v908 = vpack.c.b16 %v780, %v780
        %v909 = vpack.c.b16 %v781, %v781
        %v910 = vpack.c.b16 %v782, %v782
        %v911 = vpack.c.b16 %v783, %v783
        %v912 = vpack.c.b16 %v784, %v784
        %v913 = vpack.c.b16 %v785, %v785
        %v914 = vpack.c.b16 %v786, %v786
        %v915 = vpack.c.b16 %v787, %v787
        %v916 = vpack.c.b16 %v788, %v788
        %v917 = vpack.c.b16 %v789, %v789
        %v918 = vpack.c.b16 %v790, %v790
        %v919 = vpack.c.b16 %v791, %v791
        %v920 = vpack.c.b16 %v792, %v792
        %v921 = vpack.c.b16 %v793, %v793
        %v922 = vpack.c.b16 %v794, %v794
        %v923 = vpack.c.b16 %v795, %v795
        %v924 = vpack.c.b16 %v796, %v796
        %v925 = vpack.c.b16 %v797, %v797
        %v926 = vpack.c.b16 %v798, %v798
        %v927 = vpack.c.b16 %v799, %v799
        %v928 = vpack.c.b16 %v800, %v800
        %v929 = vpack.c.b16 %v801, %v801
        %v930 = vpack.c.b16 %v802, %v802
        %v931 = vpack.c.b16 %v803, %v803
        %s1060 = scalar_lea.vmem [#allocation2], 24
        %1061 = vst.msk [vmem:[%s1060 + $0x4] sm:$0xf] %vm264, %v804
        %1062 = vst.msk [vmem:[%s1060 + $0x8] sm:$0xf] %vm264, %v805
        %1063 = vst.msk [vmem:[%s1060 + $0xc] sm:$0xf] %vm264, %v806
        %1064 = vst.msk [vmem:[%s1060 + $0x10] sm:$0xf] %vm264, %v807
        %1065 = vst.msk [vmem:[%s1060 + $0x1c] sm:$0xf] %vm264, %v808
        %1066 = vst.msk [vmem:[%s1060 + $0x20] sm:$0xf] %vm264, %v809
        %1067 = vst.msk [vmem:[%s1060 + $0x24] sm:$0xf] %vm264, %v810
        %1068 = vst.msk [vmem:[%s1060 + $0x28] sm:$0xf] %vm264, %v811
        %1069 = vst.msk [vmem:[%s1060 + $0x34] sm:$0xf] %vm264, %v812
        %1070 = vst.msk [vmem:[%s1060 + $0x38] sm:$0xf] %vm264, %v813
        %1071 = vst.msk [vmem:[%s1060 + $0x3c] sm:$0xf] %vm264, %v814
        %1072 = vst.msk [vmem:[%s1060 + $0x40] sm:$0xf] %vm264, %v815
        %1073 = vst.msk [vmem:[%s1060 + $0x4c] sm:$0xf] %vm264, %v816
        %1074 = vst.msk [vmem:[%s1060 + $0x50] sm:$0xf] %vm264, %v817
        %1075 = vst.msk [vmem:[%s1060 + $0x54] sm:$0xf] %vm264, %v818
        %1076 = vst.msk [vmem:[%s1060 + $0x58] sm:$0xf] %vm264, %v819
        %1077 = vst.msk [vmem:[%s1060 + $0x64] sm:$0xf] %vm264, %v820
        %1078 = vst.msk [vmem:[%s1060 + $0x68] sm:$0xf] %vm264, %v821
        %1079 = vst.msk [vmem:[%s1060 + $0x6c] sm:$0xf] %vm264, %v822
        %1080 = vst.msk [vmem:[%s1060 + $0x70] sm:$0xf] %vm264, %v823
        %1081 = vst.msk [vmem:[%s1060 + $0x7c] sm:$0xf] %vm264, %v824
        %1082 = vst.msk [vmem:[%s1060 + $0x80] sm:$0xf] %vm264, %v825
        %1083 = vst.msk [vmem:[%s1060 + $0x84] sm:$0xf] %vm264, %v826
        %1084 = vst.msk [vmem:[%s1060 + $0x88] sm:$0xf] %vm264, %v827
        %1085 = vst.msk [vmem:[%s1060 + $0x94] sm:$0xf] %vm264, %v828
        %1086 = vst.msk [vmem:[%s1060 + $0x98] sm:$0xf] %vm264, %v829
        %1087 = vst.msk [vmem:[%s1060 + $0x9c] sm:$0xf] %vm264, %v830
        %1088 = vst.msk [vmem:[%s1060 + $0xa0] sm:$0xf] %vm264, %v831
        %1089 = vst.msk [vmem:[%s1060 + $0xac] sm:$0xf] %vm264, %v832
        %1090 = vst.msk [vmem:[%s1060 + $0xb0] sm:$0xf] %vm264, %v833
        %1091 = vst.msk [vmem:[%s1060 + $0xb4] sm:$0xf] %vm264, %v834
        %1092 = vst.msk [vmem:[%s1060 + $0xb8] sm:$0xf] %vm264, %v835
        %1093 = vst.msk [vmem:[%s1060 + $0xc4] sm:$0xf] %vm264, %v836
        %1094 = vst.msk [vmem:[%s1060 + $0xc8] sm:$0xf] %vm264, %v837
        %1095 = vst.msk [vmem:[%s1060 + $0xcc] sm:$0xf] %vm264, %v838
        %1096 = vst.msk [vmem:[%s1060 + $0xd0] sm:$0xf] %vm264, %v839
        %1097 = vst.msk [vmem:[%s1060 + $0xdc] sm:$0xf] %vm264, %v840
        %1098 = vst.msk [vmem:[%s1060 + $0xe0] sm:$0xf] %vm264, %v841
        %1099 = vst.msk [vmem:[%s1060 + $0xe4] sm:$0xf] %vm264, %v842
        %1100 = vst.msk [vmem:[%s1060 + $0xe8] sm:$0xf] %vm264, %v843
        %1101 = vst.msk [vmem:[%s1060 + $0xf4] sm:$0xf] %vm264, %v844
        %1102 = vst.msk [vmem:[%s1060 + $0xf8] sm:$0xf] %vm264, %v845
        %1103 = vst.msk [vmem:[%s1060 + $0xfc] sm:$0xf] %vm264, %v846
        %1104 = vst.msk [vmem:[%s1060 + $0x100] sm:$0xf] %vm264, %v847
        %1105 = vst.msk [vmem:[%s1060 + $0x10c] sm:$0xf] %vm264, %v848
        %1106 = vst.msk [vmem:[%s1060 + $0x110] sm:$0xf] %vm264, %v849
        %1107 = vst.msk [vmem:[%s1060 + $0x114] sm:$0xf] %vm264, %v850
        %1108 = vst.msk [vmem:[%s1060 + $0x118] sm:$0xf] %vm264, %v851
        %1109 = vst.msk [vmem:[%s1060 + $0x124] sm:$0xf] %vm264, %v852
        %1110 = vst.msk [vmem:[%s1060 + $0x128] sm:$0xf] %vm264, %v853
        %1111 = vst.msk [vmem:[%s1060 + $0x12c] sm:$0xf] %vm264, %v854
        %1112 = vst.msk [vmem:[%s1060 + $0x130] sm:$0xf] %vm264, %v855
        %1113 = vst.msk [vmem:[%s1060 + $0x13c] sm:$0xf] %vm264, %v856
        %1114 = vst.msk [vmem:[%s1060 + $0x140] sm:$0xf] %vm264, %v857
        %1115 = vst.msk [vmem:[%s1060 + $0x144] sm:$0xf] %vm264, %v858
        %1116 = vst.msk [vmem:[%s1060 + $0x148] sm:$0xf] %vm264, %v859
        %1117 = vst.msk [vmem:[%s1060 + $0x154] sm:$0xf] %vm264, %v860
        %1118 = vst.msk [vmem:[%s1060 + $0x158] sm:$0xf] %vm264, %v861
        %1119 = vst.msk [vmem:[%s1060 + $0x15c] sm:$0xf] %vm264, %v862
        %1120 = vst.msk [vmem:[%s1060 + $0x160] sm:$0xf] %vm264, %v863
        %1121 = vst.msk [vmem:[%s1060 + $0x16c] sm:$0xf] %vm264, %v864
        %1122 = vst.msk [vmem:[%s1060 + $0x170] sm:$0xf] %vm264, %v865
        %1123 = vst.msk [vmem:[%s1060 + $0x174] sm:$0xf] %vm264, %v866
        %1124 = vst.msk [vmem:[%s1060 + $0x178] sm:$0xf] %vm264, %v867
        %1125 = vst.msk [vmem:[%s1060 + $0x184] sm:$0xf] %vm264, %v868
        %1126 = vst.msk [vmem:[%s1060 + $0x188] sm:$0xf] %vm264, %v869
        %1127 = vst.msk [vmem:[%s1060 + $0x18c] sm:$0xf] %vm264, %v870
        %1128 = vst.msk [vmem:[%s1060 + $0x190] sm:$0xf] %vm264, %v871
        %1129 = vst.msk [vmem:[%s1060 + $0x19c] sm:$0xf] %vm264, %v872
        %1130 = vst.msk [vmem:[%s1060 + $0x1a0] sm:$0xf] %vm264, %v873
        %1131 = vst.msk [vmem:[%s1060 + $0x1a4] sm:$0xf] %vm264, %v874
        %1132 = vst.msk [vmem:[%s1060 + $0x1a8] sm:$0xf] %vm264, %v875
        %1133 = vst.msk [vmem:[%s1060 + $0x1b4] sm:$0xf] %vm264, %v876
        %1134 = vst.msk [vmem:[%s1060 + $0x1b8] sm:$0xf] %vm264, %v877
        %1135 = vst.msk [vmem:[%s1060 + $0x1bc] sm:$0xf] %vm264, %v878
        %1136 = vst.msk [vmem:[%s1060 + $0x1c0] sm:$0xf] %vm264, %v879
        %1137 = vst.msk [vmem:[%s1060 + $0x1cc] sm:$0xf] %vm264, %v880
        %1138 = vst.msk [vmem:[%s1060 + $0x1d0] sm:$0xf] %vm264, %v881
        %1139 = vst.msk [vmem:[%s1060 + $0x1d4] sm:$0xf] %vm264, %v882
        %1140 = vst.msk [vmem:[%s1060 + $0x1d8] sm:$0xf] %vm264, %v883
        %1141 = vst.msk [vmem:[%s1060 + $0x1e4] sm:$0xf] %vm264, %v884
        %1142 = vst.msk [vmem:[%s1060 + $0x1e8] sm:$0xf] %vm264, %v885
        %1143 = vst.msk [vmem:[%s1060 + $0x1ec] sm:$0xf] %vm264, %v886
        %1144 = vst.msk [vmem:[%s1060 + $0x1f0] sm:$0xf] %vm264, %v887
        %1145 = vst.msk [vmem:[%s1060 + $0x1fc] sm:$0xf] %vm264, %v888
        %1146 = vst.msk [vmem:[%s1060 + $0x200] sm:$0xf] %vm264, %v889
        %1147 = vst.msk [vmem:[%s1060 + $0x204] sm:$0xf] %vm264, %v890
        %1148 = vst.msk [vmem:[%s1060 + $0x208] sm:$0xf] %vm264, %v891
        %1149 = vst.msk [vmem:[%s1060 + $0x214] sm:$0xf] %vm264, %v892
        %1150 = vst.msk [vmem:[%s1060 + $0x218] sm:$0xf] %vm264, %v893
        %1151 = vst.msk [vmem:[%s1060 + $0x21c] sm:$0xf] %vm264, %v894
        %1152 = vst.msk [vmem:[%s1060 + $0x220] sm:$0xf] %vm264, %v895
        %1153 = vst.msk [vmem:[%s1060 + $0x22c] sm:$0xf] %vm264, %v896
        %1154 = vst.msk [vmem:[%s1060 + $0x230] sm:$0xf] %vm264, %v897
        %1155 = vst.msk [vmem:[%s1060 + $0x234] sm:$0xf] %vm264, %v898
        %1156 = vst.msk [vmem:[%s1060 + $0x238] sm:$0xf] %vm264, %v899
        %1157 = vst.msk [vmem:[%s1060 + $0x244] sm:$0xf] %vm264, %v900
        %1158 = vst.msk [vmem:[%s1060 + $0x248] sm:$0xf] %vm264, %v901
        %1159 = vst.msk [vmem:[%s1060 + $0x24c] sm:$0xf] %vm264, %v902
        %1160 = vst.msk [vmem:[%s1060 + $0x250] sm:$0xf] %vm264, %v903
        %1161 = vst.msk [vmem:[%s1060 + $0x25c] sm:$0xf] %vm264, %v904
        %1162 = vst.msk [vmem:[%s1060 + $0x260] sm:$0xf] %vm264, %v905
        %1163 = vst.msk [vmem:[%s1060 + $0x264] sm:$0xf] %vm264, %v906
        %1164 = vst.msk [vmem:[%s1060 + $0x268] sm:$0xf] %vm264, %v907
        %1165 = vst.msk [vmem:[%s1060 + $0x274] sm:$0xf] %vm264, %v908
        %1166 = vst.msk [vmem:[%s1060 + $0x278] sm:$0xf] %vm264, %v909
        %1167 = vst.msk [vmem:[%s1060 + $0x27c] sm:$0xf] %vm264, %v910
        %1168 = vst.msk [vmem:[%s1060 + $0x280] sm:$0xf] %vm264, %v911
        %1169 = vst.msk [vmem:[%s1060 + $0x28c] sm:$0xf] %vm264, %v912
        %1170 = vst.msk [vmem:[%s1060 + $0x290] sm:$0xf] %vm264, %v913
        %1171 = vst.msk [vmem:[%s1060 + $0x294] sm:$0xf] %vm264, %v914
        %1172 = vst.msk [vmem:[%s1060 + $0x298] sm:$0xf] %vm264, %v915
        %1173 = vst.msk [vmem:[%s1060 + $0x2a4] sm:$0xf] %vm264, %v916
        %1174 = vst.msk [vmem:[%s1060 + $0x2a8] sm:$0xf] %vm264, %v917
        %1175 = vst.msk [vmem:[%s1060 + $0x2ac] sm:$0xf] %vm264, %v918
        %1176 = vst.msk [vmem:[%s1060 + $0x2b0] sm:$0xf] %vm264, %v919
        %1177 = vst.msk [vmem:[%s1060 + $0x2bc] sm:$0xf] %vm264, %v920
        %1178 = vst.msk [vmem:[%s1060 + $0x2c0] sm:$0xf] %vm264, %v921
        %1179 = vst.msk [vmem:[%s1060 + $0x2c4] sm:$0xf] %vm264, %v922
        %1180 = vst.msk [vmem:[%s1060 + $0x2c8] sm:$0xf] %vm264, %v923
        %1181 = vst.msk [vmem:[%s1060 + $0x2d4] sm:$0xf] %vm264, %v924
        %1182 = vst.msk [vmem:[%s1060 + $0x2d8] sm:$0xf] %vm264, %v925
        %1183 = vst.msk [vmem:[%s1060 + $0x2dc] sm:$0xf] %vm264, %v926
        %1184 = vst.msk [vmem:[%s1060 + $0x2e0] sm:$0xf] %vm264, %v927
        %1185 = vst.msk [vmem:[%s1060 + $0x2ec] sm:$0xf] %vm264, %v928
        %1186 = vst.msk [vmem:[%s1060 + $0x2f0] sm:$0xf] %vm264, %v929
        %1187 = vst.msk [vmem:[%s1060 + $0x2f4] sm:$0xf] %vm264, %v930
        %1188 = vst.msk [vmem:[%s1060 + $0x2f8] sm:$0xf] %vm264, %v931
        %v1189 = vld [vmem:[%s1] sm:$0xf]
        %v1190 = vld [vmem:[%s1 + $0x4] sm:$0xf]
        %v1191 = vld [vmem:[%s1 + $0x8] sm:$0xf]
        %v1192 = vld [vmem:[%s1 + $0xc] sm:$0xf]
        %v1193 = vld [vmem:[%s1 + $0x10] sm:$0xf]
        %v1194 = vld [vmem:[%s1 + $0x14] sm:$0xf]
        %v1195 = vld [vmem:[%s1 + $0x18] sm:$0xf]
        %v1196 = vld [vmem:[%s1 + $0x1c] sm:$0xf]
        %v1197 = vld [vmem:[%s1 + $0x20] sm:$0xf]
        %v1198 = vld [vmem:[%s2] sm:$0x1]
        %v1199 = vld [vmem:[%s3] sm:$0x1]
        %v1200 = vld [vmem:[%s3 + $0x1] sm:$0x1]
        %v1201 = vld [vmem:[%s3 + $0x2] sm:$0x1]
        %v1202 = vld [vmem:[%s3 + $0x3] sm:$0x1]
        %v1203 = vld [vmem:[%s3 + $0x4] sm:$0x1]
        %v1204 = vld [vmem:[%s3 + $0x5] sm:$0x1]
        %v1205 = vld [vmem:[%s3 + $0x6] sm:$0x1]
        %v1206 = vld [vmem:[%s3 + $0x7] sm:$0x1]
        %v1207 = vld [vmem:[%s3 + $0x8] sm:$0x1]
        %v1208 = vld [vmem:[#allocation4] sm:$0x1]
        loop: start=0, step=1, limit=4
        $region41: #{decoder_resf_forward.7} parent=39 // loop_pre_header
          _
        $region42: #{decoder_resf_forward.7} parent=39 // loop_header
          %s1210 = sphi 0, %s1214
          %p1211 = scmp.ge.s32.totalorder %s1210, 4
        $region43: #{decoder_resf_forward.7} parent=39 // loop_header_branch
          %1213 = sbr.rel (%p1211) target = $region47
        $region44: #{decoder_resf_forward.7} parent=39 // loop_body
          %s1215 = smul.u32 %s1210, 8
          %s1216 = smul.u32 %s1215, 6
          %s1217 = smul.addr %s1216, 4
          %s1218 = scalar_lea.vmem [#allocation2], %s1217
          %v1219 = vld [vmem:[%s1218] sm:$0x8]
          %v1220 = vld [vmem:[%s1218 + $0x4] sm:$0xf]
          %v1221 = vld [vmem:[%s1218 + $0x8] sm:$0xf]
          %v1222 = vld [vmem:[%s1218 + $0xc] sm:$0xf]
          %v1223 = vld [vmem:[%s1218 + $0x10] sm:$0xf]
          %v1224 = vld [vmem:[%s1218 + $0x18] sm:$0x8]
          %v1225 = vld [vmem:[%s1218 + $0x1c] sm:$0xf]
          %v1226 = vld [vmem:[%s1218 + $0x20] sm:$0xf]
          %v1227 = vld [vmem:[%s1218 + $0x24] sm:$0xf]
          %v1228 = vld [vmem:[%s1218 + $0x28] sm:$0xf]
          %v1229 = vld [vmem:[%s1218 + $0x30] sm:$0x8]
          %v1230 = vld [vmem:[%s1218 + $0x34] sm:$0xf]
          %v1231 = vld [vmem:[%s1218 + $0x38] sm:$0xf]
          %v1232 = vld [vmem:[%s1218 + $0x3c] sm:$0xf]
          %v1233 = vld [vmem:[%s1218 + $0x40] sm:$0xf]
          %v1234 = vld [vmem:[%s1218 + $0x48] sm:$0x8]
          %v1235 = vld [vmem:[%s1218 + $0x4c] sm:$0xf]
          %v1236 = vld [vmem:[%s1218 + $0x50] sm:$0xf]
          %v1237 = vld [vmem:[%s1218 + $0x54] sm:$0xf]
          %v1238 = vld [vmem:[%s1218 + $0x58] sm:$0xf]
          %v1239 = vld [vmem:[%s1218 + $0x60] sm:$0x8]
          %v1240 = vld [vmem:[%s1218 + $0x64] sm:$0xf]
          %v1241 = vld [vmem:[%s1218 + $0x68] sm:$0xf]
          %v1242 = vld [vmem:[%s1218 + $0x6c] sm:$0xf]
          %v1243 = vld [vmem:[%s1218 + $0x70] sm:$0xf]
          %v1244 = vld [vmem:[%s1218 + $0x78] sm:$0x8]
          %v1245 = vld [vmem:[%s1218 + $0x7c] sm:$0xf]
          %v1246 = vld [vmem:[%s1218 + $0x80] sm:$0xf]
          %v1247 = vld [vmem:[%s1218 + $0x84] sm:$0xf]
          %v1248 = vld [vmem:[%s1218 + $0x88] sm:$0xf]
          %v1249 = vld [vmem:[%s1218 + $0x90] sm:$0x8]
          %v1250 = vld [vmem:[%s1218 + $0x94] sm:$0xf]
          %v1251 = vld [vmem:[%s1218 + $0x98] sm:$0xf]
          %v1252 = vld [vmem:[%s1218 + $0x9c] sm:$0xf]
          %v1253 = vld [vmem:[%s1218 + $0xa0] sm:$0xf]
          %v1254 = vld [vmem:[%s1218 + $0xa8] sm:$0x8]
          %v1255 = vld [vmem:[%s1218 + $0xac] sm:$0xf]
          %v1256 = vld [vmem:[%s1218 + $0xb0] sm:$0xf]
          %v1257 = vld [vmem:[%s1218 + $0xb4] sm:$0xf]
          %v1258 = vld [vmem:[%s1218 + $0xb8] sm:$0xf]
          %vm1259 = vsmask.f32 256
          %vm1260 = vsmask.f32 4368
          %vm1261 = vmor %vm1259, %vm1260
          %v1263 = vshrl.u32 %v1219, 16
          %v1265 = vrot.slane %v1263, 7
          %v1266 = vrot.slane %v1265, 4
          %v1268 = vshrl.u32 %v1220, 16
          %v1270 = vrot.slane %v1268, 7
          %v1271 = vshll.u32 %v1220, 16
          %v1273 = vor.u32 %v1270, %v1271
          %v1274 = vsel %vm1261, %v1266, %v1273
          %v1275 = vrot.slane %v1270, 4
          %v1277 = vshrl.u32 %v1221, 16
          %v1279 = vrot.slane %v1277, 7
          %v1280 = vshll.u32 %v1221, 16
          %v1282 = vor.u32 %v1279, %v1280
          %v1283 = vsel %vm1261, %v1275, %v1282
          %v1284 = vrot.slane %v1279, 4
          %v1286 = vshrl.u32 %v1222, 16
          %v1288 = vrot.slane %v1286, 7
          %v1289 = vshll.u32 %v1222, 16
          %v1291 = vor.u32 %v1288, %v1289
          %v1292 = vsel %vm1261, %v1284, %v1291
          %v1293 = vrot.slane %v1288, 4
          %v1295 = vshrl.u32 %v1223, 16
          %v1297 = vrot.slane %v1295, 7
          %v1298 = vshll.u32 %v1223, 16
          %v1300 = vor.u32 %v1297, %v1298
          %v1301 = vsel %vm1261, %v1293, %v1300
          %v1303 = vshrl.u32 %v1224, 16
          %v1305 = vrot.slane %v1303, 7
          %v1306 = vrot.slane %v1305, 4
          %v1308 = vshrl.u32 %v1225, 16
          %v1310 = vrot.slane %v1308, 7
          %v1311 = vshll.u32 %v1225, 16
          %v1313 = vor.u32 %v1310, %v1311
          %v1314 = vsel %vm1261, %v1306, %v1313
          %v1315 = vrot.slane %v1310, 4
          %v1317 = vshrl.u32 %v1226, 16
          %v1319 = vrot.slane %v1317, 7
          %v1320 = vshll.u32 %v1226, 16
          %v1322 = vor.u32 %v1319, %v1320
          %v1323 = vsel %vm1261, %v1315, %v1322
          %v1324 = vrot.slane %v1319, 4
          %v1326 = vshrl.u32 %v1227, 16
          %v1328 = vrot.slane %v1326, 7
          %v1329 = vshll.u32 %v1227, 16
          %v1331 = vor.u32 %v1328, %v1329
          %v1332 = vsel %vm1261, %v1324, %v1331
          %v1333 = vrot.slane %v1328, 4
          %v1335 = vshrl.u32 %v1228, 16
          %v1337 = vrot.slane %v1335, 7
          %v1338 = vshll.u32 %v1228, 16
          %v1340 = vor.u32 %v1337, %v1338
          %v1341 = vsel %vm1261, %v1333, %v1340
          %v1343 = vshrl.u32 %v1229, 16
          %v1345 = vrot.slane %v1343, 7
          %v1346 = vrot.slane %v1345, 4
          %v1348 = vshrl.u32 %v1230, 16
          %v1350 = vrot.slane %v1348, 7
          %v1351 = vshll.u32 %v1230, 16
          %v1353 = vor.u32 %v1350, %v1351
          %v1354 = vsel %vm1261, %v1346, %v1353
          %v1355 = vrot.slane %v1350, 4
          %v1357 = vshrl.u32 %v1231, 16
          %v1359 = vrot.slane %v1357, 7
          %v1360 = vshll.u32 %v1231, 16
          %v1362 = vor.u32 %v1359, %v1360
          %v1363 = vsel %vm1261, %v1355, %v1362
          %v1364 = vrot.slane %v1359, 4
          %v1366 = vshrl.u32 %v1232, 16
          %v1368 = vrot.slane %v1366, 7
          %v1369 = vshll.u32 %v1232, 16
          %v1371 = vor.u32 %v1368, %v1369
          %v1372 = vsel %vm1261, %v1364, %v1371
          %v1373 = vrot.slane %v1368, 4
          %v1375 = vshrl.u32 %v1233, 16
          %v1377 = vrot.slane %v1375, 7
          %v1378 = vshll.u32 %v1233, 16
          %v1380 = vor.u32 %v1377, %v1378
          %v1381 = vsel %vm1261, %v1373, %v1380
          %v1383 = vshrl.u32 %v1234, 16
          %v1385 = vrot.slane %v1383, 7
          %v1386 = vrot.slane %v1385, 4
          %v1388 = vshrl.u32 %v1235, 16
          %v1390 = vrot.slane %v1388, 7
          %v1391 = vshll.u32 %v1235, 16
          %v1393 = vor.u32 %v1390, %v1391
          %v1394 = vsel %vm1261, %v1386, %v1393
          %v1395 = vrot.slane %v1390, 4
          %v1397 = vshrl.u32 %v1236, 16
          %v1399 = vrot.slane %v1397, 7
          %v1400 = vshll.u32 %v1236, 16
          %v1402 = vor.u32 %v1399, %v1400
          %v1403 = vsel %vm1261, %v1395, %v1402
          %v1404 = vrot.slane %v1399, 4
          %v1406 = vshrl.u32 %v1237, 16
          %v1408 = vrot.slane %v1406, 7
          %v1409 = vshll.u32 %v1237, 16
          %v1411 = vor.u32 %v1408, %v1409
          %v1412 = vsel %vm1261, %v1404, %v1411
          %v1413 = vrot.slane %v1408, 4
          %v1415 = vshrl.u32 %v1238, 16
          %v1417 = vrot.slane %v1415, 7
          %v1418 = vshll.u32 %v1238, 16
          %v1420 = vor.u32 %v1417, %v1418
          %v1421 = vsel %vm1261, %v1413, %v1420
          %v1423 = vshrl.u32 %v1239, 16
          %v1425 = vrot.slane %v1423, 7
          %v1426 = vrot.slane %v1425, 4
          %v1428 = vshrl.u32 %v1240, 16
          %v1430 = vrot.slane %v1428, 7
          %v1431 = vshll.u32 %v1240, 16
          %v1433 = vor.u32 %v1430, %v1431
          %v1434 = vsel %vm1261, %v1426, %v1433
          %v1435 = vrot.slane %v1430, 4
          %v1437 = vshrl.u32 %v1241, 16
          %v1439 = vrot.slane %v1437, 7
          %v1440 = vshll.u32 %v1241, 16
          %v1442 = vor.u32 %v1439, %v1440
          %v1443 = vsel %vm1261, %v1435, %v1442
          %v1444 = vrot.slane %v1439, 4
          %v1446 = vshrl.u32 %v1242, 16
          %v1448 = vrot.slane %v1446, 7
          %v1449 = vshll.u32 %v1242, 16
          %v1451 = vor.u32 %v1448, %v1449
          %v1452 = vsel %vm1261, %v1444, %v1451
          %v1453 = vrot.slane %v1448, 4
          %v1455 = vshrl.u32 %v1243, 16
          %v1457 = vrot.slane %v1455, 7
          %v1458 = vshll.u32 %v1243, 16
          %v1460 = vor.u32 %v1457, %v1458
          %v1461 = vsel %vm1261, %v1453, %v1460
          %v1463 = vshrl.u32 %v1244, 16
          %v1465 = vrot.slane %v1463, 7
          %v1466 = vrot.slane %v1465, 4
          %v1468 = vshrl.u32 %v1245, 16
          %v1470 = vrot.slane %v1468, 7
          %v1471 = vshll.u32 %v1245, 16
          %v1473 = vor.u32 %v1470, %v1471
          %v1474 = vsel %vm1261, %v1466, %v1473
          %v1475 = vrot.slane %v1470, 4
          %v1477 = vshrl.u32 %v1246, 16
          %v1479 = vrot.slane %v1477, 7
          %v1480 = vshll.u32 %v1246, 16
          %v1482 = vor.u32 %v1479, %v1480
          %v1483 = vsel %vm1261, %v1475, %v1482
          %v1484 = vrot.slane %v1479, 4
          %v1486 = vshrl.u32 %v1247, 16
          %v1488 = vrot.slane %v1486, 7
          %v1489 = vshll.u32 %v1247, 16
          %v1491 = vor.u32 %v1488, %v1489
          %v1492 = vsel %vm1261, %v1484, %v1491
          %v1493 = vrot.slane %v1488, 4
          %v1495 = vshrl.u32 %v1248, 16
          %v1497 = vrot.slane %v1495, 7
          %v1498 = vshll.u32 %v1248, 16
          %v1500 = vor.u32 %v1497, %v1498
          %v1501 = vsel %vm1261, %v1493, %v1500
          %v1503 = vshrl.u32 %v1249, 16
          %v1505 = vrot.slane %v1503, 7
          %v1506 = vrot.slane %v1505, 4
          %v1508 = vshrl.u32 %v1250, 16
          %v1510 = vrot.slane %v1508, 7
          %v1511 = vshll.u32 %v1250, 16
          %v1513 = vor.u32 %v1510, %v1511
          %v1514 = vsel %vm1261, %v1506, %v1513
          %v1515 = vrot.slane %v1510, 4
          %v1517 = vshrl.u32 %v1251, 16
          %v1519 = vrot.slane %v1517, 7
          %v1520 = vshll.u32 %v1251, 16
          %v1522 = vor.u32 %v1519, %v1520
          %v1523 = vsel %vm1261, %v1515, %v1522
          %v1524 = vrot.slane %v1519, 4
          %v1526 = vshrl.u32 %v1252, 16
          %v1528 = vrot.slane %v1526, 7
          %v1529 = vshll.u32 %v1252, 16
          %v1531 = vor.u32 %v1528, %v1529
          %v1532 = vsel %vm1261, %v1524, %v1531
          %v1533 = vrot.slane %v1528, 4
          %v1535 = vshrl.u32 %v1253, 16
          %v1537 = vrot.slane %v1535, 7
          %v1538 = vshll.u32 %v1253, 16
          %v1540 = vor.u32 %v1537, %v1538
          %v1541 = vsel %vm1261, %v1533, %v1540
          %v1543 = vshrl.u32 %v1254, 16
          %v1545 = vrot.slane %v1543, 7
          %v1546 = vrot.slane %v1545, 4
          %v1548 = vshrl.u32 %v1255, 16
          %v1550 = vrot.slane %v1548, 7
          %v1551 = vshll.u32 %v1255, 16
          %v1553 = vor.u32 %v1550, %v1551
          %v1554 = vsel %vm1261, %v1546, %v1553
          %v1555 = vrot.slane %v1550, 4
          %v1557 = vshrl.u32 %v1256, 16
          %v1559 = vrot.slane %v1557, 7
          %v1560 = vshll.u32 %v1256, 16
          %v1562 = vor.u32 %v1559, %v1560
          %v1563 = vsel %vm1261, %v1555, %v1562
          %v1564 = vrot.slane %v1559, 4
          %v1566 = vshrl.u32 %v1257, 16
          %v1568 = vrot.slane %v1566, 7
          %v1569 = vshll.u32 %v1257, 16
          %v1571 = vor.u32 %v1568, %v1569
          %v1572 = vsel %vm1261, %v1564, %v1571
          %v1573 = vrot.slane %v1568, 4
          %v1575 = vshrl.u32 %v1258, 16
          %v1577 = vrot.slane %v1575, 7
          %v1578 = vshll.u32 %v1258, 16
          %v1580 = vor.u32 %v1577, %v1578
          %v1581 = vsel %vm1261, %v1573, %v1580
          %v1582 = vld [vmem:[%s1218 + $0x14] sm:$0x1]
          %v1583 = vld [vmem:[%s1218 + $0x2c] sm:$0x1]
          %v1584 = vld [vmem:[%s1218 + $0x44] sm:$0x1]
          %v1585 = vld [vmem:[%s1218 + $0x5c] sm:$0x1]
          %v1586 = vld [vmem:[%s1218 + $0x74] sm:$0x1]
          %v1587 = vld [vmem:[%s1218 + $0x8c] sm:$0x1]
          %v1588 = vld [vmem:[%s1218 + $0xa4] sm:$0x1]
          %v1589 = vld [vmem:[%s1218 + $0xbc] sm:$0x1]
          %vm1590 = vsmask.f32 3328
          %vm1591 = vsmask.f32 7440
          %vm1592 = vmor %vm1590, %vm1591
          %v1593 = vrot.slane %v1268, 4
          %v1594 = vrot.slane %v1271, 5
          %v1595 = vor.u32 %v1593, %v1594
          %v1596 = vrot.slane %v1595, 4
          %v1597 = vrot.slane %v1280, 5
          %v1598 = vsel %vm1592, %v1596, %v1597
          %v1599 = vrot.slane %v1277, 4
          %v1600 = vor.u32 %v1599, %v1597
          %v1601 = vrot.slane %v1600, 4
          %v1602 = vrot.slane %v1289, 5
          %v1603 = vsel %vm1592, %v1601, %v1602
          %v1604 = vrot.slane %v1286, 4
          %v1605 = vor.u32 %v1604, %v1602
          %v1606 = vrot.slane %v1605, 4
          %v1607 = vrot.slane %v1298, 5
          %v1608 = vsel %vm1592, %v1606, %v1607
          %v1609 = vrot.slane %v1295, 4
          %v1610 = vor.u32 %v1609, %v1607
          %v1611 = vrot.slane %v1610, 4
          %v1613 = vshll.u32 %v1582, 16
          %v1615 = vrot.slane %v1613, 5
          %v1616 = vsel %vm1592, %v1611, %v1615
          %v1617 = vrot.slane %v1308, 4
          %v1618 = vrot.slane %v1311, 5
          %v1619 = vor.u32 %v1617, %v1618
          %v1620 = vrot.slane %v1619, 4
          %v1621 = vrot.slane %v1320, 5
          %v1622 = vsel %vm1592, %v1620, %v1621
          %v1623 = vrot.slane %v1317, 4
          %v1624 = vor.u32 %v1623, %v1621
          %v1625 = vrot.slane %v1624, 4
          %v1626 = vrot.slane %v1329, 5
          %v1627 = vsel %vm1592, %v1625, %v1626
          %v1628 = vrot.slane %v1326, 4
          %v1629 = vor.u32 %v1628, %v1626
          %v1630 = vrot.slane %v1629, 4
          %v1631 = vrot.slane %v1338, 5
          %v1632 = vsel %vm1592, %v1630, %v1631
          %v1633 = vrot.slane %v1335, 4
          %v1634 = vor.u32 %v1633, %v1631
          %v1635 = vrot.slane %v1634, 4
          %v1637 = vshll.u32 %v1583, 16
          %v1639 = vrot.slane %v1637, 5
          %v1640 = vsel %vm1592, %v1635, %v1639
          %v1641 = vrot.slane %v1348, 4
          %v1642 = vrot.slane %v1351, 5
          %v1643 = vor.u32 %v1641, %v1642
          %v1644 = vrot.slane %v1643, 4
          %v1645 = vrot.slane %v1360, 5
          %v1646 = vsel %vm1592, %v1644, %v1645
          %v1647 = vrot.slane %v1357, 4
          %v1648 = vor.u32 %v1647, %v1645
          %v1649 = vrot.slane %v1648, 4
          %v1650 = vrot.slane %v1369, 5
          %v1651 = vsel %vm1592, %v1649, %v1650
          %v1652 = vrot.slane %v1366, 4
          %v1653 = vor.u32 %v1652, %v1650
          %v1654 = vrot.slane %v1653, 4
          %v1655 = vrot.slane %v1378, 5
          %v1656 = vsel %vm1592, %v1654, %v1655
          %v1657 = vrot.slane %v1375, 4
          %v1658 = vor.u32 %v1657, %v1655
          %v1659 = vrot.slane %v1658, 4
          %v1661 = vshll.u32 %v1584, 16
          %v1663 = vrot.slane %v1661, 5
          %v1664 = vsel %vm1592, %v1659, %v1663
          %v1665 = vrot.slane %v1388, 4
          %v1666 = vrot.slane %v1391, 5
          %v1667 = vor.u32 %v1665, %v1666
          %v1668 = vrot.slane %v1667, 4
          %v1669 = vrot.slane %v1400, 5
          %v1670 = vsel %vm1592, %v1668, %v1669
          %v1671 = vrot.slane %v1397, 4
          %v1672 = vor.u32 %v1671, %v1669
          %v1673 = vrot.slane %v1672, 4
          %v1674 = vrot.slane %v1409, 5
          %v1675 = vsel %vm1592, %v1673, %v1674
          %v1676 = vrot.slane %v1406, 4
          %v1677 = vor.u32 %v1676, %v1674
          %v1678 = vrot.slane %v1677, 4
          %v1679 = vrot.slane %v1418, 5
          %v1680 = vsel %vm1592, %v1678, %v1679
          %v1681 = vrot.slane %v1415, 4
          %v1682 = vor.u32 %v1681, %v1679
          %v1683 = vrot.slane %v1682, 4
          %v1685 = vshll.u32 %v1585, 16
          %v1687 = vrot.slane %v1685, 5
          %v1688 = vsel %vm1592, %v1683, %v1687
          %v1689 = vrot.slane %v1428, 4
          %v1690 = vrot.slane %v1431, 5
          %v1691 = vor.u32 %v1689, %v1690
          %v1692 = vrot.slane %v1691, 4
          %v1693 = vrot.slane %v1440, 5
          %v1694 = vsel %vm1592, %v1692, %v1693
          %v1695 = vrot.slane %v1437, 4
          %v1696 = vor.u32 %v1695, %v1693
          %v1697 = vrot.slane %v1696, 4
          %v1698 = vrot.slane %v1449, 5
          %v1699 = vsel %vm1592, %v1697, %v1698
          %v1700 = vrot.slane %v1446, 4
          %v1701 = vor.u32 %v1700, %v1698
          %v1702 = vrot.slane %v1701, 4
          %v1703 = vrot.slane %v1458, 5
          %v1704 = vsel %vm1592, %v1702, %v1703
          %v1705 = vrot.slane %v1455, 4
          %v1706 = vor.u32 %v1705, %v1703
          %v1707 = vrot.slane %v1706, 4
          %v1709 = vshll.u32 %v1586, 16
          %v1711 = vrot.slane %v1709, 5
          %v1712 = vsel %vm1592, %v1707, %v1711
          %v1713 = vrot.slane %v1468, 4
          %v1714 = vrot.slane %v1471, 5
          %v1715 = vor.u32 %v1713, %v1714
          %v1716 = vrot.slane %v1715, 4
          %v1717 = vrot.slane %v1480, 5
          %v1718 = vsel %vm1592, %v1716, %v1717
          %v1719 = vrot.slane %v1477, 4
          %v1720 = vor.u32 %v1719, %v1717
          %v1721 = vrot.slane %v1720, 4
          %v1722 = vrot.slane %v1489, 5
          %v1723 = vsel %vm1592, %v1721, %v1722
          %v1724 = vrot.slane %v1486, 4
          %v1725 = vor.u32 %v1724, %v1722
          %v1726 = vrot.slane %v1725, 4
          %v1727 = vrot.slane %v1498, 5
          %v1728 = vsel %vm1592, %v1726, %v1727
          %v1729 = vrot.slane %v1495, 4
          %v1730 = vor.u32 %v1729, %v1727
          %v1731 = vrot.slane %v1730, 4
          %v1733 = vshll.u32 %v1587, 16
          %v1735 = vrot.slane %v1733, 5
          %v1736 = vsel %vm1592, %v1731, %v1735
          %v1737 = vrot.slane %v1508, 4
          %v1738 = vrot.slane %v1511, 5
          %v1739 = vor.u32 %v1737, %v1738
          %v1740 = vrot.slane %v1739, 4
          %v1741 = vrot.slane %v1520, 5
          %v1742 = vsel %vm1592, %v1740, %v1741
          %v1743 = vrot.slane %v1517, 4
          %v1744 = vor.u32 %v1743, %v1741
          %v1745 = vrot.slane %v1744, 4
          %v1746 = vrot.slane %v1529, 5
          %v1747 = vsel %vm1592, %v1745, %v1746
          %v1748 = vrot.slane %v1526, 4
          %v1749 = vor.u32 %v1748, %v1746
          %v1750 = vrot.slane %v1749, 4
          %v1751 = vrot.slane %v1538, 5
          %v1752 = vsel %vm1592, %v1750, %v1751
          %v1753 = vrot.slane %v1535, 4
          %v1754 = vor.u32 %v1753, %v1751
          %v1755 = vrot.slane %v1754, 4
          %v1757 = vshll.u32 %v1588, 16
          %v1759 = vrot.slane %v1757, 5
          %v1760 = vsel %vm1592, %v1755, %v1759
          %v1761 = vrot.slane %v1548, 4
          %v1762 = vrot.slane %v1551, 5
          %v1763 = vor.u32 %v1761, %v1762
          %v1764 = vrot.slane %v1763, 4
          %v1765 = vrot.slane %v1560, 5
          %v1766 = vsel %vm1592, %v1764, %v1765
          %v1767 = vrot.slane %v1557, 4
          %v1768 = vor.u32 %v1767, %v1765
          %v1769 = vrot.slane %v1768, 4
          %v1770 = vrot.slane %v1569, 5
          %v1771 = vsel %vm1592, %v1769, %v1770
          %v1772 = vrot.slane %v1566, 4
          %v1773 = vor.u32 %v1772, %v1770
          %v1774 = vrot.slane %v1773, 4
          %v1775 = vrot.slane %v1578, 5
          %v1776 = vsel %vm1592, %v1774, %v1775
          %v1777 = vrot.slane %v1575, 4
          %v1778 = vor.u32 %v1777, %v1775
          %v1779 = vrot.slane %v1778, 4
          %v1781 = vshll.u32 %v1589, 16
          %v1783 = vrot.slane %v1781, 5
          %v1784 = vsel %vm1592, %v1779, %v1783
          %s1785 = sadd.s32 %s1215, 1
          %s1786 = smul.u32 %s1785, 6
          %s1787 = smul.addr %s1786, 4
          %s1788 = scalar_lea.vmem [#allocation2], %s1787
          %v1789 = vld [vmem:[%s1788] sm:$0x8]
          %v1790 = vld [vmem:[%s1788 + $0x4] sm:$0xf]
          %v1791 = vld [vmem:[%s1788 + $0x8] sm:$0xf]
          %v1792 = vld [vmem:[%s1788 + $0xc] sm:$0xf]
          %v1793 = vld [vmem:[%s1788 + $0x10] sm:$0xf]
          %v1794 = vld [vmem:[%s1788 + $0x18] sm:$0x8]
          %v1795 = vld [vmem:[%s1788 + $0x1c] sm:$0xf]
          %v1796 = vld [vmem:[%s1788 + $0x20] sm:$0xf]
          %v1797 = vld [vmem:[%s1788 + $0x24] sm:$0xf]
          %v1798 = vld [vmem:[%s1788 + $0x28] sm:$0xf]
          %v1799 = vld [vmem:[%s1788 + $0x30] sm:$0x8]
          %v1800 = vld [vmem:[%s1788 + $0x34] sm:$0xf]
          %v1801 = vld [vmem:[%s1788 + $0x38] sm:$0xf]
          %v1802 = vld [vmem:[%s1788 + $0x3c] sm:$0xf]
          %v1803 = vld [vmem:[%s1788 + $0x40] sm:$0xf]
          %v1804 = vld [vmem:[%s1788 + $0x48] sm:$0x8]
          %v1805 = vld [vmem:[%s1788 + $0x4c] sm:$0xf]
          %v1806 = vld [vmem:[%s1788 + $0x50] sm:$0xf]
          %v1807 = vld [vmem:[%s1788 + $0x54] sm:$0xf]
          %v1808 = vld [vmem:[%s1788 + $0x58] sm:$0xf]
          %v1809 = vld [vmem:[%s1788 + $0x60] sm:$0x8]
          %v1810 = vld [vmem:[%s1788 + $0x64] sm:$0xf]
          %v1811 = vld [vmem:[%s1788 + $0x68] sm:$0xf]
          %v1812 = vld [vmem:[%s1788 + $0x6c] sm:$0xf]
          %v1813 = vld [vmem:[%s1788 + $0x70] sm:$0xf]
          %v1814 = vld [vmem:[%s1788 + $0x78] sm:$0x8]
          %v1815 = vld [vmem:[%s1788 + $0x7c] sm:$0xf]
          %v1816 = vld [vmem:[%s1788 + $0x80] sm:$0xf]
          %v1817 = vld [vmem:[%s1788 + $0x84] sm:$0xf]
          %v1818 = vld [vmem:[%s1788 + $0x88] sm:$0xf]
          %v1819 = vld [vmem:[%s1788 + $0x90] sm:$0x8]
          %v1820 = vld [vmem:[%s1788 + $0x94] sm:$0xf]
          %v1821 = vld [vmem:[%s1788 + $0x98] sm:$0xf]
          %v1822 = vld [vmem:[%s1788 + $0x9c] sm:$0xf]
          %v1823 = vld [vmem:[%s1788 + $0xa0] sm:$0xf]
          %v1824 = vld [vmem:[%s1788 + $0xa8] sm:$0x8]
          %v1825 = vld [vmem:[%s1788 + $0xac] sm:$0xf]
          %v1826 = vld [vmem:[%s1788 + $0xb0] sm:$0xf]
          %v1827 = vld [vmem:[%s1788 + $0xb4] sm:$0xf]
          %v1828 = vld [vmem:[%s1788 + $0xb8] sm:$0xf]
          %v1830 = vshrl.u32 %v1789, 16
          %v1832 = vrot.slane %v1830, 7
          %v1833 = vrot.slane %v1832, 4
          %v1835 = vshrl.u32 %v1790, 16
          %v1837 = vrot.slane %v1835, 7
          %v1838 = vshll.u32 %v1790, 16
          %v1840 = vor.u32 %v1837, %v1838
          %v1841 = vsel %vm1261, %v1833, %v1840
          %v1842 = vrot.slane %v1837, 4
          %v1844 = vshrl.u32 %v1791, 16
          %v1846 = vrot.slane %v1844, 7
          %v1847 = vshll.u32 %v1791, 16
          %v1849 = vor.u32 %v1846, %v1847
          %v1850 = vsel %vm1261, %v1842, %v1849
          %v1851 = vrot.slane %v1846, 4
          %v1853 = vshrl.u32 %v1792, 16
          %v1855 = vrot.slane %v1853, 7
          %v1856 = vshll.u32 %v1792, 16
          %v1858 = vor.u32 %v1855, %v1856
          %v1859 = vsel %vm1261, %v1851, %v1858
          %v1860 = vrot.slane %v1855, 4
          %v1862 = vshrl.u32 %v1793, 16
          %v1864 = vrot.slane %v1862, 7
          %v1865 = vshll.u32 %v1793, 16
          %v1867 = vor.u32 %v1864, %v1865
          %v1868 = vsel %vm1261, %v1860, %v1867
          %v1870 = vshrl.u32 %v1794, 16
          %v1872 = vrot.slane %v1870, 7
          %v1873 = vrot.slane %v1872, 4
          %v1875 = vshrl.u32 %v1795, 16
          %v1877 = vrot.slane %v1875, 7
          %v1878 = vshll.u32 %v1795, 16
          %v1880 = vor.u32 %v1877, %v1878
          %v1881 = vsel %vm1261, %v1873, %v1880
          %v1882 = vrot.slane %v1877, 4
          %v1884 = vshrl.u32 %v1796, 16
          %v1886 = vrot.slane %v1884, 7
          %v1887 = vshll.u32 %v1796, 16
          %v1889 = vor.u32 %v1886, %v1887
          %v1890 = vsel %vm1261, %v1882, %v1889
          %v1891 = vrot.slane %v1886, 4
          %v1893 = vshrl.u32 %v1797, 16
          %v1895 = vrot.slane %v1893, 7
          %v1896 = vshll.u32 %v1797, 16
          %v1898 = vor.u32 %v1895, %v1896
          %v1899 = vsel %vm1261, %v1891, %v1898
          %v1900 = vrot.slane %v1895, 4
          %v1902 = vshrl.u32 %v1798, 16
          %v1904 = vrot.slane %v1902, 7
          %v1905 = vshll.u32 %v1798, 16
          %v1907 = vor.u32 %v1904, %v1905
          %v1908 = vsel %vm1261, %v1900, %v1907
          %v1910 = vshrl.u32 %v1799, 16
          %v1912 = vrot.slane %v1910, 7
          %v1913 = vrot.slane %v1912, 4
          %v1915 = vshrl.u32 %v1800, 16
          %v1917 = vrot.slane %v1915, 7
          %v1918 = vshll.u32 %v1800, 16
          %v1920 = vor.u32 %v1917, %v1918
          %v1921 = vsel %vm1261, %v1913, %v1920
          %v1922 = vrot.slane %v1917, 4
          %v1924 = vshrl.u32 %v1801, 16
          %v1926 = vrot.slane %v1924, 7
          %v1927 = vshll.u32 %v1801, 16
          %v1929 = vor.u32 %v1926, %v1927
          %v1930 = vsel %vm1261, %v1922, %v1929
          %v1931 = vrot.slane %v1926, 4
          %v1933 = vshrl.u32 %v1802, 16
          %v1935 = vrot.slane %v1933, 7
          %v1936 = vshll.u32 %v1802, 16
          %v1938 = vor.u32 %v1935, %v1936
          %v1939 = vsel %vm1261, %v1931, %v1938
          %v1940 = vrot.slane %v1935, 4
          %v1942 = vshrl.u32 %v1803, 16
          %v1944 = vrot.slane %v1942, 7
          %v1945 = vshll.u32 %v1803, 16
          %v1947 = vor.u32 %v1944, %v1945
          %v1948 = vsel %vm1261, %v1940, %v1947
          %v1950 = vshrl.u32 %v1804, 16
          %v1952 = vrot.slane %v1950, 7
          %v1953 = vrot.slane %v1952, 4
          %v1955 = vshrl.u32 %v1805, 16
          %v1957 = vrot.slane %v1955, 7
          %v1958 = vshll.u32 %v1805, 16
          %v1960 = vor.u32 %v1957, %v1958
          %v1961 = vsel %vm1261, %v1953, %v1960
          %v1962 = vrot.slane %v1957, 4
          %v1964 = vshrl.u32 %v1806, 16
          %v1966 = vrot.slane %v1964, 7
          %v1967 = vshll.u32 %v1806, 16
          %v1969 = vor.u32 %v1966, %v1967
          %v1970 = vsel %vm1261, %v1962, %v1969
          %v1971 = vrot.slane %v1966, 4
          %v1973 = vshrl.u32 %v1807, 16
          %v1975 = vrot.slane %v1973, 7
          %v1976 = vshll.u32 %v1807, 16
          %v1978 = vor.u32 %v1975, %v1976
          %v1979 = vsel %vm1261, %v1971, %v1978
          %v1980 = vrot.slane %v1975, 4
          %v1982 = vshrl.u32 %v1808, 16
          %v1984 = vrot.slane %v1982, 7
          %v1985 = vshll.u32 %v1808, 16
          %v1987 = vor.u32 %v1984, %v1985
          %v1988 = vsel %vm1261, %v1980, %v1987
          %v1990 = vshrl.u32 %v1809, 16
          %v1992 = vrot.slane %v1990, 7
          %v1993 = vrot.slane %v1992, 4
          %v1995 = vshrl.u32 %v1810, 16
          %v1997 = vrot.slane %v1995, 7
          %v1998 = vshll.u32 %v1810, 16
          %v2000 = vor.u32 %v1997, %v1998
          %v2001 = vsel %vm1261, %v1993, %v2000
          %v2002 = vrot.slane %v1997, 4
          %v2004 = vshrl.u32 %v1811, 16
          %v2006 = vrot.slane %v2004, 7
          %v2007 = vshll.u32 %v1811, 16
          %v2009 = vor.u32 %v2006, %v2007
          %v2010 = vsel %vm1261, %v2002, %v2009
          %v2011 = vrot.slane %v2006, 4
          %v2013 = vshrl.u32 %v1812, 16
          %v2015 = vrot.slane %v2013, 7
          %v2016 = vshll.u32 %v1812, 16
          %v2018 = vor.u32 %v2015, %v2016
          %v2019 = vsel %vm1261, %v2011, %v2018
          %v2020 = vrot.slane %v2015, 4
          %v2022 = vshrl.u32 %v1813, 16
          %v2024 = vrot.slane %v2022, 7
          %v2025 = vshll.u32 %v1813, 16
          %v2027 = vor.u32 %v2024, %v2025
          %v2028 = vsel %vm1261, %v2020, %v2027
          %v2030 = vshrl.u32 %v1814, 16
          %v2032 = vrot.slane %v2030, 7
          %v2033 = vrot.slane %v2032, 4
          %v2035 = vshrl.u32 %v1815, 16
          %v2037 = vrot.slane %v2035, 7
          %v2038 = vshll.u32 %v1815, 16
          %v2040 = vor.u32 %v2037, %v2038
          %v2041 = vsel %vm1261, %v2033, %v2040
          %v2042 = vrot.slane %v2037, 4
          %v2044 = vshrl.u32 %v1816, 16
          %v2046 = vrot.slane %v2044, 7
          %v2047 = vshll.u32 %v1816, 16
          %v2049 = vor.u32 %v2046, %v2047
          %v2050 = vsel %vm1261, %v2042, %v2049
          %v2051 = vrot.slane %v2046, 4
          %v2053 = vshrl.u32 %v1817, 16
          %v2055 = vrot.slane %v2053, 7
          %v2056 = vshll.u32 %v1817, 16
          %v2058 = vor.u32 %v2055, %v2056
          %v2059 = vsel %vm1261, %v2051, %v2058
          %v2060 = vrot.slane %v2055, 4
          %v2062 = vshrl.u32 %v1818, 16
          %v2064 = vrot.slane %v2062, 7
          %v2065 = vshll.u32 %v1818, 16
          %v2067 = vor.u32 %v2064, %v2065
          %v2068 = vsel %vm1261, %v2060, %v2067
          %v2070 = vshrl.u32 %v1819, 16
          %v2072 = vrot.slane %v2070, 7
          %v2073 = vrot.slane %v2072, 4
          %v2075 = vshrl.u32 %v1820, 16
          %v2077 = vrot.slane %v2075, 7
          %v2078 = vshll.u32 %v1820, 16
          %v2080 = vor.u32 %v2077, %v2078
          %v2081 = vsel %vm1261, %v2073, %v2080
          %v2082 = vrot.slane %v2077, 4
          %v2084 = vshrl.u32 %v1821, 16
          %v2086 = vrot.slane %v2084, 7
          %v2087 = vshll.u32 %v1821, 16
          %v2089 = vor.u32 %v2086, %v2087
          %v2090 = vsel %vm1261, %v2082, %v2089
          %v2091 = vrot.slane %v2086, 4
          %v2093 = vshrl.u32 %v1822, 16
          %v2095 = vrot.slane %v2093, 7
          %v2096 = vshll.u32 %v1822, 16
          %v2098 = vor.u32 %v2095, %v2096
          %v2099 = vsel %vm1261, %v2091, %v2098
          %v2100 = vrot.slane %v2095, 4
          %v2102 = vshrl.u32 %v1823, 16
          %v2104 = vrot.slane %v2102, 7
          %v2105 = vshll.u32 %v1823, 16
          %v2107 = vor.u32 %v2104, %v2105
          %v2108 = vsel %vm1261, %v2100, %v2107
          %v2110 = vshrl.u32 %v1824, 16
          %v2112 = vrot.slane %v2110, 7
          %v2113 = vrot.slane %v2112, 4
          %v2115 = vshrl.u32 %v1825, 16
          %v2117 = vrot.slane %v2115, 7
          %v2118 = vshll.u32 %v1825, 16
          %v2120 = vor.u32 %v2117, %v2118
          %v2121 = vsel %vm1261, %v2113, %v2120
          %v2122 = vrot.slane %v2117, 4
          %v2124 = vshrl.u32 %v1826, 16
          %v2126 = vrot.slane %v2124, 7
          %v2127 = vshll.u32 %v1826, 16
          %v2129 = vor.u32 %v2126, %v2127
          %v2130 = vsel %vm1261, %v2122, %v2129
          %v2131 = vrot.slane %v2126, 4
          %v2133 = vshrl.u32 %v1827, 16
          %v2135 = vrot.slane %v2133, 7
          %v2136 = vshll.u32 %v1827, 16
          %v2138 = vor.u32 %v2135, %v2136
          %v2139 = vsel %vm1261, %v2131, %v2138
          %v2140 = vrot.slane %v2135, 4
          %v2142 = vshrl.u32 %v1828, 16
          %v2144 = vrot.slane %v2142, 7
          %v2145 = vshll.u32 %v1828, 16
          %v2147 = vor.u32 %v2144, %v2145
          %v2148 = vsel %vm1261, %v2140, %v2147
          %v2149 = vld [vmem:[%s1788 + $0x14] sm:$0x1]
          %v2150 = vld [vmem:[%s1788 + $0x2c] sm:$0x1]
          %v2151 = vld [vmem:[%s1788 + $0x44] sm:$0x1]
          %v2152 = vld [vmem:[%s1788 + $0x5c] sm:$0x1]
          %v2153 = vld [vmem:[%s1788 + $0x74] sm:$0x1]
          %v2154 = vld [vmem:[%s1788 + $0x8c] sm:$0x1]
          %v2155 = vld [vmem:[%s1788 + $0xa4] sm:$0x1]
          %v2156 = vld [vmem:[%s1788 + $0xbc] sm:$0x1]
          %v2157 = vrot.slane %v1835, 4
          %v2158 = vrot.slane %v1838, 5
          %v2159 = vor.u32 %v2157, %v2158
          %v2160 = vrot.slane %v2159, 4
          %v2161 = vrot.slane %v1847, 5
          %v2162 = vsel %vm1592, %v2160, %v2161
          %v2163 = vrot.slane %v1844, 4
          %v2164 = vor.u32 %v2163, %v2161
          %v2165 = vrot.slane %v2164, 4
          %v2166 = vrot.slane %v1856, 5
          %v2167 = vsel %vm1592, %v2165, %v2166
          %v2168 = vrot.slane %v1853, 4
          %v2169 = vor.u32 %v2168, %v2166
          %v2170 = vrot.slane %v2169, 4
          %v2171 = vrot.slane %v1865, 5
          %v2172 = vsel %vm1592, %v2170, %v2171
          %v2173 = vrot.slane %v1862, 4
          %v2174 = vor.u32 %v2173, %v2171
          %v2175 = vrot.slane %v2174, 4
          %v2177 = vshll.u32 %v2149, 16
          %v2179 = vrot.slane %v2177, 5
          %v2180 = vsel %vm1592, %v2175, %v2179
          %v2181 = vrot.slane %v1875, 4
          %v2182 = vrot.slane %v1878, 5
          %v2183 = vor.u32 %v2181, %v2182
          %v2184 = vrot.slane %v2183, 4
          %v2185 = vrot.slane %v1887, 5
          %v2186 = vsel %vm1592, %v2184, %v2185
          %v2187 = vrot.slane %v1884, 4
          %v2188 = vor.u32 %v2187, %v2185
          %v2189 = vrot.slane %v2188, 4
          %v2190 = vrot.slane %v1896, 5
          %v2191 = vsel %vm1592, %v2189, %v2190
          %v2192 = vrot.slane %v1893, 4
          %v2193 = vor.u32 %v2192, %v2190
          %v2194 = vrot.slane %v2193, 4
          %v2195 = vrot.slane %v1905, 5
          %v2196 = vsel %vm1592, %v2194, %v2195
          %v2197 = vrot.slane %v1902, 4
          %v2198 = vor.u32 %v2197, %v2195
          %v2199 = vrot.slane %v2198, 4
          %v2201 = vshll.u32 %v2150, 16
          %v2203 = vrot.slane %v2201, 5
          %v2204 = vsel %vm1592, %v2199, %v2203
          %v2205 = vrot.slane %v1915, 4
          %v2206 = vrot.slane %v1918, 5
          %v2207 = vor.u32 %v2205, %v2206
          %v2208 = vrot.slane %v2207, 4
          %v2209 = vrot.slane %v1927, 5
          %v2210 = vsel %vm1592, %v2208, %v2209
          %v2211 = vrot.slane %v1924, 4
          %v2212 = vor.u32 %v2211, %v2209
          %v2213 = vrot.slane %v2212, 4
          %v2214 = vrot.slane %v1936, 5
          %v2215 = vsel %vm1592, %v2213, %v2214
          %v2216 = vrot.slane %v1933, 4
          %v2217 = vor.u32 %v2216, %v2214
          %v2218 = vrot.slane %v2217, 4
          %v2219 = vrot.slane %v1945, 5
          %v2220 = vsel %vm1592, %v2218, %v2219
          %v2221 = vrot.slane %v1942, 4
          %v2222 = vor.u32 %v2221, %v2219
          %v2223 = vrot.slane %v2222, 4
          %v2225 = vshll.u32 %v2151, 16
          %v2227 = vrot.slane %v2225, 5
          %v2228 = vsel %vm1592, %v2223, %v2227
          %v2229 = vrot.slane %v1955, 4
          %v2230 = vrot.slane %v1958, 5
          %v2231 = vor.u32 %v2229, %v2230
          %v2232 = vrot.slane %v2231, 4
          %v2233 = vrot.slane %v1967, 5
          %v2234 = vsel %vm1592, %v2232, %v2233
          %v2235 = vrot.slane %v1964, 4
          %v2236 = vor.u32 %v2235, %v2233
          %v2237 = vrot.slane %v2236, 4
          %v2238 = vrot.slane %v1976, 5
          %v2239 = vsel %vm1592, %v2237, %v2238
          %v2240 = vrot.slane %v1973, 4
          %v2241 = vor.u32 %v2240, %v2238
          %v2242 = vrot.slane %v2241, 4
          %v2243 = vrot.slane %v1985, 5
          %v2244 = vsel %vm1592, %v2242, %v2243
          %v2245 = vrot.slane %v1982, 4
          %v2246 = vor.u32 %v2245, %v2243
          %v2247 = vrot.slane %v2246, 4
          %v2249 = vshll.u32 %v2152, 16
          %v2251 = vrot.slane %v2249, 5
          %v2252 = vsel %vm1592, %v2247, %v2251
          %v2253 = vrot.slane %v1995, 4
          %v2254 = vrot.slane %v1998, 5
          %v2255 = vor.u32 %v2253, %v2254
          %v2256 = vrot.slane %v2255, 4
          %v2257 = vrot.slane %v2007, 5
          %v2258 = vsel %vm1592, %v2256, %v2257
          %v2259 = vrot.slane %v2004, 4
          %v2260 = vor.u32 %v2259, %v2257
          %v2261 = vrot.slane %v2260, 4
          %v2262 = vrot.slane %v2016, 5
          %v2263 = vsel %vm1592, %v2261, %v2262
          %v2264 = vrot.slane %v2013, 4
          %v2265 = vor.u32 %v2264, %v2262
          %v2266 = vrot.slane %v2265, 4
          %v2267 = vrot.slane %v2025, 5
          %v2268 = vsel %vm1592, %v2266, %v2267
          %v2269 = vrot.slane %v2022, 4
          %v2270 = vor.u32 %v2269, %v2267
          %v2271 = vrot.slane %v2270, 4
          %v2273 = vshll.u32 %v2153, 16
          %v2275 = vrot.slane %v2273, 5
          %v2276 = vsel %vm1592, %v2271, %v2275
          %v2277 = vrot.slane %v2035, 4
          %v2278 = vrot.slane %v2038, 5
          %v2279 = vor.u32 %v2277, %v2278
          %v2280 = vrot.slane %v2279, 4
          %v2281 = vrot.slane %v2047, 5
          %v2282 = vsel %vm1592, %v2280, %v2281
          %v2283 = vrot.slane %v2044, 4
          %v2284 = vor.u32 %v2283, %v2281
          %v2285 = vrot.slane %v2284, 4
          %v2286 = vrot.slane %v2056, 5
          %v2287 = vsel %vm1592, %v2285, %v2286
          %v2288 = vrot.slane %v2053, 4
          %v2289 = vor.u32 %v2288, %v2286
          %v2290 = vrot.slane %v2289, 4
          %v2291 = vrot.slane %v2065, 5
          %v2292 = vsel %vm1592, %v2290, %v2291
          %v2293 = vrot.slane %v2062, 4
          %v2294 = vor.u32 %v2293, %v2291
          %v2295 = vrot.slane %v2294, 4
          %v2297 = vshll.u32 %v2154, 16
          %v2299 = vrot.slane %v2297, 5
          %v2300 = vsel %vm1592, %v2295, %v2299
          %v2301 = vrot.slane %v2075, 4
          %v2302 = vrot.slane %v2078, 5
          %v2303 = vor.u32 %v2301, %v2302
          %v2304 = vrot.slane %v2303, 4
          %v2305 = vrot.slane %v2087, 5
          %v2306 = vsel %vm1592, %v2304, %v2305
          %v2307 = vrot.slane %v2084, 4
          %v2308 = vor.u32 %v2307, %v2305
          %v2309 = vrot.slane %v2308, 4
          %v2310 = vrot.slane %v2096, 5
          %v2311 = vsel %vm1592, %v2309, %v2310
          %v2312 = vrot.slane %v2093, 4
          %v2313 = vor.u32 %v2312, %v2310
          %v2314 = vrot.slane %v2313, 4
          %v2315 = vrot.slane %v2105, 5
          %v2316 = vsel %vm1592, %v2314, %v2315
          %v2317 = vrot.slane %v2102, 4
          %v2318 = vor.u32 %v2317, %v2315
          %v2319 = vrot.slane %v2318, 4
          %v2321 = vshll.u32 %v2155, 16
          %v2323 = vrot.slane %v2321, 5
          %v2324 = vsel %vm1592, %v2319, %v2323
          %v2325 = vrot.slane %v2115, 4
          %v2326 = vrot.slane %v2118, 5
          %v2327 = vor.u32 %v2325, %v2326
          %v2328 = vrot.slane %v2327, 4
          %v2329 = vrot.slane %v2127, 5
          %v2330 = vsel %vm1592, %v2328, %v2329
          %v2331 = vrot.slane %v2124, 4
          %v2332 = vor.u32 %v2331, %v2329
          %v2333 = vrot.slane %v2332, 4
          %v2334 = vrot.slane %v2136, 5
          %v2335 = vsel %vm1592, %v2333, %v2334
          %v2336 = vrot.slane %v2133, 4
          %v2337 = vor.u32 %v2336, %v2334
          %v2338 = vrot.slane %v2337, 4
          %v2339 = vrot.slane %v2145, 5
          %v2340 = vsel %vm1592, %v2338, %v2339
          %v2341 = vrot.slane %v2142, 4
          %v2342 = vor.u32 %v2341, %v2339
          %v2343 = vrot.slane %v2342, 4
          %v2345 = vshll.u32 %v2156, 16
          %v2347 = vrot.slane %v2345, 5
          %v2348 = vsel %vm1592, %v2343, %v2347
          %s2349 = sadd.s32 %s1215, 2
          %s2350 = smul.u32 %s2349, 6
          %s2351 = smul.addr %s2350, 4
          %s2352 = scalar_lea.vmem [#allocation2], %s2351
          %v2353 = vld [vmem:[%s2352] sm:$0x8]
          %v2354 = vld [vmem:[%s2352 + $0x4] sm:$0xf]
          %v2355 = vld [vmem:[%s2352 + $0x8] sm:$0xf]
          %v2356 = vld [vmem:[%s2352 + $0xc] sm:$0xf]
          %v2357 = vld [vmem:[%s2352 + $0x10] sm:$0xf]
          %v2358 = vld [vmem:[%s2352 + $0x18] sm:$0x8]
          %v2359 = vld [vmem:[%s2352 + $0x1c] sm:$0xf]
          %v2360 = vld [vmem:[%s2352 + $0x20] sm:$0xf]
          %v2361 = vld [vmem:[%s2352 + $0x24] sm:$0xf]
          %v2362 = vld [vmem:[%s2352 + $0x28] sm:$0xf]
          %v2363 = vld [vmem:[%s2352 + $0x30] sm:$0x8]
          %v2364 = vld [vmem:[%s2352 + $0x34] sm:$0xf]
          %v2365 = vld [vmem:[%s2352 + $0x38] sm:$0xf]
          %v2366 = vld [vmem:[%s2352 + $0x3c] sm:$0xf]
          %v2367 = vld [vmem:[%s2352 + $0x40] sm:$0xf]
          %v2368 = vld [vmem:[%s2352 + $0x48] sm:$0x8]
          %v2369 = vld [vmem:[%s2352 + $0x4c] sm:$0xf]
          %v2370 = vld [vmem:[%s2352 + $0x50] sm:$0xf]
          %v2371 = vld [vmem:[%s2352 + $0x54] sm:$0xf]
          %v2372 = vld [vmem:[%s2352 + $0x58] sm:$0xf]
          %v2373 = vld [vmem:[%s2352 + $0x60] sm:$0x8]
          %v2374 = vld [vmem:[%s2352 + $0x64] sm:$0xf]
          %v2375 = vld [vmem:[%s2352 + $0x68] sm:$0xf]
          %v2376 = vld [vmem:[%s2352 + $0x6c] sm:$0xf]
          %v2377 = vld [vmem:[%s2352 + $0x70] sm:$0xf]
          %v2378 = vld [vmem:[%s2352 + $0x78] sm:$0x8]
          %v2379 = vld [vmem:[%s2352 + $0x7c] sm:$0xf]
          %v2380 = vld [vmem:[%s2352 + $0x80] sm:$0xf]
          %v2381 = vld [vmem:[%s2352 + $0x84] sm:$0xf]
          %v2382 = vld [vmem:[%s2352 + $0x88] sm:$0xf]
          %v2383 = vld [vmem:[%s2352 + $0x90] sm:$0x8]
          %v2384 = vld [vmem:[%s2352 + $0x94] sm:$0xf]
          %v2385 = vld [vmem:[%s2352 + $0x98] sm:$0xf]
          %v2386 = vld [vmem:[%s2352 + $0x9c] sm:$0xf]
          %v2387 = vld [vmem:[%s2352 + $0xa0] sm:$0xf]
          %v2388 = vld [vmem:[%s2352 + $0xa8] sm:$0x8]
          %v2389 = vld [vmem:[%s2352 + $0xac] sm:$0xf]
          %v2390 = vld [vmem:[%s2352 + $0xb0] sm:$0xf]
          %v2391 = vld [vmem:[%s2352 + $0xb4] sm:$0xf]
          %v2392 = vld [vmem:[%s2352 + $0xb8] sm:$0xf]
          %v2394 = vshrl.u32 %v2353, 16
          %v2396 = vrot.slane %v2394, 7
          %v2397 = vrot.slane %v2396, 4
          %v2399 = vshrl.u32 %v2354, 16
          %v2401 = vrot.slane %v2399, 7
          %v2402 = vshll.u32 %v2354, 16
          %v2404 = vor.u32 %v2401, %v2402
          %v2405 = vsel %vm1261, %v2397, %v2404
          %v2406 = vrot.slane %v2401, 4
          %v2408 = vshrl.u32 %v2355, 16
          %v2410 = vrot.slane %v2408, 7
          %v2411 = vshll.u32 %v2355, 16
          %v2413 = vor.u32 %v2410, %v2411
          %v2414 = vsel %vm1261, %v2406, %v2413
          %v2415 = vrot.slane %v2410, 4
          %v2417 = vshrl.u32 %v2356, 16
          %v2419 = vrot.slane %v2417, 7
          %v2420 = vshll.u32 %v2356, 16
          %v2422 = vor.u32 %v2419, %v2420
          %v2423 = vsel %vm1261, %v2415, %v2422
          %v2424 = vrot.slane %v2419, 4
          %v2426 = vshrl.u32 %v2357, 16
          %v2428 = vrot.slane %v2426, 7
          %v2429 = vshll.u32 %v2357, 16
          %v2431 = vor.u32 %v2428, %v2429
          %v2432 = vsel %vm1261, %v2424, %v2431
          %v2434 = vshrl.u32 %v2358, 16
          %v2436 = vrot.slane %v2434, 7
          %v2437 = vrot.slane %v2436, 4
          %v2439 = vshrl.u32 %v2359, 16
          %v2441 = vrot.slane %v2439, 7
          %v2442 = vshll.u32 %v2359, 16
          %v2444 = vor.u32 %v2441, %v2442
          %v2445 = vsel %vm1261, %v2437, %v2444
          %v2446 = vrot.slane %v2441, 4
          %v2448 = vshrl.u32 %v2360, 16
          %v2450 = vrot.slane %v2448, 7
          %v2451 = vshll.u32 %v2360, 16
          %v2453 = vor.u32 %v2450, %v2451
          %v2454 = vsel %vm1261, %v2446, %v2453
          %v2455 = vrot.slane %v2450, 4
          %v2457 = vshrl.u32 %v2361, 16
          %v2459 = vrot.slane %v2457, 7
          %v2460 = vshll.u32 %v2361, 16
          %v2462 = vor.u32 %v2459, %v2460
          %v2463 = vsel %vm1261, %v2455, %v2462
          %v2464 = vrot.slane %v2459, 4
          %v2466 = vshrl.u32 %v2362, 16
          %v2468 = vrot.slane %v2466, 7
          %v2469 = vshll.u32 %v2362, 16
          %v2471 = vor.u32 %v2468, %v2469
          %v2472 = vsel %vm1261, %v2464, %v2471
          %v2474 = vshrl.u32 %v2363, 16
          %v2476 = vrot.slane %v2474, 7
          %v2477 = vrot.slane %v2476, 4
          %v2479 = vshrl.u32 %v2364, 16
          %v2481 = vrot.slane %v2479, 7
          %v2482 = vshll.u32 %v2364, 16
          %v2484 = vor.u32 %v2481, %v2482
          %v2485 = vsel %vm1261, %v2477, %v2484
          %v2486 = vrot.slane %v2481, 4
          %v2488 = vshrl.u32 %v2365, 16
          %v2490 = vrot.slane %v2488, 7
          %v2491 = vshll.u32 %v2365, 16
          %v2493 = vor.u32 %v2490, %v2491
          %v2494 = vsel %vm1261, %v2486, %v2493
          %v2495 = vrot.slane %v2490, 4
          %v2497 = vshrl.u32 %v2366, 16
          %v2499 = vrot.slane %v2497, 7
          %v2500 = vshll.u32 %v2366, 16
          %v2502 = vor.u32 %v2499, %v2500
          %v2503 = vsel %vm1261, %v2495, %v2502
          %v2504 = vrot.slane %v2499, 4
          %v2506 = vshrl.u32 %v2367, 16
          %v2508 = vrot.slane %v2506, 7
          %v2509 = vshll.u32 %v2367, 16
          %v2511 = vor.u32 %v2508, %v2509
          %v2512 = vsel %vm1261, %v2504, %v2511
          %v2514 = vshrl.u32 %v2368, 16
          %v2516 = vrot.slane %v2514, 7
          %v2517 = vrot.slane %v2516, 4
          %v2519 = vshrl.u32 %v2369, 16
          %v2521 = vrot.slane %v2519, 7
          %v2522 = vshll.u32 %v2369, 16
          %v2524 = vor.u32 %v2521, %v2522
          %v2525 = vsel %vm1261, %v2517, %v2524
          %v2526 = vrot.slane %v2521, 4
          %v2528 = vshrl.u32 %v2370, 16
          %v2530 = vrot.slane %v2528, 7
          %v2531 = vshll.u32 %v2370, 16
          %v2533 = vor.u32 %v2530, %v2531
          %v2534 = vsel %vm1261, %v2526, %v2533
          %v2535 = vrot.slane %v2530, 4
          %v2537 = vshrl.u32 %v2371, 16
          %v2539 = vrot.slane %v2537, 7
          %v2540 = vshll.u32 %v2371, 16
          %v2542 = vor.u32 %v2539, %v2540
          %v2543 = vsel %vm1261, %v2535, %v2542
          %v2544 = vrot.slane %v2539, 4
          %v2546 = vshrl.u32 %v2372, 16
          %v2548 = vrot.slane %v2546, 7
          %v2549 = vshll.u32 %v2372, 16
          %v2551 = vor.u32 %v2548, %v2549
          %v2552 = vsel %vm1261, %v2544, %v2551
          %v2554 = vshrl.u32 %v2373, 16
          %v2556 = vrot.slane %v2554, 7
          %v2557 = vrot.slane %v2556, 4
          %v2559 = vshrl.u32 %v2374, 16
          %v2561 = vrot.slane %v2559, 7
          %v2562 = vshll.u32 %v2374, 16
          %v2564 = vor.u32 %v2561, %v2562
          %v2565 = vsel %vm1261, %v2557, %v2564
          %v2566 = vrot.slane %v2561, 4
          %v2568 = vshrl.u32 %v2375, 16
          %v2570 = vrot.slane %v2568, 7
          %v2571 = vshll.u32 %v2375, 16
          %v2573 = vor.u32 %v2570, %v2571
          %v2574 = vsel %vm1261, %v2566, %v2573
          %v2575 = vrot.slane %v2570, 4
          %v2577 = vshrl.u32 %v2376, 16
          %v2579 = vrot.slane %v2577, 7
          %v2580 = vshll.u32 %v2376, 16
          %v2582 = vor.u32 %v2579, %v2580
          %v2583 = vsel %vm1261, %v2575, %v2582
          %v2584 = vrot.slane %v2579, 4
          %v2586 = vshrl.u32 %v2377, 16
          %v2588 = vrot.slane %v2586, 7
          %v2589 = vshll.u32 %v2377, 16
          %v2591 = vor.u32 %v2588, %v2589
          %v2592 = vsel %vm1261, %v2584, %v2591
          %v2594 = vshrl.u32 %v2378, 16
          %v2596 = vrot.slane %v2594, 7
          %v2597 = vrot.slane %v2596, 4
          %v2599 = vshrl.u32 %v2379, 16
          %v2601 = vrot.slane %v2599, 7
          %v2602 = vshll.u32 %v2379, 16
          %v2604 = vor.u32 %v2601, %v2602
          %v2605 = vsel %vm1261, %v2597, %v2604
          %v2606 = vrot.slane %v2601, 4
          %v2608 = vshrl.u32 %v2380, 16
          %v2610 = vrot.slane %v2608, 7
          %v2611 = vshll.u32 %v2380, 16
          %v2613 = vor.u32 %v2610, %v2611
          %v2614 = vsel %vm1261, %v2606, %v2613
          %v2615 = vrot.slane %v2610, 4
          %v2617 = vshrl.u32 %v2381, 16
          %v2619 = vrot.slane %v2617, 7
          %v2620 = vshll.u32 %v2381, 16
          %v2622 = vor.u32 %v2619, %v2620
          %v2623 = vsel %vm1261, %v2615, %v2622
          %v2624 = vrot.slane %v2619, 4
          %v2626 = vshrl.u32 %v2382, 16
          %v2628 = vrot.slane %v2626, 7
          %v2629 = vshll.u32 %v2382, 16
          %v2631 = vor.u32 %v2628, %v2629
          %v2632 = vsel %vm1261, %v2624, %v2631
          %v2634 = vshrl.u32 %v2383, 16
          %v2636 = vrot.slane %v2634, 7
          %v2637 = vrot.slane %v2636, 4
          %v2639 = vshrl.u32 %v2384, 16
          %v2641 = vrot.slane %v2639, 7
          %v2642 = vshll.u32 %v2384, 16
          %v2644 = vor.u32 %v2641, %v2642
          %v2645 = vsel %vm1261, %v2637, %v2644
          %v2646 = vrot.slane %v2641, 4
          %v2648 = vshrl.u32 %v2385, 16
          %v2650 = vrot.slane %v2648, 7
          %v2651 = vshll.u32 %v2385, 16
          %v2653 = vor.u32 %v2650, %v2651
          %v2654 = vsel %vm1261, %v2646, %v2653
          %v2655 = vrot.slane %v2650, 4
          %v2657 = vshrl.u32 %v2386, 16
          %v2659 = vrot.slane %v2657, 7
          %v2660 = vshll.u32 %v2386, 16
          %v2662 = vor.u32 %v2659, %v2660
          %v2663 = vsel %vm1261, %v2655, %v2662
          %v2664 = vrot.slane %v2659, 4
          %v2666 = vshrl.u32 %v2387, 16
          %v2668 = vrot.slane %v2666, 7
          %v2669 = vshll.u32 %v2387, 16
          %v2671 = vor.u32 %v2668, %v2669
          %v2672 = vsel %vm1261, %v2664, %v2671
          %v2674 = vshrl.u32 %v2388, 16
          %v2676 = vrot.slane %v2674, 7
          %v2677 = vrot.slane %v2676, 4
          %v2679 = vshrl.u32 %v2389, 16
          %v2681 = vrot.slane %v2679, 7
          %v2682 = vshll.u32 %v2389, 16
          %v2684 = vor.u32 %v2681, %v2682
          %v2685 = vsel %vm1261, %v2677, %v2684
          %v2686 = vrot.slane %v2681, 4
          %v2688 = vshrl.u32 %v2390, 16
          %v2690 = vrot.slane %v2688, 7
          %v2691 = vshll.u32 %v2390, 16
          %v2693 = vor.u32 %v2690, %v2691
          %v2694 = vsel %vm1261, %v2686, %v2693
          %v2695 = vrot.slane %v2690, 4
          %v2697 = vshrl.u32 %v2391, 16
          %v2699 = vrot.slane %v2697, 7
          %v2700 = vshll.u32 %v2391, 16
          %v2702 = vor.u32 %v2699, %v2700
          %v2703 = vsel %vm1261, %v2695, %v2702
          %v2704 = vrot.slane %v2699, 4
          %v2706 = vshrl.u32 %v2392, 16
          %v2708 = vrot.slane %v2706, 7
          %v2709 = vshll.u32 %v2392, 16
          %v2711 = vor.u32 %v2708, %v2709
          %v2712 = vsel %vm1261, %v2704, %v2711
          %v2713 = vld [vmem:[%s2352 + $0x14] sm:$0x1]
          %v2714 = vld [vmem:[%s2352 + $0x2c] sm:$0x1]
          %v2715 = vld [vmem:[%s2352 + $0x44] sm:$0x1]
          %v2716 = vld [vmem:[%s2352 + $0x5c] sm:$0x1]
          %v2717 = vld [vmem:[%s2352 + $0x74] sm:$0x1]
          %v2718 = vld [vmem:[%s2352 + $0x8c] sm:$0x1]
          %v2719 = vld [vmem:[%s2352 + $0xa4] sm:$0x1]
          %v2720 = vld [vmem:[%s2352 + $0xbc] sm:$0x1]
          %v2721 = vrot.slane %v2399, 4
          %v2722 = vrot.slane %v2402, 5
          %v2723 = vor.u32 %v2721, %v2722
          %v2724 = vrot.slane %v2723, 4
          %v2725 = vrot.slane %v2411, 5
          %v2726 = vsel %vm1592, %v2724, %v2725
          %v2727 = vrot.slane %v2408, 4
          %v2728 = vor.u32 %v2727, %v2725
          %v2729 = vrot.slane %v2728, 4
          %v2730 = vrot.slane %v2420, 5
          %v2731 = vsel %vm1592, %v2729, %v2730
          %v2732 = vrot.slane %v2417, 4
          %v2733 = vor.u32 %v2732, %v2730
          %v2734 = vrot.slane %v2733, 4
          %v2735 = vrot.slane %v2429, 5
          %v2736 = vsel %vm1592, %v2734, %v2735
          %v2737 = vrot.slane %v2426, 4
          %v2738 = vor.u32 %v2737, %v2735
          %v2739 = vrot.slane %v2738, 4
          %v2741 = vshll.u32 %v2713, 16
          %v2743 = vrot.slane %v2741, 5
          %v2744 = vsel %vm1592, %v2739, %v2743
          %v2745 = vrot.slane %v2439, 4
          %v2746 = vrot.slane %v2442, 5
          %v2747 = vor.u32 %v2745, %v2746
          %v2748 = vrot.slane %v2747, 4
          %v2749 = vrot.slane %v2451, 5
          %v2750 = vsel %vm1592, %v2748, %v2749
          %v2751 = vrot.slane %v2448, 4
          %v2752 = vor.u32 %v2751, %v2749
          %v2753 = vrot.slane %v2752, 4
          %v2754 = vrot.slane %v2460, 5
          %v2755 = vsel %vm1592, %v2753, %v2754
          %v2756 = vrot.slane %v2457, 4
          %v2757 = vor.u32 %v2756, %v2754
          %v2758 = vrot.slane %v2757, 4
          %v2759 = vrot.slane %v2469, 5
          %v2760 = vsel %vm1592, %v2758, %v2759
          %v2761 = vrot.slane %v2466, 4
          %v2762 = vor.u32 %v2761, %v2759
          %v2763 = vrot.slane %v2762, 4
          %v2765 = vshll.u32 %v2714, 16
          %v2767 = vrot.slane %v2765, 5
          %v2768 = vsel %vm1592, %v2763, %v2767
          %v2769 = vrot.slane %v2479, 4
          %v2770 = vrot.slane %v2482, 5
          %v2771 = vor.u32 %v2769, %v2770
          %v2772 = vrot.slane %v2771, 4
          %v2773 = vrot.slane %v2491, 5
          %v2774 = vsel %vm1592, %v2772, %v2773
          %v2775 = vrot.slane %v2488, 4
          %v2776 = vor.u32 %v2775, %v2773
          %v2777 = vrot.slane %v2776, 4
          %v2778 = vrot.slane %v2500, 5
          %v2779 = vsel %vm1592, %v2777, %v2778
          %v2780 = vrot.slane %v2497, 4
          %v2781 = vor.u32 %v2780, %v2778
          %v2782 = vrot.slane %v2781, 4
          %v2783 = vrot.slane %v2509, 5
          %v2784 = vsel %vm1592, %v2782, %v2783
          %v2785 = vrot.slane %v2506, 4
          %v2786 = vor.u32 %v2785, %v2783
          %v2787 = vrot.slane %v2786, 4
          %v2789 = vshll.u32 %v2715, 16
          %v2791 = vrot.slane %v2789, 5
          %v2792 = vsel %vm1592, %v2787, %v2791
          %v2793 = vrot.slane %v2519, 4
          %v2794 = vrot.slane %v2522, 5
          %v2795 = vor.u32 %v2793, %v2794
          %v2796 = vrot.slane %v2795, 4
          %v2797 = vrot.slane %v2531, 5
          %v2798 = vsel %vm1592, %v2796, %v2797
          %v2799 = vrot.slane %v2528, 4
          %v2800 = vor.u32 %v2799, %v2797
          %v2801 = vrot.slane %v2800, 4
          %v2802 = vrot.slane %v2540, 5
          %v2803 = vsel %vm1592, %v2801, %v2802
          %v2804 = vrot.slane %v2537, 4
          %v2805 = vor.u32 %v2804, %v2802
          %v2806 = vrot.slane %v2805, 4
          %v2807 = vrot.slane %v2549, 5
          %v2808 = vsel %vm1592, %v2806, %v2807
          %v2809 = vrot.slane %v2546, 4
          %v2810 = vor.u32 %v2809, %v2807
          %v2811 = vrot.slane %v2810, 4
          %v2813 = vshll.u32 %v2716, 16
          %v2815 = vrot.slane %v2813, 5
          %v2816 = vsel %vm1592, %v2811, %v2815
          %v2817 = vrot.slane %v2559, 4
          %v2818 = vrot.slane %v2562, 5
          %v2819 = vor.u32 %v2817, %v2818
          %v2820 = vrot.slane %v2819, 4
          %v2821 = vrot.slane %v2571, 5
          %v2822 = vsel %vm1592, %v2820, %v2821
          %v2823 = vrot.slane %v2568, 4
          %v2824 = vor.u32 %v2823, %v2821
          %v2825 = vrot.slane %v2824, 4
          %v2826 = vrot.slane %v2580, 5
          %v2827 = vsel %vm1592, %v2825, %v2826
          %v2828 = vrot.slane %v2577, 4
          %v2829 = vor.u32 %v2828, %v2826
          %v2830 = vrot.slane %v2829, 4
          %v2831 = vrot.slane %v2589, 5
          %v2832 = vsel %vm1592, %v2830, %v2831
          %v2833 = vrot.slane %v2586, 4
          %v2834 = vor.u32 %v2833, %v2831
          %v2835 = vrot.slane %v2834, 4
          %v2837 = vshll.u32 %v2717, 16
          %v2839 = vrot.slane %v2837, 5
          %v2840 = vsel %vm1592, %v2835, %v2839
          %v2841 = vrot.slane %v2599, 4
          %v2842 = vrot.slane %v2602, 5
          %v2843 = vor.u32 %v2841, %v2842
          %v2844 = vrot.slane %v2843, 4
          %v2845 = vrot.slane %v2611, 5
          %v2846 = vsel %vm1592, %v2844, %v2845
          %v2847 = vrot.slane %v2608, 4
          %v2848 = vor.u32 %v2847, %v2845
          %v2849 = vrot.slane %v2848, 4
          %v2850 = vrot.slane %v2620, 5
          %v2851 = vsel %vm1592, %v2849, %v2850
          %v2852 = vrot.slane %v2617, 4
          %v2853 = vor.u32 %v2852, %v2850
          %v2854 = vrot.slane %v2853, 4
          %v2855 = vrot.slane %v2629, 5
          %v2856 = vsel %vm1592, %v2854, %v2855
          %v2857 = vrot.slane %v2626, 4
          %v2858 = vor.u32 %v2857, %v2855
          %v2859 = vrot.slane %v2858, 4
          %v2861 = vshll.u32 %v2718, 16
          %v2863 = vrot.slane %v2861, 5
          %v2864 = vsel %vm1592, %v2859, %v2863
          %v2865 = vrot.slane %v2639, 4
          %v2866 = vrot.slane %v2642, 5
          %v2867 = vor.u32 %v2865, %v2866
          %v2868 = vrot.slane %v2867, 4
          %v2869 = vrot.slane %v2651, 5
          %v2870 = vsel %vm1592, %v2868, %v2869
          %v2871 = vrot.slane %v2648, 4
          %v2872 = vor.u32 %v2871, %v2869
          %v2873 = vrot.slane %v2872, 4
          %v2874 = vrot.slane %v2660, 5
          %v2875 = vsel %vm1592, %v2873, %v2874
          %v2876 = vrot.slane %v2657, 4
          %v2877 = vor.u32 %v2876, %v2874
          %v2878 = vrot.slane %v2877, 4
          %v2879 = vrot.slane %v2669, 5
          %v2880 = vsel %vm1592, %v2878, %v2879
          %v2881 = vrot.slane %v2666, 4
          %v2882 = vor.u32 %v2881, %v2879
          %v2883 = vrot.slane %v2882, 4
          %v2885 = vshll.u32 %v2719, 16
          %v2887 = vrot.slane %v2885, 5
          %v2888 = vsel %vm1592, %v2883, %v2887
          %v2889 = vrot.slane %v2679, 4
          %v2890 = vrot.slane %v2682, 5
          %v2891 = vor.u32 %v2889, %v2890
          %v2892 = vrot.slane %v2891, 4
          %v2893 = vrot.slane %v2691, 5
          %v2894 = vsel %vm1592, %v2892, %v2893
          %v2895 = vrot.slane %v2688, 4
          %v2896 = vor.u32 %v2895, %v2893
          %v2897 = vrot.slane %v2896, 4
          %v2898 = vrot.slane %v2700, 5
          %v2899 = vsel %vm1592, %v2897, %v2898
          %v2900 = vrot.slane %v2697, 4
          %v2901 = vor.u32 %v2900, %v2898
          %v2902 = vrot.slane %v2901, 4
          %v2903 = vrot.slane %v2709, 5
          %v2904 = vsel %vm1592, %v2902, %v2903
          %v2905 = vrot.slane %v2706, 4
          %v2906 = vor.u32 %v2905, %v2903
          %v2907 = vrot.slane %v2906, 4
          %v2909 = vshll.u32 %v2720, 16
          %v2911 = vrot.slane %v2909, 5
          %v2912 = vsel %vm1592, %v2907, %v2911
          %v2913 = vunpack.c.l.b16 %v1274
          %v2914 = vunpack.c.l.b16 %v1283
          %v2915 = vunpack.c.l.b16 %v1292
          %v2916 = vunpack.c.l.b16 %v1301
          %v2917 = vunpack.c.l.b16 %v1314
          %v2918 = vunpack.c.l.b16 %v1323
          %v2919 = vunpack.c.l.b16 %v1332
          %v2920 = vunpack.c.l.b16 %v1341
          %v2921 = vunpack.c.l.b16 %v1354
          %v2922 = vunpack.c.l.b16 %v1363
          %v2923 = vunpack.c.l.b16 %v1372
          %v2924 = vunpack.c.l.b16 %v1381
          %v2925 = vunpack.c.l.b16 %v1394
          %v2926 = vunpack.c.l.b16 %v1403
          %v2927 = vunpack.c.l.b16 %v1412
          %v2928 = vunpack.c.l.b16 %v1421
          %v2929 = vunpack.c.l.b16 %v1434
          %v2930 = vunpack.c.l.b16 %v1443
          %v2931 = vunpack.c.l.b16 %v1452
          %v2932 = vunpack.c.l.b16 %v1461
          %v2933 = vunpack.c.l.b16 %v1474
          %v2934 = vunpack.c.l.b16 %v1483
          %v2935 = vunpack.c.l.b16 %v1492
          %v2936 = vunpack.c.l.b16 %v1501
          %v2937 = vunpack.c.l.b16 %v1514
          %v2938 = vunpack.c.l.b16 %v1523
          %v2939 = vunpack.c.l.b16 %v1532
          %v2940 = vunpack.c.l.b16 %v1541
          %v2941 = vunpack.c.l.b16 %v1554
          %v2942 = vunpack.c.l.b16 %v1563
          %v2943 = vunpack.c.l.b16 %v1572
          %v2944 = vunpack.c.l.b16 %v1581
          %v2945 = vpack.c.b16 %v2914, %v2913
          %v2946 = vpack.c.b16 %v2916, %v2915
          %v2947 = vpack.c.b16 %v2918, %v2917
          %v2948 = vpack.c.b16 %v2920, %v2919
          %v2949 = vpack.c.b16 %v2922, %v2921
          %v2950 = vpack.c.b16 %v2924, %v2923
          %v2951 = vpack.c.b16 %v2926, %v2925
          %v2952 = vpack.c.b16 %v2928, %v2927
          %v2953 = vpack.c.b16 %v2930, %v2929
          %v2954 = vpack.c.b16 %v2932, %v2931
          %v2955 = vpack.c.b16 %v2934, %v2933
          %v2956 = vpack.c.b16 %v2936, %v2935
          %v2957 = vpack.c.b16 %v2938, %v2937
          %v2958 = vpack.c.b16 %v2940, %v2939
          %v2959 = vpack.c.b16 %v2942, %v2941
          %v2960 = vpack.c.b16 %v2944, %v2943
          %v2993 = vunpack.c.l.b16 %v1220
          %v2994 = vunpack.c.l.b16 %v1221
          %v2995 = vunpack.c.l.b16 %v1222
          %v2996 = vunpack.c.l.b16 %v1223
          %v2997 = vunpack.c.l.b16 %v1225
          %v2998 = vunpack.c.l.b16 %v1226
          %v2999 = vunpack.c.l.b16 %v1227
          %v3000 = vunpack.c.l.b16 %v1228
          %v3001 = vunpack.c.l.b16 %v1230
          %v3002 = vunpack.c.l.b16 %v1231
          %v3003 = vunpack.c.l.b16 %v1232
          %v3004 = vunpack.c.l.b16 %v1233
          %v3005 = vunpack.c.l.b16 %v1235
          %v3006 = vunpack.c.l.b16 %v1236
          %v3007 = vunpack.c.l.b16 %v1237
          %v3008 = vunpack.c.l.b16 %v1238
          %v3009 = vunpack.c.l.b16 %v1240
          %v3010 = vunpack.c.l.b16 %v1241
          %v3011 = vunpack.c.l.b16 %v1242
          %v3012 = vunpack.c.l.b16 %v1243
          %v3013 = vunpack.c.l.b16 %v1245
          %v3014 = vunpack.c.l.b16 %v1246
          %v3015 = vunpack.c.l.b16 %v1247
          %v3016 = vunpack.c.l.b16 %v1248
          %v3017 = vunpack.c.l.b16 %v1250
          %v3018 = vunpack.c.l.b16 %v1251
          %v3019 = vunpack.c.l.b16 %v1252
          %v3020 = vunpack.c.l.b16 %v1253
          %v3021 = vunpack.c.l.b16 %v1255
          %v3022 = vunpack.c.l.b16 %v1256
          %v3023 = vunpack.c.l.b16 %v1257
          %v3024 = vunpack.c.l.b16 %v1258
          %v3025 = vpack.c.b16 %v2994, %v2993
          %v3026 = vpack.c.b16 %v2996, %v2995
          %v3027 = vpack.c.b16 %v2998, %v2997
          %v3028 = vpack.c.b16 %v3000, %v2999
          %v3029 = vpack.c.b16 %v3002, %v3001
          %v3030 = vpack.c.b16 %v3004, %v3003
          %v3031 = vpack.c.b16 %v3006, %v3005
          %v3032 = vpack.c.b16 %v3008, %v3007
          %v3033 = vpack.c.b16 %v3010, %v3009
          %v3034 = vpack.c.b16 %v3012, %v3011
          %v3035 = vpack.c.b16 %v3014, %v3013
          %v3036 = vpack.c.b16 %v3016, %v3015
          %v3037 = vpack.c.b16 %v3018, %v3017
          %v3038 = vpack.c.b16 %v3020, %v3019
          %v3039 = vpack.c.b16 %v3022, %v3021
          %v3040 = vpack.c.b16 %v3024, %v3023
          %3041 = vrot.lane.b32.xlu0 %v3025, 8
          %v3042 = vpop.permute.xlu0 %3041
          %3043 = vrot.lane.b32.xlu0 %v3026, 8
          %v3044 = vpop.permute.xlu0 %3043
          %3045 = vrot.lane.b32.xlu0 %v3027, 8
          %v3046 = vpop.permute.xlu0 %3045
          %3047 = vrot.lane.b32.xlu0 %v3028, 8
          %v3048 = vpop.permute.xlu0 %3047
          %3049 = vrot.lane.b32.xlu0 %v3029, 8
          %v3050 = vpop.permute.xlu0 %3049
          %3051 = vrot.lane.b32.xlu0 %v3030, 8
          %v3052 = vpop.permute.xlu0 %3051
          %3053 = vrot.lane.b32.xlu0 %v3031, 8
          %v3054 = vpop.permute.xlu0 %3053
          %3055 = vrot.lane.b32.xlu0 %v3032, 8
          %v3056 = vpop.permute.xlu0 %3055
          %3057 = vrot.lane.b32.xlu0 %v3033, 8
          %v3058 = vpop.permute.xlu0 %3057
          %3059 = vrot.lane.b32.xlu0 %v3034, 8
          %v3060 = vpop.permute.xlu0 %3059
          %3061 = vrot.lane.b32.xlu0 %v3035, 8
          %v3062 = vpop.permute.xlu0 %3061
          %3063 = vrot.lane.b32.xlu0 %v3036, 8
          %v3064 = vpop.permute.xlu0 %3063
          %3065 = vrot.lane.b32.xlu0 %v3037, 8
          %v3066 = vpop.permute.xlu0 %3065
          %3067 = vrot.lane.b32.xlu0 %v3038, 8
          %v3068 = vpop.permute.xlu0 %3067
          %3069 = vrot.lane.b32.xlu0 %v3039, 8
          %v3070 = vpop.permute.xlu0 %3069
          %3071 = vrot.lane.b32.xlu0 %v3040, 8
          %v3072 = vpop.permute.xlu0 %3071
          %v3073 = vunpack.c.l.b16 %v1598
          %v3074 = vunpack.c.l.b16 %v1603
          %v3075 = vunpack.c.l.b16 %v1608
          %v3076 = vunpack.c.l.b16 %v1616
          %v3077 = vunpack.c.l.b16 %v1622
          %v3078 = vunpack.c.l.b16 %v1627
          %v3079 = vunpack.c.l.b16 %v1632
          %v3080 = vunpack.c.l.b16 %v1640
          %v3081 = vunpack.c.l.b16 %v1646
          %v3082 = vunpack.c.l.b16 %v1651
          %v3083 = vunpack.c.l.b16 %v1656
          %v3084 = vunpack.c.l.b16 %v1664
          %v3085 = vunpack.c.l.b16 %v1670
          %v3086 = vunpack.c.l.b16 %v1675
          %v3087 = vunpack.c.l.b16 %v1680
          %v3088 = vunpack.c.l.b16 %v1688
          %v3089 = vunpack.c.l.b16 %v1694
          %v3090 = vunpack.c.l.b16 %v1699
          %v3091 = vunpack.c.l.b16 %v1704
          %v3092 = vunpack.c.l.b16 %v1712
          %v3093 = vunpack.c.l.b16 %v1718
          %v3094 = vunpack.c.l.b16 %v1723
          %v3095 = vunpack.c.l.b16 %v1728
          %v3096 = vunpack.c.l.b16 %v1736
          %v3097 = vunpack.c.l.b16 %v1742
          %v3098 = vunpack.c.l.b16 %v1747
          %v3099 = vunpack.c.l.b16 %v1752
          %v3100 = vunpack.c.l.b16 %v1760
          %v3101 = vunpack.c.l.b16 %v1766
          %v3102 = vunpack.c.l.b16 %v1771
          %v3103 = vunpack.c.l.b16 %v1776
          %v3104 = vunpack.c.l.b16 %v1784
          %v3105 = vpack.c.b16 %v3074, %v3073
          %v3106 = vpack.c.b16 %v3076, %v3075
          %v3107 = vpack.c.b16 %v3078, %v3077
          %v3108 = vpack.c.b16 %v3080, %v3079
          %v3109 = vpack.c.b16 %v3082, %v3081
          %v3110 = vpack.c.b16 %v3084, %v3083
          %v3111 = vpack.c.b16 %v3086, %v3085
          %v3112 = vpack.c.b16 %v3088, %v3087
          %v3113 = vpack.c.b16 %v3090, %v3089
          %v3114 = vpack.c.b16 %v3092, %v3091
          %v3115 = vpack.c.b16 %v3094, %v3093
          %v3116 = vpack.c.b16 %v3096, %v3095
          %v3117 = vpack.c.b16 %v3098, %v3097
          %v3118 = vpack.c.b16 %v3100, %v3099
          %v3119 = vpack.c.b16 %v3102, %v3101
          %v3120 = vpack.c.b16 %v3104, %v3103
          %3121 = vrot.lane.b32.xlu0 %v3105, 16
          %v3122 = vpop.permute.xlu0 %3121
          %3123 = vrot.lane.b32.xlu0 %v3106, 16
          %v3124 = vpop.permute.xlu0 %3123
          %3125 = vrot.lane.b32.xlu0 %v3107, 16
          %v3126 = vpop.permute.xlu0 %3125
          %3127 = vrot.lane.b32.xlu0 %v3108, 16
          %v3128 = vpop.permute.xlu0 %3127
          %3129 = vrot.lane.b32.xlu0 %v3109, 16
          %v3130 = vpop.permute.xlu0 %3129
          %3131 = vrot.lane.b32.xlu0 %v3110, 16
          %v3132 = vpop.permute.xlu0 %3131
          %3133 = vrot.lane.b32.xlu0 %v3111, 16
          %v3134 = vpop.permute.xlu0 %3133
          %3135 = vrot.lane.b32.xlu0 %v3112, 16
          %v3136 = vpop.permute.xlu0 %3135
          %3137 = vrot.lane.b32.xlu0 %v3113, 16
          %v3138 = vpop.permute.xlu0 %3137
          %3139 = vrot.lane.b32.xlu0 %v3114, 16
          %v3140 = vpop.permute.xlu0 %3139
          %3141 = vrot.lane.b32.xlu0 %v3115, 16
          %v3142 = vpop.permute.xlu0 %3141
          %3143 = vrot.lane.b32.xlu0 %v3116, 16
          %v3144 = vpop.permute.xlu0 %3143
          %3145 = vrot.lane.b32.xlu0 %v3117, 16
          %v3146 = vpop.permute.xlu0 %3145
          %3147 = vrot.lane.b32.xlu0 %v3118, 16
          %v3148 = vpop.permute.xlu0 %3147
          %3149 = vrot.lane.b32.xlu0 %v3119, 16
          %v3150 = vpop.permute.xlu0 %3149
          %3151 = vrot.lane.b32.xlu0 %v3120, 16
          %v3152 = vpop.permute.xlu0 %3151
          %v3153 = vunpack.c.l.b16 %v1841
          %v3154 = vunpack.c.l.b16 %v1850
          %v3155 = vunpack.c.l.b16 %v1859
          %v3156 = vunpack.c.l.b16 %v1868
          %v3157 = vunpack.c.l.b16 %v1881
          %v3158 = vunpack.c.l.b16 %v1890
          %v3159 = vunpack.c.l.b16 %v1899
          %v3160 = vunpack.c.l.b16 %v1908
          %v3161 = vunpack.c.l.b16 %v1921
          %v3162 = vunpack.c.l.b16 %v1930
          %v3163 = vunpack.c.l.b16 %v1939
          %v3164 = vunpack.c.l.b16 %v1948
          %v3165 = vunpack.c.l.b16 %v1961
          %v3166 = vunpack.c.l.b16 %v1970
          %v3167 = vunpack.c.l.b16 %v1979
          %v3168 = vunpack.c.l.b16 %v1988
          %v3169 = vunpack.c.l.b16 %v2001
          %v3170 = vunpack.c.l.b16 %v2010
          %v3171 = vunpack.c.l.b16 %v2019
          %v3172 = vunpack.c.l.b16 %v2028
          %v3173 = vunpack.c.l.b16 %v2041
          %v3174 = vunpack.c.l.b16 %v2050
          %v3175 = vunpack.c.l.b16 %v2059
          %v3176 = vunpack.c.l.b16 %v2068
          %v3177 = vunpack.c.l.b16 %v2081
          %v3178 = vunpack.c.l.b16 %v2090
          %v3179 = vunpack.c.l.b16 %v2099
          %v3180 = vunpack.c.l.b16 %v2108
          %v3181 = vunpack.c.l.b16 %v2121
          %v3182 = vunpack.c.l.b16 %v2130
          %v3183 = vunpack.c.l.b16 %v2139
          %v3184 = vunpack.c.l.b16 %v2148
          %v3185 = vpack.c.b16 %v3154, %v3153
          %v3186 = vpack.c.b16 %v3156, %v3155
          %v3187 = vpack.c.b16 %v3158, %v3157
          %v3188 = vpack.c.b16 %v3160, %v3159
          %v3189 = vpack.c.b16 %v3162, %v3161
          %v3190 = vpack.c.b16 %v3164, %v3163
          %v3191 = vpack.c.b16 %v3166, %v3165
          %v3192 = vpack.c.b16 %v3168, %v3167
          %v3193 = vpack.c.b16 %v3170, %v3169
          %v3194 = vpack.c.b16 %v3172, %v3171
          %v3195 = vpack.c.b16 %v3174, %v3173
          %v3196 = vpack.c.b16 %v3176, %v3175
          %v3197 = vpack.c.b16 %v3178, %v3177
          %v3198 = vpack.c.b16 %v3180, %v3179
          %v3199 = vpack.c.b16 %v3182, %v3181
          %v3200 = vpack.c.b16 %v3184, %v3183
          %3201 = vrot.lane.b32.xlu0 %v3185, 24
          %v3202 = vpop.permute.xlu0 %3201
          %3203 = vrot.lane.b32.xlu0 %v3186, 24
          %v3204 = vpop.permute.xlu0 %3203
          %3205 = vrot.lane.b32.xlu0 %v3187, 24
          %v3206 = vpop.permute.xlu0 %3205
          %3207 = vrot.lane.b32.xlu0 %v3188, 24
          %v3208 = vpop.permute.xlu0 %3207
          %3209 = vrot.lane.b32.xlu0 %v3189, 24
          %v3210 = vpop.permute.xlu0 %3209
          %3211 = vrot.lane.b32.xlu0 %v3190, 24
          %v3212 = vpop.permute.xlu0 %3211
          %3213 = vrot.lane.b32.xlu0 %v3191, 24
          %v3214 = vpop.permute.xlu0 %3213
          %3215 = vrot.lane.b32.xlu0 %v3192, 24
          %v3216 = vpop.permute.xlu0 %3215
          %3217 = vrot.lane.b32.xlu0 %v3193, 24
          %v3218 = vpop.permute.xlu0 %3217
          %3219 = vrot.lane.b32.xlu0 %v3194, 24
          %v3220 = vpop.permute.xlu0 %3219
          %3221 = vrot.lane.b32.xlu0 %v3195, 24
          %v3222 = vpop.permute.xlu0 %3221
          %3223 = vrot.lane.b32.xlu0 %v3196, 24
          %v3224 = vpop.permute.xlu0 %3223
          %3225 = vrot.lane.b32.xlu0 %v3197, 24
          %v3226 = vpop.permute.xlu0 %3225
          %3227 = vrot.lane.b32.xlu0 %v3198, 24
          %v3228 = vpop.permute.xlu0 %3227
          %3229 = vrot.lane.b32.xlu0 %v3199, 24
          %v3230 = vpop.permute.xlu0 %3229
          %3231 = vrot.lane.b32.xlu0 %v3200, 24
          %v3232 = vpop.permute.xlu0 %3231
          %v3265 = vunpack.c.l.b16 %v1790
          %v3266 = vunpack.c.l.b16 %v1791
          %v3267 = vunpack.c.l.b16 %v1792
          %v3268 = vunpack.c.l.b16 %v1793
          %v3269 = vunpack.c.l.b16 %v1795
          %v3270 = vunpack.c.l.b16 %v1796
          %v3271 = vunpack.c.l.b16 %v1797
          %v3272 = vunpack.c.l.b16 %v1798
          %v3273 = vunpack.c.l.b16 %v1800
          %v3274 = vunpack.c.l.b16 %v1801
          %v3275 = vunpack.c.l.b16 %v1802
          %v3276 = vunpack.c.l.b16 %v1803
          %v3277 = vunpack.c.l.b16 %v1805
          %v3278 = vunpack.c.l.b16 %v1806
          %v3279 = vunpack.c.l.b16 %v1807
          %v3280 = vunpack.c.l.b16 %v1808
          %v3281 = vunpack.c.l.b16 %v1810
          %v3282 = vunpack.c.l.b16 %v1811
          %v3283 = vunpack.c.l.b16 %v1812
          %v3284 = vunpack.c.l.b16 %v1813
          %v3285 = vunpack.c.l.b16 %v1815
          %v3286 = vunpack.c.l.b16 %v1816
          %v3287 = vunpack.c.l.b16 %v1817
          %v3288 = vunpack.c.l.b16 %v1818
          %v3289 = vunpack.c.l.b16 %v1820
          %v3290 = vunpack.c.l.b16 %v1821
          %v3291 = vunpack.c.l.b16 %v1822
          %v3292 = vunpack.c.l.b16 %v1823
          %v3293 = vunpack.c.l.b16 %v1825
          %v3294 = vunpack.c.l.b16 %v1826
          %v3295 = vunpack.c.l.b16 %v1827
          %v3296 = vunpack.c.l.b16 %v1828
          %v3297 = vpack.c.b16 %v3266, %v3265
          %v3298 = vpack.c.b16 %v3268, %v3267
          %v3299 = vpack.c.b16 %v3270, %v3269
          %v3300 = vpack.c.b16 %v3272, %v3271
          %v3301 = vpack.c.b16 %v3274, %v3273
          %v3302 = vpack.c.b16 %v3276, %v3275
          %v3303 = vpack.c.b16 %v3278, %v3277
          %v3304 = vpack.c.b16 %v3280, %v3279
          %v3305 = vpack.c.b16 %v3282, %v3281
          %v3306 = vpack.c.b16 %v3284, %v3283
          %v3307 = vpack.c.b16 %v3286, %v3285
          %v3308 = vpack.c.b16 %v3288, %v3287
          %v3309 = vpack.c.b16 %v3290, %v3289
          %v3310 = vpack.c.b16 %v3292, %v3291
          %v3311 = vpack.c.b16 %v3294, %v3293
          %v3312 = vpack.c.b16 %v3296, %v3295
          %3313 = vrot.lane.b32.xlu0 %v3297, 32
          %v3314 = vpop.permute.xlu0 %3313
          %3315 = vrot.lane.b32.xlu0 %v3298, 32
          %v3316 = vpop.permute.xlu0 %3315
          %3317 = vrot.lane.b32.xlu0 %v3299, 32
          %v3318 = vpop.permute.xlu0 %3317
          %3319 = vrot.lane.b32.xlu0 %v3300, 32
          %v3320 = vpop.permute.xlu0 %3319
          %3321 = vrot.lane.b32.xlu0 %v3301, 32
          %v3322 = vpop.permute.xlu0 %3321
          %3323 = vrot.lane.b32.xlu0 %v3302, 32
          %v3324 = vpop.permute.xlu0 %3323
          %3325 = vrot.lane.b32.xlu0 %v3303, 32
          %v3326 = vpop.permute.xlu0 %3325
          %3327 = vrot.lane.b32.xlu0 %v3304, 32
          %v3328 = vpop.permute.xlu0 %3327
          %3329 = vrot.lane.b32.xlu0 %v3305, 32
          %v3330 = vpop.permute.xlu0 %3329
          %3331 = vrot.lane.b32.xlu0 %v3306, 32
          %v3332 = vpop.permute.xlu0 %3331
          %3333 = vrot.lane.b32.xlu0 %v3307, 32
          %v3334 = vpop.permute.xlu0 %3333
          %3335 = vrot.lane.b32.xlu0 %v3308, 32
          %v3336 = vpop.permute.xlu0 %3335
          %3337 = vrot.lane.b32.xlu0 %v3309, 32
          %v3338 = vpop.permute.xlu0 %3337
          %3339 = vrot.lane.b32.xlu0 %v3310, 32
          %v3340 = vpop.permute.xlu0 %3339
          %3341 = vrot.lane.b32.xlu0 %v3311, 32
          %v3342 = vpop.permute.xlu0 %3341
          %3343 = vrot.lane.b32.xlu0 %v3312, 32
          %v3344 = vpop.permute.xlu0 %3343
          %v3345 = vunpack.c.l.b16 %v2162
          %v3346 = vunpack.c.l.b16 %v2167
          %v3347 = vunpack.c.l.b16 %v2172
          %v3348 = vunpack.c.l.b16 %v2180
          %v3349 = vunpack.c.l.b16 %v2186
          %v3350 = vunpack.c.l.b16 %v2191
          %v3351 = vunpack.c.l.b16 %v2196
          %v3352 = vunpack.c.l.b16 %v2204
          %v3353 = vunpack.c.l.b16 %v2210
          %v3354 = vunpack.c.l.b16 %v2215
          %v3355 = vunpack.c.l.b16 %v2220
          %v3356 = vunpack.c.l.b16 %v2228
          %v3357 = vunpack.c.l.b16 %v2234
          %v3358 = vunpack.c.l.b16 %v2239
          %v3359 = vunpack.c.l.b16 %v2244
          %v3360 = vunpack.c.l.b16 %v2252
          %v3361 = vunpack.c.l.b16 %v2258
          %v3362 = vunpack.c.l.b16 %v2263
          %v3363 = vunpack.c.l.b16 %v2268
          %v3364 = vunpack.c.l.b16 %v2276
          %v3365 = vunpack.c.l.b16 %v2282
          %v3366 = vunpack.c.l.b16 %v2287
          %v3367 = vunpack.c.l.b16 %v2292
          %v3368 = vunpack.c.l.b16 %v2300
          %v3369 = vunpack.c.l.b16 %v2306
          %v3370 = vunpack.c.l.b16 %v2311
          %v3371 = vunpack.c.l.b16 %v2316
          %v3372 = vunpack.c.l.b16 %v2324
          %v3373 = vunpack.c.l.b16 %v2330
          %v3374 = vunpack.c.l.b16 %v2335
          %v3375 = vunpack.c.l.b16 %v2340
          %v3376 = vunpack.c.l.b16 %v2348
          %v3377 = vpack.c.b16 %v3346, %v3345
          %v3378 = vpack.c.b16 %v3348, %v3347
          %v3379 = vpack.c.b16 %v3350, %v3349
          %v3380 = vpack.c.b16 %v3352, %v3351
          %v3381 = vpack.c.b16 %v3354, %v3353
          %v3382 = vpack.c.b16 %v3356, %v3355
          %v3383 = vpack.c.b16 %v3358, %v3357
          %v3384 = vpack.c.b16 %v3360, %v3359
          %v3385 = vpack.c.b16 %v3362, %v3361
          %v3386 = vpack.c.b16 %v3364, %v3363
          %v3387 = vpack.c.b16 %v3366, %v3365
          %v3388 = vpack.c.b16 %v3368, %v3367
          %v3389 = vpack.c.b16 %v3370, %v3369
          %v3390 = vpack.c.b16 %v3372, %v3371
          %v3391 = vpack.c.b16 %v3374, %v3373
          %v3392 = vpack.c.b16 %v3376, %v3375
          %3393 = vrot.lane.b32.xlu0 %v3377, 40
          %v3394 = vpop.permute.xlu0 %3393
          %3395 = vrot.lane.b32.xlu0 %v3378, 40
          %v3396 = vpop.permute.xlu0 %3395
          %3397 = vrot.lane.b32.xlu0 %v3379, 40
          %v3398 = vpop.permute.xlu0 %3397
          %3399 = vrot.lane.b32.xlu0 %v3380, 40
          %v3400 = vpop.permute.xlu0 %3399
          %3401 = vrot.lane.b32.xlu0 %v3381, 40
          %v3402 = vpop.permute.xlu0 %3401
          %3403 = vrot.lane.b32.xlu0 %v3382, 40
          %v3404 = vpop.permute.xlu0 %3403
          %3405 = vrot.lane.b32.xlu0 %v3383, 40
          %v3406 = vpop.permute.xlu0 %3405
          %3407 = vrot.lane.b32.xlu0 %v3384, 40
          %v3408 = vpop.permute.xlu0 %3407
          %3409 = vrot.lane.b32.xlu0 %v3385, 40
          %v3410 = vpop.permute.xlu0 %3409
          %3411 = vrot.lane.b32.xlu0 %v3386, 40
          %v3412 = vpop.permute.xlu0 %3411
          %3413 = vrot.lane.b32.xlu0 %v3387, 40
          %v3414 = vpop.permute.xlu0 %3413
          %3415 = vrot.lane.b32.xlu0 %v3388, 40
          %v3416 = vpop.permute.xlu0 %3415
          %3417 = vrot.lane.b32.xlu0 %v3389, 40
          %v3418 = vpop.permute.xlu0 %3417
          %3419 = vrot.lane.b32.xlu0 %v3390, 40
          %v3420 = vpop.permute.xlu0 %3419
          %3421 = vrot.lane.b32.xlu0 %v3391, 40
          %v3422 = vpop.permute.xlu0 %3421
          %3423 = vrot.lane.b32.xlu0 %v3392, 40
          %v3424 = vpop.permute.xlu0 %3423
          %v3425 = vunpack.c.l.b16 %v2405
          %v3426 = vunpack.c.l.b16 %v2414
          %v3427 = vunpack.c.l.b16 %v2423
          %v3428 = vunpack.c.l.b16 %v2432
          %v3429 = vunpack.c.l.b16 %v2445
          %v3430 = vunpack.c.l.b16 %v2454
          %v3431 = vunpack.c.l.b16 %v2463
          %v3432 = vunpack.c.l.b16 %v2472
          %v3433 = vunpack.c.l.b16 %v2485
          %v3434 = vunpack.c.l.b16 %v2494
          %v3435 = vunpack.c.l.b16 %v2503
          %v3436 = vunpack.c.l.b16 %v2512
          %v3437 = vunpack.c.l.b16 %v2525
          %v3438 = vunpack.c.l.b16 %v2534
          %v3439 = vunpack.c.l.b16 %v2543
          %v3440 = vunpack.c.l.b16 %v2552
          %v3441 = vunpack.c.l.b16 %v2565
          %v3442 = vunpack.c.l.b16 %v2574
          %v3443 = vunpack.c.l.b16 %v2583
          %v3444 = vunpack.c.l.b16 %v2592
          %v3445 = vunpack.c.l.b16 %v2605
          %v3446 = vunpack.c.l.b16 %v2614
          %v3447 = vunpack.c.l.b16 %v2623
          %v3448 = vunpack.c.l.b16 %v2632
          %v3449 = vunpack.c.l.b16 %v2645
          %v3450 = vunpack.c.l.b16 %v2654
          %v3451 = vunpack.c.l.b16 %v2663
          %v3452 = vunpack.c.l.b16 %v2672
          %v3453 = vunpack.c.l.b16 %v2685
          %v3454 = vunpack.c.l.b16 %v2694
          %v3455 = vunpack.c.l.b16 %v2703
          %v3456 = vunpack.c.l.b16 %v2712
          %v3457 = vpack.c.b16 %v3426, %v3425
          %v3458 = vpack.c.b16 %v3428, %v3427
          %v3459 = vpack.c.b16 %v3430, %v3429
          %v3460 = vpack.c.b16 %v3432, %v3431
          %v3461 = vpack.c.b16 %v3434, %v3433
          %v3462 = vpack.c.b16 %v3436, %v3435
          %v3463 = vpack.c.b16 %v3438, %v3437
          %v3464 = vpack.c.b16 %v3440, %v3439
          %v3465 = vpack.c.b16 %v3442, %v3441
          %v3466 = vpack.c.b16 %v3444, %v3443
          %v3467 = vpack.c.b16 %v3446, %v3445
          %v3468 = vpack.c.b16 %v3448, %v3447
          %v3469 = vpack.c.b16 %v3450, %v3449
          %v3470 = vpack.c.b16 %v3452, %v3451
          %v3471 = vpack.c.b16 %v3454, %v3453
          %v3472 = vpack.c.b16 %v3456, %v3455
          %3473 = vrot.lane.b32.xlu0 %v3457, 48
          %v3474 = vpop.permute.xlu0 %3473
          %3475 = vrot.lane.b32.xlu0 %v3458, 48
          %v3476 = vpop.permute.xlu0 %3475
          %3477 = vrot.lane.b32.xlu0 %v3459, 48
          %v3478 = vpop.permute.xlu0 %3477
          %3479 = vrot.lane.b32.xlu0 %v3460, 48
          %v3480 = vpop.permute.xlu0 %3479
          %3481 = vrot.lane.b32.xlu0 %v3461, 48
          %v3482 = vpop.permute.xlu0 %3481
          %3483 = vrot.lane.b32.xlu0 %v3462, 48
          %v3484 = vpop.permute.xlu0 %3483
          %3485 = vrot.lane.b32.xlu0 %v3463, 48
          %v3486 = vpop.permute.xlu0 %3485
          %3487 = vrot.lane.b32.xlu0 %v3464, 48
          %v3488 = vpop.permute.xlu0 %3487
          %3489 = vrot.lane.b32.xlu0 %v3465, 48
          %v3490 = vpop.permute.xlu0 %3489
          %3491 = vrot.lane.b32.xlu0 %v3466, 48
          %v3492 = vpop.permute.xlu0 %3491
          %3493 = vrot.lane.b32.xlu0 %v3467, 48
          %v3494 = vpop.permute.xlu0 %3493
          %3495 = vrot.lane.b32.xlu0 %v3468, 48
          %v3496 = vpop.permute.xlu0 %3495
          %3497 = vrot.lane.b32.xlu0 %v3469, 48
          %v3498 = vpop.permute.xlu0 %3497
          %3499 = vrot.lane.b32.xlu0 %v3470, 48
          %v3500 = vpop.permute.xlu0 %3499
          %3501 = vrot.lane.b32.xlu0 %v3471, 48
          %v3502 = vpop.permute.xlu0 %3501
          %3503 = vrot.lane.b32.xlu0 %v3472, 48
          %v3504 = vpop.permute.xlu0 %3503
          %v3537 = vunpack.c.l.b16 %v2354
          %v3538 = vunpack.c.l.b16 %v2355
          %v3539 = vunpack.c.l.b16 %v2356
          %v3540 = vunpack.c.l.b16 %v2357
          %v3541 = vunpack.c.l.b16 %v2359
          %v3542 = vunpack.c.l.b16 %v2360
          %v3543 = vunpack.c.l.b16 %v2361
          %v3544 = vunpack.c.l.b16 %v2362
          %v3545 = vunpack.c.l.b16 %v2364
          %v3546 = vunpack.c.l.b16 %v2365
          %v3547 = vunpack.c.l.b16 %v2366
          %v3548 = vunpack.c.l.b16 %v2367
          %v3549 = vunpack.c.l.b16 %v2369
          %v3550 = vunpack.c.l.b16 %v2370
          %v3551 = vunpack.c.l.b16 %v2371
          %v3552 = vunpack.c.l.b16 %v2372
          %v3553 = vunpack.c.l.b16 %v2374
          %v3554 = vunpack.c.l.b16 %v2375
          %v3555 = vunpack.c.l.b16 %v2376
          %v3556 = vunpack.c.l.b16 %v2377
          %v3557 = vunpack.c.l.b16 %v2379
          %v3558 = vunpack.c.l.b16 %v2380
          %v3559 = vunpack.c.l.b16 %v2381
          %v3560 = vunpack.c.l.b16 %v2382
          %v3561 = vunpack.c.l.b16 %v2384
          %v3562 = vunpack.c.l.b16 %v2385
          %v3563 = vunpack.c.l.b16 %v2386
          %v3564 = vunpack.c.l.b16 %v2387
          %v3565 = vunpack.c.l.b16 %v2389
          %v3566 = vunpack.c.l.b16 %v2390
          %v3567 = vunpack.c.l.b16 %v2391
          %v3568 = vunpack.c.l.b16 %v2392
          %v3569 = vpack.c.b16 %v3538, %v3537
          %v3570 = vpack.c.b16 %v3540, %v3539
          %v3571 = vpack.c.b16 %v3542, %v3541
          %v3572 = vpack.c.b16 %v3544, %v3543
          %v3573 = vpack.c.b16 %v3546, %v3545
          %v3574 = vpack.c.b16 %v3548, %v3547
          %v3575 = vpack.c.b16 %v3550, %v3549
          %v3576 = vpack.c.b16 %v3552, %v3551
          %v3577 = vpack.c.b16 %v3554, %v3553
          %v3578 = vpack.c.b16 %v3556, %v3555
          %v3579 = vpack.c.b16 %v3558, %v3557
          %v3580 = vpack.c.b16 %v3560, %v3559
          %v3581 = vpack.c.b16 %v3562, %v3561
          %v3582 = vpack.c.b16 %v3564, %v3563
          %v3583 = vpack.c.b16 %v3566, %v3565
          %v3584 = vpack.c.b16 %v3568, %v3567
          %3585 = vrot.lane.b32.xlu0 %v3569, 56
          %v3586 = vpop.permute.xlu0 %3585
          %3587 = vrot.lane.b32.xlu0 %v3570, 56
          %v3588 = vpop.permute.xlu0 %3587
          %3589 = vrot.lane.b32.xlu0 %v3571, 56
          %v3590 = vpop.permute.xlu0 %3589
          %3591 = vrot.lane.b32.xlu0 %v3572, 56
          %v3592 = vpop.permute.xlu0 %3591
          %3593 = vrot.lane.b32.xlu0 %v3573, 56
          %v3594 = vpop.permute.xlu0 %3593
          %3595 = vrot.lane.b32.xlu0 %v3574, 56
          %v3596 = vpop.permute.xlu0 %3595
          %3597 = vrot.lane.b32.xlu0 %v3575, 56
          %v3598 = vpop.permute.xlu0 %3597
          %3599 = vrot.lane.b32.xlu0 %v3576, 56
          %v3600 = vpop.permute.xlu0 %3599
          %3601 = vrot.lane.b32.xlu0 %v3577, 56
          %v3602 = vpop.permute.xlu0 %3601
          %3603 = vrot.lane.b32.xlu0 %v3578, 56
          %v3604 = vpop.permute.xlu0 %3603
          %3605 = vrot.lane.b32.xlu0 %v3579, 56
          %v3606 = vpop.permute.xlu0 %3605
          %3607 = vrot.lane.b32.xlu0 %v3580, 56
          %v3608 = vpop.permute.xlu0 %3607
          %3609 = vrot.lane.b32.xlu0 %v3581, 56
          %v3610 = vpop.permute.xlu0 %3609
          %3611 = vrot.lane.b32.xlu0 %v3582, 56
          %v3612 = vpop.permute.xlu0 %3611
          %3613 = vrot.lane.b32.xlu0 %v3583, 56
          %v3614 = vpop.permute.xlu0 %3613
          %3615 = vrot.lane.b32.xlu0 %v3584, 56
          %v3616 = vpop.permute.xlu0 %3615
          %v3617 = vunpack.c.l.b16 %v2726
          %v3618 = vunpack.c.l.b16 %v2731
          %v3619 = vunpack.c.l.b16 %v2736
          %v3620 = vunpack.c.l.b16 %v2744
          %v3621 = vunpack.c.l.b16 %v2750
          %v3622 = vunpack.c.l.b16 %v2755
          %v3623 = vunpack.c.l.b16 %v2760
          %v3624 = vunpack.c.l.b16 %v2768
          %v3625 = vunpack.c.l.b16 %v2774
          %v3626 = vunpack.c.l.b16 %v2779
          %v3627 = vunpack.c.l.b16 %v2784
          %v3628 = vunpack.c.l.b16 %v2792
          %v3629 = vunpack.c.l.b16 %v2798
          %v3630 = vunpack.c.l.b16 %v2803
          %v3631 = vunpack.c.l.b16 %v2808
          %v3632 = vunpack.c.l.b16 %v2816
          %v3633 = vunpack.c.l.b16 %v2822
          %v3634 = vunpack.c.l.b16 %v2827
          %v3635 = vunpack.c.l.b16 %v2832
          %v3636 = vunpack.c.l.b16 %v2840
          %v3637 = vunpack.c.l.b16 %v2846
          %v3638 = vunpack.c.l.b16 %v2851
          %v3639 = vunpack.c.l.b16 %v2856
          %v3640 = vunpack.c.l.b16 %v2864
          %v3641 = vunpack.c.l.b16 %v2870
          %v3642 = vunpack.c.l.b16 %v2875
          %v3643 = vunpack.c.l.b16 %v2880
          %v3644 = vunpack.c.l.b16 %v2888
          %v3645 = vunpack.c.l.b16 %v2894
          %v3646 = vunpack.c.l.b16 %v2899
          %v3647 = vunpack.c.l.b16 %v2904
          %v3648 = vunpack.c.l.b16 %v2912
          %v3649 = vpack.c.b16 %v3618, %v3617
          %v3650 = vpack.c.b16 %v3620, %v3619
          %v3651 = vpack.c.b16 %v3622, %v3621
          %v3652 = vpack.c.b16 %v3624, %v3623
          %v3653 = vpack.c.b16 %v3626, %v3625
          %v3654 = vpack.c.b16 %v3628, %v3627
          %v3655 = vpack.c.b16 %v3630, %v3629
          %v3656 = vpack.c.b16 %v3632, %v3631
          %v3657 = vpack.c.b16 %v3634, %v3633
          %v3658 = vpack.c.b16 %v3636, %v3635
          %v3659 = vpack.c.b16 %v3638, %v3637
          %v3660 = vpack.c.b16 %v3640, %v3639
          %v3661 = vpack.c.b16 %v3642, %v3641
          %v3662 = vpack.c.b16 %v3644, %v3643
          %v3663 = vpack.c.b16 %v3646, %v3645
          %v3664 = vpack.c.b16 %v3648, %v3647
          %3665 = vrot.lane.b32.xlu0 %v3649, 64
          %v3666 = vpop.permute.xlu0 %3665
          %3667 = vrot.lane.b32.xlu0 %v3650, 64
          %v3668 = vpop.permute.xlu0 %3667
          %3669 = vrot.lane.b32.xlu0 %v3651, 64
          %v3670 = vpop.permute.xlu0 %3669
          %3671 = vrot.lane.b32.xlu0 %v3652, 64
          %v3672 = vpop.permute.xlu0 %3671
          %3673 = vrot.lane.b32.xlu0 %v3653, 64
          %v3674 = vpop.permute.xlu0 %3673
          %3675 = vrot.lane.b32.xlu0 %v3654, 64
          %v3676 = vpop.permute.xlu0 %3675
          %3677 = vrot.lane.b32.xlu0 %v3655, 64
          %v3678 = vpop.permute.xlu0 %3677
          %3679 = vrot.lane.b32.xlu0 %v3656, 64
          %v3680 = vpop.permute.xlu0 %3679
          %3681 = vrot.lane.b32.xlu0 %v3657, 64
          %v3682 = vpop.permute.xlu0 %3681
          %3683 = vrot.lane.b32.xlu0 %v3658, 64
          %v3684 = vpop.permute.xlu0 %3683
          %3685 = vrot.lane.b32.xlu0 %v3659, 64
          %v3686 = vpop.permute.xlu0 %3685
          %3687 = vrot.lane.b32.xlu0 %v3660, 64
          %v3688 = vpop.permute.xlu0 %3687
          %3689 = vrot.lane.b32.xlu0 %v3661, 64
          %v3690 = vpop.permute.xlu0 %3689
          %3691 = vrot.lane.b32.xlu0 %v3662, 64
          %v3692 = vpop.permute.xlu0 %3691
          %3693 = vrot.lane.b32.xlu0 %v3663, 64
          %v3694 = vpop.permute.xlu0 %3693
          %3695 = vrot.lane.b32.xlu0 %v3664, 64
          %v3696 = vpop.permute.xlu0 %3695
          %vm3697 = vcmask 64512
          %v3700 = vsel %vm3697, %v2945, %v3042
          %v3703 = vsel %vm3697, %v2946, %v3044
          %v3706 = vsel %vm3697, %v2947, %v3046
          %v3709 = vsel %vm3697, %v2948, %v3048
          %v3712 = vsel %vm3697, %v2949, %v3050
          %v3715 = vsel %vm3697, %v2950, %v3052
          %v3718 = vsel %vm3697, %v2951, %v3054
          %v3721 = vsel %vm3697, %v2952, %v3056
          %v3724 = vsel %vm3697, %v2953, %v3058
          %v3727 = vsel %vm3697, %v2954, %v3060
          %v3730 = vsel %vm3697, %v2955, %v3062
          %v3733 = vsel %vm3697, %v2956, %v3064
          %v3736 = vsel %vm3697, %v2957, %v3066
          %v3739 = vsel %vm3697, %v2958, %v3068
          %v3742 = vsel %vm3697, %v2959, %v3070
          %v3745 = vsel %vm3697, %v2960, %v3072
          %vm3746 = vcmask 130048
          %v3748 = vsel %vm3746, %v3700, %v3122
          %v3750 = vsel %vm3746, %v3703, %v3124
          %v3752 = vsel %vm3746, %v3706, %v3126
          %v3754 = vsel %vm3746, %v3709, %v3128
          %v3756 = vsel %vm3746, %v3712, %v3130
          %v3758 = vsel %vm3746, %v3715, %v3132
          %v3760 = vsel %vm3746, %v3718, %v3134
          %v3762 = vsel %vm3746, %v3721, %v3136
          %v3764 = vsel %vm3746, %v3724, %v3138
          %v3766 = vsel %vm3746, %v3727, %v3140
          %v3768 = vsel %vm3746, %v3730, %v3142
          %v3770 = vsel %vm3746, %v3733, %v3144
          %v3772 = vsel %vm3746, %v3736, %v3146
          %v3774 = vsel %vm3746, %v3739, %v3148
          %v3776 = vsel %vm3746, %v3742, %v3150
          %v3778 = vsel %vm3746, %v3745, %v3152
          %vm3779 = vcmask 195584
          %v3781 = vsel %vm3779, %v3748, %v3202
          %v3783 = vsel %vm3779, %v3750, %v3204
          %v3785 = vsel %vm3779, %v3752, %v3206
          %v3787 = vsel %vm3779, %v3754, %v3208
          %v3789 = vsel %vm3779, %v3756, %v3210
          %v3791 = vsel %vm3779, %v3758, %v3212
          %v3793 = vsel %vm3779, %v3760, %v3214
          %v3795 = vsel %vm3779, %v3762, %v3216
          %v3797 = vsel %vm3779, %v3764, %v3218
          %v3799 = vsel %vm3779, %v3766, %v3220
          %v3801 = vsel %vm3779, %v3768, %v3222
          %v3803 = vsel %vm3779, %v3770, %v3224
          %v3805 = vsel %vm3779, %v3772, %v3226
          %v3807 = vsel %vm3779, %v3774, %v3228
          %v3809 = vsel %vm3779, %v3776, %v3230
          %v3811 = vsel %vm3779, %v3778, %v3232
          %vm3812 = vcmask 261120
          %v3814 = vsel %vm3812, %v3781, %v3314
          %v3816 = vsel %vm3812, %v3783, %v3316
          %v3818 = vsel %vm3812, %v3785, %v3318
          %v3820 = vsel %vm3812, %v3787, %v3320
          %v3822 = vsel %vm3812, %v3789, %v3322
          %v3824 = vsel %vm3812, %v3791, %v3324
          %v3826 = vsel %vm3812, %v3793, %v3326
          %v3828 = vsel %vm3812, %v3795, %v3328
          %v3830 = vsel %vm3812, %v3797, %v3330
          %v3832 = vsel %vm3812, %v3799, %v3332
          %v3834 = vsel %vm3812, %v3801, %v3334
          %v3836 = vsel %vm3812, %v3803, %v3336
          %v3838 = vsel %vm3812, %v3805, %v3338
          %v3840 = vsel %vm3812, %v3807, %v3340
          %v3842 = vsel %vm3812, %v3809, %v3342
          %v3844 = vsel %vm3812, %v3811, %v3344
          %vm3845 = vcmask 326656
          %v3847 = vsel %vm3845, %v3814, %v3394
          %v3849 = vsel %vm3845, %v3816, %v3396
          %v3851 = vsel %vm3845, %v3818, %v3398
          %v3853 = vsel %vm3845, %v3820, %v3400
          %v3855 = vsel %vm3845, %v3822, %v3402
          %v3857 = vsel %vm3845, %v3824, %v3404
          %v3859 = vsel %vm3845, %v3826, %v3406
          %v3861 = vsel %vm3845, %v3828, %v3408
          %v3863 = vsel %vm3845, %v3830, %v3410
          %v3865 = vsel %vm3845, %v3832, %v3412
          %v3867 = vsel %vm3845, %v3834, %v3414
          %v3869 = vsel %vm3845, %v3836, %v3416
          %v3871 = vsel %vm3845, %v3838, %v3418
          %v3873 = vsel %vm3845, %v3840, %v3420
          %v3875 = vsel %vm3845, %v3842, %v3422
          %v3877 = vsel %vm3845, %v3844, %v3424
          %vm3878 = vcmask 392192
          %v3880 = vsel %vm3878, %v3847, %v3474
          %v3882 = vsel %vm3878, %v3849, %v3476
          %v3884 = vsel %vm3878, %v3851, %v3478
          %v3886 = vsel %vm3878, %v3853, %v3480
          %v3888 = vsel %vm3878, %v3855, %v3482
          %v3890 = vsel %vm3878, %v3857, %v3484
          %v3892 = vsel %vm3878, %v3859, %v3486
          %v3894 = vsel %vm3878, %v3861, %v3488
          %v3896 = vsel %vm3878, %v3863, %v3490
          %v3898 = vsel %vm3878, %v3865, %v3492
          %v3900 = vsel %vm3878, %v3867, %v3494
          %v3902 = vsel %vm3878, %v3869, %v3496
          %v3904 = vsel %vm3878, %v3871, %v3498
          %v3906 = vsel %vm3878, %v3873, %v3500
          %v3908 = vsel %vm3878, %v3875, %v3502
          %v3910 = vsel %vm3878, %v3877, %v3504
          %vm3911 = vcmask 457728
          %v3913 = vsel %vm3911, %v3880, %v3586
          %v3915 = vsel %vm3911, %v3882, %v3588
          %v3917 = vsel %vm3911, %v3884, %v3590
          %v3919 = vsel %vm3911, %v3886, %v3592
          %v3921 = vsel %vm3911, %v3888, %v3594
          %v3923 = vsel %vm3911, %v3890, %v3596
          %v3925 = vsel %vm3911, %v3892, %v3598
          %v3927 = vsel %vm3911, %v3894, %v3600
          %v3929 = vsel %vm3911, %v3896, %v3602
          %v3931 = vsel %vm3911, %v3898, %v3604
          %v3933 = vsel %vm3911, %v3900, %v3606
          %v3935 = vsel %vm3911, %v3902, %v3608
          %v3937 = vsel %vm3911, %v3904, %v3610
          %v3939 = vsel %vm3911, %v3906, %v3612
          %v3941 = vsel %vm3911, %v3908, %v3614
          %v3943 = vsel %vm3911, %v3910, %v3616
          %vm3944 = vcmask 523264
          %v3946 = vsel %vm3944, %v3913, %v3666
          %v3948 = vsel %vm3944, %v3915, %v3668
          %v3950 = vsel %vm3944, %v3917, %v3670
          %v3952 = vsel %vm3944, %v3919, %v3672
          %v3954 = vsel %vm3944, %v3921, %v3674
          %v3956 = vsel %vm3944, %v3923, %v3676
          %v3958 = vsel %vm3944, %v3925, %v3678
          %v3960 = vsel %vm3944, %v3927, %v3680
          %v3962 = vsel %vm3944, %v3929, %v3682
          %v3964 = vsel %vm3944, %v3931, %v3684
          %v3966 = vsel %vm3944, %v3933, %v3686
          %v3968 = vsel %vm3944, %v3935, %v3688
          %v3970 = vsel %vm3944, %v3937, %v3690
          %v3972 = vsel %vm3944, %v3939, %v3692
          %v3974 = vsel %vm3944, %v3941, %v3694
          %v3976 = vsel %vm3944, %v3943, %v3696
          %v3978 = vlaneseq
          %v3979 = vshrl.u32 %v3978, 7
          %v3980 = vsub.s32 0, %v3979
          %v3981 = vrot.slane %v1198, %v3980
          %v3992 = vunpack.c.l.b16 %v1189
          %v3993 = vunpack.c.l.b16 %v1190
          %v3994 = vunpack.c.l.b16 %v1191
          %v3995 = vunpack.c.l.b16 %v1192
          %v3996 = vunpack.c.l.b16 %v1193
          %v3997 = vunpack.c.l.b16 %v1194
          %v3998 = vunpack.c.l.b16 %v1195
          %v3999 = vunpack.c.l.b16 %v1196
          %v4000 = vunpack.c.l.b16 %v1197
          %v4001 = vpack.c.b16 %v3993, %v3992
          %v4002 = vpack.c.b16 %v3995, %v3994
          %v4003 = vpack.c.b16 %v3997, %v3996
          %v4004 = vpack.c.b16 %v3999, %v3998
          %v4005 = vpack.c.b16 %v4000, %v4000
          %vm4010 = vcmask 588800
          %v4011 = vsel %vm4010, %v3946, 0
          %v4013 = vsel %vm4010, %v3948, 0
          %v4015 = vsel %vm4010, %v3950, 0
          %v4017 = vsel %vm4010, %v3952, 0
          %v4019 = vsel %vm4010, %v3954, 0
          %v4021 = vsel %vm4010, %v3956, 0
          %v4023 = vsel %vm4010, %v3958, 0
          %v4025 = vsel %vm4010, %v3960, 0
          %v4027 = vsel %vm4010, %v3962, 0
          %v4029 = vsel %vm4010, %v3964, 0
          %v4031 = vsel %vm4010, %v3966, 0
          %v4033 = vsel %vm4010, %v3968, 0
          %v4035 = vsel %vm4010, %v3970, 0
          %v4037 = vsel %vm4010, %v3972, 0
          %v4039 = vsel %vm4010, %v3974, 0
          %v4041 = vsel %vm4010, %v3976, 0
          %vm4043 = vcmask 1043456
          %v4045 = vsel %vm4043, %v4005, 0
          %4047 = vmatprep.subr.bf16.mxu0 0
          %4048 = vmatpush1.bf16.msra.mxu0 0
          %4049 = vmatprep.subr.bf16.mxu0 0
          %4050 = vmatpush1.bf16.msra.mxu0 0
          %4051 = vmatprep.subr.bf16.mxu0 0
          %4052 = vmatpush1.bf16.msra.mxu0 0
          %4053 = vmatprep.subr.bf16.mxu0 0
          %4054 = vmatpush1.bf16.msra.mxu0 %v4045
          %4055 = vmatprep.subr.bf16.mxu0 0
          %4056 = vmatpush1.bf16.msra.mxu0 %v4004
          %4057 = vmatprep.subr.bf16.mxu0 0
          %4058 = vmatpush1.bf16.msra.mxu0 %v4003
          %4059 = vmatprep.subr.bf16.mxu0 0
          %4060 = vmatpush1.bf16.msra.mxu0 %v4002
          %4061 = vmatprep.subr.bf16.mxu0 0
          %4062 = vmatpush1.bf16.msra.mxu0 %v4001
          %4063 = vmatprep.subr.bf16.mxu0 0
          %4064 = vmatpush2.bf16.msra.mxu0 0
          %4065 = vmatprep.subr.bf16.mxu0 0
          %4066 = vmatpush2.bf16.msra.mxu0 0
          %4067 = vmatprep.subr.bf16.mxu0 0
          %4068 = vmatpush2.bf16.msra.mxu0 0
          %4069 = vmatprep.subr.bf16.mxu0 0
          %4070 = vmatpush2.bf16.msra.mxu0 0
          %4071 = vmatprep.subr.bf16.mxu0 0
          %4072 = vmatpush2.bf16.msra.mxu0 0
          %4073 = vmatprep.subr.bf16.mxu0 0
          %4074 = vmatpush2.bf16.msra.mxu0 0
          %4075 = vmatprep.subr.bf16.mxu0 0
          %4076 = vmatpush2.bf16.msra.mxu0 0
          %4077 = vmatprep.subr.bf16.mxu0 0
          %4078 = vmatpush2.bf16.msra.mxu0 0
          %4079 = vmatprep.mubr.bf16.mxu0 0
          %4080 = vmatmul.mubr.bf16.gmra.mxu0 %v4011
          %v4081 = vpop.f32.mrf.mxu0
          %v4082 = vadd.f32 %v3981, %v4081
          %v4083 = vpop.f32.mrf.mxu0
          %v4084 = vpop.f32.mrf.mxu0
          %v4085 = vadd.f32 %v3981, %v4084
          %v4086 = vpop.f32.mrf.mxu0
          %4087 = vmatprep.mubr.bf16.mxu0 0
          %4088 = vmatmul.mubr.bf16.gmra.mxu0 %v4013
          %v4089 = vpop.f32.mrf.mxu0
          %v4090 = vadd.f32 %v3981, %v4089
          %v4091 = vpop.f32.mrf.mxu0
          %v4092 = vpop.f32.mrf.mxu0
          %v4093 = vadd.f32 %v3981, %v4092
          %v4094 = vpop.f32.mrf.mxu0
          %4095 = vmatprep.mubr.bf16.mxu0 0
          %4096 = vmatmul.mubr.bf16.gmra.mxu0 %v4015
          %v4097 = vpop.f32.mrf.mxu0
          %v4098 = vadd.f32 %v3981, %v4097
          %v4099 = vpop.f32.mrf.mxu0
          %v4100 = vpop.f32.mrf.mxu0
          %v4101 = vadd.f32 %v3981, %v4100
          %v4102 = vpop.f32.mrf.mxu0
          %4103 = vmatprep.mubr.bf16.mxu0 0
          %4104 = vmatmul.mubr.bf16.gmra.mxu0 %v4017
          %v4105 = vpop.f32.mrf.mxu0
          %v4106 = vadd.f32 %v3981, %v4105
          %v4107 = vpop.f32.mrf.mxu0
          %v4108 = vpop.f32.mrf.mxu0
          %v4109 = vadd.f32 %v3981, %v4108
          %v4110 = vpop.f32.mrf.mxu0
          %4111 = vmatprep.mubr.bf16.mxu0 0
          %4112 = vmatmul.mubr.bf16.gmra.mxu0 %v4019
          %v4113 = vpop.f32.mrf.mxu0
          %v4114 = vadd.f32 %v3981, %v4113
          %v4115 = vpop.f32.mrf.mxu0
          %v4116 = vpop.f32.mrf.mxu0
          %v4117 = vadd.f32 %v3981, %v4116
          %v4118 = vpop.f32.mrf.mxu0
          %4119 = vmatprep.mubr.bf16.mxu0 0
          %4120 = vmatmul.mubr.bf16.gmra.mxu0 %v4021
          %v4121 = vpop.f32.mrf.mxu0
          %v4122 = vadd.f32 %v3981, %v4121
          %v4123 = vpop.f32.mrf.mxu0
          %v4124 = vpop.f32.mrf.mxu0
          %v4125 = vadd.f32 %v3981, %v4124
          %v4126 = vpop.f32.mrf.mxu0
          %4127 = vmatprep.mubr.bf16.mxu0 0
          %4128 = vmatmul.mubr.bf16.gmra.mxu0 %v4023
          %v4129 = vpop.f32.mrf.mxu0
          %v4130 = vadd.f32 %v3981, %v4129
          %v4131 = vpop.f32.mrf.mxu0
          %v4132 = vpop.f32.mrf.mxu0
          %v4133 = vadd.f32 %v3981, %v4132
          %v4134 = vpop.f32.mrf.mxu0
          %4135 = vmatprep.mubr.bf16.mxu0 0
          %4136 = vmatmul.mubr.bf16.gmra.mxu0 %v4025
          %v4137 = vpop.f32.mrf.mxu0
          %v4138 = vadd.f32 %v3981, %v4137
          %v4139 = vpop.f32.mrf.mxu0
          %v4140 = vpop.f32.mrf.mxu0
          %v4141 = vadd.f32 %v3981, %v4140
          %v4142 = vpop.f32.mrf.mxu0
          %4143 = vmatprep.mubr.bf16.mxu0 0
          %4144 = vmatmul.mubr.bf16.gmra.mxu0 %v4027
          %v4145 = vpop.f32.mrf.mxu0
          %v4146 = vadd.f32 %v3981, %v4145
          %v4147 = vpop.f32.mrf.mxu0
          %v4148 = vpop.f32.mrf.mxu0
          %v4149 = vadd.f32 %v3981, %v4148
          %v4150 = vpop.f32.mrf.mxu0
          %4151 = vmatprep.mubr.bf16.mxu0 0
          %4152 = vmatmul.mubr.bf16.gmra.mxu0 %v4029
          %v4153 = vpop.f32.mrf.mxu0
          %v4154 = vadd.f32 %v3981, %v4153
          %v4155 = vpop.f32.mrf.mxu0
          %v4156 = vpop.f32.mrf.mxu0
          %v4157 = vadd.f32 %v3981, %v4156
          %v4158 = vpop.f32.mrf.mxu0
          %4159 = vmatprep.mubr.bf16.mxu0 0
          %4160 = vmatmul.mubr.bf16.gmra.mxu0 %v4031
          %v4161 = vpop.f32.mrf.mxu0
          %v4162 = vadd.f32 %v3981, %v4161
          %v4163 = vpop.f32.mrf.mxu0
          %v4164 = vpop.f32.mrf.mxu0
          %v4165 = vadd.f32 %v3981, %v4164
          %v4166 = vpop.f32.mrf.mxu0
          %4167 = vmatprep.mubr.bf16.mxu0 0
          %4168 = vmatmul.mubr.bf16.gmra.mxu0 %v4033
          %v4169 = vpop.f32.mrf.mxu0
          %v4170 = vadd.f32 %v3981, %v4169
          %v4171 = vpop.f32.mrf.mxu0
          %v4172 = vpop.f32.mrf.mxu0
          %v4173 = vadd.f32 %v3981, %v4172
          %v4174 = vpop.f32.mrf.mxu0
          %4175 = vmatprep.mubr.bf16.mxu0 0
          %4176 = vmatmul.mubr.bf16.gmra.mxu0 %v4035
          %v4177 = vpop.f32.mrf.mxu0
          %v4178 = vadd.f32 %v3981, %v4177
          %v4179 = vpop.f32.mrf.mxu0
          %v4180 = vpop.f32.mrf.mxu0
          %v4181 = vadd.f32 %v3981, %v4180
          %v4182 = vpop.f32.mrf.mxu0
          %4183 = vmatprep.mubr.bf16.mxu0 0
          %4184 = vmatmul.mubr.bf16.gmra.mxu0 %v4037
          %v4185 = vpop.f32.mrf.mxu0
          %v4186 = vadd.f32 %v3981, %v4185
          %v4187 = vpop.f32.mrf.mxu0
          %v4188 = vpop.f32.mrf.mxu0
          %v4189 = vadd.f32 %v3981, %v4188
          %v4190 = vpop.f32.mrf.mxu0
          %4191 = vmatprep.mubr.bf16.mxu0 0
          %4192 = vmatmul.mubr.bf16.gmra.mxu0 %v4039
          %v4193 = vpop.f32.mrf.mxu0
          %v4194 = vadd.f32 %v3981, %v4193
          %v4195 = vpop.f32.mrf.mxu0
          %v4196 = vpop.f32.mrf.mxu0
          %v4197 = vadd.f32 %v3981, %v4196
          %v4198 = vpop.f32.mrf.mxu0
          %4199 = vmatprep.mubr.bf16.mxu0 0
          %4200 = vmatmul.mubr.bf16.gmra.mxu0 %v4041
          %v4201 = vpop.f32.mrf.mxu0
          %v4202 = vadd.f32 %v3981, %v4201
          %v4203 = vpop.f32.mrf.mxu0
          %v4204 = vpop.f32.mrf.mxu0
          %v4205 = vadd.f32 %v3981, %v4204
          %v4206 = vpop.f32.mrf.mxu0
          %4207 = vdwg.mxu0
          %s4208 = smul.u32 %s1215, 32
          %s4209 = scalar_lea.vmem %s250, %s4208 [#allocation5]
          %4210 = vst.msk [vmem:[%s4209] sm:$0xff] %vm3944, %v4082
          %4211 = vst.msk [vmem:[%s4209 + $0x8] sm:$0xff] %vm3944, %v4085
          %4212 = vst.msk [vmem:[%s4209 + $0x10] sm:$0xff] %vm3944, %v4090
          %4213 = vst.msk [vmem:[%s4209 + $0x18] sm:$0xff] %vm3944, %v4093
          %4214 = vst.msk [vmem:[%s4209 + $0x20] sm:$0xff] %vm3944, %v4098
          %4215 = vst.msk [vmem:[%s4209 + $0x28] sm:$0xff] %vm3944, %v4101
          %4216 = vst.msk [vmem:[%s4209 + $0x30] sm:$0xff] %vm3944, %v4106
          %4217 = vst.msk [vmem:[%s4209 + $0x38] sm:$0xff] %vm3944, %v4109
          %4218 = vst.msk [vmem:[%s4209 + $0x40] sm:$0xff] %vm3944, %v4114
          %4219 = vst.msk [vmem:[%s4209 + $0x48] sm:$0xff] %vm3944, %v4117
          %4220 = vst.msk [vmem:[%s4209 + $0x50] sm:$0xff] %vm3944, %v4122
          %4221 = vst.msk [vmem:[%s4209 + $0x58] sm:$0xff] %vm3944, %v4125
          %4222 = vst.msk [vmem:[%s4209 + $0x60] sm:$0xff] %vm3944, %v4130
          %4223 = vst.msk [vmem:[%s4209 + $0x68] sm:$0xff] %vm3944, %v4133
          %4224 = vst.msk [vmem:[%s4209 + $0x70] sm:$0xff] %vm3944, %v4138
          %4225 = vst.msk [vmem:[%s4209 + $0x78] sm:$0xff] %vm3944, %v4141
          %4226 = vst.msk [vmem:[%s4209 + $0x80] sm:$0xff] %vm3944, %v4146
          %4227 = vst.msk [vmem:[%s4209 + $0x88] sm:$0xff] %vm3944, %v4149
          %4228 = vst.msk [vmem:[%s4209 + $0x90] sm:$0xff] %vm3944, %v4154
          %4229 = vst.msk [vmem:[%s4209 + $0x98] sm:$0xff] %vm3944, %v4157
          %4230 = vst.msk [vmem:[%s4209 + $0xa0] sm:$0xff] %vm3944, %v4162
          %4231 = vst.msk [vmem:[%s4209 + $0xa8] sm:$0xff] %vm3944, %v4165
          %4232 = vst.msk [vmem:[%s4209 + $0xb0] sm:$0xff] %vm3944, %v4170
          %4233 = vst.msk [vmem:[%s4209 + $0xb8] sm:$0xff] %vm3944, %v4173
          %4234 = vst.msk [vmem:[%s4209 + $0xc0] sm:$0xff] %vm3944, %v4178
          %4235 = vst.msk [vmem:[%s4209 + $0xc8] sm:$0xff] %vm3944, %v4181
          %4236 = vst.msk [vmem:[%s4209 + $0xd0] sm:$0xff] %vm3944, %v4186
          %4237 = vst.msk [vmem:[%s4209 + $0xd8] sm:$0xff] %vm3944, %v4189
          %4238 = vst.msk [vmem:[%s4209 + $0xe0] sm:$0xff] %vm3944, %v4194
          %4239 = vst.msk [vmem:[%s4209 + $0xe8] sm:$0xff] %vm3944, %v4197
          %4240 = vst.msk [vmem:[%s4209 + $0xf0] sm:$0xff] %vm3944, %v4202
          %4241 = vst.msk [vmem:[%s4209 + $0xf8] sm:$0xff] %vm3944, %v4205
          %v4242 = vpack.c.bf16 %v4085, %v4082
          %v4243 = vpack.c.bf16 %v4093, %v4090
          %v4244 = vpack.c.bf16 %v4101, %v4098
          %v4245 = vpack.c.bf16 %v4109, %v4106
          %v4246 = vpack.c.bf16 %v4117, %v4114
          %v4247 = vpack.c.bf16 %v4125, %v4122
          %v4248 = vpack.c.bf16 %v4133, %v4130
          %v4249 = vpack.c.bf16 %v4141, %v4138
          %v4250 = vpack.c.bf16 %v4149, %v4146
          %v4251 = vpack.c.bf16 %v4157, %v4154
          %v4252 = vpack.c.bf16 %v4165, %v4162
          %v4253 = vpack.c.bf16 %v4173, %v4170
          %v4254 = vpack.c.bf16 %v4181, %v4178
          %v4255 = vpack.c.bf16 %v4189, %v4186
          %v4256 = vpack.c.bf16 %v4197, %v4194
          %v4257 = vpack.c.bf16 %v4205, %v4202
          %v4274 = vunpack.c.l.b16 %v4242
          %v4275 = vunpack.c.h.b16 %v4242
          %v4276 = vunpack.c.l.b16 %v4243
          %v4277 = vunpack.c.h.b16 %v4243
          %v4278 = vunpack.c.l.b16 %v4244
          %v4279 = vunpack.c.h.b16 %v4244
          %v4280 = vunpack.c.l.b16 %v4245
          %v4281 = vunpack.c.h.b16 %v4245
          %v4282 = vunpack.c.l.b16 %v4246
          %v4283 = vunpack.c.h.b16 %v4246
          %v4284 = vunpack.c.l.b16 %v4247
          %v4285 = vunpack.c.h.b16 %v4247
          %v4286 = vunpack.c.l.b16 %v4248
          %v4287 = vunpack.c.h.b16 %v4248
          %v4288 = vunpack.c.l.b16 %v4249
          %v4289 = vunpack.c.h.b16 %v4249
          %v4290 = vunpack.c.l.b16 %v4250
          %v4291 = vunpack.c.h.b16 %v4250
          %v4292 = vunpack.c.l.b16 %v4251
          %v4293 = vunpack.c.h.b16 %v4251
          %v4294 = vunpack.c.l.b16 %v4252
          %v4295 = vunpack.c.h.b16 %v4252
          %v4296 = vunpack.c.l.b16 %v4253
          %v4297 = vunpack.c.h.b16 %v4253
          %v4298 = vunpack.c.l.b16 %v4254
          %v4299 = vunpack.c.h.b16 %v4254
          %v4300 = vunpack.c.l.b16 %v4255
          %v4301 = vunpack.c.h.b16 %v4255
          %v4302 = vunpack.c.l.b16 %v4256
          %v4303 = vunpack.c.h.b16 %v4256
          %v4304 = vunpack.c.l.b16 %v4257
          %v4305 = vunpack.c.h.b16 %v4257
          %v4306 = vpack.c.b16 %v4274, %v4274
          %v4307 = vpack.c.b16 %v4275, %v4275
          %v4308 = vpack.c.b16 %v4276, %v4276
          %v4309 = vpack.c.b16 %v4277, %v4277
          %v4310 = vpack.c.b16 %v4278, %v4278
          %v4311 = vpack.c.b16 %v4279, %v4279
          %v4312 = vpack.c.b16 %v4280, %v4280
          %v4313 = vpack.c.b16 %v4281, %v4281
          %v4314 = vpack.c.b16 %v4282, %v4282
          %v4315 = vpack.c.b16 %v4283, %v4283
          %v4316 = vpack.c.b16 %v4284, %v4284
          %v4317 = vpack.c.b16 %v4285, %v4285
          %v4318 = vpack.c.b16 %v4286, %v4286
          %v4319 = vpack.c.b16 %v4287, %v4287
          %v4320 = vpack.c.b16 %v4288, %v4288
          %v4321 = vpack.c.b16 %v4289, %v4289
          %v4322 = vpack.c.b16 %v4290, %v4290
          %v4323 = vpack.c.b16 %v4291, %v4291
          %v4324 = vpack.c.b16 %v4292, %v4292
          %v4325 = vpack.c.b16 %v4293, %v4293
          %v4326 = vpack.c.b16 %v4294, %v4294
          %v4327 = vpack.c.b16 %v4295, %v4295
          %v4328 = vpack.c.b16 %v4296, %v4296
          %v4329 = vpack.c.b16 %v4297, %v4297
          %v4330 = vpack.c.b16 %v4298, %v4298
          %v4331 = vpack.c.b16 %v4299, %v4299
          %v4332 = vpack.c.b16 %v4300, %v4300
          %v4333 = vpack.c.b16 %v4301, %v4301
          %v4334 = vpack.c.b16 %v4302, %v4302
          %v4335 = vpack.c.b16 %v4303, %v4303
          %v4336 = vpack.c.b16 %v4304, %v4304
          %v4337 = vpack.c.b16 %v4305, %v4305
          %s4370 = smul.addr %s1786, 4
          %s4371 = scalar_lea.vmem [#allocation3], %s4370
          %4372 = vst.msk [vmem:[%s4371 + $0x4] sm:$0xf] %vm342, %v4306
          %4373 = vst.msk [vmem:[%s4371 + $0x8] sm:$0xf] %vm342, %v4307
          %4374 = vst.msk [vmem:[%s4371 + $0xc] sm:$0xf] %vm342, %v4308
          %4375 = vst.msk [vmem:[%s4371 + $0x10] sm:$0xf] %vm342, %v4309
          %4376 = vst.msk [vmem:[%s4371 + $0x1c] sm:$0xf] %vm342, %v4310
          %4377 = vst.msk [vmem:[%s4371 + $0x20] sm:$0xf] %vm342, %v4311
          %4378 = vst.msk [vmem:[%s4371 + $0x24] sm:$0xf] %vm342, %v4312
          %4379 = vst.msk [vmem:[%s4371 + $0x28] sm:$0xf] %vm342, %v4313
          %4380 = vst.msk [vmem:[%s4371 + $0x34] sm:$0xf] %vm342, %v4314
          %4381 = vst.msk [vmem:[%s4371 + $0x38] sm:$0xf] %vm342, %v4315
          %4382 = vst.msk [vmem:[%s4371 + $0x3c] sm:$0xf] %vm342, %v4316
          %4383 = vst.msk [vmem:[%s4371 + $0x40] sm:$0xf] %vm342, %v4317
          %4384 = vst.msk [vmem:[%s4371 + $0x4c] sm:$0xf] %vm342, %v4318
          %4385 = vst.msk [vmem:[%s4371 + $0x50] sm:$0xf] %vm342, %v4319
          %4386 = vst.msk [vmem:[%s4371 + $0x54] sm:$0xf] %vm342, %v4320
          %4387 = vst.msk [vmem:[%s4371 + $0x58] sm:$0xf] %vm342, %v4321
          %4388 = vst.msk [vmem:[%s4371 + $0x64] sm:$0xf] %vm342, %v4322
          %4389 = vst.msk [vmem:[%s4371 + $0x68] sm:$0xf] %vm342, %v4323
          %4390 = vst.msk [vmem:[%s4371 + $0x6c] sm:$0xf] %vm342, %v4324
          %4391 = vst.msk [vmem:[%s4371 + $0x70] sm:$0xf] %vm342, %v4325
          %4392 = vst.msk [vmem:[%s4371 + $0x7c] sm:$0xf] %vm342, %v4326
          %4393 = vst.msk [vmem:[%s4371 + $0x80] sm:$0xf] %vm342, %v4327
          %4394 = vst.msk [vmem:[%s4371 + $0x84] sm:$0xf] %vm342, %v4328
          %4395 = vst.msk [vmem:[%s4371 + $0x88] sm:$0xf] %vm342, %v4329
          %4396 = vst.msk [vmem:[%s4371 + $0x94] sm:$0xf] %vm342, %v4330
          %4397 = vst.msk [vmem:[%s4371 + $0x98] sm:$0xf] %vm342, %v4331
          %4398 = vst.msk [vmem:[%s4371 + $0x9c] sm:$0xf] %vm342, %v4332
          %4399 = vst.msk [vmem:[%s4371 + $0xa0] sm:$0xf] %vm342, %v4333
          %4400 = vst.msk [vmem:[%s4371 + $0xac] sm:$0xf] %vm342, %v4334
          %4401 = vst.msk [vmem:[%s4371 + $0xb0] sm:$0xf] %vm342, %v4335
          %4402 = vst.msk [vmem:[%s4371 + $0xb4] sm:$0xf] %vm342, %v4336
          %4403 = vst.msk [vmem:[%s4371 + $0xb8] sm:$0xf] %vm342, %v4337
        $region45: #{decoder_resf_forward.7} parent=39 // loop_footer
          %s1214 = sadd.s32 1, %s1210
        $region46: #{decoder_resf_forward.7} parent=39 // loop_footer_branch
          %1209 = sbr.rel target = $region42
        $region47: #{decoder_resf_forward.7} parent=39 // loop_exit
          _
        loop: start=0, step=1, limit=4
        $region48: #{decoder_resf_forward.7} parent=39 // loop_pre_header
          _
        $region49: #{decoder_resf_forward.7} parent=39 // loop_header
          %s4405 = sphi 0, %s4409
          %p4406 = scmp.ge.s32.totalorder %s4405, 4
        $region50: #{decoder_resf_forward.7} parent=39 // loop_header_branch
          %4408 = sbr.rel (%p4406) target = $region54
        $region51: #{decoder_resf_forward.7} parent=39 // loop_body
          %s4410 = smul.u32 %s4405, 8
          %s4411 = smul.u32 %s4410, 6
          %s4412 = smul.addr %s4411, 4
          %s4413 = scalar_lea.vmem [#allocation3], %s4412
          %v4414 = vld [vmem:[%s4413] sm:$0x8]
          %v4415 = vld [vmem:[%s4413 + $0x4] sm:$0xf]
          %v4416 = vld [vmem:[%s4413 + $0x8] sm:$0xf]
          %v4417 = vld [vmem:[%s4413 + $0xc] sm:$0xf]
          %v4418 = vld [vmem:[%s4413 + $0x10] sm:$0xf]
          %v4419 = vld [vmem:[%s4413 + $0x18] sm:$0x8]
          %v4420 = vld [vmem:[%s4413 + $0x1c] sm:$0xf]
          %v4421 = vld [vmem:[%s4413 + $0x20] sm:$0xf]
          %v4422 = vld [vmem:[%s4413 + $0x24] sm:$0xf]
          %v4423 = vld [vmem:[%s4413 + $0x28] sm:$0xf]
          %v4424 = vld [vmem:[%s4413 + $0x30] sm:$0x8]
          %v4425 = vld [vmem:[%s4413 + $0x34] sm:$0xf]
          %v4426 = vld [vmem:[%s4413 + $0x38] sm:$0xf]
          %v4427 = vld [vmem:[%s4413 + $0x3c] sm:$0xf]
          %v4428 = vld [vmem:[%s4413 + $0x40] sm:$0xf]
          %v4429 = vld [vmem:[%s4413 + $0x48] sm:$0x8]
          %v4430 = vld [vmem:[%s4413 + $0x4c] sm:$0xf]
          %v4431 = vld [vmem:[%s4413 + $0x50] sm:$0xf]
          %v4432 = vld [vmem:[%s4413 + $0x54] sm:$0xf]
          %v4433 = vld [vmem:[%s4413 + $0x58] sm:$0xf]
          %v4434 = vld [vmem:[%s4413 + $0x60] sm:$0x8]
          %v4435 = vld [vmem:[%s4413 + $0x64] sm:$0xf]
          %v4436 = vld [vmem:[%s4413 + $0x68] sm:$0xf]
          %v4437 = vld [vmem:[%s4413 + $0x6c] sm:$0xf]
          %v4438 = vld [vmem:[%s4413 + $0x70] sm:$0xf]
          %v4439 = vld [vmem:[%s4413 + $0x78] sm:$0x8]
          %v4440 = vld [vmem:[%s4413 + $0x7c] sm:$0xf]
          %v4441 = vld [vmem:[%s4413 + $0x80] sm:$0xf]
          %v4442 = vld [vmem:[%s4413 + $0x84] sm:$0xf]
          %v4443 = vld [vmem:[%s4413 + $0x88] sm:$0xf]
          %v4444 = vld [vmem:[%s4413 + $0x90] sm:$0x8]
          %v4445 = vld [vmem:[%s4413 + $0x94] sm:$0xf]
          %v4446 = vld [vmem:[%s4413 + $0x98] sm:$0xf]
          %v4447 = vld [vmem:[%s4413 + $0x9c] sm:$0xf]
          %v4448 = vld [vmem:[%s4413 + $0xa0] sm:$0xf]
          %v4449 = vld [vmem:[%s4413 + $0xa8] sm:$0x8]
          %v4450 = vld [vmem:[%s4413 + $0xac] sm:$0xf]
          %v4451 = vld [vmem:[%s4413 + $0xb0] sm:$0xf]
          %v4452 = vld [vmem:[%s4413 + $0xb4] sm:$0xf]
          %v4453 = vld [vmem:[%s4413 + $0xb8] sm:$0xf]
          %v4454 = vunpack.c.l.bf16 %v4414
          %v4455 = vunpack.c.l.bf16 %v4415
          %v4456 = vunpack.c.l.bf16 %v4416
          %v4457 = vunpack.c.l.bf16 %v4417
          %v4458 = vunpack.c.l.bf16 %v4418
          %v4459 = vunpack.c.l.bf16 %v4419
          %v4460 = vunpack.c.l.bf16 %v4420
          %v4461 = vunpack.c.l.bf16 %v4421
          %v4462 = vunpack.c.l.bf16 %v4422
          %v4463 = vunpack.c.l.bf16 %v4423
          %v4464 = vunpack.c.l.bf16 %v4424
          %v4465 = vunpack.c.l.bf16 %v4425
          %v4466 = vunpack.c.l.bf16 %v4426
          %v4467 = vunpack.c.l.bf16 %v4427
          %v4468 = vunpack.c.l.bf16 %v4428
          %v4469 = vunpack.c.l.bf16 %v4429
          %v4470 = vunpack.c.l.bf16 %v4430
          %v4471 = vunpack.c.l.bf16 %v4431
          %v4472 = vunpack.c.l.bf16 %v4432
          %v4473 = vunpack.c.l.bf16 %v4433
          %v4474 = vunpack.c.l.bf16 %v4434
          %v4475 = vunpack.c.l.bf16 %v4435
          %v4476 = vunpack.c.l.bf16 %v4436
          %v4477 = vunpack.c.l.bf16 %v4437
          %v4478 = vunpack.c.l.bf16 %v4438
          %v4479 = vunpack.c.l.bf16 %v4439
          %v4480 = vunpack.c.l.bf16 %v4440
          %v4481 = vunpack.c.l.bf16 %v4441
          %v4482 = vunpack.c.l.bf16 %v4442
          %v4483 = vunpack.c.l.bf16 %v4443
          %v4484 = vunpack.c.l.bf16 %v4444
          %v4485 = vunpack.c.l.bf16 %v4445
          %v4486 = vunpack.c.l.bf16 %v4446
          %v4487 = vunpack.c.l.bf16 %v4447
          %v4488 = vunpack.c.l.bf16 %v4448
          %v4489 = vunpack.c.l.bf16 %v4449
          %v4490 = vunpack.c.l.bf16 %v4450
          %v4491 = vunpack.c.l.bf16 %v4451
          %v4492 = vunpack.c.l.bf16 %v4452
          %v4493 = vunpack.c.l.bf16 %v4453
          %v4494 = vlaneseq
          %v4495 = vshrl.u32 %v4494, 7
          %v4496 = vsub.s32 0, %v4495
          %v4497 = vrot.slane %v1199, %v4496
          %v4498 = vmul.f32 %v4454, %v4497
          %v4499 = vmul.f32 %v4455, %v4497
          %v4500 = vmul.f32 %v4456, %v4497
          %v4501 = vmul.f32 %v4457, %v4497
          %v4502 = vmul.f32 %v4458, %v4497
          %v4503 = vmul.f32 %v4459, %v4497
          %v4504 = vmul.f32 %v4460, %v4497
          %v4505 = vmul.f32 %v4461, %v4497
          %v4506 = vmul.f32 %v4462, %v4497
          %v4507 = vmul.f32 %v4463, %v4497
          %v4508 = vmul.f32 %v4464, %v4497
          %v4509 = vmul.f32 %v4465, %v4497
          %v4510 = vmul.f32 %v4466, %v4497
          %v4511 = vmul.f32 %v4467, %v4497
          %v4512 = vmul.f32 %v4468, %v4497
          %v4513 = vmul.f32 %v4469, %v4497
          %v4514 = vmul.f32 %v4470, %v4497
          %v4515 = vmul.f32 %v4471, %v4497
          %v4516 = vmul.f32 %v4472, %v4497
          %v4517 = vmul.f32 %v4473, %v4497
          %v4518 = vmul.f32 %v4474, %v4497
          %v4519 = vmul.f32 %v4475, %v4497
          %v4520 = vmul.f32 %v4476, %v4497
          %v4521 = vmul.f32 %v4477, %v4497
          %v4522 = vmul.f32 %v4478, %v4497
          %v4523 = vmul.f32 %v4479, %v4497
          %v4524 = vmul.f32 %v4480, %v4497
          %v4525 = vmul.f32 %v4481, %v4497
          %v4526 = vmul.f32 %v4482, %v4497
          %v4527 = vmul.f32 %v4483, %v4497
          %v4528 = vmul.f32 %v4484, %v4497
          %v4529 = vmul.f32 %v4485, %v4497
          %v4530 = vmul.f32 %v4486, %v4497
          %v4531 = vmul.f32 %v4487, %v4497
          %v4532 = vmul.f32 %v4488, %v4497
          %v4533 = vmul.f32 %v4489, %v4497
          %v4534 = vmul.f32 %v4490, %v4497
          %v4535 = vmul.f32 %v4491, %v4497
          %v4536 = vmul.f32 %v4492, %v4497
          %v4537 = vmul.f32 %v4493, %v4497
          %v4538 = vadd.f32 %v4498, 0.0
          %v4539 = vadd.f32 %v4499, 0.0
          %v4540 = vadd.f32 %v4500, 0.0
          %v4541 = vadd.f32 %v4501, 0.0
          %v4542 = vadd.f32 %v4502, 0.0
          %v4543 = vadd.f32 %v4503, 0.0
          %v4544 = vadd.f32 %v4504, 0.0
          %v4545 = vadd.f32 %v4505, 0.0
          %v4546 = vadd.f32 %v4506, 0.0
          %v4547 = vadd.f32 %v4507, 0.0
          %v4548 = vadd.f32 %v4508, 0.0
          %v4549 = vadd.f32 %v4509, 0.0
          %v4550 = vadd.f32 %v4510, 0.0
          %v4551 = vadd.f32 %v4511, 0.0
          %v4552 = vadd.f32 %v4512, 0.0
          %v4553 = vadd.f32 %v4513, 0.0
          %v4554 = vadd.f32 %v4514, 0.0
          %v4555 = vadd.f32 %v4515, 0.0
          %v4556 = vadd.f32 %v4516, 0.0
          %v4557 = vadd.f32 %v4517, 0.0
          %v4558 = vadd.f32 %v4518, 0.0
          %v4559 = vadd.f32 %v4519, 0.0
          %v4560 = vadd.f32 %v4520, 0.0
          %v4561 = vadd.f32 %v4521, 0.0
          %v4562 = vadd.f32 %v4522, 0.0
          %v4563 = vadd.f32 %v4523, 0.0
          %v4564 = vadd.f32 %v4524, 0.0
          %v4565 = vadd.f32 %v4525, 0.0
          %v4566 = vadd.f32 %v4526, 0.0
          %v4567 = vadd.f32 %v4527, 0.0
          %v4568 = vadd.f32 %v4528, 0.0
          %v4569 = vadd.f32 %v4529, 0.0
          %v4570 = vadd.f32 %v4530, 0.0
          %v4571 = vadd.f32 %v4531, 0.0
          %v4572 = vadd.f32 %v4532, 0.0
          %v4573 = vadd.f32 %v4533, 0.0
          %v4574 = vadd.f32 %v4534, 0.0
          %v4575 = vadd.f32 %v4535, 0.0
          %v4576 = vadd.f32 %v4536, 0.0
          %v4577 = vadd.f32 %v4537, 0.0
          %v4578 = vlaneseq
          %v4579 = vshrl.u32 %v4578, 7
          %v4580 = vsub.s32 0, %v4579
          %v4581 = vrot.slane %v1200, %v4580
          %v4582 = vmul.f32 %v4455, %v4581
          %v4583 = vmul.f32 %v4456, %v4581
          %v4584 = vmul.f32 %v4457, %v4581
          %v4585 = vmul.f32 %v4458, %v4581
          %v4586 = vmul.f32 %v4460, %v4581
          %v4587 = vmul.f32 %v4461, %v4581
          %v4588 = vmul.f32 %v4462, %v4581
          %v4589 = vmul.f32 %v4463, %v4581
          %v4590 = vmul.f32 %v4465, %v4581
          %v4591 = vmul.f32 %v4466, %v4581
          %v4592 = vmul.f32 %v4467, %v4581
          %v4593 = vmul.f32 %v4468, %v4581
          %v4594 = vmul.f32 %v4470, %v4581
          %v4595 = vmul.f32 %v4471, %v4581
          %v4596 = vmul.f32 %v4472, %v4581
          %v4597 = vmul.f32 %v4473, %v4581
          %v4598 = vmul.f32 %v4475, %v4581
          %v4599 = vmul.f32 %v4476, %v4581
          %v4600 = vmul.f32 %v4477, %v4581
          %v4601 = vmul.f32 %v4478, %v4581
          %v4602 = vmul.f32 %v4480, %v4581
          %v4603 = vmul.f32 %v4481, %v4581
          %v4604 = vmul.f32 %v4482, %v4581
          %v4605 = vmul.f32 %v4483, %v4581
          %v4606 = vmul.f32 %v4485, %v4581
          %v4607 = vmul.f32 %v4486, %v4581
          %v4608 = vmul.f32 %v4487, %v4581
          %v4609 = vmul.f32 %v4488, %v4581
          %v4610 = vmul.f32 %v4490, %v4581
          %v4611 = vmul.f32 %v4491, %v4581
          %v4612 = vmul.f32 %v4492, %v4581
          %v4613 = vmul.f32 %v4493, %v4581
          %vm4646 = vcmask 1046528
          %v4647 = vrot.slane %v4582, 1
          %v4648 = vrot.slane %v4583, 1
          %v4649 = vsel %vm4646, %v4647, %v4648
          %v4650 = vrot.slane %v4584, 1
          %v4651 = vsel %vm4646, %v4648, %v4650
          %v4652 = vrot.slane %v4585, 1
          %v4653 = vsel %vm4646, %v4650, %v4652
          %v4654 = vrot.slane %v4586, 1
          %v4655 = vrot.slane %v4587, 1
          %v4656 = vsel %vm4646, %v4654, %v4655
          %v4657 = vrot.slane %v4588, 1
          %v4658 = vsel %vm4646, %v4655, %v4657
          %v4659 = vrot.slane %v4589, 1
          %v4660 = vsel %vm4646, %v4657, %v4659
          %v4661 = vrot.slane %v4590, 1
          %v4662 = vrot.slane %v4591, 1
          %v4663 = vsel %vm4646, %v4661, %v4662
          %v4664 = vrot.slane %v4592, 1
          %v4665 = vsel %vm4646, %v4662, %v4664
          %v4666 = vrot.slane %v4593, 1
          %v4667 = vsel %vm4646, %v4664, %v4666
          %v4668 = vrot.slane %v4594, 1
          %v4669 = vrot.slane %v4595, 1
          %v4670 = vsel %vm4646, %v4668, %v4669
          %v4671 = vrot.slane %v4596, 1
          %v4672 = vsel %vm4646, %v4669, %v4671
          %v4673 = vrot.slane %v4597, 1
          %v4674 = vsel %vm4646, %v4671, %v4673
          %v4675 = vrot.slane %v4598, 1
          %v4676 = vrot.slane %v4599, 1
          %v4677 = vsel %vm4646, %v4675, %v4676
          %v4678 = vrot.slane %v4600, 1
          %v4679 = vsel %vm4646, %v4676, %v4678
          %v4680 = vrot.slane %v4601, 1
          %v4681 = vsel %vm4646, %v4678, %v4680
          %v4682 = vrot.slane %v4602, 1
          %v4683 = vrot.slane %v4603, 1
          %v4684 = vsel %vm4646, %v4682, %v4683
          %v4685 = vrot.slane %v4604, 1
          %v4686 = vsel %vm4646, %v4683, %v4685
          %v4687 = vrot.slane %v4605, 1
          %v4688 = vsel %vm4646, %v4685, %v4687
          %v4689 = vrot.slane %v4606, 1
          %v4690 = vrot.slane %v4607, 1
          %v4691 = vsel %vm4646, %v4689, %v4690
          %v4692 = vrot.slane %v4608, 1
          %v4693 = vsel %vm4646, %v4690, %v4692
          %v4694 = vrot.slane %v4609, 1
          %v4695 = vsel %vm4646, %v4692, %v4694
          %v4696 = vrot.slane %v4610, 1
          %v4697 = vrot.slane %v4611, 1
          %v4698 = vsel %vm4646, %v4696, %v4697
          %v4699 = vrot.slane %v4612, 1
          %v4700 = vsel %vm4646, %v4697, %v4699
          %v4701 = vrot.slane %v4613, 1
          %v4702 = vsel %vm4646, %v4699, %v4701
          %v4743 = vadd.f32 %v4538, %v4647
          %v4744 = vadd.f32 %v4539, %v4649
          %v4745 = vadd.f32 %v4540, %v4651
          %v4746 = vadd.f32 %v4541, %v4653
          %v4747 = vadd.f32 %v4542, %v4652
          %v4748 = vadd.f32 %v4543, %v4654
          %v4749 = vadd.f32 %v4544, %v4656
          %v4750 = vadd.f32 %v4545, %v4658
          %v4751 = vadd.f32 %v4546, %v4660
          %v4752 = vadd.f32 %v4547, %v4659
          %v4753 = vadd.f32 %v4548, %v4661
          %v4754 = vadd.f32 %v4549, %v4663
          %v4755 = vadd.f32 %v4550, %v4665
          %v4756 = vadd.f32 %v4551, %v4667
          %v4757 = vadd.f32 %v4552, %v4666
          %v4758 = vadd.f32 %v4553, %v4668
          %v4759 = vadd.f32 %v4554, %v4670
          %v4760 = vadd.f32 %v4555, %v4672
          %v4761 = vadd.f32 %v4556, %v4674
          %v4762 = vadd.f32 %v4557, %v4673
          %v4763 = vadd.f32 %v4558, %v4675
          %v4764 = vadd.f32 %v4559, %v4677
          %v4765 = vadd.f32 %v4560, %v4679
          %v4766 = vadd.f32 %v4561, %v4681
          %v4767 = vadd.f32 %v4562, %v4680
          %v4768 = vadd.f32 %v4563, %v4682
          %v4769 = vadd.f32 %v4564, %v4684
          %v4770 = vadd.f32 %v4565, %v4686
          %v4771 = vadd.f32 %v4566, %v4688
          %v4772 = vadd.f32 %v4567, %v4687
          %v4773 = vadd.f32 %v4568, %v4689
          %v4774 = vadd.f32 %v4569, %v4691
          %v4775 = vadd.f32 %v4570, %v4693
          %v4776 = vadd.f32 %v4571, %v4695
          %v4777 = vadd.f32 %v4572, %v4694
          %v4778 = vadd.f32 %v4573, %v4696
          %v4779 = vadd.f32 %v4574, %v4698
          %v4780 = vadd.f32 %v4575, %v4700
          %v4781 = vadd.f32 %v4576, %v4702
          %v4782 = vadd.f32 %v4577, %v4701
          %v4783 = vld [vmem:[%s4413 + $0x14] sm:$0x1]
          %v4784 = vld [vmem:[%s4413 + $0x2c] sm:$0x1]
          %v4785 = vld [vmem:[%s4413 + $0x44] sm:$0x1]
          %v4786 = vld [vmem:[%s4413 + $0x5c] sm:$0x1]
          %v4787 = vld [vmem:[%s4413 + $0x74] sm:$0x1]
          %v4788 = vld [vmem:[%s4413 + $0x8c] sm:$0x1]
          %v4789 = vld [vmem:[%s4413 + $0xa4] sm:$0x1]
          %v4790 = vld [vmem:[%s4413 + $0xbc] sm:$0x1]
          %v4791 = vunpack.c.l.bf16 %v4783
          %v4792 = vunpack.c.l.bf16 %v4784
          %v4793 = vunpack.c.l.bf16 %v4785
          %v4794 = vunpack.c.l.bf16 %v4786
          %v4795 = vunpack.c.l.bf16 %v4787
          %v4796 = vunpack.c.l.bf16 %v4788
          %v4797 = vunpack.c.l.bf16 %v4789
          %v4798 = vunpack.c.l.bf16 %v4790
          %v4799 = vlaneseq
          %v4800 = vshrl.u32 %v4799, 7
          %v4801 = vsub.s32 0, %v4800
          %v4802 = vrot.slane %v1201, %v4801
          %v4803 = vmul.f32 %v4455, %v4802
          %v4804 = vmul.f32 %v4456, %v4802
          %v4805 = vmul.f32 %v4457, %v4802
          %v4806 = vmul.f32 %v4458, %v4802
          %v4807 = vmul.f32 %v4791, %v4802
          %v4808 = vmul.f32 %v4460, %v4802
          %v4809 = vmul.f32 %v4461, %v4802
          %v4810 = vmul.f32 %v4462, %v4802
          %v4811 = vmul.f32 %v4463, %v4802
          %v4812 = vmul.f32 %v4792, %v4802
          %v4813 = vmul.f32 %v4465, %v4802
          %v4814 = vmul.f32 %v4466, %v4802
          %v4815 = vmul.f32 %v4467, %v4802
          %v4816 = vmul.f32 %v4468, %v4802
          %v4817 = vmul.f32 %v4793, %v4802
          %v4818 = vmul.f32 %v4470, %v4802
          %v4819 = vmul.f32 %v4471, %v4802
          %v4820 = vmul.f32 %v4472, %v4802
          %v4821 = vmul.f32 %v4473, %v4802
          %v4822 = vmul.f32 %v4794, %v4802
          %v4823 = vmul.f32 %v4475, %v4802
          %v4824 = vmul.f32 %v4476, %v4802
          %v4825 = vmul.f32 %v4477, %v4802
          %v4826 = vmul.f32 %v4478, %v4802
          %v4827 = vmul.f32 %v4795, %v4802
          %v4828 = vmul.f32 %v4480, %v4802
          %v4829 = vmul.f32 %v4481, %v4802
          %v4830 = vmul.f32 %v4482, %v4802
          %v4831 = vmul.f32 %v4483, %v4802
          %v4832 = vmul.f32 %v4796, %v4802
          %v4833 = vmul.f32 %v4485, %v4802
          %v4834 = vmul.f32 %v4486, %v4802
          %v4835 = vmul.f32 %v4487, %v4802
          %v4836 = vmul.f32 %v4488, %v4802
          %v4837 = vmul.f32 %v4797, %v4802
          %v4838 = vmul.f32 %v4490, %v4802
          %v4839 = vmul.f32 %v4491, %v4802
          %v4840 = vmul.f32 %v4492, %v4802
          %v4841 = vmul.f32 %v4493, %v4802
          %v4842 = vmul.f32 %v4798, %v4802
          %vm4883 = vcmask 1045504
          %v4884 = vrot.slane %v4803, 2
          %v4885 = vrot.slane %v4804, 2
          %v4886 = vsel %vm4883, %v4884, %v4885
          %v4887 = vrot.slane %v4805, 2
          %v4888 = vsel %vm4883, %v4885, %v4887
          %v4889 = vrot.slane %v4806, 2
          %v4890 = vsel %vm4883, %v4887, %v4889
          %v4891 = vrot.slane %v4807, 2
          %v4892 = vsel %vm4883, %v4889, %v4891
          %v4893 = vrot.slane %v4808, 2
          %v4894 = vrot.slane %v4809, 2
          %v4895 = vsel %vm4883, %v4893, %v4894
          %v4896 = vrot.slane %v4810, 2
          %v4897 = vsel %vm4883, %v4894, %v4896
          %v4898 = vrot.slane %v4811, 2
          %v4899 = vsel %vm4883, %v4896, %v4898
          %v4900 = vrot.slane %v4812, 2
          %v4901 = vsel %vm4883, %v4898, %v4900
          %v4902 = vrot.slane %v4813, 2
          %v4903 = vrot.slane %v4814, 2
          %v4904 = vsel %vm4883, %v4902, %v4903
          %v4905 = vrot.slane %v4815, 2
          %v4906 = vsel %vm4883, %v4903, %v4905
          %v4907 = vrot.slane %v4816, 2
          %v4908 = vsel %vm4883, %v4905, %v4907
          %v4909 = vrot.slane %v4817, 2
          %v4910 = vsel %vm4883, %v4907, %v4909
          %v4911 = vrot.slane %v4818, 2
          %v4912 = vrot.slane %v4819, 2
          %v4913 = vsel %vm4883, %v4911, %v4912
          %v4914 = vrot.slane %v4820, 2
          %v4915 = vsel %vm4883, %v4912, %v4914
          %v4916 = vrot.slane %v4821, 2
          %v4917 = vsel %vm4883, %v4914, %v4916
          %v4918 = vrot.slane %v4822, 2
          %v4919 = vsel %vm4883, %v4916, %v4918
          %v4920 = vrot.slane %v4823, 2
          %v4921 = vrot.slane %v4824, 2
          %v4922 = vsel %vm4883, %v4920, %v4921
          %v4923 = vrot.slane %v4825, 2
          %v4924 = vsel %vm4883, %v4921, %v4923
          %v4925 = vrot.slane %v4826, 2
          %v4926 = vsel %vm4883, %v4923, %v4925
          %v4927 = vrot.slane %v4827, 2
          %v4928 = vsel %vm4883, %v4925, %v4927
          %v4929 = vrot.slane %v4828, 2
          %v4930 = vrot.slane %v4829, 2
          %v4931 = vsel %vm4883, %v4929, %v4930
          %v4932 = vrot.slane %v4830, 2
          %v4933 = vsel %vm4883, %v4930, %v4932
          %v4934 = vrot.slane %v4831, 2
          %v4935 = vsel %vm4883, %v4932, %v4934
          %v4936 = vrot.slane %v4832, 2
          %v4937 = vsel %vm4883, %v4934, %v4936
          %v4938 = vrot.slane %v4833, 2
          %v4939 = vrot.slane %v4834, 2
          %v4940 = vsel %vm4883, %v4938, %v4939
          %v4941 = vrot.slane %v4835, 2
          %v4942 = vsel %vm4883, %v4939, %v4941
          %v4943 = vrot.slane %v4836, 2
          %v4944 = vsel %vm4883, %v4941, %v4943
          %v4945 = vrot.slane %v4837, 2
          %v4946 = vsel %vm4883, %v4943, %v4945
          %v4947 = vrot.slane %v4838, 2
          %v4948 = vrot.slane %v4839, 2
          %v4949 = vsel %vm4883, %v4947, %v4948
          %v4950 = vrot.slane %v4840, 2
          %v4951 = vsel %vm4883, %v4948, %v4950
          %v4952 = vrot.slane %v4841, 2
          %v4953 = vsel %vm4883, %v4950, %v4952
          %v4954 = vrot.slane %v4842, 2
          %v4955 = vsel %vm4883, %v4952, %v4954
          %v4996 = vadd.f32 %v4743, %v4884
          %v4997 = vadd.f32 %v4744, %v4886
          %v4998 = vadd.f32 %v4745, %v4888
          %v4999 = vadd.f32 %v4746, %v4890
          %v5000 = vadd.f32 %v4747, %v4892
          %v5001 = vadd.f32 %v4748, %v4893
          %v5002 = vadd.f32 %v4749, %v4895
          %v5003 = vadd.f32 %v4750, %v4897
          %v5004 = vadd.f32 %v4751, %v4899
          %v5005 = vadd.f32 %v4752, %v4901
          %v5006 = vadd.f32 %v4753, %v4902
          %v5007 = vadd.f32 %v4754, %v4904
          %v5008 = vadd.f32 %v4755, %v4906
          %v5009 = vadd.f32 %v4756, %v4908
          %v5010 = vadd.f32 %v4757, %v4910
          %v5011 = vadd.f32 %v4758, %v4911
          %v5012 = vadd.f32 %v4759, %v4913
          %v5013 = vadd.f32 %v4760, %v4915
          %v5014 = vadd.f32 %v4761, %v4917
          %v5015 = vadd.f32 %v4762, %v4919
          %v5016 = vadd.f32 %v4763, %v4920
          %v5017 = vadd.f32 %v4764, %v4922
          %v5018 = vadd.f32 %v4765, %v4924
          %v5019 = vadd.f32 %v4766, %v4926
          %v5020 = vadd.f32 %v4767, %v4928
          %v5021 = vadd.f32 %v4768, %v4929
          %v5022 = vadd.f32 %v4769, %v4931
          %v5023 = vadd.f32 %v4770, %v4933
          %v5024 = vadd.f32 %v4771, %v4935
          %v5025 = vadd.f32 %v4772, %v4937
          %v5026 = vadd.f32 %v4773, %v4938
          %v5027 = vadd.f32 %v4774, %v4940
          %v5028 = vadd.f32 %v4775, %v4942
          %v5029 = vadd.f32 %v4776, %v4944
          %v5030 = vadd.f32 %v4777, %v4946
          %v5031 = vadd.f32 %v4778, %v4947
          %v5032 = vadd.f32 %v4779, %v4949
          %v5033 = vadd.f32 %v4780, %v4951
          %v5034 = vadd.f32 %v4781, %v4953
          %v5035 = vadd.f32 %v4782, %v4955
          %s5036 = sadd.s32 %s4410, 1
          %s5037 = smul.u32 %s5036, 6
          %s5038 = smul.addr %s5037, 4
          %s5039 = scalar_lea.vmem [#allocation3], %s5038
          %v5040 = vld [vmem:[%s5039] sm:$0x8]
          %v5041 = vld [vmem:[%s5039 + $0x4] sm:$0xf]
          %v5042 = vld [vmem:[%s5039 + $0x8] sm:$0xf]
          %v5043 = vld [vmem:[%s5039 + $0xc] sm:$0xf]
          %v5044 = vld [vmem:[%s5039 + $0x10] sm:$0xf]
          %v5045 = vld [vmem:[%s5039 + $0x18] sm:$0x8]
          %v5046 = vld [vmem:[%s5039 + $0x1c] sm:$0xf]
          %v5047 = vld [vmem:[%s5039 + $0x20] sm:$0xf]
          %v5048 = vld [vmem:[%s5039 + $0x24] sm:$0xf]
          %v5049 = vld [vmem:[%s5039 + $0x28] sm:$0xf]
          %v5050 = vld [vmem:[%s5039 + $0x30] sm:$0x8]
          %v5051 = vld [vmem:[%s5039 + $0x34] sm:$0xf]
          %v5052 = vld [vmem:[%s5039 + $0x38] sm:$0xf]
          %v5053 = vld [vmem:[%s5039 + $0x3c] sm:$0xf]
          %v5054 = vld [vmem:[%s5039 + $0x40] sm:$0xf]
          %v5055 = vld [vmem:[%s5039 + $0x48] sm:$0x8]
          %v5056 = vld [vmem:[%s5039 + $0x4c] sm:$0xf]
          %v5057 = vld [vmem:[%s5039 + $0x50] sm:$0xf]
          %v5058 = vld [vmem:[%s5039 + $0x54] sm:$0xf]
          %v5059 = vld [vmem:[%s5039 + $0x58] sm:$0xf]
          %v5060 = vld [vmem:[%s5039 + $0x60] sm:$0x8]
          %v5061 = vld [vmem:[%s5039 + $0x64] sm:$0xf]
          %v5062 = vld [vmem:[%s5039 + $0x68] sm:$0xf]
          %v5063 = vld [vmem:[%s5039 + $0x6c] sm:$0xf]
          %v5064 = vld [vmem:[%s5039 + $0x70] sm:$0xf]
          %v5065 = vld [vmem:[%s5039 + $0x78] sm:$0x8]
          %v5066 = vld [vmem:[%s5039 + $0x7c] sm:$0xf]
          %v5067 = vld [vmem:[%s5039 + $0x80] sm:$0xf]
          %v5068 = vld [vmem:[%s5039 + $0x84] sm:$0xf]
          %v5069 = vld [vmem:[%s5039 + $0x88] sm:$0xf]
          %v5070 = vld [vmem:[%s5039 + $0x90] sm:$0x8]
          %v5071 = vld [vmem:[%s5039 + $0x94] sm:$0xf]
          %v5072 = vld [vmem:[%s5039 + $0x98] sm:$0xf]
          %v5073 = vld [vmem:[%s5039 + $0x9c] sm:$0xf]
          %v5074 = vld [vmem:[%s5039 + $0xa0] sm:$0xf]
          %v5075 = vld [vmem:[%s5039 + $0xa8] sm:$0x8]
          %v5076 = vld [vmem:[%s5039 + $0xac] sm:$0xf]
          %v5077 = vld [vmem:[%s5039 + $0xb0] sm:$0xf]
          %v5078 = vld [vmem:[%s5039 + $0xb4] sm:$0xf]
          %v5079 = vld [vmem:[%s5039 + $0xb8] sm:$0xf]
          %v5080 = vunpack.c.l.bf16 %v5040
          %v5081 = vunpack.c.l.bf16 %v5041
          %v5082 = vunpack.c.l.bf16 %v5042
          %v5083 = vunpack.c.l.bf16 %v5043
          %v5084 = vunpack.c.l.bf16 %v5044
          %v5085 = vunpack.c.l.bf16 %v5045
          %v5086 = vunpack.c.l.bf16 %v5046
          %v5087 = vunpack.c.l.bf16 %v5047
          %v5088 = vunpack.c.l.bf16 %v5048
          %v5089 = vunpack.c.l.bf16 %v5049
          %v5090 = vunpack.c.l.bf16 %v5050
          %v5091 = vunpack.c.l.bf16 %v5051
          %v5092 = vunpack.c.l.bf16 %v5052
          %v5093 = vunpack.c.l.bf16 %v5053
          %v5094 = vunpack.c.l.bf16 %v5054
          %v5095 = vunpack.c.l.bf16 %v5055
          %v5096 = vunpack.c.l.bf16 %v5056
          %v5097 = vunpack.c.l.bf16 %v5057
          %v5098 = vunpack.c.l.bf16 %v5058
          %v5099 = vunpack.c.l.bf16 %v5059
          %v5100 = vunpack.c.l.bf16 %v5060
          %v5101 = vunpack.c.l.bf16 %v5061
          %v5102 = vunpack.c.l.bf16 %v5062
          %v5103 = vunpack.c.l.bf16 %v5063
          %v5104 = vunpack.c.l.bf16 %v5064
          %v5105 = vunpack.c.l.bf16 %v5065
          %v5106 = vunpack.c.l.bf16 %v5066
          %v5107 = vunpack.c.l.bf16 %v5067
          %v5108 = vunpack.c.l.bf16 %v5068
          %v5109 = vunpack.c.l.bf16 %v5069
          %v5110 = vunpack.c.l.bf16 %v5070
          %v5111 = vunpack.c.l.bf16 %v5071
          %v5112 = vunpack.c.l.bf16 %v5072
          %v5113 = vunpack.c.l.bf16 %v5073
          %v5114 = vunpack.c.l.bf16 %v5074
          %v5115 = vunpack.c.l.bf16 %v5075
          %v5116 = vunpack.c.l.bf16 %v5076
          %v5117 = vunpack.c.l.bf16 %v5077
          %v5118 = vunpack.c.l.bf16 %v5078
          %v5119 = vunpack.c.l.bf16 %v5079
          %v5120 = vlaneseq
          %v5121 = vshrl.u32 %v5120, 7
          %v5122 = vsub.s32 0, %v5121
          %v5123 = vrot.slane %v1202, %v5122
          %v5124 = vmul.f32 %v5080, %v5123
          %v5125 = vmul.f32 %v5081, %v5123
          %v5126 = vmul.f32 %v5082, %v5123
          %v5127 = vmul.f32 %v5083, %v5123
          %v5128 = vmul.f32 %v5084, %v5123
          %v5129 = vmul.f32 %v5085, %v5123
          %v5130 = vmul.f32 %v5086, %v5123
          %v5131 = vmul.f32 %v5087, %v5123
          %v5132 = vmul.f32 %v5088, %v5123
          %v5133 = vmul.f32 %v5089, %v5123
          %v5134 = vmul.f32 %v5090, %v5123
          %v5135 = vmul.f32 %v5091, %v5123
          %v5136 = vmul.f32 %v5092, %v5123
          %v5137 = vmul.f32 %v5093, %v5123
          %v5138 = vmul.f32 %v5094, %v5123
          %v5139 = vmul.f32 %v5095, %v5123
          %v5140 = vmul.f32 %v5096, %v5123
          %v5141 = vmul.f32 %v5097, %v5123
          %v5142 = vmul.f32 %v5098, %v5123
          %v5143 = vmul.f32 %v5099, %v5123
          %v5144 = vmul.f32 %v5100, %v5123
          %v5145 = vmul.f32 %v5101, %v5123
          %v5146 = vmul.f32 %v5102, %v5123
          %v5147 = vmul.f32 %v5103, %v5123
          %v5148 = vmul.f32 %v5104, %v5123
          %v5149 = vmul.f32 %v5105, %v5123
          %v5150 = vmul.f32 %v5106, %v5123
          %v5151 = vmul.f32 %v5107, %v5123
          %v5152 = vmul.f32 %v5108, %v5123
          %v5153 = vmul.f32 %v5109, %v5123
          %v5154 = vmul.f32 %v5110, %v5123
          %v5155 = vmul.f32 %v5111, %v5123
          %v5156 = vmul.f32 %v5112, %v5123
          %v5157 = vmul.f32 %v5113, %v5123
          %v5158 = vmul.f32 %v5114, %v5123
          %v5159 = vmul.f32 %v5115, %v5123
          %v5160 = vmul.f32 %v5116, %v5123
          %v5161 = vmul.f32 %v5117, %v5123
          %v5162 = vmul.f32 %v5118, %v5123
          %v5163 = vmul.f32 %v5119, %v5123
          %v5164 = vadd.f32 %v4996, %v5124
          %v5165 = vadd.f32 %v4997, %v5125
          %v5166 = vadd.f32 %v4998, %v5126
          %v5167 = vadd.f32 %v4999, %v5127
          %v5168 = vadd.f32 %v5000, %v5128
          %v5169 = vadd.f32 %v5001, %v5129
          %v5170 = vadd.f32 %v5002, %v5130
          %v5171 = vadd.f32 %v5003, %v5131
          %v5172 = vadd.f32 %v5004, %v5132
          %v5173 = vadd.f32 %v5005, %v5133
          %v5174 = vadd.f32 %v5006, %v5134
          %v5175 = vadd.f32 %v5007, %v5135
          %v5176 = vadd.f32 %v5008, %v5136
          %v5177 = vadd.f32 %v5009, %v5137
          %v5178 = vadd.f32 %v5010, %v5138
          %v5179 = vadd.f32 %v5011, %v5139
          %v5180 = vadd.f32 %v5012, %v5140
          %v5181 = vadd.f32 %v5013, %v5141
          %v5182 = vadd.f32 %v5014, %v5142
          %v5183 = vadd.f32 %v5015, %v5143
          %v5184 = vadd.f32 %v5016, %v5144
          %v5185 = vadd.f32 %v5017, %v5145
          %v5186 = vadd.f32 %v5018, %v5146
          %v5187 = vadd.f32 %v5019, %v5147
          %v5188 = vadd.f32 %v5020, %v5148
          %v5189 = vadd.f32 %v5021, %v5149
          %v5190 = vadd.f32 %v5022, %v5150
          %v5191 = vadd.f32 %v5023, %v5151
          %v5192 = vadd.f32 %v5024, %v5152
          %v5193 = vadd.f32 %v5025, %v5153
          %v5194 = vadd.f32 %v5026, %v5154
          %v5195 = vadd.f32 %v5027, %v5155
          %v5196 = vadd.f32 %v5028, %v5156
          %v5197 = vadd.f32 %v5029, %v5157
          %v5198 = vadd.f32 %v5030, %v5158
          %v5199 = vadd.f32 %v5031, %v5159
          %v5200 = vadd.f32 %v5032, %v5160
          %v5201 = vadd.f32 %v5033, %v5161
          %v5202 = vadd.f32 %v5034, %v5162
          %v5203 = vadd.f32 %v5035, %v5163
          %v5204 = vlaneseq
          %v5205 = vshrl.u32 %v5204, 7
          %v5206 = vsub.s32 0, %v5205
          %v5207 = vrot.slane %v1203, %v5206
          %v5208 = vmul.f32 %v5081, %v5207
          %v5209 = vmul.f32 %v5082, %v5207
          %v5210 = vmul.f32 %v5083, %v5207
          %v5211 = vmul.f32 %v5084, %v5207
          %v5212 = vmul.f32 %v5086, %v5207
          %v5213 = vmul.f32 %v5087, %v5207
          %v5214 = vmul.f32 %v5088, %v5207
          %v5215 = vmul.f32 %v5089, %v5207
          %v5216 = vmul.f32 %v5091, %v5207
          %v5217 = vmul.f32 %v5092, %v5207
          %v5218 = vmul.f32 %v5093, %v5207
          %v5219 = vmul.f32 %v5094, %v5207
          %v5220 = vmul.f32 %v5096, %v5207
          %v5221 = vmul.f32 %v5097, %v5207
          %v5222 = vmul.f32 %v5098, %v5207
          %v5223 = vmul.f32 %v5099, %v5207
          %v5224 = vmul.f32 %v5101, %v5207
          %v5225 = vmul.f32 %v5102, %v5207
          %v5226 = vmul.f32 %v5103, %v5207
          %v5227 = vmul.f32 %v5104, %v5207
          %v5228 = vmul.f32 %v5106, %v5207
          %v5229 = vmul.f32 %v5107, %v5207
          %v5230 = vmul.f32 %v5108, %v5207
          %v5231 = vmul.f32 %v5109, %v5207
          %v5232 = vmul.f32 %v5111, %v5207
          %v5233 = vmul.f32 %v5112, %v5207
          %v5234 = vmul.f32 %v5113, %v5207
          %v5235 = vmul.f32 %v5114, %v5207
          %v5236 = vmul.f32 %v5116, %v5207
          %v5237 = vmul.f32 %v5117, %v5207
          %v5238 = vmul.f32 %v5118, %v5207
          %v5239 = vmul.f32 %v5119, %v5207
          %v5272 = vrot.slane %v5208, 1
          %v5273 = vrot.slane %v5209, 1
          %v5274 = vsel %vm4646, %v5272, %v5273
          %v5275 = vrot.slane %v5210, 1
          %v5276 = vsel %vm4646, %v5273, %v5275
          %v5277 = vrot.slane %v5211, 1
          %v5278 = vsel %vm4646, %v5275, %v5277
          %v5279 = vrot.slane %v5212, 1
          %v5280 = vrot.slane %v5213, 1
          %v5281 = vsel %vm4646, %v5279, %v5280
          %v5282 = vrot.slane %v5214, 1
          %v5283 = vsel %vm4646, %v5280, %v5282
          %v5284 = vrot.slane %v5215, 1
          %v5285 = vsel %vm4646, %v5282, %v5284
          %v5286 = vrot.slane %v5216, 1
          %v5287 = vrot.slane %v5217, 1
          %v5288 = vsel %vm4646, %v5286, %v5287
          %v5289 = vrot.slane %v5218, 1
          %v5290 = vsel %vm4646, %v5287, %v5289
          %v5291 = vrot.slane %v5219, 1
          %v5292 = vsel %vm4646, %v5289, %v5291
          %v5293 = vrot.slane %v5220, 1
          %v5294 = vrot.slane %v5221, 1
          %v5295 = vsel %vm4646, %v5293, %v5294
          %v5296 = vrot.slane %v5222, 1
          %v5297 = vsel %vm4646, %v5294, %v5296
          %v5298 = vrot.slane %v5223, 1
          %v5299 = vsel %vm4646, %v5296, %v5298
          %v5300 = vrot.slane %v5224, 1
          %v5301 = vrot.slane %v5225, 1
          %v5302 = vsel %vm4646, %v5300, %v5301
          %v5303 = vrot.slane %v5226, 1
          %v5304 = vsel %vm4646, %v5301, %v5303
          %v5305 = vrot.slane %v5227, 1
          %v5306 = vsel %vm4646, %v5303, %v5305
          %v5307 = vrot.slane %v5228, 1
          %v5308 = vrot.slane %v5229, 1
          %v5309 = vsel %vm4646, %v5307, %v5308
          %v5310 = vrot.slane %v5230, 1
          %v5311 = vsel %vm4646, %v5308, %v5310
          %v5312 = vrot.slane %v5231, 1
          %v5313 = vsel %vm4646, %v5310, %v5312
          %v5314 = vrot.slane %v5232, 1
          %v5315 = vrot.slane %v5233, 1
          %v5316 = vsel %vm4646, %v5314, %v5315
          %v5317 = vrot.slane %v5234, 1
          %v5318 = vsel %vm4646, %v5315, %v5317
          %v5319 = vrot.slane %v5235, 1
          %v5320 = vsel %vm4646, %v5317, %v5319
          %v5321 = vrot.slane %v5236, 1
          %v5322 = vrot.slane %v5237, 1
          %v5323 = vsel %vm4646, %v5321, %v5322
          %v5324 = vrot.slane %v5238, 1
          %v5325 = vsel %vm4646, %v5322, %v5324
          %v5326 = vrot.slane %v5239, 1
          %v5327 = vsel %vm4646, %v5324, %v5326
          %v5368 = vadd.f32 %v5164, %v5272
          %v5369 = vadd.f32 %v5165, %v5274
          %v5370 = vadd.f32 %v5166, %v5276
          %v5371 = vadd.f32 %v5167, %v5278
          %v5372 = vadd.f32 %v5168, %v5277
          %v5373 = vadd.f32 %v5169, %v5279
          %v5374 = vadd.f32 %v5170, %v5281
          %v5375 = vadd.f32 %v5171, %v5283
          %v5376 = vadd.f32 %v5172, %v5285
          %v5377 = vadd.f32 %v5173, %v5284
          %v5378 = vadd.f32 %v5174, %v5286
          %v5379 = vadd.f32 %v5175, %v5288
          %v5380 = vadd.f32 %v5176, %v5290
          %v5381 = vadd.f32 %v5177, %v5292
          %v5382 = vadd.f32 %v5178, %v5291
          %v5383 = vadd.f32 %v5179, %v5293
          %v5384 = vadd.f32 %v5180, %v5295
          %v5385 = vadd.f32 %v5181, %v5297
          %v5386 = vadd.f32 %v5182, %v5299
          %v5387 = vadd.f32 %v5183, %v5298
          %v5388 = vadd.f32 %v5184, %v5300
          %v5389 = vadd.f32 %v5185, %v5302
          %v5390 = vadd.f32 %v5186, %v5304
          %v5391 = vadd.f32 %v5187, %v5306
          %v5392 = vadd.f32 %v5188, %v5305
          %v5393 = vadd.f32 %v5189, %v5307
          %v5394 = vadd.f32 %v5190, %v5309
          %v5395 = vadd.f32 %v5191, %v5311
          %v5396 = vadd.f32 %v5192, %v5313
          %v5397 = vadd.f32 %v5193, %v5312
          %v5398 = vadd.f32 %v5194, %v5314
          %v5399 = vadd.f32 %v5195, %v5316
          %v5400 = vadd.f32 %v5196, %v5318
          %v5401 = vadd.f32 %v5197, %v5320
          %v5402 = vadd.f32 %v5198, %v5319
          %v5403 = vadd.f32 %v5199, %v5321
          %v5404 = vadd.f32 %v5200, %v5323
          %v5405 = vadd.f32 %v5201, %v5325
          %v5406 = vadd.f32 %v5202, %v5327
          %v5407 = vadd.f32 %v5203, %v5326
          %v5408 = vld [vmem:[%s5039 + $0x14] sm:$0x1]
          %v5409 = vld [vmem:[%s5039 + $0x2c] sm:$0x1]
          %v5410 = vld [vmem:[%s5039 + $0x44] sm:$0x1]
          %v5411 = vld [vmem:[%s5039 + $0x5c] sm:$0x1]
          %v5412 = vld [vmem:[%s5039 + $0x74] sm:$0x1]
          %v5413 = vld [vmem:[%s5039 + $0x8c] sm:$0x1]
          %v5414 = vld [vmem:[%s5039 + $0xa4] sm:$0x1]
          %v5415 = vld [vmem:[%s5039 + $0xbc] sm:$0x1]
          %v5416 = vunpack.c.l.bf16 %v5408
          %v5417 = vunpack.c.l.bf16 %v5409
          %v5418 = vunpack.c.l.bf16 %v5410
          %v5419 = vunpack.c.l.bf16 %v5411
          %v5420 = vunpack.c.l.bf16 %v5412
          %v5421 = vunpack.c.l.bf16 %v5413
          %v5422 = vunpack.c.l.bf16 %v5414
          %v5423 = vunpack.c.l.bf16 %v5415
          %v5424 = vlaneseq
          %v5425 = vshrl.u32 %v5424, 7
          %v5426 = vsub.s32 0, %v5425
          %v5427 = vrot.slane %v1204, %v5426
          %v5428 = vmul.f32 %v5081, %v5427
          %v5429 = vmul.f32 %v5082, %v5427
          %v5430 = vmul.f32 %v5083, %v5427
          %v5431 = vmul.f32 %v5084, %v5427
          %v5432 = vmul.f32 %v5416, %v5427
          %v5433 = vmul.f32 %v5086, %v5427
          %v5434 = vmul.f32 %v5087, %v5427
          %v5435 = vmul.f32 %v5088, %v5427
          %v5436 = vmul.f32 %v5089, %v5427
          %v5437 = vmul.f32 %v5417, %v5427
          %v5438 = vmul.f32 %v5091, %v5427
          %v5439 = vmul.f32 %v5092, %v5427
          %v5440 = vmul.f32 %v5093, %v5427
          %v5441 = vmul.f32 %v5094, %v5427
          %v5442 = vmul.f32 %v5418, %v5427
          %v5443 = vmul.f32 %v5096, %v5427
          %v5444 = vmul.f32 %v5097, %v5427
          %v5445 = vmul.f32 %v5098, %v5427
          %v5446 = vmul.f32 %v5099, %v5427
          %v5447 = vmul.f32 %v5419, %v5427
          %v5448 = vmul.f32 %v5101, %v5427
          %v5449 = vmul.f32 %v5102, %v5427
          %v5450 = vmul.f32 %v5103, %v5427
          %v5451 = vmul.f32 %v5104, %v5427
          %v5452 = vmul.f32 %v5420, %v5427
          %v5453 = vmul.f32 %v5106, %v5427
          %v5454 = vmul.f32 %v5107, %v5427
          %v5455 = vmul.f32 %v5108, %v5427
          %v5456 = vmul.f32 %v5109, %v5427
          %v5457 = vmul.f32 %v5421, %v5427
          %v5458 = vmul.f32 %v5111, %v5427
          %v5459 = vmul.f32 %v5112, %v5427
          %v5460 = vmul.f32 %v5113, %v5427
          %v5461 = vmul.f32 %v5114, %v5427
          %v5462 = vmul.f32 %v5422, %v5427
          %v5463 = vmul.f32 %v5116, %v5427
          %v5464 = vmul.f32 %v5117, %v5427
          %v5465 = vmul.f32 %v5118, %v5427
          %v5466 = vmul.f32 %v5119, %v5427
          %v5467 = vmul.f32 %v5423, %v5427
          %v5508 = vrot.slane %v5428, 2
          %v5509 = vrot.slane %v5429, 2
          %v5510 = vsel %vm4883, %v5508, %v5509
          %v5511 = vrot.slane %v5430, 2
          %v5512 = vsel %vm4883, %v5509, %v5511
          %v5513 = vrot.slane %v5431, 2
          %v5514 = vsel %vm4883, %v5511, %v5513
          %v5515 = vrot.slane %v5432, 2
          %v5516 = vsel %vm4883, %v5513, %v5515
          %v5517 = vrot.slane %v5433, 2
          %v5518 = vrot.slane %v5434, 2
          %v5519 = vsel %vm4883, %v5517, %v5518
          %v5520 = vrot.slane %v5435, 2
          %v5521 = vsel %vm4883, %v5518, %v5520
          %v5522 = vrot.slane %v5436, 2
          %v5523 = vsel %vm4883, %v5520, %v5522
          %v5524 = vrot.slane %v5437, 2
          %v5525 = vsel %vm4883, %v5522, %v5524
          %v5526 = vrot.slane %v5438, 2
          %v5527 = vrot.slane %v5439, 2
          %v5528 = vsel %vm4883, %v5526, %v5527
          %v5529 = vrot.slane %v5440, 2
          %v5530 = vsel %vm4883, %v5527, %v5529
          %v5531 = vrot.slane %v5441, 2
          %v5532 = vsel %vm4883, %v5529, %v5531
          %v5533 = vrot.slane %v5442, 2
          %v5534 = vsel %vm4883, %v5531, %v5533
          %v5535 = vrot.slane %v5443, 2
          %v5536 = vrot.slane %v5444, 2
          %v5537 = vsel %vm4883, %v5535, %v5536
          %v5538 = vrot.slane %v5445, 2
          %v5539 = vsel %vm4883, %v5536, %v5538
          %v5540 = vrot.slane %v5446, 2
          %v5541 = vsel %vm4883, %v5538, %v5540
          %v5542 = vrot.slane %v5447, 2
          %v5543 = vsel %vm4883, %v5540, %v5542
          %v5544 = vrot.slane %v5448, 2
          %v5545 = vrot.slane %v5449, 2
          %v5546 = vsel %vm4883, %v5544, %v5545
          %v5547 = vrot.slane %v5450, 2
          %v5548 = vsel %vm4883, %v5545, %v5547
          %v5549 = vrot.slane %v5451, 2
          %v5550 = vsel %vm4883, %v5547, %v5549
          %v5551 = vrot.slane %v5452, 2
          %v5552 = vsel %vm4883, %v5549, %v5551
          %v5553 = vrot.slane %v5453, 2
          %v5554 = vrot.slane %v5454, 2
          %v5555 = vsel %vm4883, %v5553, %v5554
          %v5556 = vrot.slane %v5455, 2
          %v5557 = vsel %vm4883, %v5554, %v5556
          %v5558 = vrot.slane %v5456, 2
          %v5559 = vsel %vm4883, %v5556, %v5558
          %v5560 = vrot.slane %v5457, 2
          %v5561 = vsel %vm4883, %v5558, %v5560
          %v5562 = vrot.slane %v5458, 2
          %v5563 = vrot.slane %v5459, 2
          %v5564 = vsel %vm4883, %v5562, %v5563
          %v5565 = vrot.slane %v5460, 2
          %v5566 = vsel %vm4883, %v5563, %v5565
          %v5567 = vrot.slane %v5461, 2
          %v5568 = vsel %vm4883, %v5565, %v5567
          %v5569 = vrot.slane %v5462, 2
          %v5570 = vsel %vm4883, %v5567, %v5569
          %v5571 = vrot.slane %v5463, 2
          %v5572 = vrot.slane %v5464, 2
          %v5573 = vsel %vm4883, %v5571, %v5572
          %v5574 = vrot.slane %v5465, 2
          %v5575 = vsel %vm4883, %v5572, %v5574
          %v5576 = vrot.slane %v5466, 2
          %v5577 = vsel %vm4883, %v5574, %v5576
          %v5578 = vrot.slane %v5467, 2
          %v5579 = vsel %vm4883, %v5576, %v5578
          %v5620 = vadd.f32 %v5368, %v5508
          %v5621 = vadd.f32 %v5369, %v5510
          %v5622 = vadd.f32 %v5370, %v5512
          %v5623 = vadd.f32 %v5371, %v5514
          %v5624 = vadd.f32 %v5372, %v5516
          %v5625 = vadd.f32 %v5373, %v5517
          %v5626 = vadd.f32 %v5374, %v5519
          %v5627 = vadd.f32 %v5375, %v5521
          %v5628 = vadd.f32 %v5376, %v5523
          %v5629 = vadd.f32 %v5377, %v5525
          %v5630 = vadd.f32 %v5378, %v5526
          %v5631 = vadd.f32 %v5379, %v5528
          %v5632 = vadd.f32 %v5380, %v5530
          %v5633 = vadd.f32 %v5381, %v5532
          %v5634 = vadd.f32 %v5382, %v5534
          %v5635 = vadd.f32 %v5383, %v5535
          %v5636 = vadd.f32 %v5384, %v5537
          %v5637 = vadd.f32 %v5385, %v5539
          %v5638 = vadd.f32 %v5386, %v5541
          %v5639 = vadd.f32 %v5387, %v5543
          %v5640 = vadd.f32 %v5388, %v5544
          %v5641 = vadd.f32 %v5389, %v5546
          %v5642 = vadd.f32 %v5390, %v5548
          %v5643 = vadd.f32 %v5391, %v5550
          %v5644 = vadd.f32 %v5392, %v5552
          %v5645 = vadd.f32 %v5393, %v5553
          %v5646 = vadd.f32 %v5394, %v5555
          %v5647 = vadd.f32 %v5395, %v5557
          %v5648 = vadd.f32 %v5396, %v5559
          %v5649 = vadd.f32 %v5397, %v5561
          %v5650 = vadd.f32 %v5398, %v5562
          %v5651 = vadd.f32 %v5399, %v5564
          %v5652 = vadd.f32 %v5400, %v5566
          %v5653 = vadd.f32 %v5401, %v5568
          %v5654 = vadd.f32 %v5402, %v5570
          %v5655 = vadd.f32 %v5403, %v5571
          %v5656 = vadd.f32 %v5404, %v5573
          %v5657 = vadd.f32 %v5405, %v5575
          %v5658 = vadd.f32 %v5406, %v5577
          %v5659 = vadd.f32 %v5407, %v5579
          %s5660 = sadd.s32 %s4410, 2
          %s5661 = smul.u32 %s5660, 6
          %s5662 = smul.addr %s5661, 4
          %s5663 = scalar_lea.vmem [#allocation3], %s5662
          %v5664 = vld [vmem:[%s5663] sm:$0x8]
          %v5665 = vld [vmem:[%s5663 + $0x4] sm:$0xf]
          %v5666 = vld [vmem:[%s5663 + $0x8] sm:$0xf]
          %v5667 = vld [vmem:[%s5663 + $0xc] sm:$0xf]
          %v5668 = vld [vmem:[%s5663 + $0x10] sm:$0xf]
          %v5669 = vld [vmem:[%s5663 + $0x18] sm:$0x8]
          %v5670 = vld [vmem:[%s5663 + $0x1c] sm:$0xf]
          %v5671 = vld [vmem:[%s5663 + $0x20] sm:$0xf]
          %v5672 = vld [vmem:[%s5663 + $0x24] sm:$0xf]
          %v5673 = vld [vmem:[%s5663 + $0x28] sm:$0xf]
          %v5674 = vld [vmem:[%s5663 + $0x30] sm:$0x8]
          %v5675 = vld [vmem:[%s5663 + $0x34] sm:$0xf]
          %v5676 = vld [vmem:[%s5663 + $0x38] sm:$0xf]
          %v5677 = vld [vmem:[%s5663 + $0x3c] sm:$0xf]
          %v5678 = vld [vmem:[%s5663 + $0x40] sm:$0xf]
          %v5679 = vld [vmem:[%s5663 + $0x48] sm:$0x8]
          %v5680 = vld [vmem:[%s5663 + $0x4c] sm:$0xf]
          %v5681 = vld [vmem:[%s5663 + $0x50] sm:$0xf]
          %v5682 = vld [vmem:[%s5663 + $0x54] sm:$0xf]
          %v5683 = vld [vmem:[%s5663 + $0x58] sm:$0xf]
          %v5684 = vld [vmem:[%s5663 + $0x60] sm:$0x8]
          %v5685 = vld [vmem:[%s5663 + $0x64] sm:$0xf]
          %v5686 = vld [vmem:[%s5663 + $0x68] sm:$0xf]
          %v5687 = vld [vmem:[%s5663 + $0x6c] sm:$0xf]
          %v5688 = vld [vmem:[%s5663 + $0x70] sm:$0xf]
          %v5689 = vld [vmem:[%s5663 + $0x78] sm:$0x8]
          %v5690 = vld [vmem:[%s5663 + $0x7c] sm:$0xf]
          %v5691 = vld [vmem:[%s5663 + $0x80] sm:$0xf]
          %v5692 = vld [vmem:[%s5663 + $0x84] sm:$0xf]
          %v5693 = vld [vmem:[%s5663 + $0x88] sm:$0xf]
          %v5694 = vld [vmem:[%s5663 + $0x90] sm:$0x8]
          %v5695 = vld [vmem:[%s5663 + $0x94] sm:$0xf]
          %v5696 = vld [vmem:[%s5663 + $0x98] sm:$0xf]
          %v5697 = vld [vmem:[%s5663 + $0x9c] sm:$0xf]
          %v5698 = vld [vmem:[%s5663 + $0xa0] sm:$0xf]
          %v5699 = vld [vmem:[%s5663 + $0xa8] sm:$0x8]
          %v5700 = vld [vmem:[%s5663 + $0xac] sm:$0xf]
          %v5701 = vld [vmem:[%s5663 + $0xb0] sm:$0xf]
          %v5702 = vld [vmem:[%s5663 + $0xb4] sm:$0xf]
          %v5703 = vld [vmem:[%s5663 + $0xb8] sm:$0xf]
          %v5704 = vunpack.c.l.bf16 %v5664
          %v5705 = vunpack.c.l.bf16 %v5665
          %v5706 = vunpack.c.l.bf16 %v5666
          %v5707 = vunpack.c.l.bf16 %v5667
          %v5708 = vunpack.c.l.bf16 %v5668
          %v5709 = vunpack.c.l.bf16 %v5669
          %v5710 = vunpack.c.l.bf16 %v5670
          %v5711 = vunpack.c.l.bf16 %v5671
          %v5712 = vunpack.c.l.bf16 %v5672
          %v5713 = vunpack.c.l.bf16 %v5673
          %v5714 = vunpack.c.l.bf16 %v5674
          %v5715 = vunpack.c.l.bf16 %v5675
          %v5716 = vunpack.c.l.bf16 %v5676
          %v5717 = vunpack.c.l.bf16 %v5677
          %v5718 = vunpack.c.l.bf16 %v5678
          %v5719 = vunpack.c.l.bf16 %v5679
          %v5720 = vunpack.c.l.bf16 %v5680
          %v5721 = vunpack.c.l.bf16 %v5681
          %v5722 = vunpack.c.l.bf16 %v5682
          %v5723 = vunpack.c.l.bf16 %v5683
          %v5724 = vunpack.c.l.bf16 %v5684
          %v5725 = vunpack.c.l.bf16 %v5685
          %v5726 = vunpack.c.l.bf16 %v5686
          %v5727 = vunpack.c.l.bf16 %v5687
          %v5728 = vunpack.c.l.bf16 %v5688
          %v5729 = vunpack.c.l.bf16 %v5689
          %v5730 = vunpack.c.l.bf16 %v5690
          %v5731 = vunpack.c.l.bf16 %v5691
          %v5732 = vunpack.c.l.bf16 %v5692
          %v5733 = vunpack.c.l.bf16 %v5693
          %v5734 = vunpack.c.l.bf16 %v5694
          %v5735 = vunpack.c.l.bf16 %v5695
          %v5736 = vunpack.c.l.bf16 %v5696
          %v5737 = vunpack.c.l.bf16 %v5697
          %v5738 = vunpack.c.l.bf16 %v5698
          %v5739 = vunpack.c.l.bf16 %v5699
          %v5740 = vunpack.c.l.bf16 %v5700
          %v5741 = vunpack.c.l.bf16 %v5701
          %v5742 = vunpack.c.l.bf16 %v5702
          %v5743 = vunpack.c.l.bf16 %v5703
          %v5744 = vlaneseq
          %v5745 = vshrl.u32 %v5744, 7
          %v5746 = vsub.s32 0, %v5745
          %v5747 = vrot.slane %v1205, %v5746
          %v5748 = vmul.f32 %v5704, %v5747
          %v5749 = vmul.f32 %v5705, %v5747
          %v5750 = vmul.f32 %v5706, %v5747
          %v5751 = vmul.f32 %v5707, %v5747
          %v5752 = vmul.f32 %v5708, %v5747
          %v5753 = vmul.f32 %v5709, %v5747
          %v5754 = vmul.f32 %v5710, %v5747
          %v5755 = vmul.f32 %v5711, %v5747
          %v5756 = vmul.f32 %v5712, %v5747
          %v5757 = vmul.f32 %v5713, %v5747
          %v5758 = vmul.f32 %v5714, %v5747
          %v5759 = vmul.f32 %v5715, %v5747
          %v5760 = vmul.f32 %v5716, %v5747
          %v5761 = vmul.f32 %v5717, %v5747
          %v5762 = vmul.f32 %v5718, %v5747
          %v5763 = vmul.f32 %v5719, %v5747
          %v5764 = vmul.f32 %v5720, %v5747
          %v5765 = vmul.f32 %v5721, %v5747
          %v5766 = vmul.f32 %v5722, %v5747
          %v5767 = vmul.f32 %v5723, %v5747
          %v5768 = vmul.f32 %v5724, %v5747
          %v5769 = vmul.f32 %v5725, %v5747
          %v5770 = vmul.f32 %v5726, %v5747
          %v5771 = vmul.f32 %v5727, %v5747
          %v5772 = vmul.f32 %v5728, %v5747
          %v5773 = vmul.f32 %v5729, %v5747
          %v5774 = vmul.f32 %v5730, %v5747
          %v5775 = vmul.f32 %v5731, %v5747
          %v5776 = vmul.f32 %v5732, %v5747
          %v5777 = vmul.f32 %v5733, %v5747
          %v5778 = vmul.f32 %v5734, %v5747
          %v5779 = vmul.f32 %v5735, %v5747
          %v5780 = vmul.f32 %v5736, %v5747
          %v5781 = vmul.f32 %v5737, %v5747
          %v5782 = vmul.f32 %v5738, %v5747
          %v5783 = vmul.f32 %v5739, %v5747
          %v5784 = vmul.f32 %v5740, %v5747
          %v5785 = vmul.f32 %v5741, %v5747
          %v5786 = vmul.f32 %v5742, %v5747
          %v5787 = vmul.f32 %v5743, %v5747
          %v5788 = vadd.f32 %v5620, %v5748
          %v5789 = vadd.f32 %v5621, %v5749
          %v5790 = vadd.f32 %v5622, %v5750
          %v5791 = vadd.f32 %v5623, %v5751
          %v5792 = vadd.f32 %v5624, %v5752
          %v5793 = vadd.f32 %v5625, %v5753
          %v5794 = vadd.f32 %v5626, %v5754
          %v5795 = vadd.f32 %v5627, %v5755
          %v5796 = vadd.f32 %v5628, %v5756
          %v5797 = vadd.f32 %v5629, %v5757
          %v5798 = vadd.f32 %v5630, %v5758
          %v5799 = vadd.f32 %v5631, %v5759
          %v5800 = vadd.f32 %v5632, %v5760
          %v5801 = vadd.f32 %v5633, %v5761
          %v5802 = vadd.f32 %v5634, %v5762
          %v5803 = vadd.f32 %v5635, %v5763
          %v5804 = vadd.f32 %v5636, %v5764
          %v5805 = vadd.f32 %v5637, %v5765
          %v5806 = vadd.f32 %v5638, %v5766
          %v5807 = vadd.f32 %v5639, %v5767
          %v5808 = vadd.f32 %v5640, %v5768
          %v5809 = vadd.f32 %v5641, %v5769
          %v5810 = vadd.f32 %v5642, %v5770
          %v5811 = vadd.f32 %v5643, %v5771
          %v5812 = vadd.f32 %v5644, %v5772
          %v5813 = vadd.f32 %v5645, %v5773
          %v5814 = vadd.f32 %v5646, %v5774
          %v5815 = vadd.f32 %v5647, %v5775
          %v5816 = vadd.f32 %v5648, %v5776
          %v5817 = vadd.f32 %v5649, %v5777
          %v5818 = vadd.f32 %v5650, %v5778
          %v5819 = vadd.f32 %v5651, %v5779
          %v5820 = vadd.f32 %v5652, %v5780
          %v5821 = vadd.f32 %v5653, %v5781
          %v5822 = vadd.f32 %v5654, %v5782
          %v5823 = vadd.f32 %v5655, %v5783
          %v5824 = vadd.f32 %v5656, %v5784
          %v5825 = vadd.f32 %v5657, %v5785
          %v5826 = vadd.f32 %v5658, %v5786
          %v5827 = vadd.f32 %v5659, %v5787
          %v5828 = vlaneseq
          %v5829 = vshrl.u32 %v5828, 7
          %v5830 = vsub.s32 0, %v5829
          %v5831 = vrot.slane %v1206, %v5830
          %v5832 = vmul.f32 %v5705, %v5831
          %v5833 = vmul.f32 %v5706, %v5831
          %v5834 = vmul.f32 %v5707, %v5831
          %v5835 = vmul.f32 %v5708, %v5831
          %v5836 = vmul.f32 %v5710, %v5831
          %v5837 = vmul.f32 %v5711, %v5831
          %v5838 = vmul.f32 %v5712, %v5831
          %v5839 = vmul.f32 %v5713, %v5831
          %v5840 = vmul.f32 %v5715, %v5831
          %v5841 = vmul.f32 %v5716, %v5831
          %v5842 = vmul.f32 %v5717, %v5831
          %v5843 = vmul.f32 %v5718, %v5831
          %v5844 = vmul.f32 %v5720, %v5831
          %v5845 = vmul.f32 %v5721, %v5831
          %v5846 = vmul.f32 %v5722, %v5831
          %v5847 = vmul.f32 %v5723, %v5831
          %v5848 = vmul.f32 %v5725, %v5831
          %v5849 = vmul.f32 %v5726, %v5831
          %v5850 = vmul.f32 %v5727, %v5831
          %v5851 = vmul.f32 %v5728, %v5831
          %v5852 = vmul.f32 %v5730, %v5831
          %v5853 = vmul.f32 %v5731, %v5831
          %v5854 = vmul.f32 %v5732, %v5831
          %v5855 = vmul.f32 %v5733, %v5831
          %v5856 = vmul.f32 %v5735, %v5831
          %v5857 = vmul.f32 %v5736, %v5831
          %v5858 = vmul.f32 %v5737, %v5831
          %v5859 = vmul.f32 %v5738, %v5831
          %v5860 = vmul.f32 %v5740, %v5831
          %v5861 = vmul.f32 %v5741, %v5831
          %v5862 = vmul.f32 %v5742, %v5831
          %v5863 = vmul.f32 %v5743, %v5831
          %v5896 = vrot.slane %v5832, 1
          %v5897 = vrot.slane %v5833, 1
          %v5898 = vsel %vm4646, %v5896, %v5897
          %v5899 = vrot.slane %v5834, 1
          %v5900 = vsel %vm4646, %v5897, %v5899
          %v5901 = vrot.slane %v5835, 1
          %v5902 = vsel %vm4646, %v5899, %v5901
          %v5903 = vrot.slane %v5836, 1
          %v5904 = vrot.slane %v5837, 1
          %v5905 = vsel %vm4646, %v5903, %v5904
          %v5906 = vrot.slane %v5838, 1
          %v5907 = vsel %vm4646, %v5904, %v5906
          %v5908 = vrot.slane %v5839, 1
          %v5909 = vsel %vm4646, %v5906, %v5908
          %v5910 = vrot.slane %v5840, 1
          %v5911 = vrot.slane %v5841, 1
          %v5912 = vsel %vm4646, %v5910, %v5911
          %v5913 = vrot.slane %v5842, 1
          %v5914 = vsel %vm4646, %v5911, %v5913
          %v5915 = vrot.slane %v5843, 1
          %v5916 = vsel %vm4646, %v5913, %v5915
          %v5917 = vrot.slane %v5844, 1
          %v5918 = vrot.slane %v5845, 1
          %v5919 = vsel %vm4646, %v5917, %v5918
          %v5920 = vrot.slane %v5846, 1
          %v5921 = vsel %vm4646, %v5918, %v5920
          %v5922 = vrot.slane %v5847, 1
          %v5923 = vsel %vm4646, %v5920, %v5922
          %v5924 = vrot.slane %v5848, 1
          %v5925 = vrot.slane %v5849, 1
          %v5926 = vsel %vm4646, %v5924, %v5925
          %v5927 = vrot.slane %v5850, 1
          %v5928 = vsel %vm4646, %v5925, %v5927
          %v5929 = vrot.slane %v5851, 1
          %v5930 = vsel %vm4646, %v5927, %v5929
          %v5931 = vrot.slane %v5852, 1
          %v5932 = vrot.slane %v5853, 1
          %v5933 = vsel %vm4646, %v5931, %v5932
          %v5934 = vrot.slane %v5854, 1
          %v5935 = vsel %vm4646, %v5932, %v5934
          %v5936 = vrot.slane %v5855, 1
          %v5937 = vsel %vm4646, %v5934, %v5936
          %v5938 = vrot.slane %v5856, 1
          %v5939 = vrot.slane %v5857, 1
          %v5940 = vsel %vm4646, %v5938, %v5939
          %v5941 = vrot.slane %v5858, 1
          %v5942 = vsel %vm4646, %v5939, %v5941
          %v5943 = vrot.slane %v5859, 1
          %v5944 = vsel %vm4646, %v5941, %v5943
          %v5945 = vrot.slane %v5860, 1
          %v5946 = vrot.slane %v5861, 1
          %v5947 = vsel %vm4646, %v5945, %v5946
          %v5948 = vrot.slane %v5862, 1
          %v5949 = vsel %vm4646, %v5946, %v5948
          %v5950 = vrot.slane %v5863, 1
          %v5951 = vsel %vm4646, %v5948, %v5950
          %v5992 = vadd.f32 %v5788, %v5896
          %v5993 = vadd.f32 %v5789, %v5898
          %v5994 = vadd.f32 %v5790, %v5900
          %v5995 = vadd.f32 %v5791, %v5902
          %v5996 = vadd.f32 %v5792, %v5901
          %v5997 = vadd.f32 %v5793, %v5903
          %v5998 = vadd.f32 %v5794, %v5905
          %v5999 = vadd.f32 %v5795, %v5907
          %v6000 = vadd.f32 %v5796, %v5909
          %v6001 = vadd.f32 %v5797, %v5908
          %v6002 = vadd.f32 %v5798, %v5910
          %v6003 = vadd.f32 %v5799, %v5912
          %v6004 = vadd.f32 %v5800, %v5914
          %v6005 = vadd.f32 %v5801, %v5916
          %v6006 = vadd.f32 %v5802, %v5915
          %v6007 = vadd.f32 %v5803, %v5917
          %v6008 = vadd.f32 %v5804, %v5919
          %v6009 = vadd.f32 %v5805, %v5921
          %v6010 = vadd.f32 %v5806, %v5923
          %v6011 = vadd.f32 %v5807, %v5922
          %v6012 = vadd.f32 %v5808, %v5924
          %v6013 = vadd.f32 %v5809, %v5926
          %v6014 = vadd.f32 %v5810, %v5928
          %v6015 = vadd.f32 %v5811, %v5930
          %v6016 = vadd.f32 %v5812, %v5929
          %v6017 = vadd.f32 %v5813, %v5931
          %v6018 = vadd.f32 %v5814, %v5933
          %v6019 = vadd.f32 %v5815, %v5935
          %v6020 = vadd.f32 %v5816, %v5937
          %v6021 = vadd.f32 %v5817, %v5936
          %v6022 = vadd.f32 %v5818, %v5938
          %v6023 = vadd.f32 %v5819, %v5940
          %v6024 = vadd.f32 %v5820, %v5942
          %v6025 = vadd.f32 %v5821, %v5944
          %v6026 = vadd.f32 %v5822, %v5943
          %v6027 = vadd.f32 %v5823, %v5945
          %v6028 = vadd.f32 %v5824, %v5947
          %v6029 = vadd.f32 %v5825, %v5949
          %v6030 = vadd.f32 %v5826, %v5951
          %v6031 = vadd.f32 %v5827, %v5950
          %v6032 = vld [vmem:[%s5663 + $0x14] sm:$0x1]
          %v6033 = vld [vmem:[%s5663 + $0x2c] sm:$0x1]
          %v6034 = vld [vmem:[%s5663 + $0x44] sm:$0x1]
          %v6035 = vld [vmem:[%s5663 + $0x5c] sm:$0x1]
          %v6036 = vld [vmem:[%s5663 + $0x74] sm:$0x1]
          %v6037 = vld [vmem:[%s5663 + $0x8c] sm:$0x1]
          %v6038 = vld [vmem:[%s5663 + $0xa4] sm:$0x1]
          %v6039 = vld [vmem:[%s5663 + $0xbc] sm:$0x1]
          %v6040 = vunpack.c.l.bf16 %v6032
          %v6041 = vunpack.c.l.bf16 %v6033
          %v6042 = vunpack.c.l.bf16 %v6034
          %v6043 = vunpack.c.l.bf16 %v6035
          %v6044 = vunpack.c.l.bf16 %v6036
          %v6045 = vunpack.c.l.bf16 %v6037
          %v6046 = vunpack.c.l.bf16 %v6038
          %v6047 = vunpack.c.l.bf16 %v6039
          %v6048 = vlaneseq
          %v6049 = vshrl.u32 %v6048, 7
          %v6050 = vsub.s32 0, %v6049
          %v6051 = vrot.slane %v1207, %v6050
          %v6052 = vmul.f32 %v5705, %v6051
          %v6053 = vmul.f32 %v5706, %v6051
          %v6054 = vmul.f32 %v5707, %v6051
          %v6055 = vmul.f32 %v5708, %v6051
          %v6056 = vmul.f32 %v6040, %v6051
          %v6057 = vmul.f32 %v5710, %v6051
          %v6058 = vmul.f32 %v5711, %v6051
          %v6059 = vmul.f32 %v5712, %v6051
          %v6060 = vmul.f32 %v5713, %v6051
          %v6061 = vmul.f32 %v6041, %v6051
          %v6062 = vmul.f32 %v5715, %v6051
          %v6063 = vmul.f32 %v5716, %v6051
          %v6064 = vmul.f32 %v5717, %v6051
          %v6065 = vmul.f32 %v5718, %v6051
          %v6066 = vmul.f32 %v6042, %v6051
          %v6067 = vmul.f32 %v5720, %v6051
          %v6068 = vmul.f32 %v5721, %v6051
          %v6069 = vmul.f32 %v5722, %v6051
          %v6070 = vmul.f32 %v5723, %v6051
          %v6071 = vmul.f32 %v6043, %v6051
          %v6072 = vmul.f32 %v5725, %v6051
          %v6073 = vmul.f32 %v5726, %v6051
          %v6074 = vmul.f32 %v5727, %v6051
          %v6075 = vmul.f32 %v5728, %v6051
          %v6076 = vmul.f32 %v6044, %v6051
          %v6077 = vmul.f32 %v5730, %v6051
          %v6078 = vmul.f32 %v5731, %v6051
          %v6079 = vmul.f32 %v5732, %v6051
          %v6080 = vmul.f32 %v5733, %v6051
          %v6081 = vmul.f32 %v6045, %v6051
          %v6082 = vmul.f32 %v5735, %v6051
          %v6083 = vmul.f32 %v5736, %v6051
          %v6084 = vmul.f32 %v5737, %v6051
          %v6085 = vmul.f32 %v5738, %v6051
          %v6086 = vmul.f32 %v6046, %v6051
          %v6087 = vmul.f32 %v5740, %v6051
          %v6088 = vmul.f32 %v5741, %v6051
          %v6089 = vmul.f32 %v5742, %v6051
          %v6090 = vmul.f32 %v5743, %v6051
          %v6091 = vmul.f32 %v6047, %v6051
          %v6132 = vrot.slane %v6052, 2
          %v6133 = vrot.slane %v6053, 2
          %v6134 = vsel %vm4883, %v6132, %v6133
          %v6135 = vrot.slane %v6054, 2
          %v6136 = vsel %vm4883, %v6133, %v6135
          %v6137 = vrot.slane %v6055, 2
          %v6138 = vsel %vm4883, %v6135, %v6137
          %v6139 = vrot.slane %v6056, 2
          %v6140 = vsel %vm4883, %v6137, %v6139
          %v6141 = vrot.slane %v6057, 2
          %v6142 = vrot.slane %v6058, 2
          %v6143 = vsel %vm4883, %v6141, %v6142
          %v6144 = vrot.slane %v6059, 2
          %v6145 = vsel %vm4883, %v6142, %v6144
          %v6146 = vrot.slane %v6060, 2
          %v6147 = vsel %vm4883, %v6144, %v6146
          %v6148 = vrot.slane %v6061, 2
          %v6149 = vsel %vm4883, %v6146, %v6148
          %v6150 = vrot.slane %v6062, 2
          %v6151 = vrot.slane %v6063, 2
          %v6152 = vsel %vm4883, %v6150, %v6151
          %v6153 = vrot.slane %v6064, 2
          %v6154 = vsel %vm4883, %v6151, %v6153
          %v6155 = vrot.slane %v6065, 2
          %v6156 = vsel %vm4883, %v6153, %v6155
          %v6157 = vrot.slane %v6066, 2
          %v6158 = vsel %vm4883, %v6155, %v6157
          %v6159 = vrot.slane %v6067, 2
          %v6160 = vrot.slane %v6068, 2
          %v6161 = vsel %vm4883, %v6159, %v6160
          %v6162 = vrot.slane %v6069, 2
          %v6163 = vsel %vm4883, %v6160, %v6162
          %v6164 = vrot.slane %v6070, 2
          %v6165 = vsel %vm4883, %v6162, %v6164
          %v6166 = vrot.slane %v6071, 2
          %v6167 = vsel %vm4883, %v6164, %v6166
          %v6168 = vrot.slane %v6072, 2
          %v6169 = vrot.slane %v6073, 2
          %v6170 = vsel %vm4883, %v6168, %v6169
          %v6171 = vrot.slane %v6074, 2
          %v6172 = vsel %vm4883, %v6169, %v6171
          %v6173 = vrot.slane %v6075, 2
          %v6174 = vsel %vm4883, %v6171, %v6173
          %v6175 = vrot.slane %v6076, 2
          %v6176 = vsel %vm4883, %v6173, %v6175
          %v6177 = vrot.slane %v6077, 2
          %v6178 = vrot.slane %v6078, 2
          %v6179 = vsel %vm4883, %v6177, %v6178
          %v6180 = vrot.slane %v6079, 2
          %v6181 = vsel %vm4883, %v6178, %v6180
          %v6182 = vrot.slane %v6080, 2
          %v6183 = vsel %vm4883, %v6180, %v6182
          %v6184 = vrot.slane %v6081, 2
          %v6185 = vsel %vm4883, %v6182, %v6184
          %v6186 = vrot.slane %v6082, 2
          %v6187 = vrot.slane %v6083, 2
          %v6188 = vsel %vm4883, %v6186, %v6187
          %v6189 = vrot.slane %v6084, 2
          %v6190 = vsel %vm4883, %v6187, %v6189
          %v6191 = vrot.slane %v6085, 2
          %v6192 = vsel %vm4883, %v6189, %v6191
          %v6193 = vrot.slane %v6086, 2
          %v6194 = vsel %vm4883, %v6191, %v6193
          %v6195 = vrot.slane %v6087, 2
          %v6196 = vrot.slane %v6088, 2
          %v6197 = vsel %vm4883, %v6195, %v6196
          %v6198 = vrot.slane %v6089, 2
          %v6199 = vsel %vm4883, %v6196, %v6198
          %v6200 = vrot.slane %v6090, 2
          %v6201 = vsel %vm4883, %v6198, %v6200
          %v6202 = vrot.slane %v6091, 2
          %v6203 = vsel %vm4883, %v6200, %v6202
          %v6244 = vadd.f32 %v5992, %v6132
          %v6245 = vadd.f32 %v5993, %v6134
          %v6246 = vadd.f32 %v5994, %v6136
          %v6247 = vadd.f32 %v5995, %v6138
          %v6248 = vadd.f32 %v5996, %v6140
          %v6249 = vadd.f32 %v5997, %v6141
          %v6250 = vadd.f32 %v5998, %v6143
          %v6251 = vadd.f32 %v5999, %v6145
          %v6252 = vadd.f32 %v6000, %v6147
          %v6253 = vadd.f32 %v6001, %v6149
          %v6254 = vadd.f32 %v6002, %v6150
          %v6255 = vadd.f32 %v6003, %v6152
          %v6256 = vadd.f32 %v6004, %v6154
          %v6257 = vadd.f32 %v6005, %v6156
          %v6258 = vadd.f32 %v6006, %v6158
          %v6259 = vadd.f32 %v6007, %v6159
          %v6260 = vadd.f32 %v6008, %v6161
          %v6261 = vadd.f32 %v6009, %v6163
          %v6262 = vadd.f32 %v6010, %v6165
          %v6263 = vadd.f32 %v6011, %v6167
          %v6264 = vadd.f32 %v6012, %v6168
          %v6265 = vadd.f32 %v6013, %v6170
          %v6266 = vadd.f32 %v6014, %v6172
          %v6267 = vadd.f32 %v6015, %v6174
          %v6268 = vadd.f32 %v6016, %v6176
          %v6269 = vadd.f32 %v6017, %v6177
          %v6270 = vadd.f32 %v6018, %v6179
          %v6271 = vadd.f32 %v6019, %v6181
          %v6272 = vadd.f32 %v6020, %v6183
          %v6273 = vadd.f32 %v6021, %v6185
          %v6274 = vadd.f32 %v6022, %v6186
          %v6275 = vadd.f32 %v6023, %v6188
          %v6276 = vadd.f32 %v6024, %v6190
          %v6277 = vadd.f32 %v6025, %v6192
          %v6278 = vadd.f32 %v6026, %v6194
          %v6279 = vadd.f32 %v6027, %v6195
          %v6280 = vadd.f32 %v6028, %v6197
          %v6281 = vadd.f32 %v6029, %v6199
          %v6282 = vadd.f32 %v6030, %v6201
          %v6283 = vadd.f32 %v6031, %v6203
          %vm6284 = vcmask 523271
          %v6285 = vsel %vm6284, %v6244, 0.0
          %6286 = vadd.xlane.f32.xlu0 %v6285
          %v6287 = vpop.xlane.xlu0 %6286
          %vm6288 = vcmask 523264
          %v6289 = vsel %vm6288, %v6245, 0.0
          %6290 = vadd.xlane.f32.xlu0 %v6289
          %v6291 = vpop.xlane.xlu0 %6290
          %v6292 = vsel %vm6288, %v6246, 0.0
          %6293 = vadd.xlane.f32.xlu0 %v6292
          %v6294 = vpop.xlane.xlu0 %6293
          %v6295 = vsel %vm6288, %v6247, 0.0
          %6296 = vadd.xlane.f32.xlu0 %v6295
          %v6297 = vpop.xlane.xlu0 %6296
          %vm6298 = vcmask 522240
          %v6299 = vsel %vm6298, %v6248, 0.0
          %6300 = vadd.xlane.f32.xlu0 %v6299
          %v6301 = vpop.xlane.xlu0 %6300
          %v6302 = vsel %vm6284, %v6249, 0.0
          %6303 = vadd.xlane.f32.xlu0 %v6302
          %v6304 = vpop.xlane.xlu0 %6303
          %v6305 = vsel %vm6288, %v6250, 0.0
          %6306 = vadd.xlane.f32.xlu0 %v6305
          %v6307 = vpop.xlane.xlu0 %6306
          %v6308 = vsel %vm6288, %v6251, 0.0
          %6309 = vadd.xlane.f32.xlu0 %v6308
          %v6310 = vpop.xlane.xlu0 %6309
          %v6311 = vsel %vm6288, %v6252, 0.0
          %6312 = vadd.xlane.f32.xlu0 %v6311
          %v6313 = vpop.xlane.xlu0 %6312
          %v6314 = vsel %vm6298, %v6253, 0.0
          %6315 = vadd.xlane.f32.xlu0 %v6314
          %v6316 = vpop.xlane.xlu0 %6315
          %v6317 = vsel %vm6284, %v6254, 0.0
          %6318 = vadd.xlane.f32.xlu0 %v6317
          %v6319 = vpop.xlane.xlu0 %6318
          %v6320 = vsel %vm6288, %v6255, 0.0
          %6321 = vadd.xlane.f32.xlu0 %v6320
          %v6322 = vpop.xlane.xlu0 %6321
          %v6323 = vsel %vm6288, %v6256, 0.0
          %6324 = vadd.xlane.f32.xlu0 %v6323
          %v6325 = vpop.xlane.xlu0 %6324
          %v6326 = vsel %vm6288, %v6257, 0.0
          %6327 = vadd.xlane.f32.xlu0 %v6326
          %v6328 = vpop.xlane.xlu0 %6327
          %v6329 = vsel %vm6298, %v6258, 0.0
          %6330 = vadd.xlane.f32.xlu0 %v6329
          %v6331 = vpop.xlane.xlu0 %6330
          %v6332 = vsel %vm6284, %v6259, 0.0
          %6333 = vadd.xlane.f32.xlu0 %v6332
          %v6334 = vpop.xlane.xlu0 %6333
          %v6335 = vsel %vm6288, %v6260, 0.0
          %6336 = vadd.xlane.f32.xlu0 %v6335
          %v6337 = vpop.xlane.xlu0 %6336
          %v6338 = vsel %vm6288, %v6261, 0.0
          %6339 = vadd.xlane.f32.xlu0 %v6338
          %v6340 = vpop.xlane.xlu0 %6339
          %v6341 = vsel %vm6288, %v6262, 0.0
          %6342 = vadd.xlane.f32.xlu0 %v6341
          %v6343 = vpop.xlane.xlu0 %6342
          %v6344 = vsel %vm6298, %v6263, 0.0
          %6345 = vadd.xlane.f32.xlu0 %v6344
          %v6346 = vpop.xlane.xlu0 %6345
          %v6347 = vsel %vm6284, %v6264, 0.0
          %6348 = vadd.xlane.f32.xlu0 %v6347
          %v6349 = vpop.xlane.xlu0 %6348
          %v6350 = vsel %vm6288, %v6265, 0.0
          %6351 = vadd.xlane.f32.xlu0 %v6350
          %v6352 = vpop.xlane.xlu0 %6351
          %v6353 = vsel %vm6288, %v6266, 0.0
          %6354 = vadd.xlane.f32.xlu0 %v6353
          %v6355 = vpop.xlane.xlu0 %6354
          %v6356 = vsel %vm6288, %v6267, 0.0
          %6357 = vadd.xlane.f32.xlu0 %v6356
          %v6358 = vpop.xlane.xlu0 %6357
          %v6359 = vsel %vm6298, %v6268, 0.0
          %6360 = vadd.xlane.f32.xlu0 %v6359
          %v6361 = vpop.xlane.xlu0 %6360
          %v6362 = vsel %vm6284, %v6269, 0.0
          %6363 = vadd.xlane.f32.xlu0 %v6362
          %v6364 = vpop.xlane.xlu0 %6363
          %v6365 = vsel %vm6288, %v6270, 0.0
          %6366 = vadd.xlane.f32.xlu0 %v6365
          %v6367 = vpop.xlane.xlu0 %6366
          %v6368 = vsel %vm6288, %v6271, 0.0
          %6369 = vadd.xlane.f32.xlu0 %v6368
          %v6370 = vpop.xlane.xlu0 %6369
          %v6371 = vsel %vm6288, %v6272, 0.0
          %6372 = vadd.xlane.f32.xlu0 %v6371
          %v6373 = vpop.xlane.xlu0 %6372
          %v6374 = vsel %vm6298, %v6273, 0.0
          %6375 = vadd.xlane.f32.xlu0 %v6374
          %v6376 = vpop.xlane.xlu0 %6375
          %v6377 = vsel %vm6284, %v6274, 0.0
          %6378 = vadd.xlane.f32.xlu0 %v6377
          %v6379 = vpop.xlane.xlu0 %6378
          %v6380 = vsel %vm6288, %v6275, 0.0
          %6381 = vadd.xlane.f32.xlu0 %v6380
          %v6382 = vpop.xlane.xlu0 %6381
          %v6383 = vsel %vm6288, %v6276, 0.0
          %6384 = vadd.xlane.f32.xlu0 %v6383
          %v6385 = vpop.xlane.xlu0 %6384
          %v6386 = vsel %vm6288, %v6277, 0.0
          %6387 = vadd.xlane.f32.xlu0 %v6386
          %v6388 = vpop.xlane.xlu0 %6387
          %v6389 = vsel %vm6298, %v6278, 0.0
          %6390 = vadd.xlane.f32.xlu0 %v6389
          %v6391 = vpop.xlane.xlu0 %6390
          %v6392 = vsel %vm6284, %v6279, 0.0
          %6393 = vadd.xlane.f32.xlu0 %v6392
          %v6394 = vpop.xlane.xlu0 %6393
          %v6395 = vsel %vm6288, %v6280, 0.0
          %6396 = vadd.xlane.f32.xlu0 %v6395
          %v6397 = vpop.xlane.xlu0 %6396
          %v6398 = vsel %vm6288, %v6281, 0.0
          %6399 = vadd.xlane.f32.xlu0 %v6398
          %v6400 = vpop.xlane.xlu0 %6399
          %v6401 = vsel %vm6288, %v6282, 0.0
          %6402 = vadd.xlane.f32.xlu0 %v6401
          %v6403 = vpop.xlane.xlu0 %6402
          %v6404 = vsel %vm6298, %v6283, 0.0
          %6405 = vadd.xlane.f32.xlu0 %v6404
          %v6406 = vpop.xlane.xlu0 %6405
          %v6408 = vlaneseq
          %v6409 = vshrl.u32 %v6408, 7
          %v6410 = vsub.s32 0, %v6409
          %v6411 = vrot.slane %v1208, %v6410
          %6412 = vset.pattern.permute.xlu0 0
          %6413 = vperm.xlu0 %6412, %v6411
          %v6414 = vpop.permute.xlu0 %6413
          %v6416 = vadd.f32 %v6287, %v6414
          %v6417 = vadd.f32 %v6291, %v6414
          %v6418 = vadd.f32 %v6294, %v6414
          %v6419 = vadd.f32 %v6297, %v6414
          %v6420 = vadd.f32 %v6301, %v6414
          %v6421 = vadd.f32 %v6304, %v6414
          %v6422 = vadd.f32 %v6307, %v6414
          %v6423 = vadd.f32 %v6310, %v6414
          %v6424 = vadd.f32 %v6313, %v6414
          %v6425 = vadd.f32 %v6316, %v6414
          %v6426 = vadd.f32 %v6319, %v6414
          %v6427 = vadd.f32 %v6322, %v6414
          %v6428 = vadd.f32 %v6325, %v6414
          %v6429 = vadd.f32 %v6328, %v6414
          %v6430 = vadd.f32 %v6331, %v6414
          %v6431 = vadd.f32 %v6334, %v6414
          %v6432 = vadd.f32 %v6337, %v6414
          %v6433 = vadd.f32 %v6340, %v6414
          %v6434 = vadd.f32 %v6343, %v6414
          %v6435 = vadd.f32 %v6346, %v6414
          %v6436 = vadd.f32 %v6349, %v6414
          %v6437 = vadd.f32 %v6352, %v6414
          %v6438 = vadd.f32 %v6355, %v6414
          %v6439 = vadd.f32 %v6358, %v6414
          %v6440 = vadd.f32 %v6361, %v6414
          %v6441 = vadd.f32 %v6364, %v6414
          %v6442 = vadd.f32 %v6367, %v6414
          %v6443 = vadd.f32 %v6370, %v6414
          %v6444 = vadd.f32 %v6373, %v6414
          %v6445 = vadd.f32 %v6376, %v6414
          %v6446 = vadd.f32 %v6379, %v6414
          %v6447 = vadd.f32 %v6382, %v6414
          %v6448 = vadd.f32 %v6385, %v6414
          %v6449 = vadd.f32 %v6388, %v6414
          %v6450 = vadd.f32 %v6391, %v6414
          %v6451 = vadd.f32 %v6394, %v6414
          %v6452 = vadd.f32 %v6397, %v6414
          %v6453 = vadd.f32 %v6400, %v6414
          %v6454 = vadd.f32 %v6403, %v6414
          %v6455 = vadd.f32 %v6406, %v6414
          %v6496 = vlaneseq
          %v6497 = vand.u32 %v6496, 127
          %v6498 = vadd.s32 %v6497, 7
          %v6499 = vlaneseq
          %v6500 = vshrl.u32 %v6499, 7
          %v6501 = vsub.s32 %v6498, %v6500
          %v6502 = vrot.slane %v6416, %v6501
          %v6503 = vadd.s32 %v6497, 4294967295
          %v6504 = vlaneseq
          %v6505 = vshrl.u32 %v6504, 7
          %v6506 = vsub.s32 %v6503, %v6505
          %v6507 = vrot.slane %v6417, %v6506
          %vm6508 = vcmask 72712
          %v6509 = vsel %vm6508, %v6507, %v6502
          %v6510 = vadd.s32 %v6497, 4294967287
          %v6511 = vlaneseq
          %v6512 = vshrl.u32 %v6511, 7
          %v6513 = vsub.s32 %v6510, %v6512
          %v6514 = vrot.slane %v6418, %v6513
          %vm6515 = vcmask 138312
          %v6516 = vsel %vm6515, %v6514, %v6509
          %v6517 = vadd.s32 %v6497, 4294967279
          %v6518 = vlaneseq
          %v6519 = vshrl.u32 %v6518, 7
          %v6520 = vsub.s32 %v6517, %v6519
          %v6521 = vrot.slane %v6419, %v6520
          %vm6522 = vcmask 203912
          %v6523 = vsel %vm6522, %v6521, %v6516
          %v6524 = vadd.s32 %v6497, 4294967271
          %v6525 = vlaneseq
          %v6526 = vshrl.u32 %v6525, 7
          %v6527 = vsub.s32 %v6524, %v6526
          %v6528 = vrot.slane %v6420, %v6527
          %vm6529 = vcmask 269512
          %v6530 = vsel %vm6529, %v6528, %v6523
          %v6531 = vlaneseq
          %v6532 = vshrl.u32 %v6531, 7
          %v6533 = vsub.s32 %v6498, %v6532
          %v6534 = vrot.slane %v6421, %v6533
          %v6535 = vlaneseq
          %v6536 = vshrl.u32 %v6535, 7
          %v6537 = vsub.s32 %v6503, %v6536
          %v6538 = vrot.slane %v6422, %v6537
          %v6539 = vsel %vm6508, %v6538, %v6534
          %v6540 = vlaneseq
          %v6541 = vshrl.u32 %v6540, 7
          %v6542 = vsub.s32 %v6510, %v6541
          %v6543 = vrot.slane %v6423, %v6542
          %v6544 = vsel %vm6515, %v6543, %v6539
          %v6545 = vlaneseq
          %v6546 = vshrl.u32 %v6545, 7
          %v6547 = vsub.s32 %v6517, %v6546
          %v6548 = vrot.slane %v6424, %v6547
          %v6549 = vsel %vm6522, %v6548, %v6544
          %v6550 = vlaneseq
          %v6551 = vshrl.u32 %v6550, 7
          %v6552 = vsub.s32 %v6524, %v6551
          %v6553 = vrot.slane %v6425, %v6552
          %v6554 = vsel %vm6529, %v6553, %v6549
          %v6555 = vlaneseq
          %v6556 = vshrl.u32 %v6555, 7
          %v6557 = vsub.s32 %v6498, %v6556
          %v6558 = vrot.slane %v6426, %v6557
          %v6559 = vlaneseq
          %v6560 = vshrl.u32 %v6559, 7
          %v6561 = vsub.s32 %v6503, %v6560
          %v6562 = vrot.slane %v6427, %v6561
          %v6563 = vsel %vm6508, %v6562, %v6558
          %v6564 = vlaneseq
          %v6565 = vshrl.u32 %v6564, 7
          %v6566 = vsub.s32 %v6510, %v6565
          %v6567 = vrot.slane %v6428, %v6566
          %v6568 = vsel %vm6515, %v6567, %v6563
          %v6569 = vlaneseq
          %v6570 = vshrl.u32 %v6569, 7
          %v6571 = vsub.s32 %v6517, %v6570
          %v6572 = vrot.slane %v6429, %v6571
          %v6573 = vsel %vm6522, %v6572, %v6568
          %v6574 = vlaneseq
          %v6575 = vshrl.u32 %v6574, 7
          %v6576 = vsub.s32 %v6524, %v6575
          %v6577 = vrot.slane %v6430, %v6576
          %v6578 = vsel %vm6529, %v6577, %v6573
          %v6579 = vlaneseq
          %v6580 = vshrl.u32 %v6579, 7
          %v6581 = vsub.s32 %v6498, %v6580
          %v6582 = vrot.slane %v6431, %v6581
          %v6583 = vlaneseq
          %v6584 = vshrl.u32 %v6583, 7
          %v6585 = vsub.s32 %v6503, %v6584
          %v6586 = vrot.slane %v6432, %v6585
          %v6587 = vsel %vm6508, %v6586, %v6582
          %v6588 = vlaneseq
          %v6589 = vshrl.u32 %v6588, 7
          %v6590 = vsub.s32 %v6510, %v6589
          %v6591 = vrot.slane %v6433, %v6590
          %v6592 = vsel %vm6515, %v6591, %v6587
          %v6593 = vlaneseq
          %v6594 = vshrl.u32 %v6593, 7
          %v6595 = vsub.s32 %v6517, %v6594
          %v6596 = vrot.slane %v6434, %v6595
          %v6597 = vsel %vm6522, %v6596, %v6592
          %v6598 = vlaneseq
          %v6599 = vshrl.u32 %v6598, 7
          %v6600 = vsub.s32 %v6524, %v6599
          %v6601 = vrot.slane %v6435, %v6600
          %v6602 = vsel %vm6529, %v6601, %v6597
          %v6603 = vlaneseq
          %v6604 = vshrl.u32 %v6603, 7
          %v6605 = vsub.s32 %v6498, %v6604
          %v6606 = vrot.slane %v6436, %v6605
          %v6607 = vlaneseq
          %v6608 = vshrl.u32 %v6607, 7
          %v6609 = vsub.s32 %v6503, %v6608
          %v6610 = vrot.slane %v6437, %v6609
          %v6611 = vsel %vm6508, %v6610, %v6606
          %v6612 = vlaneseq
          %v6613 = vshrl.u32 %v6612, 7
          %v6614 = vsub.s32 %v6510, %v6613
          %v6615 = vrot.slane %v6438, %v6614
          %v6616 = vsel %vm6515, %v6615, %v6611
          %v6617 = vlaneseq
          %v6618 = vshrl.u32 %v6617, 7
          %v6619 = vsub.s32 %v6517, %v6618
          %v6620 = vrot.slane %v6439, %v6619
          %v6621 = vsel %vm6522, %v6620, %v6616
          %v6622 = vlaneseq
          %v6623 = vshrl.u32 %v6622, 7
          %v6624 = vsub.s32 %v6524, %v6623
          %v6625 = vrot.slane %v6440, %v6624
          %v6626 = vsel %vm6529, %v6625, %v6621
          %v6627 = vlaneseq
          %v6628 = vshrl.u32 %v6627, 7
          %v6629 = vsub.s32 %v6498, %v6628
          %v6630 = vrot.slane %v6441, %v6629
          %v6631 = vlaneseq
          %v6632 = vshrl.u32 %v6631, 7
          %v6633 = vsub.s32 %v6503, %v6632
          %v6634 = vrot.slane %v6442, %v6633
          %v6635 = vsel %vm6508, %v6634, %v6630
          %v6636 = vlaneseq
          %v6637 = vshrl.u32 %v6636, 7
          %v6638 = vsub.s32 %v6510, %v6637
          %v6639 = vrot.slane %v6443, %v6638
          %v6640 = vsel %vm6515, %v6639, %v6635
          %v6641 = vlaneseq
          %v6642 = vshrl.u32 %v6641, 7
          %v6643 = vsub.s32 %v6517, %v6642
          %v6644 = vrot.slane %v6444, %v6643
          %v6645 = vsel %vm6522, %v6644, %v6640
          %v6646 = vlaneseq
          %v6647 = vshrl.u32 %v6646, 7
          %v6648 = vsub.s32 %v6524, %v6647
          %v6649 = vrot.slane %v6445, %v6648
          %v6650 = vsel %vm6529, %v6649, %v6645
          %v6651 = vlaneseq
          %v6652 = vshrl.u32 %v6651, 7
          %v6653 = vsub.s32 %v6498, %v6652
          %v6654 = vrot.slane %v6446, %v6653
          %v6655 = vlaneseq
          %v6656 = vshrl.u32 %v6655, 7
          %v6657 = vsub.s32 %v6503, %v6656
          %v6658 = vrot.slane %v6447, %v6657
          %v6659 = vsel %vm6508, %v6658, %v6654
          %v6660 = vlaneseq
          %v6661 = vshrl.u32 %v6660, 7
          %v6662 = vsub.s32 %v6510, %v6661
          %v6663 = vrot.slane %v6448, %v6662
          %v6664 = vsel %vm6515, %v6663, %v6659
          %v6665 = vlaneseq
          %v6666 = vshrl.u32 %v6665, 7
          %v6667 = vsub.s32 %v6517, %v6666
          %v6668 = vrot.slane %v6449, %v6667
          %v6669 = vsel %vm6522, %v6668, %v6664
          %v6670 = vlaneseq
          %v6671 = vshrl.u32 %v6670, 7
          %v6672 = vsub.s32 %v6524, %v6671
          %v6673 = vrot.slane %v6450, %v6672
          %v6674 = vsel %vm6529, %v6673, %v6669
          %v6675 = vlaneseq
          %v6676 = vshrl.u32 %v6675, 7
          %v6677 = vsub.s32 %v6498, %v6676
          %v6678 = vrot.slane %v6451, %v6677
          %v6679 = vlaneseq
          %v6680 = vshrl.u32 %v6679, 7
          %v6681 = vsub.s32 %v6503, %v6680
          %v6682 = vrot.slane %v6452, %v6681
          %v6683 = vsel %vm6508, %v6682, %v6678
          %v6684 = vlaneseq
          %v6685 = vshrl.u32 %v6684, 7
          %v6686 = vsub.s32 %v6510, %v6685
          %v6687 = vrot.slane %v6453, %v6686
          %v6688 = vsel %vm6515, %v6687, %v6683
          %v6689 = vlaneseq
          %v6690 = vshrl.u32 %v6689, 7
          %v6691 = vsub.s32 %v6517, %v6690
          %v6692 = vrot.slane %v6454, %v6691
          %v6693 = vsel %vm6522, %v6692, %v6688
          %v6694 = vlaneseq
          %v6695 = vshrl.u32 %v6694, 7
          %v6696 = vsub.s32 %v6524, %v6695
          %v6697 = vrot.slane %v6455, %v6696
          %v6698 = vsel %vm6529, %v6697, %v6693
          %vm6699 = vcmask 1041409
          %v6700 = vsel %vm6699, %v6578, %v6554
          %vm6701 = vcmask 1042434
          %v6702 = vsel %vm6701, %v6602, %v6700
          %vm6703 = vcmask 1043459
          %v6704 = vsel %vm6703, %v6626, %v6702
          %vm6705 = vcmask 1044484
          %v6706 = vsel %vm6705, %v6650, %v6704
          %vm6707 = vcmask 1045509
          %v6708 = vsel %vm6707, %v6674, %v6706
          %vm6709 = vcmask 1046534
          %v6710 = vsel %vm6709, %v6698, %v6708
          %s6713 = scalar_lea.vmem %s257, %s4410 [#allocation7]
          %vm6714 = vcmask 261127
          %6715 = vst.msk [vmem:[%s6713 - $0x7] sm:$0x80] %vm6714, %v6530
          %vm6716 = vcmask 260096
          %6717 = vst.msk [vmem:[%s6713 + $0x1] sm:$0x7f] %vm6716, %v6710
        $region52: #{decoder_resf_forward.7} parent=39 // loop_footer
          %s4409 = sadd.s32 1, %s4405
        $region53: #{decoder_resf_forward.7} parent=39 // loop_footer_branch
          %4404 = sbr.rel target = $region49
        $region54: #{decoder_resf_forward.7} parent=39 // loop_exit
          _
        %s6718 = sand.u32 %s144, 1
        %s6719 = scalar_lea.sflag [#allocation6], %s6718
        %s6720 = sand.u32 %s144, 1
        %s6721 = smul.addr %s6720, 1024
        %s6722 = scalar_lea.vmem [#allocation5], %s6721
        %s6723 = sand.u32 %s170, 1
        %s6724 = scalar_lea.sflag [#allocation8], %s6723
        %s6725 = sand.u32 %s170, 1
        %s6726 = smul.addr %s6725, 32
        %s6727 = scalar_lea.vmem [#allocation7], %s6726
        // Predicated region
        $region55: #{decoder_resf_forward.7} parent=39 // pred_check
          %p6728 = pneg %p154
        $region56: #{decoder_resf_forward.7} parent=39 // pred_check_branch
          %6730 = sbr.rel (%p6728) target = $region58
        $region57: #{decoder_resf_forward.7} parent=39 // pred_region
          %s6732 = ssub.s32 16384, 16384
          %6733 = vsyncadd %s6719, %s6732
          %s6734 = smul.addr %s26, 128
          %s6735 = smul.addr %s6734, 128
          %s6736 = scalar_lea.hbm %s5, %s6735
          %s6737 = sshll.u32 %s6722, 4
          %s6738 = int_to_ptr.vmem [resolvable:$true] %s6737
          %6743 = dma.vmem_to_hbm [thread:$0]  %s6738, 16384, %s6736, %s6719, 128, 128, 8
        $region58: #{decoder_resf_forward.7} parent=39 // pred_fallthru
          _
        // Predicated region
        $region59: #{decoder_resf_forward.7} parent=39 // pred_check
          %p6744 = pneg %p180
        $region60: #{decoder_resf_forward.7} parent=39 // pred_check_branch
          %6746 = sbr.rel (%p6744) target = $region62
        $region61: #{decoder_resf_forward.7} parent=39 // pred_region
          %s6748 = ssub.s32 512, 512
          %6749 = vsyncadd %s6724, %s6748
          %s6750 = smul.addr %s26, 4
          %s6751 = smul.addr %s6750, 128
          %s6752 = scalar_lea.hbm %s6, %s6751
          %s6753 = sshll.u32 %s6727, 4
          %s6754 = int_to_ptr.vmem [resolvable:$true] %s6753
          %6759 = dma.vmem_to_hbm [thread:$0]  %s6754, 512, %s6752, %s6724, 128, 128, 8
        $region62: #{decoder_resf_forward.7} parent=39 // pred_fallthru
          _
      $region40: #{decoder_resf_forward.7} parent=5 // pred_fallthru
        _
      %p6760 = scmp.le.s32.totalorder 2, %s21
      // Predicated region
      $region63: #{decoder_resf_forward.7} parent=5 // pred_check
        %p6761 = pneg %p6760
      $region64: #{decoder_resf_forward.7} parent=5 // pred_check_branch
        %6763 = sbr.rel (%p6761) target = $region66
      $region65: #{decoder_resf_forward.7} parent=5 // pred_region
        %s6764 = ssub.s32 %s21, 2
        // Predicated region
        $region67: #{decoder_resf_forward.7} parent=65 // pred_check
          %p6765 = pneg %p160
        $region68: #{decoder_resf_forward.7} parent=65 // pred_check_branch
          %6767 = sbr.rel (%p6765) target = $region70
        $region69: #{decoder_resf_forward.7} parent=65 // pred_region
          %s6768 = sand.u32 %s145, 1
          %s6769 = scalar_lea.sflag [#allocation6], %s6768
          %s6770 = sand.u32 %s145, 1
          %s6771 = smul.addr %s6770, 1024
          %s6772 = scalar_lea.vmem [#allocation5], %s6771
          %6773 = dma.done %s6769, 16384
        $region70: #{decoder_resf_forward.7} parent=65 // pred_fallthru
          _
        // Predicated region
        $region71: #{decoder_resf_forward.7} parent=65 // pred_check
          %p6774 = pneg %p186
        $region72: #{decoder_resf_forward.7} parent=65 // pred_check_branch
          %6776 = sbr.rel (%p6774) target = $region74
        $region73: #{decoder_resf_forward.7} parent=65 // pred_region
          %s6777 = sand.u32 %s171, 1
          %s6778 = scalar_lea.sflag [#allocation8], %s6777
          %s6779 = sand.u32 %s171, 1
          %s6780 = smul.addr %s6779, 32
          %s6781 = scalar_lea.vmem [#allocation7], %s6780
          %6782 = dma.done %s6778, 512
        $region74: #{decoder_resf_forward.7} parent=65 // pred_fallthru
          _
      $region66: #{decoder_resf_forward.7} parent=5 // pred_fallthru
        _
    $region6: #{decoder_resf_forward.7} parent=1 // loop_footer
      %s25 = sadd.s32 1, %s21
    $region7: #{decoder_resf_forward.7} parent=1 // loop_footer_branch
      %20 = sbr.rel target = $region3
    $region8: #{decoder_resf_forward.7} parent=1 // loop_exit
      _
    %6783 = vsyncpa [#allocation6], 1
    %s6784 = scalar_lea.sflag [#allocation6], 1
    %6785 = vsyncpa %s6784, 1
    %6786 = vsyncpa [#allocation8], 1
    %s6787 = scalar_lea.sflag [#allocation8], 1
    %6788 = vsyncpa %s6787, 1

</llo_original>
